<compile_context>
chip_gen: v6e
topology: v6e:2x2x1
jax: 0.10.0
libtpu: 0.0.40
codegen_flags: <defaults>
</compile_context>

<pallas_src>
import jax
import jax.numpy as jnp
from jax.experimental import pallas as pl
from jax.experimental.pallas import tpu as pltpu


def _round_up(x, m):
    return (x + m - 1) // m * m


_VMEM_LIMIT = 32 * 1024 * 1024   # explicit; comfortable even on v7x (64 MiB phys)
_LANES = 128
_SUB_MULT = 16                   # row multiple (safe for bf16 (16,128) tiling)


# ----------------------------- Pallas kernels -------------------------------

def _conv_relu_pool_kernel(p_ref, w_ref, b_ref, o_ref):
    # p_ref: (4, TILE_M, Kp) bf16 -- im2col patches for the 4 positions of each
    #        2x2 pooling window (rows index pooled output pixels, K lane-padded
    #        with zeros for conv2/conv3).
    # w_ref: (Kp, Cout) bf16 (VMEM-resident, zero-padded rows), b_ref: (1, Cout) f32.
    # o_ref: (TILE_M, Cout) bf16 -- pooled + ReLU'd activation.
    w = w_ref[...]
    # Four independent MXU pushes (no accumulator chain) -> tree max on the VPU.
    d0 = jnp.dot(p_ref[0], w, preferred_element_type=jnp.float32)
    d1 = jnp.dot(p_ref[1], w, preferred_element_type=jnp.float32)
    d2 = jnp.dot(p_ref[2], w, preferred_element_type=jnp.float32)
    d3 = jnp.dot(p_ref[3], w, preferred_element_type=jnp.float32)
    pooled = jnp.maximum(jnp.maximum(d0, d1), jnp.maximum(d2, d3))
    # Bias is identical for all 4 window positions -> add after the max; ReLU
    # commutes with max.  Elementwise math stays f32; store bf16.
    o_ref[...] = jnp.maximum(pooled + b_ref[...], 0.0).astype(o_ref.dtype)


def _mlp_head_kernel(x_ref, w1_ref, b1_ref, w2_ref, b2_ref, o_ref):
    # fc1 + ReLU + fc2 + row softmax, fused.  Matmul inputs bf16, math f32.
    h = jnp.dot(x_ref[...], w1_ref[...], preferred_element_type=jnp.float32)
    h = jnp.maximum(h + b1_ref[...], 0.0)
    logits = jnp.dot(h.astype(jnp.bfloat16), w2_ref[...],
                     preferred_element_type=jnp.float32) + b2_ref[...]
    m = jnp.max(logits, axis=1, keepdims=True)
    e = jnp.exp(logits - m)
    o_ref[...] = e / jnp.sum(e, axis=1, keepdims=True)


# ------------------------------ tiling helpers -------------------------------

def _pick_tile(M, bytes_per_row, *, target=512, budget=8 * 1024 * 1024,
               mult=_SUB_MULT, min_grid=2):
    """Rows per grid step along the pooled-pixel / batch axis.

    Balanced: tm = round_up(cdiv(M, nt), mult) with nt >= min_grid (so v7x's two
    TensorCores both get work) and nt >= cdiv(M, target); additionally capped so
    the double-buffered pipelined blocks (`bytes_per_row` per row, computed with
    the lane-PADDED K) stay within `budget`."""
    cap = max(mult, (budget // max(bytes_per_row, 1)) // mult * mult)
    tgt = max(mult, min(target, cap))
    if M <= mult:
        return _round_up(M, mult)
    nt = max(min_grid, pl.cdiv(M, tgt))
    return _round_up(pl.cdiv(M, nt), mult)


# ------------------------------ layer wrappers -------------------------------

def _im2col_pooled(x_nhwc, kh, kw):
    """Gather im2col patches grouped by 2x2 pool-window position (XLA glue).

    Returns patches of shape (4, M, K) bf16 with M = N*Hp*Wp, K = kh*kw*Cin,
    where axis 0 enumerates the (row, col) offsets {0,1}x{0,1} inside each
    pooling window.  Patch element order along K is (di, dj, cin), matching
    w.reshape(kh*kw*Cin, Cout)."""
    x = x_nhwc.astype(jnp.bfloat16)
    N, H, W, Cin = x.shape
    Ho, Wo = H - kh + 1, W - kw + 1
    Hp, Wp = Ho // 2, Wo // 2  # floor, like F.max_pool2d
    quads = []
    for a in range(2):
        for b in range(2):
            pieces = []
            for di in range(kh):
                for dj in range(kw):
                    r0, c0 = a + di, b + dj
                    pieces.append(
                        x[:, r0:r0 + 2 * Hp - 1:2, c0:c0 + 2 * Wp - 1:2, :])
            q = jnp.stack(pieces, axis=3)               # (N, Hp, Wp, kh*kw, Cin)
            quads.append(q.reshape(N * Hp * Wp, kh * kw * Cin))
    return jnp.stack(quads, axis=0), (N, Hp, Wp)


def conv_relu_pool(x_nhwc, w, b):
    """Valid 5x5 conv + bias + ReLU + 2x2/2 max-pool, fused in one kernel.

    x_nhwc: (N, H, W, Cin); w: (kh, kw, Cin, Cout); b: (Cout,)
    returns (N, Hp, Wp, Cout) in bf16."""
    kh, kw, Cin, Cout = w.shape
    patches, (N, Hp, Wp) = _im2col_pooled(x_nhwc, kh, kw)      # (4, M, K) bf16
    M = N * Hp * Wp
    K = kh * kw * Cin

    # Lane-pad K only when the relative HBM inflation is small (conv2: 800->896,
    # conv3: 1600 already aligned).  conv1's K=25 stays compact (5x otherwise).
    Kp = _round_up(K, _LANES) if K >= _LANES else K

    bytes_per_row = 2 * (4 * Kp * 2) + 2 * (Cout * 2)   # dbl-buffered patches + bf16 out
    tm = _pick_tile(M, bytes_per_row)
    nt = pl.cdiv(M, tm)
    M_pad = nt * tm

    patches = jnp.pad(patches, ((0, 0), (0, M_pad - M), (0, Kp - K)))
    w_mat = jnp.pad(w.reshape(K, Cout), ((0, Kp - K), (0, 0))).astype(jnp.bfloat16)
    b_row = b.reshape(1, Cout).astype(jnp.float32)

    out = pl.pallas_call(
        _conv_relu_pool_kernel,
        out_shape=jax.ShapeDtypeStruct((M_pad, Cout), jnp.bfloat16),
        grid=(nt,),
        in_specs=[
            pl.BlockSpec((4, tm, Kp), lambda i: (0, i, 0)),   # patches: tiled over M
            pl.BlockSpec((Kp, Cout), lambda i: (0, 0)),       # weights: resident
            pl.BlockSpec((1, Cout), lambda i: (0, 0)),        # bias: resident
        ],
        out_specs=pl.BlockSpec((tm, Cout), lambda i: (i, 0)),
        compiler_params=pltpu.CompilerParams(
            dimension_semantics=("parallel",),
            vmem_limit_bytes=_VMEM_LIMIT,
        ),
    )(patches, w_mat, b_row)
    return out[:M].reshape(N, Hp, Wp, Cout)


def mlp_head(x_flat, fc1_w, fc1_b, fc2_w, fc2_b):
    """fc1 + ReLU + fc2 + softmax, gridded over batch tiles; weights resident."""
    N, D = x_flat.shape
    H1 = fc1_w.shape[1]
    O = fc2_w.shape[1]

    bytes_per_row = 2 * (D * 2) + 2 * (O * 4)
    tn = _pick_tile(N, bytes_per_row, target=256)
    N_pad = _round_up(N, tn)
    x_p = jnp.pad(x_flat.astype(jnp.bfloat16), ((0, N_pad - N), (0, 0)))

    out = pl.pallas_call(
        _mlp_head_kernel,
        out_shape=jax.ShapeDtypeStruct((N_pad, O), jnp.float32),
        grid=(N_pad // tn,),
        in_specs=[
            pl.BlockSpec((tn, D), lambda i: (i, 0)),     # activations: tiled
            pl.BlockSpec((D, H1), lambda i: (0, 0)),     # fc1 weight: resident
            pl.BlockSpec((1, H1), lambda i: (0, 0)),
            pl.BlockSpec((H1, O), lambda i: (0, 0)),     # fc2 weight: resident
            pl.BlockSpec((1, O), lambda i: (0, 0)),
        ],
        out_specs=pl.BlockSpec((tn, O), lambda i: (i, 0)),
        compiler_params=pltpu.CompilerParams(
            dimension_semantics=("parallel",),
            vmem_limit_bytes=_VMEM_LIMIT,
        ),
    )(x_p,
      fc1_w.astype(jnp.bfloat16), fc1_b.reshape(1, H1).astype(jnp.float32),
      fc2_w.astype(jnp.bfloat16), fc2_b.reshape(1, O).astype(jnp.float32))
    return out[:N]


# --------------------------------- the Net -----------------------------------

def init_params(key):
    ks = jax.random.split(key, 10)

    def w_init(k, shape, fan_in):
        return jax.random.normal(k, shape, jnp.float32) / jnp.sqrt(fan_in)

    return {
        # conv weights stored as (kh, kw, Cin, Cout); if loading real PyTorch
        # weights, permute from (Cout, Cin, kh, kw).
        "c1_w": w_init(ks[0], (5, 5, 1, 32), 5 * 5 * 1),
        "c1_b": jnp.zeros((32,), jnp.float32),
        "c2_w": w_init(ks[1], (5, 5, 32, 64), 5 * 5 * 32),
        "c2_b": jnp.zeros((64,), jnp.float32),
        "c3_w": w_init(ks[2], (5, 5, 64, 128), 5 * 5 * 64),
        "c3_b": jnp.zeros((128,), jnp.float32),
        # fc weights stored as (in, out); flatten order matches PyTorch (C,H,W)
        "fc1_w": w_init(ks[3], (512, 512), 512),
        "fc1_b": jnp.zeros((512,), jnp.float32),
        "fc2_w": w_init(ks[4], (512, 2), 512),
        "fc2_b": jnp.zeros((2,), jnp.float32),
    }


@jax.jit
def net_forward(x_nchw, params):
    # NCHW -> NHWC (channels on the 128-lane axis inside the kernels)
    x = jnp.transpose(x_nchw, (0, 2, 3, 1))                           # (N,50,50,1)

    # The reference preprocessing `x = x / 255.0` is folded into the conv1
    # weights (the conv is linear; bias is applied after), saving a full
    # elementwise pass over the input.
    c1_w_eff = params["c1_w"] * (1.0 / 255.0)

    x = conv_relu_pool(x, c1_w_eff, params["c1_b"])                   # (N,23,23, 32)
    x = conv_relu_pool(x, params["c2_w"], params["c2_b"])             # (N, 9, 9, 64)
    x = conv_relu_pool(x, params["c3_w"], params["c3_b"])             # (N, 2, 2,128)

    # Flatten in PyTorch NCHW order: (N, C, H, W) -> (N, 512)
    N = x.shape[0]
    x_flat = jnp.transpose(x, (0, 3, 1, 2)).reshape(N, 128 * 2 * 2)

    return mlp_head(x_flat, params["fc1_w"], params["fc1_b"],
                    params["fc2_w"], params["fc2_b"])                 # (N, 2)


if __name__ == "__main__":
    key = jax.random.PRNGKey(0)
    pkey, xkey = jax.random.split(key)
    params = init_params(pkey)

    # Deterministic example input: batch=2, 1 channel, 50x50 (the size Net requires).
    x = jax.random.uniform(xkey, (2, 1, 50, 50), jnp.float32, 0.0, 255.0)

    out = net_forward(x, params)
    out = jax.block_until_ready(out)

    assert out.shape == (2, 2)
    # softmax rows should sum to ~1 and be finite
    assert bool(jnp.all(jnp.isfinite(out)))
    assert bool(jnp.all(jnp.abs(jnp.sum(out, axis=1) - 1.0) < 1e-5))
    print("KERNEL_OK")
</pallas_src>

<mosaic_0001>
module attributes {stable_mosaic.version = 11 : i64} {
  func.func @_conv_relu_pool_kernel(%arg0: i32, %arg1: memref<4x368x25xbf16, #tpu.memory_space<vmem>>, %arg2: memref<25x32xbf16, #tpu.memory_space<vmem>>, %arg3: memref<1x32xf32, #tpu.memory_space<vmem>>, %arg4: memref<368x32xbf16, #tpu.memory_space<vmem>>) attributes {dimension_semantics = [#tpu.dimension_semantics<parallel>], iteration_bounds = array<i64: 3>, scalar_prefetch = 0 : i64, scratch_operands = 0 : i64, tpu.core_type = #tpu.core_type<tc>, window_params = [{transform_indices = @transform_0, window_bounds = array<i64: 4, 368, 25>}, {pipeline_mode = #tpu.pipeline_mode<synchronous>, transform_indices = @transform_1, window_bounds = array<i64: 25, 32>}, {pipeline_mode = #tpu.pipeline_mode<synchronous>, transform_indices = @transform_2, window_bounds = array<i64: 1, 32>}, {transform_indices = @transform_3, window_bounds = array<i64: 368, 32>}]} {
    %c0 = arith.constant 0 : index
    %c0_0 = arith.constant 0 : index
    %0 = vector.load %arg2[%c0, %c0_0] : memref<25x32xbf16, #tpu.memory_space<vmem>>, vector<25x32xbf16>
    %c0_1 = arith.constant 0 : index
    %c0_2 = arith.constant 0 : index
    %c0_3 = arith.constant 0 : index
    %1 = vector.load %arg1[%c0_1, %c0_2, %c0_3] : memref<4x368x25xbf16, #tpu.memory_space<vmem>>, vector<1x368x25xbf16>
    %2 = vector.shape_cast %1 : vector<1x368x25xbf16> to vector<368x25xbf16>
    %cst = arith.constant dense<0.000000e+00> : vector<368x32xf32>
    %3 = tpu.matmul %2, %0, %cst {dimension_numbers = #tpu.dot_dimension_numbers<[1], [0], [0], [1], [0, 0, 1, 1], [], []>} : vector<368x25xbf16>, vector<25x32xbf16>, vector<368x32xf32> -> vector<368x32xf32>
    %c1 = arith.constant 1 : index
    %c0_4 = arith.constant 0 : index
    %c0_5 = arith.constant 0 : index
    %4 = vector.load %arg1[%c1, %c0_4, %c0_5] : memref<4x368x25xbf16, #tpu.memory_space<vmem>>, vector<1x368x25xbf16>
    %5 = vector.shape_cast %4 : vector<1x368x25xbf16> to vector<368x25xbf16>
    %cst_6 = arith.constant dense<0.000000e+00> : vector<368x32xf32>
    %6 = tpu.matmul %5, %0, %cst_6 {dimension_numbers = #tpu.dot_dimension_numbers<[1], [0], [0], [1], [0, 0, 1, 1], [], []>} : vector<368x25xbf16>, vector<25x32xbf16>, vector<368x32xf32> -> vector<368x32xf32>
    %c2 = arith.constant 2 : index
    %c0_7 = arith.constant 0 : index
    %c0_8 = arith.constant 0 : index
    %7 = vector.load %arg1[%c2, %c0_7, %c0_8] : memref<4x368x25xbf16, #tpu.memory_space<vmem>>, vector<1x368x25xbf16>
    %8 = vector.shape_cast %7 : vector<1x368x25xbf16> to vector<368x25xbf16>
    %cst_9 = arith.constant dense<0.000000e+00> : vector<368x32xf32>
    %9 = tpu.matmul %8, %0, %cst_9 {dimension_numbers = #tpu.dot_dimension_numbers<[1], [0], [0], [1], [0, 0, 1, 1], [], []>} : vector<368x25xbf16>, vector<25x32xbf16>, vector<368x32xf32> -> vector<368x32xf32>
    %c3 = arith.constant 3 : index
    %c0_10 = arith.constant 0 : index
    %c0_11 = arith.constant 0 : index
    %10 = vector.load %arg1[%c3, %c0_10, %c0_11] : memref<4x368x25xbf16, #tpu.memory_space<vmem>>, vector<1x368x25xbf16>
    %11 = vector.shape_cast %10 : vector<1x368x25xbf16> to vector<368x25xbf16>
    %cst_12 = arith.constant dense<0.000000e+00> : vector<368x32xf32>
    %12 = tpu.matmul %11, %0, %cst_12 {dimension_numbers = #tpu.dot_dimension_numbers<[1], [0], [0], [1], [0, 0, 1, 1], [], []>} : vector<368x25xbf16>, vector<25x32xbf16>, vector<368x32xf32> -> vector<368x32xf32>
    %13 = arith.maximumf %3, %6 : vector<368x32xf32>
    %14 = arith.maximumf %9, %12 : vector<368x32xf32>
    %15 = arith.maximumf %13, %14 : vector<368x32xf32>
    %c0_13 = arith.constant 0 : index
    %c0_14 = arith.constant 0 : index
    %16 = vector.load %arg3[%c0_13, %c0_14] : memref<1x32xf32, #tpu.memory_space<vmem>>, vector<1x32xf32>
    %17 = vector.broadcast %16 : vector<1x32xf32> to vector<368x32xf32>
    %18 = arith.addf %15, %17 : vector<368x32xf32>
    %cst_15 = arith.constant 0.000000e+00 : f32
    %19 = vector.broadcast %cst_15 : f32 to vector<368x32xf32>
    %20 = arith.maximumf %18, %19 : vector<368x32xf32>
    %21 = arith.truncf %20 : vector<368x32xf32> to vector<368x32xbf16>
    %c0_16 = arith.constant 0 : index
    %c0_17 = arith.constant 0 : index
    %22 = vector.load %arg4[%c0_16, %c0_17] : memref<368x32xbf16, #tpu.memory_space<vmem>>, vector<368x32xbf16>
    tpu.vector_store %arg4[%c0_16, %c0_17], %21 {strides = array<i32>} : memref<368x32xbf16, #tpu.memory_space<vmem>>, vector<368x32xbf16>,
    return
  }
  func.func @transform_0(%arg0: i32) -> (i32, i32, i32) {
    %c0_i32 = arith.constant 0 : i32
    %c0_i32_0 = arith.constant 0 : i32
    %c0_i32_1 = arith.constant 0 : i32
    return %c0_i32, %arg0, %c0_i32_0 : i32, i32, i32
  }
  func.func @transform_1(%arg0: i32) -> (i32, i32) {
    %c0_i32 = arith.constant 0 : i32
    %c0_i32_0 = arith.constant 0 : i32
    %c0_i32_1 = arith.constant 0 : i32
    return %c0_i32, %c0_i32_0 : i32, i32
  }
  func.func @transform_2(%arg0: i32) -> (i32, i32) {
    %c0_i32 = arith.constant 0 : i32
    %c0_i32_0 = arith.constant 0 : i32
    %c0_i32_1 = arith.constant 0 : i32
    return %c0_i32, %c0_i32_0 : i32, i32
  }
  func.func @transform_3(%arg0: i32) -> (i32, i32) {
    %c0_i32 = arith.constant 0 : i32
    %c0_i32_0 = arith.constant 0 : i32
    return %arg0, %c0_i32 : i32, i32
  }
}

module attributes {stable_mosaic.version = 11 : i64} {
  func.func @_conv_relu_pool_kernel(%arg0: i32, %arg1: memref<4x96x896xbf16, #tpu.memory_space<vmem>>, %arg2: memref<896x64xbf16, #tpu.memory_space<vmem>>, %arg3: memref<1x64xf32, #tpu.memory_space<vmem>>, %arg4: memref<96x64xbf16, #tpu.memory_space<vmem>>) attributes {dimension_semantics = [#tpu.dimension_semantics<parallel>], iteration_bounds = array<i64: 2>, scalar_prefetch = 0 : i64, scratch_operands = 0 : i64, tpu.core_type = #tpu.core_type<tc>, window_params = [{transform_indices = @transform_0, window_bounds = array<i64: 4, 96, 896>}, {pipeline_mode = #tpu.pipeline_mode<synchronous>, transform_indices = @transform_1, window_bounds = array<i64: 896, 64>}, {pipeline_mode = #tpu.pipeline_mode<synchronous>, transform_indices = @transform_2, window_bounds = array<i64: 1, 64>}, {transform_indices = @transform_3, window_bounds = array<i64: 96, 64>}]} {
    %c0 = arith.constant 0 : index
    %c0_0 = arith.constant 0 : index
    %0 = vector.load %arg2[%c0, %c0_0] : memref<896x64xbf16, #tpu.memory_space<vmem>>, vector<896x64xbf16>
    %c0_1 = arith.constant 0 : index
    %c0_2 = arith.constant 0 : index
    %c0_3 = arith.constant 0 : index
    %1 = vector.load %arg1[%c0_1, %c0_2, %c0_3] : memref<4x96x896xbf16, #tpu.memory_space<vmem>>, vector<1x96x896xbf16>
    %2 = vector.shape_cast %1 : vector<1x96x896xbf16> to vector<96x896xbf16>
    %cst = arith.constant dense<0.000000e+00> : vector<96x64xf32>
    %3 = tpu.matmul %2, %0, %cst {dimension_numbers = #tpu.dot_dimension_numbers<[1], [0], [0], [1], [0, 0, 1, 1], [], []>} : vector<96x896xbf16>, vector<896x64xbf16>, vector<96x64xf32> -> vector<96x64xf32>
    %c1 = arith.constant 1 : index
    %c0_4 = arith.constant 0 : index
    %c0_5 = arith.constant 0 : index
    %4 = vector.load %arg1[%c1, %c0_4, %c0_5] : memref<4x96x896xbf16, #tpu.memory_space<vmem>>, vector<1x96x896xbf16>
    %5 = vector.shape_cast %4 : vector<1x96x896xbf16> to vector<96x896xbf16>
    %cst_6 = arith.constant dense<0.000000e+00> : vector<96x64xf32>
    %6 = tpu.matmul %5, %0, %cst_6 {dimension_numbers = #tpu.dot_dimension_numbers<[1], [0], [0], [1], [0, 0, 1, 1], [], []>} : vector<96x896xbf16>, vector<896x64xbf16>, vector<96x64xf32> -> vector<96x64xf32>
    %c2 = arith.constant 2 : index
    %c0_7 = arith.constant 0 : index
    %c0_8 = arith.constant 0 : index
    %7 = vector.load %arg1[%c2, %c0_7, %c0_8] : memref<4x96x896xbf16, #tpu.memory_space<vmem>>, vector<1x96x896xbf16>
    %8 = vector.shape_cast %7 : vector<1x96x896xbf16> to vector<96x896xbf16>
    %cst_9 = arith.constant dense<0.000000e+00> : vector<96x64xf32>
    %9 = tpu.matmul %8, %0, %cst_9 {dimension_numbers = #tpu.dot_dimension_numbers<[1], [0], [0], [1], [0, 0, 1, 1], [], []>} : vector<96x896xbf16>, vector<896x64xbf16>, vector<96x64xf32> -> vector<96x64xf32>
    %c3 = arith.constant 3 : index
    %c0_10 = arith.constant 0 : index
    %c0_11 = arith.constant 0 : index
    %10 = vector.load %arg1[%c3, %c0_10, %c0_11] : memref<4x96x896xbf16, #tpu.memory_space<vmem>>, vector<1x96x896xbf16>
    %11 = vector.shape_cast %10 : vector<1x96x896xbf16> to vector<96x896xbf16>
    %cst_12 = arith.constant dense<0.000000e+00> : vector<96x64xf32>
    %12 = tpu.matmul %11, %0, %cst_12 {dimension_numbers = #tpu.dot_dimension_numbers<[1], [0], [0], [1], [0, 0, 1, 1], [], []>} : vector<96x896xbf16>, vector<896x64xbf16>, vector<96x64xf32> -> vector<96x64xf32>
    %13 = arith.maximumf %3, %6 : vector<96x64xf32>
    %14 = arith.maximumf %9, %12 : vector<96x64xf32>
    %15 = arith.maximumf %13, %14 : vector<96x64xf32>
    %c0_13 = arith.constant 0 : index
    %c0_14 = arith.constant 0 : index
    %16 = vector.load %arg3[%c0_13, %c0_14] : memref<1x64xf32, #tpu.memory_space<vmem>>, vector<1x64xf32>
    %17 = vector.broadcast %16 : vector<1x64xf32> to vector<96x64xf32>
    %18 = arith.addf %15, %17 : vector<96x64xf32>
    %cst_15 = arith.constant 0.000000e+00 : f32
    %19 = vector.broadcast %cst_15 : f32 to vector<96x64xf32>
    %20 = arith.maximumf %18, %19 : vector<96x64xf32>
    %21 = arith.truncf %20 : vector<96x64xf32> to vector<96x64xbf16>
    %c0_16 = arith.constant 0 : index
    %c0_17 = arith.constant 0 : index
    %22 = vector.load %arg4[%c0_16, %c0_17] : memref<96x64xbf16, #tpu.memory_space<vmem>>, vector<96x64xbf16>
    tpu.vector_store %arg4[%c0_16, %c0_17], %21 {strides = array<i32>} : memref<96x64xbf16, #tpu.memory_space<vmem>>, vector<96x64xbf16>,
    return
  }
  func.func @transform_0(%arg0: i32) -> (i32, i32, i32) {
    %c0_i32 = arith.constant 0 : i32
    %c0_i32_0 = arith.constant 0 : i32
    %c0_i32_1 = arith.constant 0 : i32
    return %c0_i32, %arg0, %c0_i32_0 : i32, i32, i32
  }
  func.func @transform_1(%arg0: i32) -> (i32, i32) {
    %c0_i32 = arith.constant 0 : i32
    %c0_i32_0 = arith.constant 0 : i32
    %c0_i32_1 = arith.constant 0 : i32
    return %c0_i32, %c0_i32_0 : i32, i32
  }
  func.func @transform_2(%arg0: i32) -> (i32, i32) {
    %c0_i32 = arith.constant 0 : i32
    %c0_i32_0 = arith.constant 0 : i32
    %c0_i32_1 = arith.constant 0 : i32
    return %c0_i32, %c0_i32_0 : i32, i32
  }
  func.func @transform_3(%arg0: i32) -> (i32, i32) {
    %c0_i32 = arith.constant 0 : i32
    %c0_i32_0 = arith.constant 0 : i32
    return %arg0, %c0_i32 : i32, i32
  }
}

module attributes {stable_mosaic.version = 11 : i64} {
  func.func @_conv_relu_pool_kernel(%arg0: i32, %arg1: memref<4x16x1664xbf16, #tpu.memory_space<vmem>>, %arg2: memref<1664x128xbf16, #tpu.memory_space<vmem>>, %arg3: memref<1x128xf32, #tpu.memory_space<vmem>>, %arg4: memref<16x128xbf16, #tpu.memory_space<vmem>>) attributes {dimension_semantics = [#tpu.dimension_semantics<parallel>], iteration_bounds = array<i64: 1>, scalar_prefetch = 0 : i64, scratch_operands = 0 : i64, tpu.core_type = #tpu.core_type<tc>, window_params = [{transform_indices = @transform_0, window_bounds = array<i64: 4, 16, 1664>}, {pipeline_mode = #tpu.pipeline_mode<synchronous>, transform_indices = @transform_1, window_bounds = array<i64: 1664, 128>}, {pipeline_mode = #tpu.pipeline_mode<synchronous>, transform_indices = @transform_2, window_bounds = array<i64: 1, 128>}, {transform_indices = @transform_3, window_bounds = array<i64: 16, 128>}]} {
    %c0 = arith.constant 0 : index
    %c0_0 = arith.constant 0 : index
    %0 = vector.load %arg2[%c0, %c0_0] : memref<1664x128xbf16, #tpu.memory_space<vmem>>, vector<1664x128xbf16>
    %c0_1 = arith.constant 0 : index
    %c0_2 = arith.constant 0 : index
    %c0_3 = arith.constant 0 : index
    %1 = vector.load %arg1[%c0_1, %c0_2, %c0_3] : memref<4x16x1664xbf16, #tpu.memory_space<vmem>>, vector<1x16x1664xbf16>
    %2 = vector.shape_cast %1 : vector<1x16x1664xbf16> to vector<16x1664xbf16>
    %cst = arith.constant dense<0.000000e+00> : vector<16x128xf32>
    %3 = tpu.matmul %2, %0, %cst {dimension_numbers = #tpu.dot_dimension_numbers<[1], [0], [0], [1], [0, 0, 1, 1], [], []>} : vector<16x1664xbf16>, vector<1664x128xbf16>, vector<16x128xf32> -> vector<16x128xf32>
    %c1 = arith.constant 1 : index
    %c0_4 = arith.constant 0 : index
    %c0_5 = arith.constant 0 : index
    %4 = vector.load %arg1[%c1, %c0_4, %c0_5] : memref<4x16x1664xbf16, #tpu.memory_space<vmem>>, vector<1x16x1664xbf16>
    %5 = vector.shape_cast %4 : vector<1x16x1664xbf16> to vector<16x1664xbf16>
    %cst_6 = arith.constant dense<0.000000e+00> : vector<16x128xf32>
    %6 = tpu.matmul %5, %0, %cst_6 {dimension_numbers = #tpu.dot_dimension_numbers<[1], [0], [0], [1], [0, 0, 1, 1], [], []>} : vector<16x1664xbf16>, vector<1664x128xbf16>, vector<16x128xf32> -> vector<16x128xf32>
    %c2 = arith.constant 2 : index
    %c0_7 = arith.constant 0 : index
    %c0_8 = arith.constant 0 : index
    %7 = vector.load %arg1[%c2, %c0_7, %c0_8] : memref<4x16x1664xbf16, #tpu.memory_space<vmem>>, vector<1x16x1664xbf16>
    %8 = vector.shape_cast %7 : vector<1x16x1664xbf16> to vector<16x1664xbf16>
    %cst_9 = arith.constant dense<0.000000e+00> : vector<16x128xf32>
    %9 = tpu.matmul %8, %0, %cst_9 {dimension_numbers = #tpu.dot_dimension_numbers<[1], [0], [0], [1], [0, 0, 1, 1], [], []>} : vector<16x1664xbf16>, vector<1664x128xbf16>, vector<16x128xf32> -> vector<16x128xf32>
    %c3 = arith.constant 3 : index
    %c0_10 = arith.constant 0 : index
    %c0_11 = arith.constant 0 : index
    %10 = vector.load %arg1[%c3, %c0_10, %c0_11] : memref<4x16x1664xbf16, #tpu.memory_space<vmem>>, vector<1x16x1664xbf16>
    %11 = vector.shape_cast %10 : vector<1x16x1664xbf16> to vector<16x1664xbf16>
    %cst_12 = arith.constant dense<0.000000e+00> : vector<16x128xf32>
    %12 = tpu.matmul %11, %0, %cst_12 {dimension_numbers = #tpu.dot_dimension_numbers<[1], [0], [0], [1], [0, 0, 1, 1], [], []>} : vector<16x1664xbf16>, vector<1664x128xbf16>, vector<16x128xf32> -> vector<16x128xf32>
    %13 = arith.maximumf %3, %6 : vector<16x128xf32>
    %14 = arith.maximumf %9, %12 : vector<16x128xf32>
    %15 = arith.maximumf %13, %14 : vector<16x128xf32>
    %c0_13 = arith.constant 0 : index
    %c0_14 = arith.constant 0 : index
    %16 = vector.load %arg3[%c0_13, %c0_14] : memref<1x128xf32, #tpu.memory_space<vmem>>, vector<1x128xf32>
    %17 = vector.broadcast %16 : vector<1x128xf32> to vector<16x128xf32>
    %18 = arith.addf %15, %17 : vector<16x128xf32>
    %cst_15 = arith.constant 0.000000e+00 : f32
    %19 = vector.broadcast %cst_15 : f32 to vector<16x128xf32>
    %20 = arith.maximumf %18, %19 : vector<16x128xf32>
    %21 = arith.truncf %20 : vector<16x128xf32> to vector<16x128xbf16>
    %c0_16 = arith.constant 0 : index
    %c0_17 = arith.constant 0 : index
    %22 = vector.load %arg4[%c0_16, %c0_17] : memref<16x128xbf16, #tpu.memory_space<vmem>>, vector<16x128xbf16>
    tpu.vector_store %arg4[%c0_16, %c0_17], %21 {strides = array<i32>} : memref<16x128xbf16, #tpu.memory_space<vmem>>, vector<16x128xbf16>,
    return
  }
  func.func @transform_0(%arg0: i32) -> (i32, i32, i32) {
    %c0_i32 = arith.constant 0 : i32
    %c0_i32_0 = arith.constant 0 : i32
    %c0_i32_1 = arith.constant 0 : i32
    return %c0_i32, %arg0, %c0_i32_0 : i32, i32, i32
  }
  func.func @transform_1(%arg0: i32) -> (i32, i32) {
    %c0_i32 = arith.constant 0 : i32
    %c0_i32_0 = arith.constant 0 : i32
    %c0_i32_1 = arith.constant 0 : i32
    return %c0_i32, %c0_i32_0 : i32, i32
  }
  func.func @transform_2(%arg0: i32) -> (i32, i32) {
    %c0_i32 = arith.constant 0 : i32
    %c0_i32_0 = arith.constant 0 : i32
    %c0_i32_1 = arith.constant 0 : i32
    return %c0_i32, %c0_i32_0 : i32, i32
  }
  func.func @transform_3(%arg0: i32) -> (i32, i32) {
    %c0_i32 = arith.constant 0 : i32
    %c0_i32_0 = arith.constant 0 : i32
    return %arg0, %c0_i32 : i32, i32
  }
}

module attributes {stable_mosaic.version = 11 : i64} {
  func.func @_mlp_head_kernel(%arg0: i32, %arg1: memref<16x512xbf16, #tpu.memory_space<vmem>>, %arg2: memref<512x512xbf16, #tpu.memory_space<vmem>>, %arg3: memref<1x512xf32, #tpu.memory_space<vmem>>, %arg4: memref<512x2xbf16, #tpu.memory_space<vmem>>, %arg5: memref<1x2xf32, #tpu.memory_space<vmem>>, %arg6: memref<16x2xf32, #tpu.memory_space<vmem>>) attributes {dimension_semantics = [#tpu.dimension_semantics<parallel>], iteration_bounds = array<i64: 1>, scalar_prefetch = 0 : i64, scratch_operands = 0 : i64, tpu.core_type = #tpu.core_type<tc>, window_params = [{transform_indices = @transform_0, window_bounds = array<i64: 16, 512>}, {pipeline_mode = #tpu.pipeline_mode<synchronous>, transform_indices = @transform_1, window_bounds = array<i64: 512, 512>}, {pipeline_mode = #tpu.pipeline_mode<synchronous>, transform_indices = @transform_2, window_bounds = array<i64: 1, 512>}, {pipeline_mode = #tpu.pipeline_mode<synchronous>, transform_indices = @transform_3, window_bounds = array<i64: 512, 2>}, {pipeline_mode = #tpu.pipeline_mode<synchronous>, transform_indices = @transform_4, window_bounds = array<i64: 1, 2>}, {transform_indices = @transform_5, window_bounds = array<i64: 16, 2>}]} {
    %c0 = arith.constant 0 : index
    %c0_0 = arith.constant 0 : index
    %0 = vector.load %arg1[%c0, %c0_0] : memref<16x512xbf16, #tpu.memory_space<vmem>>, vector<16x512xbf16>
    %c0_1 = arith.constant 0 : index
    %c0_2 = arith.constant 0 : index
    %1 = vector.load %arg2[%c0_1, %c0_2] : memref<512x512xbf16, #tpu.memory_space<vmem>>, vector<512x512xbf16>
    %cst = arith.constant dense<0.000000e+00> : vector<16x512xf32>
    %2 = tpu.matmul %0, %1, %cst {dimension_numbers = #tpu.dot_dimension_numbers<[1], [0], [0], [1], [0, 0, 1, 1], [], []>} : vector<16x512xbf16>, vector<512x512xbf16>, vector<16x512xf32> -> vector<16x512xf32>
    %c0_3 = arith.constant 0 : index
    %c0_4 = arith.constant 0 : index
    %3 = vector.load %arg3[%c0_3, %c0_4] : memref<1x512xf32, #tpu.memory_space<vmem>>, vector<1x512xf32>
    %4 = vector.broadcast %3 : vector<1x512xf32> to vector<16x512xf32>
    %5 = arith.addf %2, %4 : vector<16x512xf32>
    %cst_5 = arith.constant 0.000000e+00 : f32
    %6 = vector.broadcast %cst_5 : f32 to vector<16x512xf32>
    %7 = arith.maximumf %5, %6 : vector<16x512xf32>
    %8 = arith.truncf %7 : vector<16x512xf32> to vector<16x512xbf16>
    %c0_6 = arith.constant 0 : index
    %c0_7 = arith.constant 0 : index
    %9 = vector.load %arg4[%c0_6, %c0_7] : memref<512x2xbf16, #tpu.memory_space<vmem>>, vector<512x2xbf16>
    %cst_8 = arith.constant dense<0.000000e+00> : vector<16x2xf32>
    %10 = tpu.matmul %8, %9, %cst_8 {dimension_numbers = #tpu.dot_dimension_numbers<[1], [0], [0], [1], [0, 0, 1, 1], [], []>} : vector<16x512xbf16>, vector<512x2xbf16>, vector<16x2xf32> -> vector<16x2xf32>
    %c0_9 = arith.constant 0 : index
    %c0_10 = arith.constant 0 : index
    %11 = vector.load %arg5[%c0_9, %c0_10] : memref<1x2xf32, #tpu.memory_space<vmem>>, vector<1x2xf32>
    %12 = vector.broadcast %11 : vector<1x2xf32> to vector<16x2xf32>
    %13 = arith.addf %10, %12 : vector<16x2xf32>
    %cst_11 = arith.constant dense<0xFF800000> : vector<16xf32>
    %14 = vector.multi_reduction <maximumf>, %13, %cst_11 [1] : vector<16x2xf32> to vector<16xf32>
    %15 = vector.shape_cast %14 : vector<16xf32> to vector<16x1xf32>
    %16 = vector.broadcast %15 : vector<16x1xf32> to vector<16x2xf32>
    %17 = arith.subf %13, %16 : vector<16x2xf32>
    %18 = math.exp %17 : vector<16x2xf32>
    %cst_12 = arith.constant dense<0.000000e+00> : vector<16xf32>
    %19 = vector.multi_reduction <add>, %18, %cst_12 [1] : vector<16x2xf32> to vector<16xf32>
    %20 = vector.shape_cast %19 : vector<16xf32> to vector<16x1xf32>
    %21 = vector.broadcast %20 : vector<16x1xf32> to vector<16x2xf32>
    %22 = arith.divf %18, %21 : vector<16x2xf32>
    %c0_13 = arith.constant 0 : index
    %c0_14 = arith.constant 0 : index
    %23 = vector.load %arg6[%c0_13, %c0_14] : memref<16x2xf32, #tpu.memory_space<vmem>>, vector<16x2xf32>
    tpu.vector_store %arg6[%c0_13, %c0_14], %22 {strides = array<i32>} : memref<16x2xf32, #tpu.memory_space<vmem>>, vector<16x2xf32>,
    return
  }
  func.func @transform_0(%arg0: i32) -> (i32, i32) {
    %c0_i32 = arith.constant 0 : i32
    %c0_i32_0 = arith.constant 0 : i32
    return %arg0, %c0_i32 : i32, i32
  }
  func.func @transform_1(%arg0: i32) -> (i32, i32) {
    %c0_i32 = arith.constant 0 : i32
    %c0_i32_0 = arith.constant 0 : i32
    %c0_i32_1 = arith.constant 0 : i32
    return %c0_i32, %c0_i32_0 : i32, i32
  }
  func.func @transform_2(%arg0: i32) -> (i32, i32) {
    %c0_i32 = arith.constant 0 : i32
    %c0_i32_0 = arith.constant 0 : i32
    %c0_i32_1 = arith.constant 0 : i32
    return %c0_i32, %c0_i32_0 : i32, i32
  }
  func.func @transform_3(%arg0: i32) -> (i32, i32) {
    %c0_i32 = arith.constant 0 : i32
    %c0_i32_0 = arith.constant 0 : i32
    %c0_i32_1 = arith.constant 0 : i32
    return %c0_i32, %c0_i32_0 : i32, i32
  }
  func.func @transform_4(%arg0: i32) -> (i32, i32) {
    %c0_i32 = arith.constant 0 : i32
    %c0_i32_0 = arith.constant 0 : i32
    %c0_i32_1 = arith.constant 0 : i32
    return %c0_i32, %c0_i32_0 : i32, i32
  }
  func.func @transform_5(%arg0: i32) -> (i32, i32) {
    %c0_i32 = arith.constant 0 : i32
    %c0_i32_0 = arith.constant 0 : i32
    return %arg0, %c0_i32 : i32, i32
  }
}

</mosaic_0001>

<llo_original>
// kernel: net_forward.4
$region0: #{net_forward.4}
  #allocation0 [shape = 'u32[]', space=smem, size = 0x4, offset = 0x4, fixed_abs, tag = 'smem constant byte address 0x4 - core index']
  #allocation1 [shape = 'u32[144,128]{1,0:T(1,128)}', space=vmem, size = 0x12000, scoped, tag = 'internal scratch']
  %s0 = inlined_call_operand.vmem [shape: bf16[4,1104,25], index: 0, kind: input, shape index: {}]
  %s1 = inlined_call_operand.vmem [shape: bf16[25,32], index: 1, kind: input, shape index: {}]
  %s2 = inlined_call_operand.vmem [shape: f32[1,32], index: 2, kind: input, shape index: {}]
  %s3 = inlined_call_operand.vmem [shape: bf16[1104,32], index: 3, kind: output, shape index: {}]
  %s4 = sld [smem:[#allocation0]]
  $region86: #{net_forward.4} parent=0
    _
  %s6 = ssub.s32 1, %s4
  %s7 = scalar_select 0, %s6, %s4
  $region1: #{net_forward.4} parent=0
    #allocation2 [shape = 'u8[753664]{0}', space=vmem, size = 0xb8000, scoped, tag = 'input window, operand 0']
    loop: start=0, step=1, limit=5
    $region2: #{net_forward.4} parent=1 // loop_pre_header
      _
    $region3: #{net_forward.4} parent=1 // loop_header
      %s9 = sphi 0, %s13
      %p10 = scmp.ge.s32.totalorder %s9, 5
      %s19 = sphi 0, %s21
      %s22 = sphi 0, %s19
      %s23 = sphi 0, %s22
      %s39 = sphi 0, %s23
      %s43 = sphi 0, %s43
      %s45 = sphi 0, %s43
      %s46 = sphi 0, %s45
      %s60 = sphi 0, %s46
      %s64 = sphi 0, %s64
      %s66 = sphi 0, %s64
      %s67 = sphi 0, %s66
      %s81 = sphi 0, %s67
      %s87 = sphi 0, %s89
      %s90 = sphi 0, %s87
      %s91 = sphi 0, %s90
      %s107 = sphi 0, %s91
    $region4: #{net_forward.4} parent=1 // loop_header_branch
      %12 = sbr.rel (%p10) target = $region8
    $region5: #{net_forward.4} parent=1 // loop_body
      %s14 = ssub.s32 %s9, 1
      %s15 = ssub.s32 %s9, 2
      %s16 = sadd.s32 %s9, 1
      %s17 = ssub.s32 %s9, %s16
      %p18 = scmp.eq.s32.totalorder %s17, 0
      %s20 = sadd.s32 %s19, 1
      %s21 = scalar_select %p18, %s19, %s20
      %p24 = pneg %p18
      %p25 = scmp.eq.s32.totalorder %s9, 2
      %p26 = por %p24, %p25
      %p27 = scmp.ne.s32.totalorder %s19, %s22
      %p28 = scmp.eq.s32.totalorder %s9, 0
      %p29 = por %p27, %p28
      %p30 = scmp.ne.s32.totalorder %s19, %s22
      %p31 = scmp.eq.s32.totalorder %s14, 2
      %p32 = por %p30, %p31
      %p33 = scmp.ne.s32.totalorder %s22, %s23
      %p34 = scmp.eq.s32.totalorder %s14, 0
      %p35 = por %p33, %p34
      %p36 = scmp.ne.s32.totalorder %s22, %s23
      %p37 = scmp.eq.s32.totalorder %s15, 2
      %p38 = por %p36, %p37
      %p40 = scmp.ne.s32.totalorder %s23, %s39
      %p41 = scmp.eq.s32.totalorder %s15, 0
      %p42 = por %p40, %p41
      %s44 = sadd.s32 %s43, 1
      %p47 = scmp.eq.s32.totalorder %s9, 2
      %p48 = scmp.ne.s32.totalorder %s43, %s45
      %p49 = scmp.eq.s32.totalorder %s9, 0
      %p50 = por %p48, %p49
      %p51 = scmp.ne.s32.totalorder %s43, %s45
      %p52 = scmp.eq.s32.totalorder %s14, 2
      %p53 = por %p51, %p52
      %p54 = scmp.ne.s32.totalorder %s45, %s46
      %p55 = scmp.eq.s32.totalorder %s14, 0
      %p56 = por %p54, %p55
      %p57 = scmp.ne.s32.totalorder %s45, %s46
      %p58 = scmp.eq.s32.totalorder %s15, 2
      %p59 = por %p57, %p58
      %p61 = scmp.ne.s32.totalorder %s46, %s60
      %p62 = scmp.eq.s32.totalorder %s15, 0
      %p63 = por %p61, %p62
      %s65 = sadd.s32 %s64, 1
      %p68 = scmp.eq.s32.totalorder %s9, 2
      %p69 = scmp.ne.s32.totalorder %s64, %s66
      %p70 = scmp.eq.s32.totalorder %s9, 0
      %p71 = por %p69, %p70
      %p72 = scmp.ne.s32.totalorder %s64, %s66
      %p73 = scmp.eq.s32.totalorder %s14, 2
      %p74 = por %p72, %p73
      %p75 = scmp.ne.s32.totalorder %s66, %s67
      %p76 = scmp.eq.s32.totalorder %s14, 0
      %p77 = por %p75, %p76
      %p78 = scmp.ne.s32.totalorder %s66, %s67
      %p79 = scmp.eq.s32.totalorder %s15, 2
      %p80 = por %p78, %p79
      %p82 = scmp.ne.s32.totalorder %s67, %s81
      %p83 = scmp.eq.s32.totalorder %s15, 0
      %p84 = por %p82, %p83
      %s85 = ssub.s32 %s9, %s16
      %p86 = scmp.eq.s32.totalorder %s85, 0
      %s88 = sadd.s32 %s87, 1
      %s89 = scalar_select %p86, %s87, %s88
      %p92 = pneg %p86
      %p93 = scmp.eq.s32.totalorder %s9, 2
      %p94 = por %p92, %p93
      %p95 = scmp.ne.s32.totalorder %s87, %s90
      %p96 = scmp.eq.s32.totalorder %s9, 0
      %p97 = por %p95, %p96
      %p98 = scmp.ne.s32.totalorder %s87, %s90
      %p99 = scmp.eq.s32.totalorder %s14, 2
      %p100 = por %p98, %p99
      %p101 = scmp.ne.s32.totalorder %s90, %s91
      %p102 = scmp.eq.s32.totalorder %s14, 0
      %p103 = por %p101, %p102
      %p104 = scmp.ne.s32.totalorder %s90, %s91
      %p105 = scmp.eq.s32.totalorder %s15, 2
      %p106 = por %p104, %p105
      %p108 = scmp.ne.s32.totalorder %s91, %s107
      %p109 = scmp.eq.s32.totalorder %s15, 0
      %p110 = por %p108, %p109
      %p111 = scmp.le.s32.totalorder 1, %s9
      %p112 = scmp.lt.s32.totalorder %s9, 4
      %p113 = pnand %p111, %p112
      %p114 = pneg %p113
      // Predicated region
      $region9: #{net_forward.4} parent=5 // pred_check
        _
      $region10: #{net_forward.4} parent=5 // pred_check_branch
        %116 = sbr.rel (%p113) target = $region12
      $region11: #{net_forward.4} parent=5 // pred_region
        %s117 = ssub.s32 %s9, 1
        // Predicated region
        $region13: #{net_forward.4} parent=11 // pred_check
          %p118 = pneg %p56
        $region14: #{net_forward.4} parent=11 // pred_check_branch
          %120 = sbr.rel (%p118) target = $region16
        $region15: #{net_forward.4} parent=11 // pred_region
          _
        $region16: #{net_forward.4} parent=11 // pred_fallthru
          _
        // Predicated region
        $region17: #{net_forward.4} parent=11 // pred_check
          %p121 = pneg %p77
        $region18: #{net_forward.4} parent=11 // pred_check_branch
          %123 = sbr.rel (%p121) target = $region20
        $region19: #{net_forward.4} parent=11 // pred_region
          _
        $region20: #{net_forward.4} parent=11 // pred_fallthru
          _
      $region12: #{net_forward.4} parent=5 // pred_fallthru
        _
      %p124 = scmp.lt.s32.totalorder %s9, 3
      // Predicated region
      $region21: #{net_forward.4} parent=5 // pred_check
        %p125 = pneg %p124
      $region22: #{net_forward.4} parent=5 // pred_check_branch
        %127 = sbr.rel (%p125) target = $region24
      $region23: #{net_forward.4} parent=5 // pred_region
        // Predicated region
        $region25: #{net_forward.4} parent=23 // pred_check
          %p128 = pneg %p29
        $region26: #{net_forward.4} parent=23 // pred_check_branch
          %130 = sbr.rel (%p128) target = $region28
        $region27: #{net_forward.4} parent=23 // pred_region
          %s131 = sand.u32 %s19, 1
          %s132 = sand.u32 %s19, 1
          %s133 = smul.addr %s132, 736
          %s134 = scalar_lea.vmem [#allocation2], %s133
          %s135 = smul.u32 46, %s9
          %s136 = smul.addr %s135, 4
          %s137 = scalar_lea.vmem %s0, %s136
          // Predicated region
          $region29: #{net_forward.4} parent=27 // pred_check
            _
          $region30: #{net_forward.4} parent=27 // pred_check_branch
            %139 = sbr.rel (0) target = $region32
          $region31: #{net_forward.4} parent=27 // pred_region
            // Predicated region
            $region33: #{net_forward.4} parent=31 // pred_check
              _
            $region34: #{net_forward.4} parent=31 // pred_check_branch
              %141 = sbr.rel target = $region36
            $region35: #{net_forward.4} parent=31 // pred_region
              // Predicated region
              $region48: #{net_forward.4} parent=35 // pred_check
                _
              $region49: #{net_forward.4} parent=35 // pred_check_branch
                %523 = sbr.rel (0) target = $region51
              $region50: #{net_forward.4} parent=35 // pred_region
                loop: start=0, step=1, limit=1
                $region52: #{net_forward.4} parent=50 // loop_pre_header
                  _
                $region53: #{net_forward.4} parent=50 // loop_header
                  %s525 = sphi 0, %s529
                  %p526 = scmp.ge.s32.totalorder %s525, 1
                  %s530 = sphi %s137, %s137
                  %s531 = sphi %s134, %s134
                $region54: #{net_forward.4} parent=50 // loop_header_branch
                  %528 = sbr.rel (%p526) target = $region58
                $region55: #{net_forward.4} parent=50 // loop_body
                  _
                $region56: #{net_forward.4} parent=50 // loop_footer
                  %s529 = sadd.s32 1, %s525
                $region57: #{net_forward.4} parent=50 // loop_footer_branch
                  %524 = sbr.rel target = $region53
                $region58: #{net_forward.4} parent=50 // loop_exit
                  _
                %s533 = ssub.s32 16, 1
                loop: start=0, step=1, limit=1
                $region59: #{net_forward.4} parent=50 // loop_pre_header
                  _
                $region60: #{net_forward.4} parent=50 // loop_header
                  %s535 = sphi 0, %s539
                  %p536 = scmp.ge.s32.totalorder %s535, 1
                  %s540 = sphi %s137, %s137
                  %s541 = sphi %s134, %s134
                $region61: #{net_forward.4} parent=50 // loop_header_branch
                  %538 = sbr.rel (%p536) target = $region65
                $region62: #{net_forward.4} parent=50 // loop_body
                  %v542 = vld [vmem:[%s540] sm:%s533]
                  %543 = vst [vmem:[%s541] sm:%s533] %v542
                  %v544 = vld [vmem:[%s540 + $0x4] sm:%s533]
                  %545 = vst [vmem:[%s541 + $0x4] sm:%s533] %v544
                  %v546 = vld [vmem:[%s540 + $0x8] sm:%s533]
                  %547 = vst [vmem:[%s541 + $0x8] sm:%s533] %v546
                  %v548 = vld [vmem:[%s540 + $0xc] sm:%s533]
                  %549 = vst [vmem:[%s541 + $0xc] sm:%s533] %v548
                  %v550 = vld [vmem:[%s540 + $0x10] sm:%s533]
                  %551 = vst [vmem:[%s541 + $0x10] sm:%s533] %v550
                  %v552 = vld [vmem:[%s540 + $0x14] sm:%s533]
                  %553 = vst [vmem:[%s541 + $0x14] sm:%s533] %v552
                  %v554 = vld [vmem:[%s540 + $0x18] sm:%s533]
                  %555 = vst [vmem:[%s541 + $0x18] sm:%s533] %v554
                  %v556 = vld [vmem:[%s540 + $0x1c] sm:%s533]
                  %557 = vst [vmem:[%s541 + $0x1c] sm:%s533] %v556
                  %v558 = vld [vmem:[%s540 + $0x20] sm:%s533]
                  %559 = vst [vmem:[%s541 + $0x20] sm:%s533] %v558
                  %v560 = vld [vmem:[%s540 + $0x24] sm:%s533]
                  %561 = vst [vmem:[%s541 + $0x24] sm:%s533] %v560
                  %v562 = vld [vmem:[%s540 + $0x28] sm:%s533]
                  %563 = vst [vmem:[%s541 + $0x28] sm:%s533] %v562
                  %v564 = vld [vmem:[%s540 + $0x2c] sm:%s533]
                  %565 = vst [vmem:[%s541 + $0x2c] sm:%s533] %v564
                  %v566 = vld [vmem:[%s540 + $0x30] sm:%s533]
                  %567 = vst [vmem:[%s541 + $0x30] sm:%s533] %v566
                  %v568 = vld [vmem:[%s540 + $0x34] sm:%s533]
                  %569 = vst [vmem:[%s541 + $0x34] sm:%s533] %v568
                  %v570 = vld [vmem:[%s540 + $0x38] sm:%s533]
                  %571 = vst [vmem:[%s541 + $0x38] sm:%s533] %v570
                  %v572 = vld [vmem:[%s540 + $0x3c] sm:%s533]
                  %573 = vst [vmem:[%s541 + $0x3c] sm:%s533] %v572
                  %v574 = vld [vmem:[%s540 + $0x40] sm:%s533]
                  %575 = vst [vmem:[%s541 + $0x40] sm:%s533] %v574
                  %v576 = vld [vmem:[%s540 + $0x44] sm:%s533]
                  %577 = vst [vmem:[%s541 + $0x44] sm:%s533] %v576
                  %v578 = vld [vmem:[%s540 + $0x48] sm:%s533]
                  %579 = vst [vmem:[%s541 + $0x48] sm:%s533] %v578
                  %v580 = vld [vmem:[%s540 + $0x4c] sm:%s533]
                  %581 = vst [vmem:[%s541 + $0x4c] sm:%s533] %v580
                  %v582 = vld [vmem:[%s540 + $0x50] sm:%s533]
                  %583 = vst [vmem:[%s541 + $0x50] sm:%s533] %v582
                  %v584 = vld [vmem:[%s540 + $0x54] sm:%s533]
                  %585 = vst [vmem:[%s541 + $0x54] sm:%s533] %v584
                  %v586 = vld [vmem:[%s540 + $0x58] sm:%s533]
                  %587 = vst [vmem:[%s541 + $0x58] sm:%s533] %v586
                  %v588 = vld [vmem:[%s540 + $0x5c] sm:%s533]
                  %589 = vst [vmem:[%s541 + $0x5c] sm:%s533] %v588
                  %v590 = vld [vmem:[%s540 + $0x60] sm:%s533]
                  %591 = vst [vmem:[%s541 + $0x60] sm:%s533] %v590
                  %v592 = vld [vmem:[%s540 + $0x64] sm:%s533]
                  %593 = vst [vmem:[%s541 + $0x64] sm:%s533] %v592
                  %v594 = vld [vmem:[%s540 + $0x68] sm:%s533]
                  %595 = vst [vmem:[%s541 + $0x68] sm:%s533] %v594
                  %v596 = vld [vmem:[%s540 + $0x6c] sm:%s533]
                  %597 = vst [vmem:[%s541 + $0x6c] sm:%s533] %v596
                  %v598 = vld [vmem:[%s540 + $0x70] sm:%s533]
                  %599 = vst [vmem:[%s541 + $0x70] sm:%s533] %v598
                  %v600 = vld [vmem:[%s540 + $0x74] sm:%s533]
                  %601 = vst [vmem:[%s541 + $0x74] sm:%s533] %v600
                  %v602 = vld [vmem:[%s540 + $0x78] sm:%s533]
                  %603 = vst [vmem:[%s541 + $0x78] sm:%s533] %v602
                  %v604 = vld [vmem:[%s540 + $0x7c] sm:%s533]
                  %605 = vst [vmem:[%s541 + $0x7c] sm:%s533] %v604
                  %v606 = vld [vmem:[%s540 + $0x80] sm:%s533]
                  %607 = vst [vmem:[%s541 + $0x80] sm:%s533] %v606
                  %v608 = vld [vmem:[%s540 + $0x84] sm:%s533]
                  %609 = vst [vmem:[%s541 + $0x84] sm:%s533] %v608
                  %v610 = vld [vmem:[%s540 + $0x88] sm:%s533]
                  %611 = vst [vmem:[%s541 + $0x88] sm:%s533] %v610
                  %v612 = vld [vmem:[%s540 + $0x8c] sm:%s533]
                  %613 = vst [vmem:[%s541 + $0x8c] sm:%s533] %v612
                  %v614 = vld [vmem:[%s540 + $0x90] sm:%s533]
                  %615 = vst [vmem:[%s541 + $0x90] sm:%s533] %v614
                  %v616 = vld [vmem:[%s540 + $0x94] sm:%s533]
                  %617 = vst [vmem:[%s541 + $0x94] sm:%s533] %v616
                  %v618 = vld [vmem:[%s540 + $0x98] sm:%s533]
                  %619 = vst [vmem:[%s541 + $0x98] sm:%s533] %v618
                  %v620 = vld [vmem:[%s540 + $0x9c] sm:%s533]
                  %621 = vst [vmem:[%s541 + $0x9c] sm:%s533] %v620
                  %v622 = vld [vmem:[%s540 + $0xa0] sm:%s533]
                  %623 = vst [vmem:[%s541 + $0xa0] sm:%s533] %v622
                  %v624 = vld [vmem:[%s540 + $0xa4] sm:%s533]
                  %625 = vst [vmem:[%s541 + $0xa4] sm:%s533] %v624
                  %v626 = vld [vmem:[%s540 + $0xa8] sm:%s533]
                  %627 = vst [vmem:[%s541 + $0xa8] sm:%s533] %v626
                  %v628 = vld [vmem:[%s540 + $0xac] sm:%s533]
                  %629 = vst [vmem:[%s541 + $0xac] sm:%s533] %v628
                  %v630 = vld [vmem:[%s540 + $0xb0] sm:%s533]
                  %631 = vst [vmem:[%s541 + $0xb0] sm:%s533] %v630
                  %v632 = vld [vmem:[%s540 + $0xb4] sm:%s533]
                  %633 = vst [vmem:[%s541 + $0xb4] sm:%s533] %v632
                  %v634 = vld [vmem:[%s540 + $0x228] sm:%s533]
                  %635 = vst [vmem:[%s541 + $0xb8] sm:%s533] %v634
                  %v636 = vld [vmem:[%s540 + $0x22c] sm:%s533]
                  %637 = vst [vmem:[%s541 + $0xbc] sm:%s533] %v636
                  %v638 = vld [vmem:[%s540 + $0x230] sm:%s533]
                  %639 = vst [vmem:[%s541 + $0xc0] sm:%s533] %v638
                  %v640 = vld [vmem:[%s540 + $0x234] sm:%s533]
                  %641 = vst [vmem:[%s541 + $0xc4] sm:%s533] %v640
                  %v642 = vld [vmem:[%s540 + $0x238] sm:%s533]
                  %643 = vst [vmem:[%s541 + $0xc8] sm:%s533] %v642
                  %v644 = vld [vmem:[%s540 + $0x23c] sm:%s533]
                  %645 = vst [vmem:[%s541 + $0xcc] sm:%s533] %v644
                  %v646 = vld [vmem:[%s540 + $0x240] sm:%s533]
                  %647 = vst [vmem:[%s541 + $0xd0] sm:%s533] %v646
                  %v648 = vld [vmem:[%s540 + $0x244] sm:%s533]
                  %649 = vst [vmem:[%s541 + $0xd4] sm:%s533] %v648
                  %v650 = vld [vmem:[%s540 + $0x248] sm:%s533]
                  %651 = vst [vmem:[%s541 + $0xd8] sm:%s533] %v650
                  %v652 = vld [vmem:[%s540 + $0x24c] sm:%s533]
                  %653 = vst [vmem:[%s541 + $0xdc] sm:%s533] %v652
                  %v654 = vld [vmem:[%s540 + $0x250] sm:%s533]
                  %655 = vst [vmem:[%s541 + $0xe0] sm:%s533] %v654
                  %v656 = vld [vmem:[%s540 + $0x254] sm:%s533]
                  %657 = vst [vmem:[%s541 + $0xe4] sm:%s533] %v656
                  %v658 = vld [vmem:[%s540 + $0x258] sm:%s533]
                  %659 = vst [vmem:[%s541 + $0xe8] sm:%s533] %v658
                  %v660 = vld [vmem:[%s540 + $0x25c] sm:%s533]
                  %661 = vst [vmem:[%s541 + $0xec] sm:%s533] %v660
                  %v662 = vld [vmem:[%s540 + $0x260] sm:%s533]
                  %663 = vst [vmem:[%s541 + $0xf0] sm:%s533] %v662
                  %v664 = vld [vmem:[%s540 + $0x264] sm:%s533]
                  %665 = vst [vmem:[%s541 + $0xf4] sm:%s533] %v664
                  %v666 = vld [vmem:[%s540 + $0x268] sm:%s533]
                  %667 = vst [vmem:[%s541 + $0xf8] sm:%s533] %v666
                  %v668 = vld [vmem:[%s540 + $0x26c] sm:%s533]
                  %669 = vst [vmem:[%s541 + $0xfc] sm:%s533] %v668
                  %v670 = vld [vmem:[%s540 + $0x270] sm:%s533]
                  %671 = vst [vmem:[%s541 + $0x100] sm:%s533] %v670
                  %v672 = vld [vmem:[%s540 + $0x274] sm:%s533]
                  %673 = vst [vmem:[%s541 + $0x104] sm:%s533] %v672
                  %v674 = vld [vmem:[%s540 + $0x278] sm:%s533]
                  %675 = vst [vmem:[%s541 + $0x108] sm:%s533] %v674
                  %v676 = vld [vmem:[%s540 + $0x27c] sm:%s533]
                  %677 = vst [vmem:[%s541 + $0x10c] sm:%s533] %v676
                  %v678 = vld [vmem:[%s540 + $0x280] sm:%s533]
                  %679 = vst [vmem:[%s541 + $0x110] sm:%s533] %v678
                  %v680 = vld [vmem:[%s540 + $0x284] sm:%s533]
                  %681 = vst [vmem:[%s541 + $0x114] sm:%s533] %v680
                  %v682 = vld [vmem:[%s540 + $0x288] sm:%s533]
                  %683 = vst [vmem:[%s541 + $0x118] sm:%s533] %v682
                  %v684 = vld [vmem:[%s540 + $0x28c] sm:%s533]
                  %685 = vst [vmem:[%s541 + $0x11c] sm:%s533] %v684
                  %v686 = vld [vmem:[%s540 + $0x290] sm:%s533]
                  %687 = vst [vmem:[%s541 + $0x120] sm:%s533] %v686
                  %v688 = vld [vmem:[%s540 + $0x294] sm:%s533]
                  %689 = vst [vmem:[%s541 + $0x124] sm:%s533] %v688
                  %v690 = vld [vmem:[%s540 + $0x298] sm:%s533]
                  %691 = vst [vmem:[%s541 + $0x128] sm:%s533] %v690
                  %v692 = vld [vmem:[%s540 + $0x29c] sm:%s533]
                  %693 = vst [vmem:[%s541 + $0x12c] sm:%s533] %v692
                  %v694 = vld [vmem:[%s540 + $0x2a0] sm:%s533]
                  %695 = vst [vmem:[%s541 + $0x130] sm:%s533] %v694
                  %v696 = vld [vmem:[%s540 + $0x2a4] sm:%s533]
                  %697 = vst [vmem:[%s541 + $0x134] sm:%s533] %v696
                  %v698 = vld [vmem:[%s540 + $0x2a8] sm:%s533]
                  %699 = vst [vmem:[%s541 + $0x138] sm:%s533] %v698
                  %v700 = vld [vmem:[%s540 + $0x2ac] sm:%s533]
                  %701 = vst [vmem:[%s541 + $0x13c] sm:%s533] %v700
                  %v702 = vld [vmem:[%s540 + $0x2b0] sm:%s533]
                  %703 = vst [vmem:[%s541 + $0x140] sm:%s533] %v702
                  %v704 = vld [vmem:[%s540 + $0x2b4] sm:%s533]
                  %705 = vst [vmem:[%s541 + $0x144] sm:%s533] %v704
                  %v706 = vld [vmem:[%s540 + $0x2b8] sm:%s533]
                  %707 = vst [vmem:[%s541 + $0x148] sm:%s533] %v706
                  %v708 = vld [vmem:[%s540 + $0x2bc] sm:%s533]
                  %709 = vst [vmem:[%s541 + $0x14c] sm:%s533] %v708
                  %v710 = vld [vmem:[%s540 + $0x2c0] sm:%s533]
                  %711 = vst [vmem:[%s541 + $0x150] sm:%s533] %v710
                  %v712 = vld [vmem:[%s540 + $0x2c4] sm:%s533]
                  %713 = vst [vmem:[%s541 + $0x154] sm:%s533] %v712
                  %v714 = vld [vmem:[%s540 + $0x2c8] sm:%s533]
                  %715 = vst [vmem:[%s541 + $0x158] sm:%s533] %v714
                  %v716 = vld [vmem:[%s540 + $0x2cc] sm:%s533]
                  %717 = vst [vmem:[%s541 + $0x15c] sm:%s533] %v716
                  %v718 = vld [vmem:[%s540 + $0x2d0] sm:%s533]
                  %719 = vst [vmem:[%s541 + $0x160] sm:%s533] %v718
                  %v720 = vld [vmem:[%s540 + $0x2d4] sm:%s533]
                  %721 = vst [vmem:[%s541 + $0x164] sm:%s533] %v720
                  %v722 = vld [vmem:[%s540 + $0x2d8] sm:%s533]
                  %723 = vst [vmem:[%s541 + $0x168] sm:%s533] %v722
                  %v724 = vld [vmem:[%s540 + $0x2dc] sm:%s533]
                  %725 = vst [vmem:[%s541 + $0x16c] sm:%s533] %v724
                  %v726 = vld [vmem:[%s540 + $0x450] sm:%s533]
                  %727 = vst [vmem:[%s541 + $0x170] sm:%s533] %v726
                  %v728 = vld [vmem:[%s540 + $0x454] sm:%s533]
                  %729 = vst [vmem:[%s541 + $0x174] sm:%s533] %v728
                  %v730 = vld [vmem:[%s540 + $0x458] sm:%s533]
                  %731 = vst [vmem:[%s541 + $0x178] sm:%s533] %v730
                  %v732 = vld [vmem:[%s540 + $0x45c] sm:%s533]
                  %733 = vst [vmem:[%s541 + $0x17c] sm:%s533] %v732
                  %v734 = vld [vmem:[%s540 + $0x460] sm:%s533]
                  %735 = vst [vmem:[%s541 + $0x180] sm:%s533] %v734
                  %v736 = vld [vmem:[%s540 + $0x464] sm:%s533]
                  %737 = vst [vmem:[%s541 + $0x184] sm:%s533] %v736
                  %v738 = vld [vmem:[%s540 + $0x468] sm:%s533]
                  %739 = vst [vmem:[%s541 + $0x188] sm:%s533] %v738
                  %v740 = vld [vmem:[%s540 + $0x46c] sm:%s533]
                  %741 = vst [vmem:[%s541 + $0x18c] sm:%s533] %v740
                  %v742 = vld [vmem:[%s540 + $0x470] sm:%s533]
                  %743 = vst [vmem:[%s541 + $0x190] sm:%s533] %v742
                  %v744 = vld [vmem:[%s540 + $0x474] sm:%s533]
                  %745 = vst [vmem:[%s541 + $0x194] sm:%s533] %v744
                  %v746 = vld [vmem:[%s540 + $0x478] sm:%s533]
                  %747 = vst [vmem:[%s541 + $0x198] sm:%s533] %v746
                  %v748 = vld [vmem:[%s540 + $0x47c] sm:%s533]
                  %749 = vst [vmem:[%s541 + $0x19c] sm:%s533] %v748
                  %v750 = vld [vmem:[%s540 + $0x480] sm:%s533]
                  %751 = vst [vmem:[%s541 + $0x1a0] sm:%s533] %v750
                  %v752 = vld [vmem:[%s540 + $0x484] sm:%s533]
                  %753 = vst [vmem:[%s541 + $0x1a4] sm:%s533] %v752
                  %v754 = vld [vmem:[%s540 + $0x488] sm:%s533]
                  %755 = vst [vmem:[%s541 + $0x1a8] sm:%s533] %v754
                  %v756 = vld [vmem:[%s540 + $0x48c] sm:%s533]
                  %757 = vst [vmem:[%s541 + $0x1ac] sm:%s533] %v756
                  %v758 = vld [vmem:[%s540 + $0x490] sm:%s533]
                  %759 = vst [vmem:[%s541 + $0x1b0] sm:%s533] %v758
                  %v760 = vld [vmem:[%s540 + $0x494] sm:%s533]
                  %761 = vst [vmem:[%s541 + $0x1b4] sm:%s533] %v760
                  %v762 = vld [vmem:[%s540 + $0x498] sm:%s533]
                  %763 = vst [vmem:[%s541 + $0x1b8] sm:%s533] %v762
                  %v764 = vld [vmem:[%s540 + $0x49c] sm:%s533]
                  %765 = vst [vmem:[%s541 + $0x1bc] sm:%s533] %v764
                  %v766 = vld [vmem:[%s540 + $0x4a0] sm:%s533]
                  %767 = vst [vmem:[%s541 + $0x1c0] sm:%s533] %v766
                  %v768 = vld [vmem:[%s540 + $0x4a4] sm:%s533]
                  %769 = vst [vmem:[%s541 + $0x1c4] sm:%s533] %v768
                  %v770 = vld [vmem:[%s540 + $0x4a8] sm:%s533]
                  %771 = vst [vmem:[%s541 + $0x1c8] sm:%s533] %v770
                  %v772 = vld [vmem:[%s540 + $0x4ac] sm:%s533]
                  %773 = vst [vmem:[%s541 + $0x1cc] sm:%s533] %v772
                  %v774 = vld [vmem:[%s540 + $0x4b0] sm:%s533]
                  %775 = vst [vmem:[%s541 + $0x1d0] sm:%s533] %v774
                  %v776 = vld [vmem:[%s540 + $0x4b4] sm:%s533]
                  %777 = vst [vmem:[%s541 + $0x1d4] sm:%s533] %v776
                  %v778 = vld [vmem:[%s540 + $0x4b8] sm:%s533]
                  %779 = vst [vmem:[%s541 + $0x1d8] sm:%s533] %v778
                  %v780 = vld [vmem:[%s540 + $0x4bc] sm:%s533]
                  %781 = vst [vmem:[%s541 + $0x1dc] sm:%s533] %v780
                  %v782 = vld [vmem:[%s540 + $0x4c0] sm:%s533]
                  %783 = vst [vmem:[%s541 + $0x1e0] sm:%s533] %v782
                  %v784 = vld [vmem:[%s540 + $0x4c4] sm:%s533]
                  %785 = vst [vmem:[%s541 + $0x1e4] sm:%s533] %v784
                  %v786 = vld [vmem:[%s540 + $0x4c8] sm:%s533]
                  %787 = vst [vmem:[%s541 + $0x1e8] sm:%s533] %v786
                  %v788 = vld [vmem:[%s540 + $0x4cc] sm:%s533]
                  %789 = vst [vmem:[%s541 + $0x1ec] sm:%s533] %v788
                  %v790 = vld [vmem:[%s540 + $0x4d0] sm:%s533]
                  %791 = vst [vmem:[%s541 + $0x1f0] sm:%s533] %v790
                  %v792 = vld [vmem:[%s540 + $0x4d4] sm:%s533]
                  %793 = vst [vmem:[%s541 + $0x1f4] sm:%s533] %v792
                  %v794 = vld [vmem:[%s540 + $0x4d8] sm:%s533]
                  %795 = vst [vmem:[%s541 + $0x1f8] sm:%s533] %v794
                  %v796 = vld [vmem:[%s540 + $0x4dc] sm:%s533]
                  %797 = vst [vmem:[%s541 + $0x1fc] sm:%s533] %v796
                  %v798 = vld [vmem:[%s540 + $0x4e0] sm:%s533]
                  %799 = vst [vmem:[%s541 + $0x200] sm:%s533] %v798
                  %v800 = vld [vmem:[%s540 + $0x4e4] sm:%s533]
                  %801 = vst [vmem:[%s541 + $0x204] sm:%s533] %v800
                  %v802 = vld [vmem:[%s540 + $0x4e8] sm:%s533]
                  %803 = vst [vmem:[%s541 + $0x208] sm:%s533] %v802
                  %v804 = vld [vmem:[%s540 + $0x4ec] sm:%s533]
                  %805 = vst [vmem:[%s541 + $0x20c] sm:%s533] %v804
                  %v806 = vld [vmem:[%s540 + $0x4f0] sm:%s533]
                  %807 = vst [vmem:[%s541 + $0x210] sm:%s533] %v806
                  %v808 = vld [vmem:[%s540 + $0x4f4] sm:%s533]
                  %809 = vst [vmem:[%s541 + $0x214] sm:%s533] %v808
                  %v810 = vld [vmem:[%s540 + $0x4f8] sm:%s533]
                  %811 = vst [vmem:[%s541 + $0x218] sm:%s533] %v810
                  %v812 = vld [vmem:[%s540 + $0x4fc] sm:%s533]
                  %813 = vst [vmem:[%s541 + $0x21c] sm:%s533] %v812
                  %v814 = vld [vmem:[%s540 + $0x500] sm:%s533]
                  %815 = vst [vmem:[%s541 + $0x220] sm:%s533] %v814
                  %v816 = vld [vmem:[%s540 + $0x504] sm:%s533]
                  %817 = vst [vmem:[%s541 + $0x224] sm:%s533] %v816
                  %v818 = vld [vmem:[%s540 + $0x678] sm:%s533]
                  %819 = vst [vmem:[%s541 + $0x228] sm:%s533] %v818
                  %v820 = vld [vmem:[%s540 + $0x67c] sm:%s533]
                  %821 = vst [vmem:[%s541 + $0x22c] sm:%s533] %v820
                  %v822 = vld [vmem:[%s540 + $0x680] sm:%s533]
                  %823 = vst [vmem:[%s541 + $0x230] sm:%s533] %v822
                  %v824 = vld [vmem:[%s540 + $0x684] sm:%s533]
                  %825 = vst [vmem:[%s541 + $0x234] sm:%s533] %v824
                  %v826 = vld [vmem:[%s540 + $0x688] sm:%s533]
                  %827 = vst [vmem:[%s541 + $0x238] sm:%s533] %v826
                  %v828 = vld [vmem:[%s540 + $0x68c] sm:%s533]
                  %829 = vst [vmem:[%s541 + $0x23c] sm:%s533] %v828
                  %v830 = vld [vmem:[%s540 + $0x690] sm:%s533]
                  %831 = vst [vmem:[%s541 + $0x240] sm:%s533] %v830
                  %v832 = vld [vmem:[%s540 + $0x694] sm:%s533]
                  %833 = vst [vmem:[%s541 + $0x244] sm:%s533] %v832
                  %v834 = vld [vmem:[%s540 + $0x698] sm:%s533]
                  %835 = vst [vmem:[%s541 + $0x248] sm:%s533] %v834
                  %v836 = vld [vmem:[%s540 + $0x69c] sm:%s533]
                  %837 = vst [vmem:[%s541 + $0x24c] sm:%s533] %v836
                  %v838 = vld [vmem:[%s540 + $0x6a0] sm:%s533]
                  %839 = vst [vmem:[%s541 + $0x250] sm:%s533] %v838
                  %v840 = vld [vmem:[%s540 + $0x6a4] sm:%s533]
                  %841 = vst [vmem:[%s541 + $0x254] sm:%s533] %v840
                  %v842 = vld [vmem:[%s540 + $0x6a8] sm:%s533]
                  %843 = vst [vmem:[%s541 + $0x258] sm:%s533] %v842
                  %v844 = vld [vmem:[%s540 + $0x6ac] sm:%s533]
                  %845 = vst [vmem:[%s541 + $0x25c] sm:%s533] %v844
                  %v846 = vld [vmem:[%s540 + $0x6b0] sm:%s533]
                  %847 = vst [vmem:[%s541 + $0x260] sm:%s533] %v846
                  %v848 = vld [vmem:[%s540 + $0x6b4] sm:%s533]
                  %849 = vst [vmem:[%s541 + $0x264] sm:%s533] %v848
                  %v850 = vld [vmem:[%s540 + $0x6b8] sm:%s533]
                  %851 = vst [vmem:[%s541 + $0x268] sm:%s533] %v850
                  %v852 = vld [vmem:[%s540 + $0x6bc] sm:%s533]
                  %853 = vst [vmem:[%s541 + $0x26c] sm:%s533] %v852
                  %v854 = vld [vmem:[%s540 + $0x6c0] sm:%s533]
                  %855 = vst [vmem:[%s541 + $0x270] sm:%s533] %v854
                  %v856 = vld [vmem:[%s540 + $0x6c4] sm:%s533]
                  %857 = vst [vmem:[%s541 + $0x274] sm:%s533] %v856
                  %v858 = vld [vmem:[%s540 + $0x6c8] sm:%s533]
                  %859 = vst [vmem:[%s541 + $0x278] sm:%s533] %v858
                  %v860 = vld [vmem:[%s540 + $0x6cc] sm:%s533]
                  %861 = vst [vmem:[%s541 + $0x27c] sm:%s533] %v860
                  %v862 = vld [vmem:[%s540 + $0x6d0] sm:%s533]
                  %863 = vst [vmem:[%s541 + $0x280] sm:%s533] %v862
                  %v864 = vld [vmem:[%s540 + $0x6d4] sm:%s533]
                  %865 = vst [vmem:[%s541 + $0x284] sm:%s533] %v864
                  %v866 = vld [vmem:[%s540 + $0x6d8] sm:%s533]
                  %867 = vst [vmem:[%s541 + $0x288] sm:%s533] %v866
                  %v868 = vld [vmem:[%s540 + $0x6dc] sm:%s533]
                  %869 = vst [vmem:[%s541 + $0x28c] sm:%s533] %v868
                  %v870 = vld [vmem:[%s540 + $0x6e0] sm:%s533]
                  %871 = vst [vmem:[%s541 + $0x290] sm:%s533] %v870
                  %v872 = vld [vmem:[%s540 + $0x6e4] sm:%s533]
                  %873 = vst [vmem:[%s541 + $0x294] sm:%s533] %v872
                  %v874 = vld [vmem:[%s540 + $0x6e8] sm:%s533]
                  %875 = vst [vmem:[%s541 + $0x298] sm:%s533] %v874
                  %v876 = vld [vmem:[%s540 + $0x6ec] sm:%s533]
                  %877 = vst [vmem:[%s541 + $0x29c] sm:%s533] %v876
                  %v878 = vld [vmem:[%s540 + $0x6f0] sm:%s533]
                  %879 = vst [vmem:[%s541 + $0x2a0] sm:%s533] %v878
                  %v880 = vld [vmem:[%s540 + $0x6f4] sm:%s533]
                  %881 = vst [vmem:[%s541 + $0x2a4] sm:%s533] %v880
                  %v882 = vld [vmem:[%s540 + $0x6f8] sm:%s533]
                  %883 = vst [vmem:[%s541 + $0x2a8] sm:%s533] %v882
                  %v884 = vld [vmem:[%s540 + $0x6fc] sm:%s533]
                  %885 = vst [vmem:[%s541 + $0x2ac] sm:%s533] %v884
                  %v886 = vld [vmem:[%s540 + $0x700] sm:%s533]
                  %887 = vst [vmem:[%s541 + $0x2b0] sm:%s533] %v886
                  %v888 = vld [vmem:[%s540 + $0x704] sm:%s533]
                  %889 = vst [vmem:[%s541 + $0x2b4] sm:%s533] %v888
                  %v890 = vld [vmem:[%s540 + $0x708] sm:%s533]
                  %891 = vst [vmem:[%s541 + $0x2b8] sm:%s533] %v890
                  %v892 = vld [vmem:[%s540 + $0x70c] sm:%s533]
                  %893 = vst [vmem:[%s541 + $0x2bc] sm:%s533] %v892
                  %v894 = vld [vmem:[%s540 + $0x710] sm:%s533]
                  %895 = vst [vmem:[%s541 + $0x2c0] sm:%s533] %v894
                  %v896 = vld [vmem:[%s540 + $0x714] sm:%s533]
                  %897 = vst [vmem:[%s541 + $0x2c4] sm:%s533] %v896
                  %v898 = vld [vmem:[%s540 + $0x718] sm:%s533]
                  %899 = vst [vmem:[%s541 + $0x2c8] sm:%s533] %v898
                  %v900 = vld [vmem:[%s540 + $0x71c] sm:%s533]
                  %901 = vst [vmem:[%s541 + $0x2cc] sm:%s533] %v900
                  %v902 = vld [vmem:[%s540 + $0x720] sm:%s533]
                  %903 = vst [vmem:[%s541 + $0x2d0] sm:%s533] %v902
                  %v904 = vld [vmem:[%s540 + $0x724] sm:%s533]
                  %905 = vst [vmem:[%s541 + $0x2d4] sm:%s533] %v904
                  %v906 = vld [vmem:[%s540 + $0x728] sm:%s533]
                  %907 = vst [vmem:[%s541 + $0x2d8] sm:%s533] %v906
                  %v908 = vld [vmem:[%s540 + $0x72c] sm:%s533]
                  %909 = vst [vmem:[%s541 + $0x2dc] sm:%s533] %v908
                $region63: #{net_forward.4} parent=50 // loop_footer
                  %s539 = sadd.s32 1, %s535
                $region64: #{net_forward.4} parent=50 // loop_footer_branch
                  %534 = sbr.rel target = $region60
                $region65: #{net_forward.4} parent=50 // loop_exit
                  _
              $region51: #{net_forward.4} parent=35 // pred_fallthru
                _
            $region36: #{net_forward.4} parent=31 // pred_fallthru
              _
            // Predicated region
            $region37: #{net_forward.4} parent=31 // pred_check
              _
            $region38: #{net_forward.4} parent=31 // pred_check_branch
              %143 = sbr.rel (0) target = $region40
            $region39: #{net_forward.4} parent=31 // pred_region
              %s145 = ssub.s32 16, 1
              loop: start=0, step=1, limit=1
              $region41: #{net_forward.4} parent=39 // loop_pre_header
                _
              $region42: #{net_forward.4} parent=39 // loop_header
                %s147 = sphi 0, %s151
                %p148 = scmp.ge.s32.totalorder %s147, 1
                %s152 = sphi %s137, %s137
                %s153 = sphi %s134, %s134
              $region43: #{net_forward.4} parent=39 // loop_header_branch
                %150 = sbr.rel (%p148) target = $region47
              $region44: #{net_forward.4} parent=39 // loop_body
                %v154 = vld [vmem:[%s152] sm:%s145]
                %155 = vst [vmem:[%s153] sm:%s145] %v154
                %v156 = vld [vmem:[%s152 + $0x4] sm:%s145]
                %157 = vst [vmem:[%s153 + $0x4] sm:%s145] %v156
                %v158 = vld [vmem:[%s152 + $0x8] sm:%s145]
                %159 = vst [vmem:[%s153 + $0x8] sm:%s145] %v158
                %v160 = vld [vmem:[%s152 + $0xc] sm:%s145]
                %161 = vst [vmem:[%s153 + $0xc] sm:%s145] %v160
                %v162 = vld [vmem:[%s152 + $0x10] sm:%s145]
                %163 = vst [vmem:[%s153 + $0x10] sm:%s145] %v162
                %v164 = vld [vmem:[%s152 + $0x14] sm:%s145]
                %165 = vst [vmem:[%s153 + $0x14] sm:%s145] %v164
                %v166 = vld [vmem:[%s152 + $0x18] sm:%s145]
                %167 = vst [vmem:[%s153 + $0x18] sm:%s145] %v166
                %v168 = vld [vmem:[%s152 + $0x1c] sm:%s145]
                %169 = vst [vmem:[%s153 + $0x1c] sm:%s145] %v168
                %v170 = vld [vmem:[%s152 + $0x20] sm:%s145]
                %171 = vst [vmem:[%s153 + $0x20] sm:%s145] %v170
                %v172 = vld [vmem:[%s152 + $0x24] sm:%s145]
                %173 = vst [vmem:[%s153 + $0x24] sm:%s145] %v172
                %v174 = vld [vmem:[%s152 + $0x28] sm:%s145]
                %175 = vst [vmem:[%s153 + $0x28] sm:%s145] %v174
                %v176 = vld [vmem:[%s152 + $0x2c] sm:%s145]
                %177 = vst [vmem:[%s153 + $0x2c] sm:%s145] %v176
                %v178 = vld [vmem:[%s152 + $0x30] sm:%s145]
                %179 = vst [vmem:[%s153 + $0x30] sm:%s145] %v178
                %v180 = vld [vmem:[%s152 + $0x34] sm:%s145]
                %181 = vst [vmem:[%s153 + $0x34] sm:%s145] %v180
                %v182 = vld [vmem:[%s152 + $0x38] sm:%s145]
                %183 = vst [vmem:[%s153 + $0x38] sm:%s145] %v182
                %v184 = vld [vmem:[%s152 + $0x3c] sm:%s145]
                %185 = vst [vmem:[%s153 + $0x3c] sm:%s145] %v184
                %v186 = vld [vmem:[%s152 + $0x40] sm:%s145]
                %187 = vst [vmem:[%s153 + $0x40] sm:%s145] %v186
                %v188 = vld [vmem:[%s152 + $0x44] sm:%s145]
                %189 = vst [vmem:[%s153 + $0x44] sm:%s145] %v188
                %v190 = vld [vmem:[%s152 + $0x48] sm:%s145]
                %191 = vst [vmem:[%s153 + $0x48] sm:%s145] %v190
                %v192 = vld [vmem:[%s152 + $0x4c] sm:%s145]
                %193 = vst [vmem:[%s153 + $0x4c] sm:%s145] %v192
                %v194 = vld [vmem:[%s152 + $0x50] sm:%s145]
                %195 = vst [vmem:[%s153 + $0x50] sm:%s145] %v194
                %v196 = vld [vmem:[%s152 + $0x54] sm:%s145]
                %197 = vst [vmem:[%s153 + $0x54] sm:%s145] %v196
                %v198 = vld [vmem:[%s152 + $0x58] sm:%s145]
                %199 = vst [vmem:[%s153 + $0x58] sm:%s145] %v198
                %v200 = vld [vmem:[%s152 + $0x5c] sm:%s145]
                %201 = vst [vmem:[%s153 + $0x5c] sm:%s145] %v200
                %v202 = vld [vmem:[%s152 + $0x60] sm:%s145]
                %203 = vst [vmem:[%s153 + $0x60] sm:%s145] %v202
                %v204 = vld [vmem:[%s152 + $0x64] sm:%s145]
                %205 = vst [vmem:[%s153 + $0x64] sm:%s145] %v204
                %v206 = vld [vmem:[%s152 + $0x68] sm:%s145]
                %207 = vst [vmem:[%s153 + $0x68] sm:%s145] %v206
                %v208 = vld [vmem:[%s152 + $0x6c] sm:%s145]
                %209 = vst [vmem:[%s153 + $0x6c] sm:%s145] %v208
                %v210 = vld [vmem:[%s152 + $0x70] sm:%s145]
                %211 = vst [vmem:[%s153 + $0x70] sm:%s145] %v210
                %v212 = vld [vmem:[%s152 + $0x74] sm:%s145]
                %213 = vst [vmem:[%s153 + $0x74] sm:%s145] %v212
                %v214 = vld [vmem:[%s152 + $0x78] sm:%s145]
                %215 = vst [vmem:[%s153 + $0x78] sm:%s145] %v214
                %v216 = vld [vmem:[%s152 + $0x7c] sm:%s145]
                %217 = vst [vmem:[%s153 + $0x7c] sm:%s145] %v216
                %v218 = vld [vmem:[%s152 + $0x80] sm:%s145]
                %219 = vst [vmem:[%s153 + $0x80] sm:%s145] %v218
                %v220 = vld [vmem:[%s152 + $0x84] sm:%s145]
                %221 = vst [vmem:[%s153 + $0x84] sm:%s145] %v220
                %v222 = vld [vmem:[%s152 + $0x88] sm:%s145]
                %223 = vst [vmem:[%s153 + $0x88] sm:%s145] %v222
                %v224 = vld [vmem:[%s152 + $0x8c] sm:%s145]
                %225 = vst [vmem:[%s153 + $0x8c] sm:%s145] %v224
                %v226 = vld [vmem:[%s152 + $0x90] sm:%s145]
                %227 = vst [vmem:[%s153 + $0x90] sm:%s145] %v226
                %v228 = vld [vmem:[%s152 + $0x94] sm:%s145]
                %229 = vst [vmem:[%s153 + $0x94] sm:%s145] %v228
                %v230 = vld [vmem:[%s152 + $0x98] sm:%s145]
                %231 = vst [vmem:[%s153 + $0x98] sm:%s145] %v230
                %v232 = vld [vmem:[%s152 + $0x9c] sm:%s145]
                %233 = vst [vmem:[%s153 + $0x9c] sm:%s145] %v232
                %v234 = vld [vmem:[%s152 + $0xa0] sm:%s145]
                %235 = vst [vmem:[%s153 + $0xa0] sm:%s145] %v234
                %v236 = vld [vmem:[%s152 + $0xa4] sm:%s145]
                %237 = vst [vmem:[%s153 + $0xa4] sm:%s145] %v236
                %v238 = vld [vmem:[%s152 + $0xa8] sm:%s145]
                %239 = vst [vmem:[%s153 + $0xa8] sm:%s145] %v238
                %v240 = vld [vmem:[%s152 + $0xac] sm:%s145]
                %241 = vst [vmem:[%s153 + $0xac] sm:%s145] %v240
                %v242 = vld [vmem:[%s152 + $0xb0] sm:%s145]
                %243 = vst [vmem:[%s153 + $0xb0] sm:%s145] %v242
                %v244 = vld [vmem:[%s152 + $0xb4] sm:%s145]
                %245 = vst [vmem:[%s153 + $0xb4] sm:%s145] %v244
                %v246 = vld [vmem:[%s152 + $0x228] sm:%s145]
                %247 = vst [vmem:[%s153 + $0xb8] sm:%s145] %v246
                %v248 = vld [vmem:[%s152 + $0x22c] sm:%s145]
                %249 = vst [vmem:[%s153 + $0xbc] sm:%s145] %v248
                %v250 = vld [vmem:[%s152 + $0x230] sm:%s145]
                %251 = vst [vmem:[%s153 + $0xc0] sm:%s145] %v250
                %v252 = vld [vmem:[%s152 + $0x234] sm:%s145]
                %253 = vst [vmem:[%s153 + $0xc4] sm:%s145] %v252
                %v254 = vld [vmem:[%s152 + $0x238] sm:%s145]
                %255 = vst [vmem:[%s153 + $0xc8] sm:%s145] %v254
                %v256 = vld [vmem:[%s152 + $0x23c] sm:%s145]
                %257 = vst [vmem:[%s153 + $0xcc] sm:%s145] %v256
                %v258 = vld [vmem:[%s152 + $0x240] sm:%s145]
                %259 = vst [vmem:[%s153 + $0xd0] sm:%s145] %v258
                %v260 = vld [vmem:[%s152 + $0x244] sm:%s145]
                %261 = vst [vmem:[%s153 + $0xd4] sm:%s145] %v260
                %v262 = vld [vmem:[%s152 + $0x248] sm:%s145]
                %263 = vst [vmem:[%s153 + $0xd8] sm:%s145] %v262
                %v264 = vld [vmem:[%s152 + $0x24c] sm:%s145]
                %265 = vst [vmem:[%s153 + $0xdc] sm:%s145] %v264
                %v266 = vld [vmem:[%s152 + $0x250] sm:%s145]
                %267 = vst [vmem:[%s153 + $0xe0] sm:%s145] %v266
                %v268 = vld [vmem:[%s152 + $0x254] sm:%s145]
                %269 = vst [vmem:[%s153 + $0xe4] sm:%s145] %v268
                %v270 = vld [vmem:[%s152 + $0x258] sm:%s145]
                %271 = vst [vmem:[%s153 + $0xe8] sm:%s145] %v270
                %v272 = vld [vmem:[%s152 + $0x25c] sm:%s145]
                %273 = vst [vmem:[%s153 + $0xec] sm:%s145] %v272
                %v274 = vld [vmem:[%s152 + $0x260] sm:%s145]
                %275 = vst [vmem:[%s153 + $0xf0] sm:%s145] %v274
                %v276 = vld [vmem:[%s152 + $0x264] sm:%s145]
                %277 = vst [vmem:[%s153 + $0xf4] sm:%s145] %v276
                %v278 = vld [vmem:[%s152 + $0x268] sm:%s145]
                %279 = vst [vmem:[%s153 + $0xf8] sm:%s145] %v278
                %v280 = vld [vmem:[%s152 + $0x26c] sm:%s145]
                %281 = vst [vmem:[%s153 + $0xfc] sm:%s145] %v280
                %v282 = vld [vmem:[%s152 + $0x270] sm:%s145]
                %283 = vst [vmem:[%s153 + $0x100] sm:%s145] %v282
                %v284 = vld [vmem:[%s152 + $0x274] sm:%s145]
                %285 = vst [vmem:[%s153 + $0x104] sm:%s145] %v284
                %v286 = vld [vmem:[%s152 + $0x278] sm:%s145]
                %287 = vst [vmem:[%s153 + $0x108] sm:%s145] %v286
                %v288 = vld [vmem:[%s152 + $0x27c] sm:%s145]
                %289 = vst [vmem:[%s153 + $0x10c] sm:%s145] %v288
                %v290 = vld [vmem:[%s152 + $0x280] sm:%s145]
                %291 = vst [vmem:[%s153 + $0x110] sm:%s145] %v290
                %v292 = vld [vmem:[%s152 + $0x284] sm:%s145]
                %293 = vst [vmem:[%s153 + $0x114] sm:%s145] %v292
                %v294 = vld [vmem:[%s152 + $0x288] sm:%s145]
                %295 = vst [vmem:[%s153 + $0x118] sm:%s145] %v294
                %v296 = vld [vmem:[%s152 + $0x28c] sm:%s145]
                %297 = vst [vmem:[%s153 + $0x11c] sm:%s145] %v296
                %v298 = vld [vmem:[%s152 + $0x290] sm:%s145]
                %299 = vst [vmem:[%s153 + $0x120] sm:%s145] %v298
                %v300 = vld [vmem:[%s152 + $0x294] sm:%s145]
                %301 = vst [vmem:[%s153 + $0x124] sm:%s145] %v300
                %v302 = vld [vmem:[%s152 + $0x298] sm:%s145]
                %303 = vst [vmem:[%s153 + $0x128] sm:%s145] %v302
                %v304 = vld [vmem:[%s152 + $0x29c] sm:%s145]
                %305 = vst [vmem:[%s153 + $0x12c] sm:%s145] %v304
                %v306 = vld [vmem:[%s152 + $0x2a0] sm:%s145]
                %307 = vst [vmem:[%s153 + $0x130] sm:%s145] %v306
                %v308 = vld [vmem:[%s152 + $0x2a4] sm:%s145]
                %309 = vst [vmem:[%s153 + $0x134] sm:%s145] %v308
                %v310 = vld [vmem:[%s152 + $0x2a8] sm:%s145]
                %311 = vst [vmem:[%s153 + $0x138] sm:%s145] %v310
                %v312 = vld [vmem:[%s152 + $0x2ac] sm:%s145]
                %313 = vst [vmem:[%s153 + $0x13c] sm:%s145] %v312
                %v314 = vld [vmem:[%s152 + $0x2b0] sm:%s145]
                %315 = vst [vmem:[%s153 + $0x140] sm:%s145] %v314
                %v316 = vld [vmem:[%s152 + $0x2b4] sm:%s145]
                %317 = vst [vmem:[%s153 + $0x144] sm:%s145] %v316
                %v318 = vld [vmem:[%s152 + $0x2b8] sm:%s145]
                %319 = vst [vmem:[%s153 + $0x148] sm:%s145] %v318
                %v320 = vld [vmem:[%s152 + $0x2bc] sm:%s145]
                %321 = vst [vmem:[%s153 + $0x14c] sm:%s145] %v320
                %v322 = vld [vmem:[%s152 + $0x2c0] sm:%s145]
                %323 = vst [vmem:[%s153 + $0x150] sm:%s145] %v322
                %v324 = vld [vmem:[%s152 + $0x2c4] sm:%s145]
                %325 = vst [vmem:[%s153 + $0x154] sm:%s145] %v324
                %v326 = vld [vmem:[%s152 + $0x2c8] sm:%s145]
                %327 = vst [vmem:[%s153 + $0x158] sm:%s145] %v326
                %v328 = vld [vmem:[%s152 + $0x2cc] sm:%s145]
                %329 = vst [vmem:[%s153 + $0x15c] sm:%s145] %v328
                %v330 = vld [vmem:[%s152 + $0x2d0] sm:%s145]
                %331 = vst [vmem:[%s153 + $0x160] sm:%s145] %v330
                %v332 = vld [vmem:[%s152 + $0x2d4] sm:%s145]
                %333 = vst [vmem:[%s153 + $0x164] sm:%s145] %v332
                %v334 = vld [vmem:[%s152 + $0x2d8] sm:%s145]
                %335 = vst [vmem:[%s153 + $0x168] sm:%s145] %v334
                %v336 = vld [vmem:[%s152 + $0x2dc] sm:%s145]
                %337 = vst [vmem:[%s153 + $0x16c] sm:%s145] %v336
                %v338 = vld [vmem:[%s152 + $0x450] sm:%s145]
                %339 = vst [vmem:[%s153 + $0x170] sm:%s145] %v338
                %v340 = vld [vmem:[%s152 + $0x454] sm:%s145]
                %341 = vst [vmem:[%s153 + $0x174] sm:%s145] %v340
                %v342 = vld [vmem:[%s152 + $0x458] sm:%s145]
                %343 = vst [vmem:[%s153 + $0x178] sm:%s145] %v342
                %v344 = vld [vmem:[%s152 + $0x45c] sm:%s145]
                %345 = vst [vmem:[%s153 + $0x17c] sm:%s145] %v344
                %v346 = vld [vmem:[%s152 + $0x460] sm:%s145]
                %347 = vst [vmem:[%s153 + $0x180] sm:%s145] %v346
                %v348 = vld [vmem:[%s152 + $0x464] sm:%s145]
                %349 = vst [vmem:[%s153 + $0x184] sm:%s145] %v348
                %v350 = vld [vmem:[%s152 + $0x468] sm:%s145]
                %351 = vst [vmem:[%s153 + $0x188] sm:%s145] %v350
                %v352 = vld [vmem:[%s152 + $0x46c] sm:%s145]
                %353 = vst [vmem:[%s153 + $0x18c] sm:%s145] %v352
                %v354 = vld [vmem:[%s152 + $0x470] sm:%s145]
                %355 = vst [vmem:[%s153 + $0x190] sm:%s145] %v354
                %v356 = vld [vmem:[%s152 + $0x474] sm:%s145]
                %357 = vst [vmem:[%s153 + $0x194] sm:%s145] %v356
                %v358 = vld [vmem:[%s152 + $0x478] sm:%s145]
                %359 = vst [vmem:[%s153 + $0x198] sm:%s145] %v358
                %v360 = vld [vmem:[%s152 + $0x47c] sm:%s145]
                %361 = vst [vmem:[%s153 + $0x19c] sm:%s145] %v360
                %v362 = vld [vmem:[%s152 + $0x480] sm:%s145]
                %363 = vst [vmem:[%s153 + $0x1a0] sm:%s145] %v362
                %v364 = vld [vmem:[%s152 + $0x484] sm:%s145]
                %365 = vst [vmem:[%s153 + $0x1a4] sm:%s145] %v364
                %v366 = vld [vmem:[%s152 + $0x488] sm:%s145]
                %367 = vst [vmem:[%s153 + $0x1a8] sm:%s145] %v366
                %v368 = vld [vmem:[%s152 + $0x48c] sm:%s145]
                %369 = vst [vmem:[%s153 + $0x1ac] sm:%s145] %v368
                %v370 = vld [vmem:[%s152 + $0x490] sm:%s145]
                %371 = vst [vmem:[%s153 + $0x1b0] sm:%s145] %v370
                %v372 = vld [vmem:[%s152 + $0x494] sm:%s145]
                %373 = vst [vmem:[%s153 + $0x1b4] sm:%s145] %v372
                %v374 = vld [vmem:[%s152 + $0x498] sm:%s145]
                %375 = vst [vmem:[%s153 + $0x1b8] sm:%s145] %v374
                %v376 = vld [vmem:[%s152 + $0x49c] sm:%s145]
                %377 = vst [vmem:[%s153 + $0x1bc] sm:%s145] %v376
                %v378 = vld [vmem:[%s152 + $0x4a0] sm:%s145]
                %379 = vst [vmem:[%s153 + $0x1c0] sm:%s145] %v378
                %v380 = vld [vmem:[%s152 + $0x4a4] sm:%s145]
                %381 = vst [vmem:[%s153 + $0x1c4] sm:%s145] %v380
                %v382 = vld [vmem:[%s152 + $0x4a8] sm:%s145]
                %383 = vst [vmem:[%s153 + $0x1c8] sm:%s145] %v382
                %v384 = vld [vmem:[%s152 + $0x4ac] sm:%s145]
                %385 = vst [vmem:[%s153 + $0x1cc] sm:%s145] %v384
                %v386 = vld [vmem:[%s152 + $0x4b0] sm:%s145]
                %387 = vst [vmem:[%s153 + $0x1d0] sm:%s145] %v386
                %v388 = vld [vmem:[%s152 + $0x4b4] sm:%s145]
                %389 = vst [vmem:[%s153 + $0x1d4] sm:%s145] %v388
                %v390 = vld [vmem:[%s152 + $0x4b8] sm:%s145]
                %391 = vst [vmem:[%s153 + $0x1d8] sm:%s145] %v390
                %v392 = vld [vmem:[%s152 + $0x4bc] sm:%s145]
                %393 = vst [vmem:[%s153 + $0x1dc] sm:%s145] %v392
                %v394 = vld [vmem:[%s152 + $0x4c0] sm:%s145]
                %395 = vst [vmem:[%s153 + $0x1e0] sm:%s145] %v394
                %v396 = vld [vmem:[%s152 + $0x4c4] sm:%s145]
                %397 = vst [vmem:[%s153 + $0x1e4] sm:%s145] %v396
                %v398 = vld [vmem:[%s152 + $0x4c8] sm:%s145]
                %399 = vst [vmem:[%s153 + $0x1e8] sm:%s145] %v398
                %v400 = vld [vmem:[%s152 + $0x4cc] sm:%s145]
                %401 = vst [vmem:[%s153 + $0x1ec] sm:%s145] %v400
                %v402 = vld [vmem:[%s152 + $0x4d0] sm:%s145]
                %403 = vst [vmem:[%s153 + $0x1f0] sm:%s145] %v402
                %v404 = vld [vmem:[%s152 + $0x4d4] sm:%s145]
                %405 = vst [vmem:[%s153 + $0x1f4] sm:%s145] %v404
                %v406 = vld [vmem:[%s152 + $0x4d8] sm:%s145]
                %407 = vst [vmem:[%s153 + $0x1f8] sm:%s145] %v406
                %v408 = vld [vmem:[%s152 + $0x4dc] sm:%s145]
                %409 = vst [vmem:[%s153 + $0x1fc] sm:%s145] %v408
                %v410 = vld [vmem:[%s152 + $0x4e0] sm:%s145]
                %411 = vst [vmem:[%s153 + $0x200] sm:%s145] %v410
                %v412 = vld [vmem:[%s152 + $0x4e4] sm:%s145]
                %413 = vst [vmem:[%s153 + $0x204] sm:%s145] %v412
                %v414 = vld [vmem:[%s152 + $0x4e8] sm:%s145]
                %415 = vst [vmem:[%s153 + $0x208] sm:%s145] %v414
                %v416 = vld [vmem:[%s152 + $0x4ec] sm:%s145]
                %417 = vst [vmem:[%s153 + $0x20c] sm:%s145] %v416
                %v418 = vld [vmem:[%s152 + $0x4f0] sm:%s145]
                %419 = vst [vmem:[%s153 + $0x210] sm:%s145] %v418
                %v420 = vld [vmem:[%s152 + $0x4f4] sm:%s145]
                %421 = vst [vmem:[%s153 + $0x214] sm:%s145] %v420
                %v422 = vld [vmem:[%s152 + $0x4f8] sm:%s145]
                %423 = vst [vmem:[%s153 + $0x218] sm:%s145] %v422
                %v424 = vld [vmem:[%s152 + $0x4fc] sm:%s145]
                %425 = vst [vmem:[%s153 + $0x21c] sm:%s145] %v424
                %v426 = vld [vmem:[%s152 + $0x500] sm:%s145]
                %427 = vst [vmem:[%s153 + $0x220] sm:%s145] %v426
                %v428 = vld [vmem:[%s152 + $0x504] sm:%s145]
                %429 = vst [vmem:[%s153 + $0x224] sm:%s145] %v428
                %v430 = vld [vmem:[%s152 + $0x678] sm:%s145]
                %431 = vst [vmem:[%s153 + $0x228] sm:%s145] %v430
                %v432 = vld [vmem:[%s152 + $0x67c] sm:%s145]
                %433 = vst [vmem:[%s153 + $0x22c] sm:%s145] %v432
                %v434 = vld [vmem:[%s152 + $0x680] sm:%s145]
                %435 = vst [vmem:[%s153 + $0x230] sm:%s145] %v434
                %v436 = vld [vmem:[%s152 + $0x684] sm:%s145]
                %437 = vst [vmem:[%s153 + $0x234] sm:%s145] %v436
                %v438 = vld [vmem:[%s152 + $0x688] sm:%s145]
                %439 = vst [vmem:[%s153 + $0x238] sm:%s145] %v438
                %v440 = vld [vmem:[%s152 + $0x68c] sm:%s145]
                %441 = vst [vmem:[%s153 + $0x23c] sm:%s145] %v440
                %v442 = vld [vmem:[%s152 + $0x690] sm:%s145]
                %443 = vst [vmem:[%s153 + $0x240] sm:%s145] %v442
                %v444 = vld [vmem:[%s152 + $0x694] sm:%s145]
                %445 = vst [vmem:[%s153 + $0x244] sm:%s145] %v444
                %v446 = vld [vmem:[%s152 + $0x698] sm:%s145]
                %447 = vst [vmem:[%s153 + $0x248] sm:%s145] %v446
                %v448 = vld [vmem:[%s152 + $0x69c] sm:%s145]
                %449 = vst [vmem:[%s153 + $0x24c] sm:%s145] %v448
                %v450 = vld [vmem:[%s152 + $0x6a0] sm:%s145]
                %451 = vst [vmem:[%s153 + $0x250] sm:%s145] %v450
                %v452 = vld [vmem:[%s152 + $0x6a4] sm:%s145]
                %453 = vst [vmem:[%s153 + $0x254] sm:%s145] %v452
                %v454 = vld [vmem:[%s152 + $0x6a8] sm:%s145]
                %455 = vst [vmem:[%s153 + $0x258] sm:%s145] %v454
                %v456 = vld [vmem:[%s152 + $0x6ac] sm:%s145]
                %457 = vst [vmem:[%s153 + $0x25c] sm:%s145] %v456
                %v458 = vld [vmem:[%s152 + $0x6b0] sm:%s145]
                %459 = vst [vmem:[%s153 + $0x260] sm:%s145] %v458
                %v460 = vld [vmem:[%s152 + $0x6b4] sm:%s145]
                %461 = vst [vmem:[%s153 + $0x264] sm:%s145] %v460
                %v462 = vld [vmem:[%s152 + $0x6b8] sm:%s145]
                %463 = vst [vmem:[%s153 + $0x268] sm:%s145] %v462
                %v464 = vld [vmem:[%s152 + $0x6bc] sm:%s145]
                %465 = vst [vmem:[%s153 + $0x26c] sm:%s145] %v464
                %v466 = vld [vmem:[%s152 + $0x6c0] sm:%s145]
                %467 = vst [vmem:[%s153 + $0x270] sm:%s145] %v466
                %v468 = vld [vmem:[%s152 + $0x6c4] sm:%s145]
                %469 = vst [vmem:[%s153 + $0x274] sm:%s145] %v468
                %v470 = vld [vmem:[%s152 + $0x6c8] sm:%s145]
                %471 = vst [vmem:[%s153 + $0x278] sm:%s145] %v470
                %v472 = vld [vmem:[%s152 + $0x6cc] sm:%s145]
                %473 = vst [vmem:[%s153 + $0x27c] sm:%s145] %v472
                %v474 = vld [vmem:[%s152 + $0x6d0] sm:%s145]
                %475 = vst [vmem:[%s153 + $0x280] sm:%s145] %v474
                %v476 = vld [vmem:[%s152 + $0x6d4] sm:%s145]
                %477 = vst [vmem:[%s153 + $0x284] sm:%s145] %v476
                %v478 = vld [vmem:[%s152 + $0x6d8] sm:%s145]
                %479 = vst [vmem:[%s153 + $0x288] sm:%s145] %v478
                %v480 = vld [vmem:[%s152 + $0x6dc] sm:%s145]
                %481 = vst [vmem:[%s153 + $0x28c] sm:%s145] %v480
                %v482 = vld [vmem:[%s152 + $0x6e0] sm:%s145]
                %483 = vst [vmem:[%s153 + $0x290] sm:%s145] %v482
                %v484 = vld [vmem:[%s152 + $0x6e4] sm:%s145]
                %485 = vst [vmem:[%s153 + $0x294] sm:%s145] %v484
                %v486 = vld [vmem:[%s152 + $0x6e8] sm:%s145]
                %487 = vst [vmem:[%s153 + $0x298] sm:%s145] %v486
                %v488 = vld [vmem:[%s152 + $0x6ec] sm:%s145]
                %489 = vst [vmem:[%s153 + $0x29c] sm:%s145] %v488
                %v490 = vld [vmem:[%s152 + $0x6f0] sm:%s145]
                %491 = vst [vmem:[%s153 + $0x2a0] sm:%s145] %v490
                %v492 = vld [vmem:[%s152 + $0x6f4] sm:%s145]
                %493 = vst [vmem:[%s153 + $0x2a4] sm:%s145] %v492
                %v494 = vld [vmem:[%s152 + $0x6f8] sm:%s145]
                %495 = vst [vmem:[%s153 + $0x2a8] sm:%s145] %v494
                %v496 = vld [vmem:[%s152 + $0x6fc] sm:%s145]
                %497 = vst [vmem:[%s153 + $0x2ac] sm:%s145] %v496
                %v498 = vld [vmem:[%s152 + $0x700] sm:%s145]
                %499 = vst [vmem:[%s153 + $0x2b0] sm:%s145] %v498
                %v500 = vld [vmem:[%s152 + $0x704] sm:%s145]
                %501 = vst [vmem:[%s153 + $0x2b4] sm:%s145] %v500
                %v502 = vld [vmem:[%s152 + $0x708] sm:%s145]
                %503 = vst [vmem:[%s153 + $0x2b8] sm:%s145] %v502
                %v504 = vld [vmem:[%s152 + $0x70c] sm:%s145]
                %505 = vst [vmem:[%s153 + $0x2bc] sm:%s145] %v504
                %v506 = vld [vmem:[%s152 + $0x710] sm:%s145]
                %507 = vst [vmem:[%s153 + $0x2c0] sm:%s145] %v506
                %v508 = vld [vmem:[%s152 + $0x714] sm:%s145]
                %509 = vst [vmem:[%s153 + $0x2c4] sm:%s145] %v508
                %v510 = vld [vmem:[%s152 + $0x718] sm:%s145]
                %511 = vst [vmem:[%s153 + $0x2c8] sm:%s145] %v510
                %v512 = vld [vmem:[%s152 + $0x71c] sm:%s145]
                %513 = vst [vmem:[%s153 + $0x2cc] sm:%s145] %v512
                %v514 = vld [vmem:[%s152 + $0x720] sm:%s145]
                %515 = vst [vmem:[%s153 + $0x2d0] sm:%s145] %v514
                %v516 = vld [vmem:[%s152 + $0x724] sm:%s145]
                %517 = vst [vmem:[%s153 + $0x2d4] sm:%s145] %v516
                %v518 = vld [vmem:[%s152 + $0x728] sm:%s145]
                %519 = vst [vmem:[%s153 + $0x2d8] sm:%s145] %v518
                %v520 = vld [vmem:[%s152 + $0x72c] sm:%s145]
                %521 = vst [vmem:[%s153 + $0x2dc] sm:%s145] %v520
              $region45: #{net_forward.4} parent=39 // loop_footer
                %s151 = sadd.s32 1, %s147
              $region46: #{net_forward.4} parent=39 // loop_footer_branch
                %146 = sbr.rel target = $region42
              $region47: #{net_forward.4} parent=39 // loop_exit
                _
            $region40: #{net_forward.4} parent=31 // pred_fallthru
              _
          $region32: #{net_forward.4} parent=27 // pred_fallthru
            _
          %910 = vnop
        $region28: #{net_forward.4} parent=23 // pred_fallthru
          _
      $region24: #{net_forward.4} parent=5 // pred_fallthru
        _
      %p911 = scmp.le.s32.totalorder 1, %s9
      %p912 = scmp.lt.s32.totalorder %s9, 4
      %p913 = pnand %p911, %p912
      %p914 = pneg %p913
      // Predicated region
      $region66: #{net_forward.4} parent=5 // pred_check
        _
      $region67: #{net_forward.4} parent=5 // pred_check_branch
        %916 = sbr.rel (%p913) target = $region69
      $region68: #{net_forward.4} parent=5 // pred_region
        %s917 = ssub.s32 %s9, 1
        %s918 = sand.u32 %s22, 1
        %s919 = sand.u32 %s22, 1
        %s920 = smul.addr %s919, 736
        %s921 = scalar_lea.vmem [#allocation2], %s920
        // Predicated region
        $region70: #{net_forward.4} parent=68 // pred_check
          %p922 = pneg %p35
        $region71: #{net_forward.4} parent=68 // pred_check_branch
          %924 = sbr.rel (%p922) target = $region73
        $region72: #{net_forward.4} parent=68 // pred_region
          _
        $region73: #{net_forward.4} parent=68 // pred_fallthru
          _
        %s925 = sand.u32 %s22, 1
        %s926 = sand.u32 %s22, 1
        %s927 = smul.addr %s926, 736
        %s928 = scalar_lea.vmem [#allocation2], %s927
        %p929 = pneg %p35
        %p930 = pneg %p32
        %p931 = pneg %p56
        %p932 = pneg %p53
        %p933 = pneg %p77
        %p934 = pneg %p74
        %p935 = pneg %p103
        %p936 = pneg %p100
        %s937 = smul.u32 46, %s14
        %p938 = scmp.lt.s32.totalorder %s937, 137
        %s939 = scalar_select %p938, %s937, 137
        %s940 = smul.addr %s939, 4
        %s941 = scalar_lea.vmem %s3, %s940
        %s942 = smul.u32 46, %s14
        %s943 = smul.u32 46, %s14
        %p944 = scmp.lt.s32.totalorder %s943, 137
        %s945 = scalar_select %p944, %s943, 137
        %s946 = smul.addr %s945, 4
        %s947 = scalar_lea.vmem %s3, %s946
        %s948 = smul.u32 46, %s14
        %v950 = vld [vmem:[%s1] sm:$0xf]
        %v951 = vld [vmem:[%s1 + $0x4] sm:$0xf]
        %v952 = vld [vmem:[%s1 + $0x8] sm:$0xf]
        %v953 = vld [vmem:[%s1 + $0xc] sm:$0x1]
        %v954 = vld [vmem:[%s921] sm:$0xf]
        %v955 = vld [vmem:[%s921 + $0x4] sm:$0xf]
        %v956 = vld [vmem:[%s921 + $0x8] sm:$0xf]
        %v957 = vld [vmem:[%s921 + $0xc] sm:$0xf]
        %v958 = vld [vmem:[%s921 + $0x10] sm:$0xf]
        %v959 = vld [vmem:[%s921 + $0x14] sm:$0xf]
        %v960 = vld [vmem:[%s921 + $0x18] sm:$0xf]
        %v961 = vld [vmem:[%s921 + $0x1c] sm:$0xf]
        %v962 = vld [vmem:[%s921 + $0x20] sm:$0xf]
        %v963 = vld [vmem:[%s921 + $0x24] sm:$0xf]
        %v964 = vld [vmem:[%s921 + $0x28] sm:$0xf]
        %v965 = vld [vmem:[%s921 + $0x2c] sm:$0xf]
        %v966 = vld [vmem:[%s921 + $0x30] sm:$0xf]
        %v967 = vld [vmem:[%s921 + $0x34] sm:$0xf]
        %v968 = vld [vmem:[%s921 + $0x38] sm:$0xf]
        %v969 = vld [vmem:[%s921 + $0x3c] sm:$0xf]
        %v970 = vld [vmem:[%s921 + $0x40] sm:$0xf]
        %v971 = vld [vmem:[%s921 + $0x44] sm:$0xf]
        %v972 = vld [vmem:[%s921 + $0x48] sm:$0xf]
        %v973 = vld [vmem:[%s921 + $0x4c] sm:$0xf]
        %v974 = vld [vmem:[%s921 + $0x50] sm:$0xf]
        %v975 = vld [vmem:[%s921 + $0x54] sm:$0xf]
        %v976 = vld [vmem:[%s921 + $0x58] sm:$0xf]
        %v977 = vld [vmem:[%s921 + $0x5c] sm:$0xf]
        %v978 = vld [vmem:[%s921 + $0x60] sm:$0xf]
        %v979 = vld [vmem:[%s921 + $0x64] sm:$0xf]
        %v980 = vld [vmem:[%s921 + $0x68] sm:$0xf]
        %v981 = vld [vmem:[%s921 + $0x6c] sm:$0xf]
        %v982 = vld [vmem:[%s921 + $0x70] sm:$0xf]
        %v983 = vld [vmem:[%s921 + $0x74] sm:$0xf]
        %v984 = vld [vmem:[%s921 + $0x78] sm:$0xf]
        %v985 = vld [vmem:[%s921 + $0x7c] sm:$0xf]
        %v986 = vld [vmem:[%s921 + $0x80] sm:$0xf]
        %v987 = vld [vmem:[%s921 + $0x84] sm:$0xf]
        %v988 = vld [vmem:[%s921 + $0x88] sm:$0xf]
        %v989 = vld [vmem:[%s921 + $0x8c] sm:$0xf]
        %v990 = vld [vmem:[%s921 + $0x90] sm:$0xf]
        %v991 = vld [vmem:[%s921 + $0x94] sm:$0xf]
        %v992 = vld [vmem:[%s921 + $0x98] sm:$0xf]
        %v993 = vld [vmem:[%s921 + $0x9c] sm:$0xf]
        %v994 = vld [vmem:[%s921 + $0xa0] sm:$0xf]
        %v995 = vld [vmem:[%s921 + $0xa4] sm:$0xf]
        %v996 = vld [vmem:[%s921 + $0xa8] sm:$0xf]
        %v997 = vld [vmem:[%s921 + $0xac] sm:$0xf]
        %v998 = vld [vmem:[%s921 + $0xb0] sm:$0xf]
        %v999 = vld [vmem:[%s921 + $0xb4] sm:$0xf]
        %v1046 = vunpack.c.l.b16 %v954
        %v1047 = vunpack.c.l.b16 %v955
        %v1048 = vunpack.c.l.b16 %v956
        %v1049 = vunpack.c.l.b16 %v957
        %v1050 = vunpack.c.l.b16 %v958
        %v1051 = vunpack.c.l.b16 %v959
        %v1052 = vunpack.c.l.b16 %v960
        %v1053 = vunpack.c.l.b16 %v961
        %v1054 = vunpack.c.l.b16 %v962
        %v1055 = vunpack.c.l.b16 %v963
        %v1056 = vunpack.c.l.b16 %v964
        %v1057 = vunpack.c.l.b16 %v965
        %v1058 = vunpack.c.l.b16 %v966
        %v1059 = vunpack.c.l.b16 %v967
        %v1060 = vunpack.c.l.b16 %v968
        %v1061 = vunpack.c.l.b16 %v969
        %v1062 = vunpack.c.l.b16 %v970
        %v1063 = vunpack.c.l.b16 %v971
        %v1064 = vunpack.c.l.b16 %v972
        %v1065 = vunpack.c.l.b16 %v973
        %v1066 = vunpack.c.l.b16 %v974
        %v1067 = vunpack.c.l.b16 %v975
        %v1068 = vunpack.c.l.b16 %v976
        %v1069 = vunpack.c.l.b16 %v977
        %v1070 = vunpack.c.l.b16 %v978
        %v1071 = vunpack.c.l.b16 %v979
        %v1072 = vunpack.c.l.b16 %v980
        %v1073 = vunpack.c.l.b16 %v981
        %v1074 = vunpack.c.l.b16 %v982
        %v1075 = vunpack.c.l.b16 %v983
        %v1076 = vunpack.c.l.b16 %v984
        %v1077 = vunpack.c.l.b16 %v985
        %v1078 = vunpack.c.l.b16 %v986
        %v1079 = vunpack.c.l.b16 %v987
        %v1080 = vunpack.c.l.b16 %v988
        %v1081 = vunpack.c.l.b16 %v989
        %v1082 = vunpack.c.l.b16 %v990
        %v1083 = vunpack.c.l.b16 %v991
        %v1084 = vunpack.c.l.b16 %v992
        %v1085 = vunpack.c.l.b16 %v993
        %v1086 = vunpack.c.l.b16 %v994
        %v1087 = vunpack.c.l.b16 %v995
        %v1088 = vunpack.c.l.b16 %v996
        %v1089 = vunpack.c.l.b16 %v997
        %v1090 = vunpack.c.l.b16 %v998
        %v1091 = vunpack.c.l.b16 %v999
        %v1092 = vpack.c.b16 %v1047, %v1046
        %v1093 = vpack.c.b16 %v1049, %v1048
        %v1094 = vpack.c.b16 %v1051, %v1050
        %v1095 = vpack.c.b16 %v1053, %v1052
        %v1096 = vpack.c.b16 %v1055, %v1054
        %v1097 = vpack.c.b16 %v1057, %v1056
        %v1098 = vpack.c.b16 %v1059, %v1058
        %v1099 = vpack.c.b16 %v1061, %v1060
        %v1100 = vpack.c.b16 %v1063, %v1062
        %v1101 = vpack.c.b16 %v1065, %v1064
        %v1102 = vpack.c.b16 %v1067, %v1066
        %v1103 = vpack.c.b16 %v1069, %v1068
        %v1104 = vpack.c.b16 %v1071, %v1070
        %v1105 = vpack.c.b16 %v1073, %v1072
        %v1106 = vpack.c.b16 %v1075, %v1074
        %v1107 = vpack.c.b16 %v1077, %v1076
        %v1108 = vpack.c.b16 %v1079, %v1078
        %v1109 = vpack.c.b16 %v1081, %v1080
        %v1110 = vpack.c.b16 %v1083, %v1082
        %v1111 = vpack.c.b16 %v1085, %v1084
        %v1112 = vpack.c.b16 %v1087, %v1086
        %v1113 = vpack.c.b16 %v1089, %v1088
        %v1114 = vpack.c.b16 %v1091, %v1090
        %v1119 = vunpack.c.l.b16 %v950
        %v1120 = vunpack.c.l.b16 %v951
        %v1121 = vunpack.c.l.b16 %v952
        %v1122 = vunpack.c.l.b16 %v953
        %v1123 = vpack.c.b16 %v1120, %v1119
        %v1124 = vpack.c.b16 %v1122, %v1121
        %vm1126 = vcmask 203776
        %v1128 = vsel %vm1126, %v1092, 0
        %v1131 = vsel %vm1126, %v1093, 0
        %v1134 = vsel %vm1126, %v1094, 0
        %v1137 = vsel %vm1126, %v1095, 0
        %v1140 = vsel %vm1126, %v1096, 0
        %v1143 = vsel %vm1126, %v1097, 0
        %v1146 = vsel %vm1126, %v1098, 0
        %v1149 = vsel %vm1126, %v1099, 0
        %v1152 = vsel %vm1126, %v1100, 0
        %v1155 = vsel %vm1126, %v1101, 0
        %v1158 = vsel %vm1126, %v1102, 0
        %v1161 = vsel %vm1126, %v1103, 0
        %v1164 = vsel %vm1126, %v1104, 0
        %v1167 = vsel %vm1126, %v1105, 0
        %v1170 = vsel %vm1126, %v1106, 0
        %v1173 = vsel %vm1126, %v1107, 0
        %v1176 = vsel %vm1126, %v1108, 0
        %v1179 = vsel %vm1126, %v1109, 0
        %v1182 = vsel %vm1126, %v1110, 0
        %v1185 = vsel %vm1126, %v1111, 0
        %v1188 = vsel %vm1126, %v1112, 0
        %v1191 = vsel %vm1126, %v1113, 0
        %v1194 = vsel %vm1126, %v1114, 0
        %vm1196 = vcmask 1043456
        %vm1197 = vcmask 1044480
        %v1198 = vsel %vm1196, 4294967295, 65535
        %v1199 = vsel %vm1197, %v1198, 0
        %v1201 = vand.u32 %v1124, %v1199
        %1203 = vmatprep.subr.bf16.mxu0 0
        %1204 = vmatpush1.bf16.msra.mxu0 0
        %1205 = vmatprep.subr.bf16.mxu0 0
        %1206 = vmatpush1.bf16.msra.mxu0 0
        %1207 = vmatprep.subr.bf16.mxu0 0
        %1208 = vmatpush1.bf16.msra.mxu0 0
        %1209 = vmatprep.subr.bf16.mxu0 0
        %1210 = vmatpush1.bf16.msra.mxu0 0
        %1211 = vmatprep.subr.bf16.mxu0 0
        %1212 = vmatpush1.bf16.msra.mxu0 0
        %1213 = vmatprep.subr.bf16.mxu0 0
        %1214 = vmatpush1.bf16.msra.mxu0 0
        %1215 = vmatprep.subr.bf16.mxu0 0
        %1216 = vmatpush1.bf16.msra.mxu0 %v1201
        %1217 = vmatprep.subr.bf16.mxu0 0
        %1218 = vmatpush1.bf16.msra.mxu0 %v1123
        %1219 = vmatprep.subr.bf16.mxu0 0
        %1220 = vmatpush2.bf16.msra.mxu0 0
        %1221 = vmatprep.subr.bf16.mxu0 0
        %1222 = vmatpush2.bf16.msra.mxu0 0
        %1223 = vmatprep.subr.bf16.mxu0 0
        %1224 = vmatpush2.bf16.msra.mxu0 0
        %1225 = vmatprep.subr.bf16.mxu0 0
        %1226 = vmatpush2.bf16.msra.mxu0 0
        %1227 = vmatprep.subr.bf16.mxu0 0
        %1228 = vmatpush2.bf16.msra.mxu0 0
        %1229 = vmatprep.subr.bf16.mxu0 0
        %1230 = vmatpush2.bf16.msra.mxu0 0
        %1231 = vmatprep.subr.bf16.mxu0 0
        %1232 = vmatpush2.bf16.msra.mxu0 0
        %1233 = vmatprep.subr.bf16.mxu0 0
        %1234 = vmatpush2.bf16.msra.mxu0 0
        %1235 = vmatprep.mubr.bf16.mxu0 0
        %1236 = vmatmul.mubr.bf16.gmra.mxu0 %v1128
        %v1237 = vpop.f32.mrf.mxu0
        %v1238 = vadd.f32 0.0, %v1237
        %v1239 = vpop.f32.mrf.mxu0
        %v1240 = vpop.f32.mrf.mxu0
        %v1241 = vadd.f32 0.0, %v1240
        %v1242 = vpop.f32.mrf.mxu0
        %1243 = vmatprep.mubr.bf16.mxu0 0
        %1244 = vmatmul.mubr.bf16.gmra.mxu0 %v1131
        %v1245 = vpop.f32.mrf.mxu0
        %v1246 = vadd.f32 0.0, %v1245
        %v1247 = vpop.f32.mrf.mxu0
        %v1248 = vpop.f32.mrf.mxu0
        %v1249 = vadd.f32 0.0, %v1248
        %v1250 = vpop.f32.mrf.mxu0
        %1251 = vmatprep.mubr.bf16.mxu0 0
        %1252 = vmatmul.mubr.bf16.gmra.mxu0 %v1134
        %v1253 = vpop.f32.mrf.mxu0
        %v1254 = vadd.f32 0.0, %v1253
        %v1255 = vpop.f32.mrf.mxu0
        %v1256 = vpop.f32.mrf.mxu0
        %v1257 = vadd.f32 0.0, %v1256
        %v1258 = vpop.f32.mrf.mxu0
        %1259 = vmatprep.mubr.bf16.mxu0 0
        %1260 = vmatmul.mubr.bf16.gmra.mxu0 %v1137
        %v1261 = vpop.f32.mrf.mxu0
        %v1262 = vadd.f32 0.0, %v1261
        %v1263 = vpop.f32.mrf.mxu0
        %v1264 = vpop.f32.mrf.mxu0
        %v1265 = vadd.f32 0.0, %v1264
        %v1266 = vpop.f32.mrf.mxu0
        %1267 = vmatprep.mubr.bf16.mxu0 0
        %1268 = vmatmul.mubr.bf16.gmra.mxu0 %v1140
        %v1269 = vpop.f32.mrf.mxu0
        %v1270 = vadd.f32 0.0, %v1269
        %v1271 = vpop.f32.mrf.mxu0
        %v1272 = vpop.f32.mrf.mxu0
        %v1273 = vadd.f32 0.0, %v1272
        %v1274 = vpop.f32.mrf.mxu0
        %1275 = vmatprep.mubr.bf16.mxu0 0
        %1276 = vmatmul.mubr.bf16.gmra.mxu0 %v1143
        %v1277 = vpop.f32.mrf.mxu0
        %v1278 = vadd.f32 0.0, %v1277
        %v1279 = vpop.f32.mrf.mxu0
        %v1280 = vpop.f32.mrf.mxu0
        %v1281 = vadd.f32 0.0, %v1280
        %v1282 = vpop.f32.mrf.mxu0
        %1283 = vmatprep.mubr.bf16.mxu0 0
        %1284 = vmatmul.mubr.bf16.gmra.mxu0 %v1146
        %v1285 = vpop.f32.mrf.mxu0
        %v1286 = vadd.f32 0.0, %v1285
        %v1287 = vpop.f32.mrf.mxu0
        %v1288 = vpop.f32.mrf.mxu0
        %v1289 = vadd.f32 0.0, %v1288
        %v1290 = vpop.f32.mrf.mxu0
        %1291 = vmatprep.mubr.bf16.mxu0 0
        %1292 = vmatmul.mubr.bf16.gmra.mxu0 %v1149
        %v1293 = vpop.f32.mrf.mxu0
        %v1294 = vadd.f32 0.0, %v1293
        %v1295 = vpop.f32.mrf.mxu0
        %v1296 = vpop.f32.mrf.mxu0
        %v1297 = vadd.f32 0.0, %v1296
        %v1298 = vpop.f32.mrf.mxu0
        %1299 = vmatprep.mubr.bf16.mxu0 0
        %1300 = vmatmul.mubr.bf16.gmra.mxu0 %v1152
        %v1301 = vpop.f32.mrf.mxu0
        %v1302 = vadd.f32 0.0, %v1301
        %v1303 = vpop.f32.mrf.mxu0
        %v1304 = vpop.f32.mrf.mxu0
        %v1305 = vadd.f32 0.0, %v1304
        %v1306 = vpop.f32.mrf.mxu0
        %1307 = vmatprep.mubr.bf16.mxu0 0
        %1308 = vmatmul.mubr.bf16.gmra.mxu0 %v1155
        %v1309 = vpop.f32.mrf.mxu0
        %v1310 = vadd.f32 0.0, %v1309
        %v1311 = vpop.f32.mrf.mxu0
        %v1312 = vpop.f32.mrf.mxu0
        %v1313 = vadd.f32 0.0, %v1312
        %v1314 = vpop.f32.mrf.mxu0
        %1315 = vmatprep.mubr.bf16.mxu0 0
        %1316 = vmatmul.mubr.bf16.gmra.mxu0 %v1158
        %v1317 = vpop.f32.mrf.mxu0
        %v1318 = vadd.f32 0.0, %v1317
        %v1319 = vpop.f32.mrf.mxu0
        %v1320 = vpop.f32.mrf.mxu0
        %v1321 = vadd.f32 0.0, %v1320
        %v1322 = vpop.f32.mrf.mxu0
        %1323 = vmatprep.mubr.bf16.mxu0 0
        %1324 = vmatmul.mubr.bf16.gmra.mxu0 %v1161
        %v1325 = vpop.f32.mrf.mxu0
        %v1326 = vadd.f32 0.0, %v1325
        %v1327 = vpop.f32.mrf.mxu0
        %v1328 = vpop.f32.mrf.mxu0
        %v1329 = vadd.f32 0.0, %v1328
        %v1330 = vpop.f32.mrf.mxu0
        %1331 = vmatprep.mubr.bf16.mxu0 0
        %1332 = vmatmul.mubr.bf16.gmra.mxu0 %v1164
        %v1333 = vpop.f32.mrf.mxu0
        %v1334 = vadd.f32 0.0, %v1333
        %v1335 = vpop.f32.mrf.mxu0
        %v1336 = vpop.f32.mrf.mxu0
        %v1337 = vadd.f32 0.0, %v1336
        %v1338 = vpop.f32.mrf.mxu0
        %1339 = vmatprep.mubr.bf16.mxu0 0
        %1340 = vmatmul.mubr.bf16.gmra.mxu0 %v1167
        %v1341 = vpop.f32.mrf.mxu0
        %v1342 = vadd.f32 0.0, %v1341
        %v1343 = vpop.f32.mrf.mxu0
        %v1344 = vpop.f32.mrf.mxu0
        %v1345 = vadd.f32 0.0, %v1344
        %v1346 = vpop.f32.mrf.mxu0
        %1347 = vmatprep.mubr.bf16.mxu0 0
        %1348 = vmatmul.mubr.bf16.gmra.mxu0 %v1170
        %v1349 = vpop.f32.mrf.mxu0
        %v1350 = vadd.f32 0.0, %v1349
        %v1351 = vpop.f32.mrf.mxu0
        %v1352 = vpop.f32.mrf.mxu0
        %v1353 = vadd.f32 0.0, %v1352
        %v1354 = vpop.f32.mrf.mxu0
        %1355 = vmatprep.mubr.bf16.mxu0 0
        %1356 = vmatmul.mubr.bf16.gmra.mxu0 %v1173
        %v1357 = vpop.f32.mrf.mxu0
        %v1358 = vadd.f32 0.0, %v1357
        %v1359 = vpop.f32.mrf.mxu0
        %v1360 = vpop.f32.mrf.mxu0
        %v1361 = vadd.f32 0.0, %v1360
        %v1362 = vpop.f32.mrf.mxu0
        %1363 = vmatprep.mubr.bf16.mxu0 0
        %1364 = vmatmul.mubr.bf16.gmra.mxu0 %v1176
        %v1365 = vpop.f32.mrf.mxu0
        %v1366 = vadd.f32 0.0, %v1365
        %v1367 = vpop.f32.mrf.mxu0
        %v1368 = vpop.f32.mrf.mxu0
        %v1369 = vadd.f32 0.0, %v1368
        %v1370 = vpop.f32.mrf.mxu0
        %1371 = vmatprep.mubr.bf16.mxu0 0
        %1372 = vmatmul.mubr.bf16.gmra.mxu0 %v1179
        %v1373 = vpop.f32.mrf.mxu0
        %v1374 = vadd.f32 0.0, %v1373
        %v1375 = vpop.f32.mrf.mxu0
        %v1376 = vpop.f32.mrf.mxu0
        %v1377 = vadd.f32 0.0, %v1376
        %v1378 = vpop.f32.mrf.mxu0
        %1379 = vmatprep.mubr.bf16.mxu0 0
        %1380 = vmatmul.mubr.bf16.gmra.mxu0 %v1182
        %v1381 = vpop.f32.mrf.mxu0
        %v1382 = vadd.f32 0.0, %v1381
        %v1383 = vpop.f32.mrf.mxu0
        %v1384 = vpop.f32.mrf.mxu0
        %v1385 = vadd.f32 0.0, %v1384
        %v1386 = vpop.f32.mrf.mxu0
        %1387 = vmatprep.mubr.bf16.mxu0 0
        %1388 = vmatmul.mubr.bf16.gmra.mxu0 %v1185
        %v1389 = vpop.f32.mrf.mxu0
        %v1390 = vadd.f32 0.0, %v1389
        %v1391 = vpop.f32.mrf.mxu0
        %v1392 = vpop.f32.mrf.mxu0
        %v1393 = vadd.f32 0.0, %v1392
        %v1394 = vpop.f32.mrf.mxu0
        %1395 = vmatprep.mubr.bf16.mxu0 0
        %1396 = vmatmul.mubr.bf16.gmra.mxu0 %v1188
        %v1397 = vpop.f32.mrf.mxu0
        %v1398 = vadd.f32 0.0, %v1397
        %v1399 = vpop.f32.mrf.mxu0
        %v1400 = vpop.f32.mrf.mxu0
        %v1401 = vadd.f32 0.0, %v1400
        %v1402 = vpop.f32.mrf.mxu0
        %1403 = vmatprep.mubr.bf16.mxu0 0
        %1404 = vmatmul.mubr.bf16.gmra.mxu0 %v1191
        %v1405 = vpop.f32.mrf.mxu0
        %v1406 = vadd.f32 0.0, %v1405
        %v1407 = vpop.f32.mrf.mxu0
        %v1408 = vpop.f32.mrf.mxu0
        %v1409 = vadd.f32 0.0, %v1408
        %v1410 = vpop.f32.mrf.mxu0
        %1411 = vmatprep.mubr.bf16.mxu0 0
        %1412 = vmatmul.mubr.bf16.gmra.mxu0 %v1194
        %v1413 = vpop.f32.mrf.mxu0
        %v1414 = vadd.f32 0.0, %v1413
        %v1415 = vpop.f32.mrf.mxu0
        %v1416 = vpop.f32.mrf.mxu0
        %v1417 = vadd.f32 0.0, %v1416
        %v1418 = vpop.f32.mrf.mxu0
        %1419 = vdwg.mxu0
        %s1420 = scalar_lea.vmem %s921, 184 [#allocation2]
        %v1421 = vld [vmem:[%s1420] sm:$0xf]
        %v1422 = vld [vmem:[%s1420 + $0x4] sm:$0xf]
        %v1423 = vld [vmem:[%s1420 + $0x8] sm:$0xf]
        %v1424 = vld [vmem:[%s1420 + $0xc] sm:$0xf]
        %v1425 = vld [vmem:[%s1420 + $0x10] sm:$0xf]
        %v1426 = vld [vmem:[%s1420 + $0x14] sm:$0xf]
        %v1427 = vld [vmem:[%s1420 + $0x18] sm:$0xf]
        %v1428 = vld [vmem:[%s1420 + $0x1c] sm:$0xf]
        %v1429 = vld [vmem:[%s1420 + $0x20] sm:$0xf]
        %v1430 = vld [vmem:[%s1420 + $0x24] sm:$0xf]
        %v1431 = vld [vmem:[%s1420 + $0x28] sm:$0xf]
        %v1432 = vld [vmem:[%s1420 + $0x2c] sm:$0xf]
        %v1433 = vld [vmem:[%s1420 + $0x30] sm:$0xf]
        %v1434 = vld [vmem:[%s1420 + $0x34] sm:$0xf]
        %v1435 = vld [vmem:[%s1420 + $0x38] sm:$0xf]
        %v1436 = vld [vmem:[%s1420 + $0x3c] sm:$0xf]
        %v1437 = vld [vmem:[%s1420 + $0x40] sm:$0xf]
        %v1438 = vld [vmem:[%s1420 + $0x44] sm:$0xf]
        %v1439 = vld [vmem:[%s1420 + $0x48] sm:$0xf]
        %v1440 = vld [vmem:[%s1420 + $0x4c] sm:$0xf]
        %v1441 = vld [vmem:[%s1420 + $0x50] sm:$0xf]
        %v1442 = vld [vmem:[%s1420 + $0x54] sm:$0xf]
        %v1443 = vld [vmem:[%s1420 + $0x58] sm:$0xf]
        %v1444 = vld [vmem:[%s1420 + $0x5c] sm:$0xf]
        %v1445 = vld [vmem:[%s1420 + $0x60] sm:$0xf]
        %v1446 = vld [vmem:[%s1420 + $0x64] sm:$0xf]
        %v1447 = vld [vmem:[%s1420 + $0x68] sm:$0xf]
        %v1448 = vld [vmem:[%s1420 + $0x6c] sm:$0xf]
        %v1449 = vld [vmem:[%s1420 + $0x70] sm:$0xf]
        %v1450 = vld [vmem:[%s1420 + $0x74] sm:$0xf]
        %v1451 = vld [vmem:[%s1420 + $0x78] sm:$0xf]
        %v1452 = vld [vmem:[%s1420 + $0x7c] sm:$0xf]
        %v1453 = vld [vmem:[%s1420 + $0x80] sm:$0xf]
        %v1454 = vld [vmem:[%s1420 + $0x84] sm:$0xf]
        %v1455 = vld [vmem:[%s1420 + $0x88] sm:$0xf]
        %v1456 = vld [vmem:[%s1420 + $0x8c] sm:$0xf]
        %v1457 = vld [vmem:[%s1420 + $0x90] sm:$0xf]
        %v1458 = vld [vmem:[%s1420 + $0x94] sm:$0xf]
        %v1459 = vld [vmem:[%s1420 + $0x98] sm:$0xf]
        %v1460 = vld [vmem:[%s1420 + $0x9c] sm:$0xf]
        %v1461 = vld [vmem:[%s1420 + $0xa0] sm:$0xf]
        %v1462 = vld [vmem:[%s1420 + $0xa4] sm:$0xf]
        %v1463 = vld [vmem:[%s1420 + $0xa8] sm:$0xf]
        %v1464 = vld [vmem:[%s1420 + $0xac] sm:$0xf]
        %v1465 = vld [vmem:[%s1420 + $0xb0] sm:$0xf]
        %v1466 = vld [vmem:[%s1420 + $0xb4] sm:$0xf]
        %v1513 = vunpack.c.l.b16 %v1421
        %v1514 = vunpack.c.l.b16 %v1422
        %v1515 = vunpack.c.l.b16 %v1423
        %v1516 = vunpack.c.l.b16 %v1424
        %v1517 = vunpack.c.l.b16 %v1425
        %v1518 = vunpack.c.l.b16 %v1426
        %v1519 = vunpack.c.l.b16 %v1427
        %v1520 = vunpack.c.l.b16 %v1428
        %v1521 = vunpack.c.l.b16 %v1429
        %v1522 = vunpack.c.l.b16 %v1430
        %v1523 = vunpack.c.l.b16 %v1431
        %v1524 = vunpack.c.l.b16 %v1432
        %v1525 = vunpack.c.l.b16 %v1433
        %v1526 = vunpack.c.l.b16 %v1434
        %v1527 = vunpack.c.l.b16 %v1435
        %v1528 = vunpack.c.l.b16 %v1436
        %v1529 = vunpack.c.l.b16 %v1437
        %v1530 = vunpack.c.l.b16 %v1438
        %v1531 = vunpack.c.l.b16 %v1439
        %v1532 = vunpack.c.l.b16 %v1440
        %v1533 = vunpack.c.l.b16 %v1441
        %v1534 = vunpack.c.l.b16 %v1442
        %v1535 = vunpack.c.l.b16 %v1443
        %v1536 = vunpack.c.l.b16 %v1444
        %v1537 = vunpack.c.l.b16 %v1445
        %v1538 = vunpack.c.l.b16 %v1446
        %v1539 = vunpack.c.l.b16 %v1447
        %v1540 = vunpack.c.l.b16 %v1448
        %v1541 = vunpack.c.l.b16 %v1449
        %v1542 = vunpack.c.l.b16 %v1450
        %v1543 = vunpack.c.l.b16 %v1451
        %v1544 = vunpack.c.l.b16 %v1452
        %v1545 = vunpack.c.l.b16 %v1453
        %v1546 = vunpack.c.l.b16 %v1454
        %v1547 = vunpack.c.l.b16 %v1455
        %v1548 = vunpack.c.l.b16 %v1456
        %v1549 = vunpack.c.l.b16 %v1457
        %v1550 = vunpack.c.l.b16 %v1458
        %v1551 = vunpack.c.l.b16 %v1459
        %v1552 = vunpack.c.l.b16 %v1460
        %v1553 = vunpack.c.l.b16 %v1461
        %v1554 = vunpack.c.l.b16 %v1462
        %v1555 = vunpack.c.l.b16 %v1463
        %v1556 = vunpack.c.l.b16 %v1464
        %v1557 = vunpack.c.l.b16 %v1465
        %v1558 = vunpack.c.l.b16 %v1466
        %v1559 = vpack.c.b16 %v1514, %v1513
        %v1560 = vpack.c.b16 %v1516, %v1515
        %v1561 = vpack.c.b16 %v1518, %v1517
        %v1562 = vpack.c.b16 %v1520, %v1519
        %v1563 = vpack.c.b16 %v1522, %v1521
        %v1564 = vpack.c.b16 %v1524, %v1523
        %v1565 = vpack.c.b16 %v1526, %v1525
        %v1566 = vpack.c.b16 %v1528, %v1527
        %v1567 = vpack.c.b16 %v1530, %v1529
        %v1568 = vpack.c.b16 %v1532, %v1531
        %v1569 = vpack.c.b16 %v1534, %v1533
        %v1570 = vpack.c.b16 %v1536, %v1535
        %v1571 = vpack.c.b16 %v1538, %v1537
        %v1572 = vpack.c.b16 %v1540, %v1539
        %v1573 = vpack.c.b16 %v1542, %v1541
        %v1574 = vpack.c.b16 %v1544, %v1543
        %v1575 = vpack.c.b16 %v1546, %v1545
        %v1576 = vpack.c.b16 %v1548, %v1547
        %v1577 = vpack.c.b16 %v1550, %v1549
        %v1578 = vpack.c.b16 %v1552, %v1551
        %v1579 = vpack.c.b16 %v1554, %v1553
        %v1580 = vpack.c.b16 %v1556, %v1555
        %v1581 = vpack.c.b16 %v1558, %v1557
        %v1583 = vsel %vm1126, %v1559, 0
        %v1586 = vsel %vm1126, %v1560, 0
        %v1589 = vsel %vm1126, %v1561, 0
        %v1592 = vsel %vm1126, %v1562, 0
        %v1595 = vsel %vm1126, %v1563, 0
        %v1598 = vsel %vm1126, %v1564, 0
        %v1601 = vsel %vm1126, %v1565, 0
        %v1604 = vsel %vm1126, %v1566, 0
        %v1607 = vsel %vm1126, %v1567, 0
        %v1610 = vsel %vm1126, %v1568, 0
        %v1613 = vsel %vm1126, %v1569, 0
        %v1616 = vsel %vm1126, %v1570, 0
        %v1619 = vsel %vm1126, %v1571, 0
        %v1622 = vsel %vm1126, %v1572, 0
        %v1625 = vsel %vm1126, %v1573, 0
        %v1628 = vsel %vm1126, %v1574, 0
        %v1631 = vsel %vm1126, %v1575, 0
        %v1634 = vsel %vm1126, %v1576, 0
        %v1637 = vsel %vm1126, %v1577, 0
        %v1640 = vsel %vm1126, %v1578, 0
        %v1643 = vsel %vm1126, %v1579, 0
        %v1646 = vsel %vm1126, %v1580, 0
        %v1649 = vsel %vm1126, %v1581, 0
        %1651 = vmatprep.subr.bf16.mxu0 0
        %1652 = vmatpush1.bf16.msra.mxu0 0
        %1653 = vmatprep.subr.bf16.mxu0 0
        %1654 = vmatpush1.bf16.msra.mxu0 0
        %1655 = vmatprep.subr.bf16.mxu0 0
        %1656 = vmatpush1.bf16.msra.mxu0 0
        %1657 = vmatprep.subr.bf16.mxu0 0
        %1658 = vmatpush1.bf16.msra.mxu0 0
        %1659 = vmatprep.subr.bf16.mxu0 0
        %1660 = vmatpush1.bf16.msra.mxu0 0
        %1661 = vmatprep.subr.bf16.mxu0 0
        %1662 = vmatpush1.bf16.msra.mxu0 0
        %1663 = vmatprep.subr.bf16.mxu0 0
        %1664 = vmatpush1.bf16.msra.mxu0 %v1201
        %1665 = vmatprep.subr.bf16.mxu0 0
        %1666 = vmatpush1.bf16.msra.mxu0 %v1123
        %1667 = vmatprep.subr.bf16.mxu0 0
        %1668 = vmatpush2.bf16.msra.mxu0 0
        %1669 = vmatprep.subr.bf16.mxu0 0
        %1670 = vmatpush2.bf16.msra.mxu0 0
        %1671 = vmatprep.subr.bf16.mxu0 0
        %1672 = vmatpush2.bf16.msra.mxu0 0
        %1673 = vmatprep.subr.bf16.mxu0 0
        %1674 = vmatpush2.bf16.msra.mxu0 0
        %1675 = vmatprep.subr.bf16.mxu0 0
        %1676 = vmatpush2.bf16.msra.mxu0 0
        %1677 = vmatprep.subr.bf16.mxu0 0
        %1678 = vmatpush2.bf16.msra.mxu0 0
        %1679 = vmatprep.subr.bf16.mxu0 0
        %1680 = vmatpush2.bf16.msra.mxu0 0
        %1681 = vmatprep.subr.bf16.mxu0 0
        %1682 = vmatpush2.bf16.msra.mxu0 0
        %1683 = vmatprep.mubr.bf16.mxu0 0
        %1684 = vmatmul.mubr.bf16.gmra.mxu0 %v1583
        %v1685 = vpop.f32.mrf.mxu0
        %v1686 = vadd.f32 0.0, %v1685
        %v1687 = vpop.f32.mrf.mxu0
        %v1688 = vpop.f32.mrf.mxu0
        %v1689 = vadd.f32 0.0, %v1688
        %v1690 = vpop.f32.mrf.mxu0
        %1691 = vmatprep.mubr.bf16.mxu0 0
        %1692 = vmatmul.mubr.bf16.gmra.mxu0 %v1586
        %v1693 = vpop.f32.mrf.mxu0
        %v1694 = vadd.f32 0.0, %v1693
        %v1695 = vpop.f32.mrf.mxu0
        %v1696 = vpop.f32.mrf.mxu0
        %v1697 = vadd.f32 0.0, %v1696
        %v1698 = vpop.f32.mrf.mxu0
        %1699 = vmatprep.mubr.bf16.mxu0 0
        %1700 = vmatmul.mubr.bf16.gmra.mxu0 %v1589
        %v1701 = vpop.f32.mrf.mxu0
        %v1702 = vadd.f32 0.0, %v1701
        %v1703 = vpop.f32.mrf.mxu0
        %v1704 = vpop.f32.mrf.mxu0
        %v1705 = vadd.f32 0.0, %v1704
        %v1706 = vpop.f32.mrf.mxu0
        %1707 = vmatprep.mubr.bf16.mxu0 0
        %1708 = vmatmul.mubr.bf16.gmra.mxu0 %v1592
        %v1709 = vpop.f32.mrf.mxu0
        %v1710 = vadd.f32 0.0, %v1709
        %v1711 = vpop.f32.mrf.mxu0
        %v1712 = vpop.f32.mrf.mxu0
        %v1713 = vadd.f32 0.0, %v1712
        %v1714 = vpop.f32.mrf.mxu0
        %1715 = vmatprep.mubr.bf16.mxu0 0
        %1716 = vmatmul.mubr.bf16.gmra.mxu0 %v1595
        %v1717 = vpop.f32.mrf.mxu0
        %v1718 = vadd.f32 0.0, %v1717
        %v1719 = vpop.f32.mrf.mxu0
        %v1720 = vpop.f32.mrf.mxu0
        %v1721 = vadd.f32 0.0, %v1720
        %v1722 = vpop.f32.mrf.mxu0
        %1723 = vmatprep.mubr.bf16.mxu0 0
        %1724 = vmatmul.mubr.bf16.gmra.mxu0 %v1598
        %v1725 = vpop.f32.mrf.mxu0
        %v1726 = vadd.f32 0.0, %v1725
        %v1727 = vpop.f32.mrf.mxu0
        %v1728 = vpop.f32.mrf.mxu0
        %v1729 = vadd.f32 0.0, %v1728
        %v1730 = vpop.f32.mrf.mxu0
        %1731 = vmatprep.mubr.bf16.mxu0 0
        %1732 = vmatmul.mubr.bf16.gmra.mxu0 %v1601
        %v1733 = vpop.f32.mrf.mxu0
        %v1734 = vadd.f32 0.0, %v1733
        %v1735 = vpop.f32.mrf.mxu0
        %v1736 = vpop.f32.mrf.mxu0
        %v1737 = vadd.f32 0.0, %v1736
        %v1738 = vpop.f32.mrf.mxu0
        %1739 = vmatprep.mubr.bf16.mxu0 0
        %1740 = vmatmul.mubr.bf16.gmra.mxu0 %v1604
        %v1741 = vpop.f32.mrf.mxu0
        %v1742 = vadd.f32 0.0, %v1741
        %v1743 = vpop.f32.mrf.mxu0
        %v1744 = vpop.f32.mrf.mxu0
        %v1745 = vadd.f32 0.0, %v1744
        %v1746 = vpop.f32.mrf.mxu0
        %1747 = vmatprep.mubr.bf16.mxu0 0
        %1748 = vmatmul.mubr.bf16.gmra.mxu0 %v1607
        %v1749 = vpop.f32.mrf.mxu0
        %v1750 = vadd.f32 0.0, %v1749
        %v1751 = vpop.f32.mrf.mxu0
        %v1752 = vpop.f32.mrf.mxu0
        %v1753 = vadd.f32 0.0, %v1752
        %v1754 = vpop.f32.mrf.mxu0
        %1755 = vmatprep.mubr.bf16.mxu0 0
        %1756 = vmatmul.mubr.bf16.gmra.mxu0 %v1610
        %v1757 = vpop.f32.mrf.mxu0
        %v1758 = vadd.f32 0.0, %v1757
        %v1759 = vpop.f32.mrf.mxu0
        %v1760 = vpop.f32.mrf.mxu0
        %v1761 = vadd.f32 0.0, %v1760
        %v1762 = vpop.f32.mrf.mxu0
        %1763 = vmatprep.mubr.bf16.mxu0 0
        %1764 = vmatmul.mubr.bf16.gmra.mxu0 %v1613
        %v1765 = vpop.f32.mrf.mxu0
        %v1766 = vadd.f32 0.0, %v1765
        %v1767 = vpop.f32.mrf.mxu0
        %v1768 = vpop.f32.mrf.mxu0
        %v1769 = vadd.f32 0.0, %v1768
        %v1770 = vpop.f32.mrf.mxu0
        %1771 = vmatprep.mubr.bf16.mxu0 0
        %1772 = vmatmul.mubr.bf16.gmra.mxu0 %v1616
        %v1773 = vpop.f32.mrf.mxu0
        %v1774 = vadd.f32 0.0, %v1773
        %v1775 = vpop.f32.mrf.mxu0
        %v1776 = vpop.f32.mrf.mxu0
        %v1777 = vadd.f32 0.0, %v1776
        %v1778 = vpop.f32.mrf.mxu0
        %1779 = vmatprep.mubr.bf16.mxu0 0
        %1780 = vmatmul.mubr.bf16.gmra.mxu0 %v1619
        %v1781 = vpop.f32.mrf.mxu0
        %v1782 = vadd.f32 0.0, %v1781
        %v1783 = vpop.f32.mrf.mxu0
        %v1784 = vpop.f32.mrf.mxu0
        %v1785 = vadd.f32 0.0, %v1784
        %v1786 = vpop.f32.mrf.mxu0
        %1787 = vmatprep.mubr.bf16.mxu0 0
        %1788 = vmatmul.mubr.bf16.gmra.mxu0 %v1622
        %v1789 = vpop.f32.mrf.mxu0
        %v1790 = vadd.f32 0.0, %v1789
        %v1791 = vpop.f32.mrf.mxu0
        %v1792 = vpop.f32.mrf.mxu0
        %v1793 = vadd.f32 0.0, %v1792
        %v1794 = vpop.f32.mrf.mxu0
        %1795 = vmatprep.mubr.bf16.mxu0 0
        %1796 = vmatmul.mubr.bf16.gmra.mxu0 %v1625
        %v1797 = vpop.f32.mrf.mxu0
        %v1798 = vadd.f32 0.0, %v1797
        %v1799 = vpop.f32.mrf.mxu0
        %v1800 = vpop.f32.mrf.mxu0
        %v1801 = vadd.f32 0.0, %v1800
        %v1802 = vpop.f32.mrf.mxu0
        %1803 = vmatprep.mubr.bf16.mxu0 0
        %1804 = vmatmul.mubr.bf16.gmra.mxu0 %v1628
        %v1805 = vpop.f32.mrf.mxu0
        %v1806 = vadd.f32 0.0, %v1805
        %v1807 = vpop.f32.mrf.mxu0
        %v1808 = vpop.f32.mrf.mxu0
        %v1809 = vadd.f32 0.0, %v1808
        %v1810 = vpop.f32.mrf.mxu0
        %1811 = vmatprep.mubr.bf16.mxu0 0
        %1812 = vmatmul.mubr.bf16.gmra.mxu0 %v1631
        %v1813 = vpop.f32.mrf.mxu0
        %v1814 = vadd.f32 0.0, %v1813
        %v1815 = vpop.f32.mrf.mxu0
        %v1816 = vpop.f32.mrf.mxu0
        %v1817 = vadd.f32 0.0, %v1816
        %v1818 = vpop.f32.mrf.mxu0
        %1819 = vmatprep.mubr.bf16.mxu0 0
        %1820 = vmatmul.mubr.bf16.gmra.mxu0 %v1634
        %v1821 = vpop.f32.mrf.mxu0
        %v1822 = vadd.f32 0.0, %v1821
        %v1823 = vpop.f32.mrf.mxu0
        %v1824 = vpop.f32.mrf.mxu0
        %v1825 = vadd.f32 0.0, %v1824
        %v1826 = vpop.f32.mrf.mxu0
        %1827 = vmatprep.mubr.bf16.mxu0 0
        %1828 = vmatmul.mubr.bf16.gmra.mxu0 %v1637
        %v1829 = vpop.f32.mrf.mxu0
        %v1830 = vadd.f32 0.0, %v1829
        %v1831 = vpop.f32.mrf.mxu0
        %v1832 = vpop.f32.mrf.mxu0
        %v1833 = vadd.f32 0.0, %v1832
        %v1834 = vpop.f32.mrf.mxu0
        %1835 = vmatprep.mubr.bf16.mxu0 0
        %1836 = vmatmul.mubr.bf16.gmra.mxu0 %v1640
        %v1837 = vpop.f32.mrf.mxu0
        %v1838 = vadd.f32 0.0, %v1837
        %v1839 = vpop.f32.mrf.mxu0
        %v1840 = vpop.f32.mrf.mxu0
        %v1841 = vadd.f32 0.0, %v1840
        %v1842 = vpop.f32.mrf.mxu0
        %1843 = vmatprep.mubr.bf16.mxu0 0
        %1844 = vmatmul.mubr.bf16.gmra.mxu0 %v1643
        %v1845 = vpop.f32.mrf.mxu0
        %v1846 = vadd.f32 0.0, %v1845
        %v1847 = vpop.f32.mrf.mxu0
        %v1848 = vpop.f32.mrf.mxu0
        %v1849 = vadd.f32 0.0, %v1848
        %v1850 = vpop.f32.mrf.mxu0
        %1851 = vmatprep.mubr.bf16.mxu0 0
        %1852 = vmatmul.mubr.bf16.gmra.mxu0 %v1646
        %v1853 = vpop.f32.mrf.mxu0
        %v1854 = vadd.f32 0.0, %v1853
        %v1855 = vpop.f32.mrf.mxu0
        %v1856 = vpop.f32.mrf.mxu0
        %v1857 = vadd.f32 0.0, %v1856
        %v1858 = vpop.f32.mrf.mxu0
        %1859 = vmatprep.mubr.bf16.mxu0 0
        %1860 = vmatmul.mubr.bf16.gmra.mxu0 %v1649
        %v1861 = vpop.f32.mrf.mxu0
        %v1862 = vadd.f32 0.0, %v1861
        %v1863 = vpop.f32.mrf.mxu0
        %v1864 = vpop.f32.mrf.mxu0
        %v1865 = vadd.f32 0.0, %v1864
        %v1866 = vpop.f32.mrf.mxu0
        %1867 = vdwg.mxu0
        %s1868 = scalar_lea.vmem %s921, 368 [#allocation2]
        %v1869 = vld [vmem:[%s1868] sm:$0xf]
        %v1870 = vld [vmem:[%s1868 + $0x4] sm:$0xf]
        %v1871 = vld [vmem:[%s1868 + $0x8] sm:$0xf]
        %v1872 = vld [vmem:[%s1868 + $0xc] sm:$0xf]
        %v1873 = vld [vmem:[%s1868 + $0x10] sm:$0xf]
        %v1874 = vld [vmem:[%s1868 + $0x14] sm:$0xf]
        %v1875 = vld [vmem:[%s1868 + $0x18] sm:$0xf]
        %v1876 = vld [vmem:[%s1868 + $0x1c] sm:$0xf]
        %v1877 = vld [vmem:[%s1868 + $0x20] sm:$0xf]
        %v1878 = vld [vmem:[%s1868 + $0x24] sm:$0xf]
        %v1879 = vld [vmem:[%s1868 + $0x28] sm:$0xf]
        %v1880 = vld [vmem:[%s1868 + $0x2c] sm:$0xf]
        %v1881 = vld [vmem:[%s1868 + $0x30] sm:$0xf]
        %v1882 = vld [vmem:[%s1868 + $0x34] sm:$0xf]
        %v1883 = vld [vmem:[%s1868 + $0x38] sm:$0xf]
        %v1884 = vld [vmem:[%s1868 + $0x3c] sm:$0xf]
        %v1885 = vld [vmem:[%s1868 + $0x40] sm:$0xf]
        %v1886 = vld [vmem:[%s1868 + $0x44] sm:$0xf]
        %v1887 = vld [vmem:[%s1868 + $0x48] sm:$0xf]
        %v1888 = vld [vmem:[%s1868 + $0x4c] sm:$0xf]
        %v1889 = vld [vmem:[%s1868 + $0x50] sm:$0xf]
        %v1890 = vld [vmem:[%s1868 + $0x54] sm:$0xf]
        %v1891 = vld [vmem:[%s1868 + $0x58] sm:$0xf]
        %v1892 = vld [vmem:[%s1868 + $0x5c] sm:$0xf]
        %v1893 = vld [vmem:[%s1868 + $0x60] sm:$0xf]
        %v1894 = vld [vmem:[%s1868 + $0x64] sm:$0xf]
        %v1895 = vld [vmem:[%s1868 + $0x68] sm:$0xf]
        %v1896 = vld [vmem:[%s1868 + $0x6c] sm:$0xf]
        %v1897 = vld [vmem:[%s1868 + $0x70] sm:$0xf]
        %v1898 = vld [vmem:[%s1868 + $0x74] sm:$0xf]
        %v1899 = vld [vmem:[%s1868 + $0x78] sm:$0xf]
        %v1900 = vld [vmem:[%s1868 + $0x7c] sm:$0xf]
        %v1901 = vld [vmem:[%s1868 + $0x80] sm:$0xf]
        %v1902 = vld [vmem:[%s1868 + $0x84] sm:$0xf]
        %v1903 = vld [vmem:[%s1868 + $0x88] sm:$0xf]
        %v1904 = vld [vmem:[%s1868 + $0x8c] sm:$0xf]
        %v1905 = vld [vmem:[%s1868 + $0x90] sm:$0xf]
        %v1906 = vld [vmem:[%s1868 + $0x94] sm:$0xf]
        %v1907 = vld [vmem:[%s1868 + $0x98] sm:$0xf]
        %v1908 = vld [vmem:[%s1868 + $0x9c] sm:$0xf]
        %v1909 = vld [vmem:[%s1868 + $0xa0] sm:$0xf]
        %v1910 = vld [vmem:[%s1868 + $0xa4] sm:$0xf]
        %v1911 = vld [vmem:[%s1868 + $0xa8] sm:$0xf]
        %v1912 = vld [vmem:[%s1868 + $0xac] sm:$0xf]
        %v1913 = vld [vmem:[%s1868 + $0xb0] sm:$0xf]
        %v1914 = vld [vmem:[%s1868 + $0xb4] sm:$0xf]
        %v1961 = vunpack.c.l.b16 %v1869
        %v1962 = vunpack.c.l.b16 %v1870
        %v1963 = vunpack.c.l.b16 %v1871
        %v1964 = vunpack.c.l.b16 %v1872
        %v1965 = vunpack.c.l.b16 %v1873
        %v1966 = vunpack.c.l.b16 %v1874
        %v1967 = vunpack.c.l.b16 %v1875
        %v1968 = vunpack.c.l.b16 %v1876
        %v1969 = vunpack.c.l.b16 %v1877
        %v1970 = vunpack.c.l.b16 %v1878
        %v1971 = vunpack.c.l.b16 %v1879
        %v1972 = vunpack.c.l.b16 %v1880
        %v1973 = vunpack.c.l.b16 %v1881
        %v1974 = vunpack.c.l.b16 %v1882
        %v1975 = vunpack.c.l.b16 %v1883
        %v1976 = vunpack.c.l.b16 %v1884
        %v1977 = vunpack.c.l.b16 %v1885
        %v1978 = vunpack.c.l.b16 %v1886
        %v1979 = vunpack.c.l.b16 %v1887
        %v1980 = vunpack.c.l.b16 %v1888
        %v1981 = vunpack.c.l.b16 %v1889
        %v1982 = vunpack.c.l.b16 %v1890
        %v1983 = vunpack.c.l.b16 %v1891
        %v1984 = vunpack.c.l.b16 %v1892
        %v1985 = vunpack.c.l.b16 %v1893
        %v1986 = vunpack.c.l.b16 %v1894
        %v1987 = vunpack.c.l.b16 %v1895
        %v1988 = vunpack.c.l.b16 %v1896
        %v1989 = vunpack.c.l.b16 %v1897
        %v1990 = vunpack.c.l.b16 %v1898
        %v1991 = vunpack.c.l.b16 %v1899
        %v1992 = vunpack.c.l.b16 %v1900
        %v1993 = vunpack.c.l.b16 %v1901
        %v1994 = vunpack.c.l.b16 %v1902
        %v1995 = vunpack.c.l.b16 %v1903
        %v1996 = vunpack.c.l.b16 %v1904
        %v1997 = vunpack.c.l.b16 %v1905
        %v1998 = vunpack.c.l.b16 %v1906
        %v1999 = vunpack.c.l.b16 %v1907
        %v2000 = vunpack.c.l.b16 %v1908
        %v2001 = vunpack.c.l.b16 %v1909
        %v2002 = vunpack.c.l.b16 %v1910
        %v2003 = vunpack.c.l.b16 %v1911
        %v2004 = vunpack.c.l.b16 %v1912
        %v2005 = vunpack.c.l.b16 %v1913
        %v2006 = vunpack.c.l.b16 %v1914
        %v2007 = vpack.c.b16 %v1962, %v1961
        %v2008 = vpack.c.b16 %v1964, %v1963
        %v2009 = vpack.c.b16 %v1966, %v1965
        %v2010 = vpack.c.b16 %v1968, %v1967
        %v2011 = vpack.c.b16 %v1970, %v1969
        %v2012 = vpack.c.b16 %v1972, %v1971
        %v2013 = vpack.c.b16 %v1974, %v1973
        %v2014 = vpack.c.b16 %v1976, %v1975
        %v2015 = vpack.c.b16 %v1978, %v1977
        %v2016 = vpack.c.b16 %v1980, %v1979
        %v2017 = vpack.c.b16 %v1982, %v1981
        %v2018 = vpack.c.b16 %v1984, %v1983
        %v2019 = vpack.c.b16 %v1986, %v1985
        %v2020 = vpack.c.b16 %v1988, %v1987
        %v2021 = vpack.c.b16 %v1990, %v1989
        %v2022 = vpack.c.b16 %v1992, %v1991
        %v2023 = vpack.c.b16 %v1994, %v1993
        %v2024 = vpack.c.b16 %v1996, %v1995
        %v2025 = vpack.c.b16 %v1998, %v1997
        %v2026 = vpack.c.b16 %v2000, %v1999
        %v2027 = vpack.c.b16 %v2002, %v2001
        %v2028 = vpack.c.b16 %v2004, %v2003
        %v2029 = vpack.c.b16 %v2006, %v2005
        %v2031 = vsel %vm1126, %v2007, 0
        %v2034 = vsel %vm1126, %v2008, 0
        %v2037 = vsel %vm1126, %v2009, 0
        %v2040 = vsel %vm1126, %v2010, 0
        %v2043 = vsel %vm1126, %v2011, 0
        %v2046 = vsel %vm1126, %v2012, 0
        %v2049 = vsel %vm1126, %v2013, 0
        %v2052 = vsel %vm1126, %v2014, 0
        %v2055 = vsel %vm1126, %v2015, 0
        %v2058 = vsel %vm1126, %v2016, 0
        %v2061 = vsel %vm1126, %v2017, 0
        %v2064 = vsel %vm1126, %v2018, 0
        %v2067 = vsel %vm1126, %v2019, 0
        %v2070 = vsel %vm1126, %v2020, 0
        %v2073 = vsel %vm1126, %v2021, 0
        %v2076 = vsel %vm1126, %v2022, 0
        %v2079 = vsel %vm1126, %v2023, 0
        %v2082 = vsel %vm1126, %v2024, 0
        %v2085 = vsel %vm1126, %v2025, 0
        %v2088 = vsel %vm1126, %v2026, 0
        %v2091 = vsel %vm1126, %v2027, 0
        %v2094 = vsel %vm1126, %v2028, 0
        %v2097 = vsel %vm1126, %v2029, 0
        %2099 = vmatprep.subr.bf16.mxu0 0
        %2100 = vmatpush1.bf16.msra.mxu0 0
        %2101 = vmatprep.subr.bf16.mxu0 0
        %2102 = vmatpush1.bf16.msra.mxu0 0
        %2103 = vmatprep.subr.bf16.mxu0 0
        %2104 = vmatpush1.bf16.msra.mxu0 0
        %2105 = vmatprep.subr.bf16.mxu0 0
        %2106 = vmatpush1.bf16.msra.mxu0 0
        %2107 = vmatprep.subr.bf16.mxu0 0
        %2108 = vmatpush1.bf16.msra.mxu0 0
        %2109 = vmatprep.subr.bf16.mxu0 0
        %2110 = vmatpush1.bf16.msra.mxu0 0
        %2111 = vmatprep.subr.bf16.mxu0 0
        %2112 = vmatpush1.bf16.msra.mxu0 %v1201
        %2113 = vmatprep.subr.bf16.mxu0 0
        %2114 = vmatpush1.bf16.msra.mxu0 %v1123
        %2115 = vmatprep.subr.bf16.mxu0 0
        %2116 = vmatpush2.bf16.msra.mxu0 0
        %2117 = vmatprep.subr.bf16.mxu0 0
        %2118 = vmatpush2.bf16.msra.mxu0 0
        %2119 = vmatprep.subr.bf16.mxu0 0
        %2120 = vmatpush2.bf16.msra.mxu0 0
        %2121 = vmatprep.subr.bf16.mxu0 0
        %2122 = vmatpush2.bf16.msra.mxu0 0
        %2123 = vmatprep.subr.bf16.mxu0 0
        %2124 = vmatpush2.bf16.msra.mxu0 0
        %2125 = vmatprep.subr.bf16.mxu0 0
        %2126 = vmatpush2.bf16.msra.mxu0 0
        %2127 = vmatprep.subr.bf16.mxu0 0
        %2128 = vmatpush2.bf16.msra.mxu0 0
        %2129 = vmatprep.subr.bf16.mxu0 0
        %2130 = vmatpush2.bf16.msra.mxu0 0
        %2131 = vmatprep.mubr.bf16.mxu0 0
        %2132 = vmatmul.mubr.bf16.gmra.mxu0 %v2031
        %v2133 = vpop.f32.mrf.mxu0
        %v2134 = vadd.f32 0.0, %v2133
        %v2135 = vpop.f32.mrf.mxu0
        %v2136 = vpop.f32.mrf.mxu0
        %v2137 = vadd.f32 0.0, %v2136
        %v2138 = vpop.f32.mrf.mxu0
        %2139 = vmatprep.mubr.bf16.mxu0 0
        %2140 = vmatmul.mubr.bf16.gmra.mxu0 %v2034
        %v2141 = vpop.f32.mrf.mxu0
        %v2142 = vadd.f32 0.0, %v2141
        %v2143 = vpop.f32.mrf.mxu0
        %v2144 = vpop.f32.mrf.mxu0
        %v2145 = vadd.f32 0.0, %v2144
        %v2146 = vpop.f32.mrf.mxu0
        %2147 = vmatprep.mubr.bf16.mxu0 0
        %2148 = vmatmul.mubr.bf16.gmra.mxu0 %v2037
        %v2149 = vpop.f32.mrf.mxu0
        %v2150 = vadd.f32 0.0, %v2149
        %v2151 = vpop.f32.mrf.mxu0
        %v2152 = vpop.f32.mrf.mxu0
        %v2153 = vadd.f32 0.0, %v2152
        %v2154 = vpop.f32.mrf.mxu0
        %2155 = vmatprep.mubr.bf16.mxu0 0
        %2156 = vmatmul.mubr.bf16.gmra.mxu0 %v2040
        %v2157 = vpop.f32.mrf.mxu0
        %v2158 = vadd.f32 0.0, %v2157
        %v2159 = vpop.f32.mrf.mxu0
        %v2160 = vpop.f32.mrf.mxu0
        %v2161 = vadd.f32 0.0, %v2160
        %v2162 = vpop.f32.mrf.mxu0
        %2163 = vmatprep.mubr.bf16.mxu0 0
        %2164 = vmatmul.mubr.bf16.gmra.mxu0 %v2043
        %v2165 = vpop.f32.mrf.mxu0
        %v2166 = vadd.f32 0.0, %v2165
        %v2167 = vpop.f32.mrf.mxu0
        %v2168 = vpop.f32.mrf.mxu0
        %v2169 = vadd.f32 0.0, %v2168
        %v2170 = vpop.f32.mrf.mxu0
        %2171 = vmatprep.mubr.bf16.mxu0 0
        %2172 = vmatmul.mubr.bf16.gmra.mxu0 %v2046
        %v2173 = vpop.f32.mrf.mxu0
        %v2174 = vadd.f32 0.0, %v2173
        %v2175 = vpop.f32.mrf.mxu0
        %v2176 = vpop.f32.mrf.mxu0
        %v2177 = vadd.f32 0.0, %v2176
        %v2178 = vpop.f32.mrf.mxu0
        %2179 = vmatprep.mubr.bf16.mxu0 0
        %2180 = vmatmul.mubr.bf16.gmra.mxu0 %v2049
        %v2181 = vpop.f32.mrf.mxu0
        %v2182 = vadd.f32 0.0, %v2181
        %v2183 = vpop.f32.mrf.mxu0
        %v2184 = vpop.f32.mrf.mxu0
        %v2185 = vadd.f32 0.0, %v2184
        %v2186 = vpop.f32.mrf.mxu0
        %2187 = vmatprep.mubr.bf16.mxu0 0
        %2188 = vmatmul.mubr.bf16.gmra.mxu0 %v2052
        %v2189 = vpop.f32.mrf.mxu0
        %v2190 = vadd.f32 0.0, %v2189
        %v2191 = vpop.f32.mrf.mxu0
        %v2192 = vpop.f32.mrf.mxu0
        %v2193 = vadd.f32 0.0, %v2192
        %v2194 = vpop.f32.mrf.mxu0
        %2195 = vmatprep.mubr.bf16.mxu0 0
        %2196 = vmatmul.mubr.bf16.gmra.mxu0 %v2055
        %v2197 = vpop.f32.mrf.mxu0
        %v2198 = vadd.f32 0.0, %v2197
        %v2199 = vpop.f32.mrf.mxu0
        %v2200 = vpop.f32.mrf.mxu0
        %v2201 = vadd.f32 0.0, %v2200
        %v2202 = vpop.f32.mrf.mxu0
        %2203 = vmatprep.mubr.bf16.mxu0 0
        %2204 = vmatmul.mubr.bf16.gmra.mxu0 %v2058
        %v2205 = vpop.f32.mrf.mxu0
        %v2206 = vadd.f32 0.0, %v2205
        %v2207 = vpop.f32.mrf.mxu0
        %v2208 = vpop.f32.mrf.mxu0
        %v2209 = vadd.f32 0.0, %v2208
        %v2210 = vpop.f32.mrf.mxu0
        %2211 = vmatprep.mubr.bf16.mxu0 0
        %2212 = vmatmul.mubr.bf16.gmra.mxu0 %v2061
        %v2213 = vpop.f32.mrf.mxu0
        %v2214 = vadd.f32 0.0, %v2213
        %v2215 = vpop.f32.mrf.mxu0
        %v2216 = vpop.f32.mrf.mxu0
        %v2217 = vadd.f32 0.0, %v2216
        %v2218 = vpop.f32.mrf.mxu0
        %2219 = vmatprep.mubr.bf16.mxu0 0
        %2220 = vmatmul.mubr.bf16.gmra.mxu0 %v2064
        %v2221 = vpop.f32.mrf.mxu0
        %v2222 = vadd.f32 0.0, %v2221
        %v2223 = vpop.f32.mrf.mxu0
        %v2224 = vpop.f32.mrf.mxu0
        %v2225 = vadd.f32 0.0, %v2224
        %v2226 = vpop.f32.mrf.mxu0
        %2227 = vmatprep.mubr.bf16.mxu0 0
        %2228 = vmatmul.mubr.bf16.gmra.mxu0 %v2067
        %v2229 = vpop.f32.mrf.mxu0
        %v2230 = vadd.f32 0.0, %v2229
        %v2231 = vpop.f32.mrf.mxu0
        %v2232 = vpop.f32.mrf.mxu0
        %v2233 = vadd.f32 0.0, %v2232
        %v2234 = vpop.f32.mrf.mxu0
        %2235 = vmatprep.mubr.bf16.mxu0 0
        %2236 = vmatmul.mubr.bf16.gmra.mxu0 %v2070
        %v2237 = vpop.f32.mrf.mxu0
        %v2238 = vadd.f32 0.0, %v2237
        %v2239 = vpop.f32.mrf.mxu0
        %v2240 = vpop.f32.mrf.mxu0
        %v2241 = vadd.f32 0.0, %v2240
        %v2242 = vpop.f32.mrf.mxu0
        %2243 = vmatprep.mubr.bf16.mxu0 0
        %2244 = vmatmul.mubr.bf16.gmra.mxu0 %v2073
        %v2245 = vpop.f32.mrf.mxu0
        %v2246 = vadd.f32 0.0, %v2245
        %v2247 = vpop.f32.mrf.mxu0
        %v2248 = vpop.f32.mrf.mxu0
        %v2249 = vadd.f32 0.0, %v2248
        %v2250 = vpop.f32.mrf.mxu0
        %2251 = vmatprep.mubr.bf16.mxu0 0
        %2252 = vmatmul.mubr.bf16.gmra.mxu0 %v2076
        %v2253 = vpop.f32.mrf.mxu0
        %v2254 = vadd.f32 0.0, %v2253
        %v2255 = vpop.f32.mrf.mxu0
        %v2256 = vpop.f32.mrf.mxu0
        %v2257 = vadd.f32 0.0, %v2256
        %v2258 = vpop.f32.mrf.mxu0
        %2259 = vmatprep.mubr.bf16.mxu0 0
        %2260 = vmatmul.mubr.bf16.gmra.mxu0 %v2079
        %v2261 = vpop.f32.mrf.mxu0
        %v2262 = vadd.f32 0.0, %v2261
        %v2263 = vpop.f32.mrf.mxu0
        %v2264 = vpop.f32.mrf.mxu0
        %v2265 = vadd.f32 0.0, %v2264
        %v2266 = vpop.f32.mrf.mxu0
        %2267 = vmatprep.mubr.bf16.mxu0 0
        %2268 = vmatmul.mubr.bf16.gmra.mxu0 %v2082
        %v2269 = vpop.f32.mrf.mxu0
        %v2270 = vadd.f32 0.0, %v2269
        %v2271 = vpop.f32.mrf.mxu0
        %v2272 = vpop.f32.mrf.mxu0
        %v2273 = vadd.f32 0.0, %v2272
        %v2274 = vpop.f32.mrf.mxu0
        %2275 = vmatprep.mubr.bf16.mxu0 0
        %2276 = vmatmul.mubr.bf16.gmra.mxu0 %v2085
        %v2277 = vpop.f32.mrf.mxu0
        %v2278 = vadd.f32 0.0, %v2277
        %v2279 = vpop.f32.mrf.mxu0
        %v2280 = vpop.f32.mrf.mxu0
        %v2281 = vadd.f32 0.0, %v2280
        %v2282 = vpop.f32.mrf.mxu0
        %2283 = vmatprep.mubr.bf16.mxu0 0
        %2284 = vmatmul.mubr.bf16.gmra.mxu0 %v2088
        %v2285 = vpop.f32.mrf.mxu0
        %v2286 = vadd.f32 0.0, %v2285
        %v2287 = vpop.f32.mrf.mxu0
        %v2288 = vpop.f32.mrf.mxu0
        %v2289 = vadd.f32 0.0, %v2288
        %v2290 = vpop.f32.mrf.mxu0
        %2291 = vmatprep.mubr.bf16.mxu0 0
        %2292 = vmatmul.mubr.bf16.gmra.mxu0 %v2091
        %v2293 = vpop.f32.mrf.mxu0
        %v2294 = vadd.f32 0.0, %v2293
        %v2295 = vpop.f32.mrf.mxu0
        %v2296 = vpop.f32.mrf.mxu0
        %v2297 = vadd.f32 0.0, %v2296
        %v2298 = vpop.f32.mrf.mxu0
        %2299 = vmatprep.mubr.bf16.mxu0 0
        %2300 = vmatmul.mubr.bf16.gmra.mxu0 %v2094
        %v2301 = vpop.f32.mrf.mxu0
        %v2302 = vadd.f32 0.0, %v2301
        %v2303 = vpop.f32.mrf.mxu0
        %v2304 = vpop.f32.mrf.mxu0
        %v2305 = vadd.f32 0.0, %v2304
        %v2306 = vpop.f32.mrf.mxu0
        %2307 = vmatprep.mubr.bf16.mxu0 0
        %2308 = vmatmul.mubr.bf16.gmra.mxu0 %v2097
        %v2309 = vpop.f32.mrf.mxu0
        %v2310 = vadd.f32 0.0, %v2309
        %v2311 = vpop.f32.mrf.mxu0
        %v2312 = vpop.f32.mrf.mxu0
        %v2313 = vadd.f32 0.0, %v2312
        %v2314 = vpop.f32.mrf.mxu0
        %2315 = vdwg.mxu0
        %s2316 = scalar_lea.vmem %s921, 552 [#allocation2]
        %v2317 = vld [vmem:[%s2316] sm:$0xf]
        %v2318 = vld [vmem:[%s2316 + $0x4] sm:$0xf]
        %v2319 = vld [vmem:[%s2316 + $0x8] sm:$0xf]
        %v2320 = vld [vmem:[%s2316 + $0xc] sm:$0xf]
        %v2321 = vld [vmem:[%s2316 + $0x10] sm:$0xf]
        %v2322 = vld [vmem:[%s2316 + $0x14] sm:$0xf]
        %v2323 = vld [vmem:[%s2316 + $0x18] sm:$0xf]
        %v2324 = vld [vmem:[%s2316 + $0x1c] sm:$0xf]
        %v2325 = vld [vmem:[%s2316 + $0x20] sm:$0xf]
        %v2326 = vld [vmem:[%s2316 + $0x24] sm:$0xf]
        %v2327 = vld [vmem:[%s2316 + $0x28] sm:$0xf]
        %v2328 = vld [vmem:[%s2316 + $0x2c] sm:$0xf]
        %v2329 = vld [vmem:[%s2316 + $0x30] sm:$0xf]
        %v2330 = vld [vmem:[%s2316 + $0x34] sm:$0xf]
        %v2331 = vld [vmem:[%s2316 + $0x38] sm:$0xf]
        %v2332 = vld [vmem:[%s2316 + $0x3c] sm:$0xf]
        %v2333 = vld [vmem:[%s2316 + $0x40] sm:$0xf]
        %v2334 = vld [vmem:[%s2316 + $0x44] sm:$0xf]
        %v2335 = vld [vmem:[%s2316 + $0x48] sm:$0xf]
        %v2336 = vld [vmem:[%s2316 + $0x4c] sm:$0xf]
        %v2337 = vld [vmem:[%s2316 + $0x50] sm:$0xf]
        %v2338 = vld [vmem:[%s2316 + $0x54] sm:$0xf]
        %v2339 = vld [vmem:[%s2316 + $0x58] sm:$0xf]
        %v2340 = vld [vmem:[%s2316 + $0x5c] sm:$0xf]
        %v2341 = vld [vmem:[%s2316 + $0x60] sm:$0xf]
        %v2342 = vld [vmem:[%s2316 + $0x64] sm:$0xf]
        %v2343 = vld [vmem:[%s2316 + $0x68] sm:$0xf]
        %v2344 = vld [vmem:[%s2316 + $0x6c] sm:$0xf]
        %v2345 = vld [vmem:[%s2316 + $0x70] sm:$0xf]
        %v2346 = vld [vmem:[%s2316 + $0x74] sm:$0xf]
        %v2347 = vld [vmem:[%s2316 + $0x78] sm:$0xf]
        %v2348 = vld [vmem:[%s2316 + $0x7c] sm:$0xf]
        %v2349 = vld [vmem:[%s2316 + $0x80] sm:$0xf]
        %v2350 = vld [vmem:[%s2316 + $0x84] sm:$0xf]
        %v2351 = vld [vmem:[%s2316 + $0x88] sm:$0xf]
        %v2352 = vld [vmem:[%s2316 + $0x8c] sm:$0xf]
        %v2353 = vld [vmem:[%s2316 + $0x90] sm:$0xf]
        %v2354 = vld [vmem:[%s2316 + $0x94] sm:$0xf]
        %v2355 = vld [vmem:[%s2316 + $0x98] sm:$0xf]
        %v2356 = vld [vmem:[%s2316 + $0x9c] sm:$0xf]
        %v2357 = vld [vmem:[%s2316 + $0xa0] sm:$0xf]
        %v2358 = vld [vmem:[%s2316 + $0xa4] sm:$0xf]
        %v2359 = vld [vmem:[%s2316 + $0xa8] sm:$0xf]
        %v2360 = vld [vmem:[%s2316 + $0xac] sm:$0xf]
        %v2361 = vld [vmem:[%s2316 + $0xb0] sm:$0xf]
        %v2362 = vld [vmem:[%s2316 + $0xb4] sm:$0xf]
        %v2409 = vunpack.c.l.b16 %v2317
        %v2410 = vunpack.c.l.b16 %v2318
        %v2411 = vunpack.c.l.b16 %v2319
        %v2412 = vunpack.c.l.b16 %v2320
        %v2413 = vunpack.c.l.b16 %v2321
        %v2414 = vunpack.c.l.b16 %v2322
        %v2415 = vunpack.c.l.b16 %v2323
        %v2416 = vunpack.c.l.b16 %v2324
        %v2417 = vunpack.c.l.b16 %v2325
        %v2418 = vunpack.c.l.b16 %v2326
        %v2419 = vunpack.c.l.b16 %v2327
        %v2420 = vunpack.c.l.b16 %v2328
        %v2421 = vunpack.c.l.b16 %v2329
        %v2422 = vunpack.c.l.b16 %v2330
        %v2423 = vunpack.c.l.b16 %v2331
        %v2424 = vunpack.c.l.b16 %v2332
        %v2425 = vunpack.c.l.b16 %v2333
        %v2426 = vunpack.c.l.b16 %v2334
        %v2427 = vunpack.c.l.b16 %v2335
        %v2428 = vunpack.c.l.b16 %v2336
        %v2429 = vunpack.c.l.b16 %v2337
        %v2430 = vunpack.c.l.b16 %v2338
        %v2431 = vunpack.c.l.b16 %v2339
        %v2432 = vunpack.c.l.b16 %v2340
        %v2433 = vunpack.c.l.b16 %v2341
        %v2434 = vunpack.c.l.b16 %v2342
        %v2435 = vunpack.c.l.b16 %v2343
        %v2436 = vunpack.c.l.b16 %v2344
        %v2437 = vunpack.c.l.b16 %v2345
        %v2438 = vunpack.c.l.b16 %v2346
        %v2439 = vunpack.c.l.b16 %v2347
        %v2440 = vunpack.c.l.b16 %v2348
        %v2441 = vunpack.c.l.b16 %v2349
        %v2442 = vunpack.c.l.b16 %v2350
        %v2443 = vunpack.c.l.b16 %v2351
        %v2444 = vunpack.c.l.b16 %v2352
        %v2445 = vunpack.c.l.b16 %v2353
        %v2446 = vunpack.c.l.b16 %v2354
        %v2447 = vunpack.c.l.b16 %v2355
        %v2448 = vunpack.c.l.b16 %v2356
        %v2449 = vunpack.c.l.b16 %v2357
        %v2450 = vunpack.c.l.b16 %v2358
        %v2451 = vunpack.c.l.b16 %v2359
        %v2452 = vunpack.c.l.b16 %v2360
        %v2453 = vunpack.c.l.b16 %v2361
        %v2454 = vunpack.c.l.b16 %v2362
        %v2455 = vpack.c.b16 %v2410, %v2409
        %v2456 = vpack.c.b16 %v2412, %v2411
        %v2457 = vpack.c.b16 %v2414, %v2413
        %v2458 = vpack.c.b16 %v2416, %v2415
        %v2459 = vpack.c.b16 %v2418, %v2417
        %v2460 = vpack.c.b16 %v2420, %v2419
        %v2461 = vpack.c.b16 %v2422, %v2421
        %v2462 = vpack.c.b16 %v2424, %v2423
        %v2463 = vpack.c.b16 %v2426, %v2425
        %v2464 = vpack.c.b16 %v2428, %v2427
        %v2465 = vpack.c.b16 %v2430, %v2429
        %v2466 = vpack.c.b16 %v2432, %v2431
        %v2467 = vpack.c.b16 %v2434, %v2433
        %v2468 = vpack.c.b16 %v2436, %v2435
        %v2469 = vpack.c.b16 %v2438, %v2437
        %v2470 = vpack.c.b16 %v2440, %v2439
        %v2471 = vpack.c.b16 %v2442, %v2441
        %v2472 = vpack.c.b16 %v2444, %v2443
        %v2473 = vpack.c.b16 %v2446, %v2445
        %v2474 = vpack.c.b16 %v2448, %v2447
        %v2475 = vpack.c.b16 %v2450, %v2449
        %v2476 = vpack.c.b16 %v2452, %v2451
        %v2477 = vpack.c.b16 %v2454, %v2453
        %v2479 = vsel %vm1126, %v2455, 0
        %v2482 = vsel %vm1126, %v2456, 0
        %v2485 = vsel %vm1126, %v2457, 0
        %v2488 = vsel %vm1126, %v2458, 0
        %v2491 = vsel %vm1126, %v2459, 0
        %v2494 = vsel %vm1126, %v2460, 0
        %v2497 = vsel %vm1126, %v2461, 0
        %v2500 = vsel %vm1126, %v2462, 0
        %v2503 = vsel %vm1126, %v2463, 0
        %v2506 = vsel %vm1126, %v2464, 0
        %v2509 = vsel %vm1126, %v2465, 0
        %v2512 = vsel %vm1126, %v2466, 0
        %v2515 = vsel %vm1126, %v2467, 0
        %v2518 = vsel %vm1126, %v2468, 0
        %v2521 = vsel %vm1126, %v2469, 0
        %v2524 = vsel %vm1126, %v2470, 0
        %v2527 = vsel %vm1126, %v2471, 0
        %v2530 = vsel %vm1126, %v2472, 0
        %v2533 = vsel %vm1126, %v2473, 0
        %v2536 = vsel %vm1126, %v2474, 0
        %v2539 = vsel %vm1126, %v2475, 0
        %v2542 = vsel %vm1126, %v2476, 0
        %v2545 = vsel %vm1126, %v2477, 0
        %2547 = vmatprep.subr.bf16.mxu0 0
        %2548 = vmatpush1.bf16.msra.mxu0 0
        %2549 = vmatprep.subr.bf16.mxu0 0
        %2550 = vmatpush1.bf16.msra.mxu0 0
        %2551 = vmatprep.subr.bf16.mxu0 0
        %2552 = vmatpush1.bf16.msra.mxu0 0
        %2553 = vmatprep.subr.bf16.mxu0 0
        %2554 = vmatpush1.bf16.msra.mxu0 0
        %2555 = vmatprep.subr.bf16.mxu0 0
        %2556 = vmatpush1.bf16.msra.mxu0 0
        %2557 = vmatprep.subr.bf16.mxu0 0
        %2558 = vmatpush1.bf16.msra.mxu0 0
        %2559 = vmatprep.subr.bf16.mxu0 0
        %2560 = vmatpush1.bf16.msra.mxu0 %v1201
        %2561 = vmatprep.subr.bf16.mxu0 0
        %2562 = vmatpush1.bf16.msra.mxu0 %v1123
        %2563 = vmatprep.subr.bf16.mxu0 0
        %2564 = vmatpush2.bf16.msra.mxu0 0
        %2565 = vmatprep.subr.bf16.mxu0 0
        %2566 = vmatpush2.bf16.msra.mxu0 0
        %2567 = vmatprep.subr.bf16.mxu0 0
        %2568 = vmatpush2.bf16.msra.mxu0 0
        %2569 = vmatprep.subr.bf16.mxu0 0
        %2570 = vmatpush2.bf16.msra.mxu0 0
        %2571 = vmatprep.subr.bf16.mxu0 0
        %2572 = vmatpush2.bf16.msra.mxu0 0
        %2573 = vmatprep.subr.bf16.mxu0 0
        %2574 = vmatpush2.bf16.msra.mxu0 0
        %2575 = vmatprep.subr.bf16.mxu0 0
        %2576 = vmatpush2.bf16.msra.mxu0 0
        %2577 = vmatprep.subr.bf16.mxu0 0
        %2578 = vmatpush2.bf16.msra.mxu0 0
        %2579 = vmatprep.mubr.bf16.mxu0 0
        %2580 = vmatmul.mubr.bf16.gmra.mxu0 %v2479
        %v2581 = vpop.f32.mrf.mxu0
        %v2582 = vadd.f32 0.0, %v2581
        %v2583 = vpop.f32.mrf.mxu0
        %v2584 = vpop.f32.mrf.mxu0
        %v2585 = vadd.f32 0.0, %v2584
        %v2586 = vpop.f32.mrf.mxu0
        %2587 = vmatprep.mubr.bf16.mxu0 0
        %2588 = vmatmul.mubr.bf16.gmra.mxu0 %v2482
        %v2589 = vpop.f32.mrf.mxu0
        %v2590 = vadd.f32 0.0, %v2589
        %v2591 = vpop.f32.mrf.mxu0
        %v2592 = vpop.f32.mrf.mxu0
        %v2593 = vadd.f32 0.0, %v2592
        %v2594 = vpop.f32.mrf.mxu0
        %2595 = vmatprep.mubr.bf16.mxu0 0
        %2596 = vmatmul.mubr.bf16.gmra.mxu0 %v2485
        %v2597 = vpop.f32.mrf.mxu0
        %v2598 = vadd.f32 0.0, %v2597
        %v2599 = vpop.f32.mrf.mxu0
        %v2600 = vpop.f32.mrf.mxu0
        %v2601 = vadd.f32 0.0, %v2600
        %v2602 = vpop.f32.mrf.mxu0
        %2603 = vmatprep.mubr.bf16.mxu0 0
        %2604 = vmatmul.mubr.bf16.gmra.mxu0 %v2488
        %v2605 = vpop.f32.mrf.mxu0
        %v2606 = vadd.f32 0.0, %v2605
        %v2607 = vpop.f32.mrf.mxu0
        %v2608 = vpop.f32.mrf.mxu0
        %v2609 = vadd.f32 0.0, %v2608
        %v2610 = vpop.f32.mrf.mxu0
        %2611 = vmatprep.mubr.bf16.mxu0 0
        %2612 = vmatmul.mubr.bf16.gmra.mxu0 %v2491
        %v2613 = vpop.f32.mrf.mxu0
        %v2614 = vadd.f32 0.0, %v2613
        %v2615 = vpop.f32.mrf.mxu0
        %v2616 = vpop.f32.mrf.mxu0
        %v2617 = vadd.f32 0.0, %v2616
        %v2618 = vpop.f32.mrf.mxu0
        %2619 = vmatprep.mubr.bf16.mxu0 0
        %2620 = vmatmul.mubr.bf16.gmra.mxu0 %v2494
        %v2621 = vpop.f32.mrf.mxu0
        %v2622 = vadd.f32 0.0, %v2621
        %v2623 = vpop.f32.mrf.mxu0
        %v2624 = vpop.f32.mrf.mxu0
        %v2625 = vadd.f32 0.0, %v2624
        %v2626 = vpop.f32.mrf.mxu0
        %2627 = vmatprep.mubr.bf16.mxu0 0
        %2628 = vmatmul.mubr.bf16.gmra.mxu0 %v2497
        %v2629 = vpop.f32.mrf.mxu0
        %v2630 = vadd.f32 0.0, %v2629
        %v2631 = vpop.f32.mrf.mxu0
        %v2632 = vpop.f32.mrf.mxu0
        %v2633 = vadd.f32 0.0, %v2632
        %v2634 = vpop.f32.mrf.mxu0
        %2635 = vmatprep.mubr.bf16.mxu0 0
        %2636 = vmatmul.mubr.bf16.gmra.mxu0 %v2500
        %v2637 = vpop.f32.mrf.mxu0
        %v2638 = vadd.f32 0.0, %v2637
        %v2639 = vpop.f32.mrf.mxu0
        %v2640 = vpop.f32.mrf.mxu0
        %v2641 = vadd.f32 0.0, %v2640
        %v2642 = vpop.f32.mrf.mxu0
        %2643 = vmatprep.mubr.bf16.mxu0 0
        %2644 = vmatmul.mubr.bf16.gmra.mxu0 %v2503
        %v2645 = vpop.f32.mrf.mxu0
        %v2646 = vadd.f32 0.0, %v2645
        %v2647 = vpop.f32.mrf.mxu0
        %v2648 = vpop.f32.mrf.mxu0
        %v2649 = vadd.f32 0.0, %v2648
        %v2650 = vpop.f32.mrf.mxu0
        %2651 = vmatprep.mubr.bf16.mxu0 0
        %2652 = vmatmul.mubr.bf16.gmra.mxu0 %v2506
        %v2653 = vpop.f32.mrf.mxu0
        %v2654 = vadd.f32 0.0, %v2653
        %v2655 = vpop.f32.mrf.mxu0
        %v2656 = vpop.f32.mrf.mxu0
        %v2657 = vadd.f32 0.0, %v2656
        %v2658 = vpop.f32.mrf.mxu0
        %2659 = vmatprep.mubr.bf16.mxu0 0
        %2660 = vmatmul.mubr.bf16.gmra.mxu0 %v2509
        %v2661 = vpop.f32.mrf.mxu0
        %v2662 = vadd.f32 0.0, %v2661
        %v2663 = vpop.f32.mrf.mxu0
        %v2664 = vpop.f32.mrf.mxu0
        %v2665 = vadd.f32 0.0, %v2664
        %v2666 = vpop.f32.mrf.mxu0
        %2667 = vmatprep.mubr.bf16.mxu0 0
        %2668 = vmatmul.mubr.bf16.gmra.mxu0 %v2512
        %v2669 = vpop.f32.mrf.mxu0
        %v2670 = vadd.f32 0.0, %v2669
        %v2671 = vpop.f32.mrf.mxu0
        %v2672 = vpop.f32.mrf.mxu0
        %v2673 = vadd.f32 0.0, %v2672
        %v2674 = vpop.f32.mrf.mxu0
        %2675 = vmatprep.mubr.bf16.mxu0 0
        %2676 = vmatmul.mubr.bf16.gmra.mxu0 %v2515
        %v2677 = vpop.f32.mrf.mxu0
        %v2678 = vadd.f32 0.0, %v2677
        %v2679 = vpop.f32.mrf.mxu0
        %v2680 = vpop.f32.mrf.mxu0
        %v2681 = vadd.f32 0.0, %v2680
        %v2682 = vpop.f32.mrf.mxu0
        %2683 = vmatprep.mubr.bf16.mxu0 0
        %2684 = vmatmul.mubr.bf16.gmra.mxu0 %v2518
        %v2685 = vpop.f32.mrf.mxu0
        %v2686 = vadd.f32 0.0, %v2685
        %v2687 = vpop.f32.mrf.mxu0
        %v2688 = vpop.f32.mrf.mxu0
        %v2689 = vadd.f32 0.0, %v2688
        %v2690 = vpop.f32.mrf.mxu0
        %2691 = vmatprep.mubr.bf16.mxu0 0
        %2692 = vmatmul.mubr.bf16.gmra.mxu0 %v2521
        %v2693 = vpop.f32.mrf.mxu0
        %v2694 = vadd.f32 0.0, %v2693
        %v2695 = vpop.f32.mrf.mxu0
        %v2696 = vpop.f32.mrf.mxu0
        %v2697 = vadd.f32 0.0, %v2696
        %v2698 = vpop.f32.mrf.mxu0
        %2699 = vmatprep.mubr.bf16.mxu0 0
        %2700 = vmatmul.mubr.bf16.gmra.mxu0 %v2524
        %v2701 = vpop.f32.mrf.mxu0
        %v2702 = vadd.f32 0.0, %v2701
        %v2703 = vpop.f32.mrf.mxu0
        %v2704 = vpop.f32.mrf.mxu0
        %v2705 = vadd.f32 0.0, %v2704
        %v2706 = vpop.f32.mrf.mxu0
        %2707 = vmatprep.mubr.bf16.mxu0 0
        %2708 = vmatmul.mubr.bf16.gmra.mxu0 %v2527
        %v2709 = vpop.f32.mrf.mxu0
        %v2710 = vadd.f32 0.0, %v2709
        %v2711 = vpop.f32.mrf.mxu0
        %v2712 = vpop.f32.mrf.mxu0
        %v2713 = vadd.f32 0.0, %v2712
        %v2714 = vpop.f32.mrf.mxu0
        %2715 = vmatprep.mubr.bf16.mxu0 0
        %2716 = vmatmul.mubr.bf16.gmra.mxu0 %v2530
        %v2717 = vpop.f32.mrf.mxu0
        %v2718 = vadd.f32 0.0, %v2717
        %v2719 = vpop.f32.mrf.mxu0
        %v2720 = vpop.f32.mrf.mxu0
        %v2721 = vadd.f32 0.0, %v2720
        %v2722 = vpop.f32.mrf.mxu0
        %2723 = vmatprep.mubr.bf16.mxu0 0
        %2724 = vmatmul.mubr.bf16.gmra.mxu0 %v2533
        %v2725 = vpop.f32.mrf.mxu0
        %v2726 = vadd.f32 0.0, %v2725
        %v2727 = vpop.f32.mrf.mxu0
        %v2728 = vpop.f32.mrf.mxu0
        %v2729 = vadd.f32 0.0, %v2728
        %v2730 = vpop.f32.mrf.mxu0
        %2731 = vmatprep.mubr.bf16.mxu0 0
        %2732 = vmatmul.mubr.bf16.gmra.mxu0 %v2536
        %v2733 = vpop.f32.mrf.mxu0
        %v2734 = vadd.f32 0.0, %v2733
        %v2735 = vpop.f32.mrf.mxu0
        %v2736 = vpop.f32.mrf.mxu0
        %v2737 = vadd.f32 0.0, %v2736
        %v2738 = vpop.f32.mrf.mxu0
        %2739 = vmatprep.mubr.bf16.mxu0 0
        %2740 = vmatmul.mubr.bf16.gmra.mxu0 %v2539
        %v2741 = vpop.f32.mrf.mxu0
        %v2742 = vadd.f32 0.0, %v2741
        %v2743 = vpop.f32.mrf.mxu0
        %v2744 = vpop.f32.mrf.mxu0
        %v2745 = vadd.f32 0.0, %v2744
        %v2746 = vpop.f32.mrf.mxu0
        %2747 = vmatprep.mubr.bf16.mxu0 0
        %2748 = vmatmul.mubr.bf16.gmra.mxu0 %v2542
        %v2749 = vpop.f32.mrf.mxu0
        %v2750 = vadd.f32 0.0, %v2749
        %v2751 = vpop.f32.mrf.mxu0
        %v2752 = vpop.f32.mrf.mxu0
        %v2753 = vadd.f32 0.0, %v2752
        %v2754 = vpop.f32.mrf.mxu0
        %2755 = vmatprep.mubr.bf16.mxu0 0
        %2756 = vmatmul.mubr.bf16.gmra.mxu0 %v2545
        %v2757 = vpop.f32.mrf.mxu0
        %v2758 = vadd.f32 0.0, %v2757
        %v2759 = vpop.f32.mrf.mxu0
        %v2760 = vpop.f32.mrf.mxu0
        %v2761 = vadd.f32 0.0, %v2760
        %v2762 = vpop.f32.mrf.mxu0
        %2763 = vdwg.mxu0
        %v2764 = vmax.f32 %v1238, %v1686
        %v2765 = vmax.f32 %v1241, %v1689
        %v2766 = vmax.f32 %v1246, %v1694
        %v2767 = vmax.f32 %v1249, %v1697
        %v2768 = vmax.f32 %v1254, %v1702
        %v2769 = vmax.f32 %v1257, %v1705
        %v2770 = vmax.f32 %v1262, %v1710
        %v2771 = vmax.f32 %v1265, %v1713
        %v2772 = vmax.f32 %v1270, %v1718
        %v2773 = vmax.f32 %v1273, %v1721
        %v2774 = vmax.f32 %v1278, %v1726
        %v2775 = vmax.f32 %v1281, %v1729
        %v2776 = vmax.f32 %v1286, %v1734
        %v2777 = vmax.f32 %v1289, %v1737
        %v2778 = vmax.f32 %v1294, %v1742
        %v2779 = vmax.f32 %v1297, %v1745
        %v2780 = vmax.f32 %v1302, %v1750
        %v2781 = vmax.f32 %v1305, %v1753
        %v2782 = vmax.f32 %v1310, %v1758
        %v2783 = vmax.f32 %v1313, %v1761
        %v2784 = vmax.f32 %v1318, %v1766
        %v2785 = vmax.f32 %v1321, %v1769
        %v2786 = vmax.f32 %v1326, %v1774
        %v2787 = vmax.f32 %v1329, %v1777
        %v2788 = vmax.f32 %v1334, %v1782
        %v2789 = vmax.f32 %v1337, %v1785
        %v2790 = vmax.f32 %v1342, %v1790
        %v2791 = vmax.f32 %v1345, %v1793
        %v2792 = vmax.f32 %v1350, %v1798
        %v2793 = vmax.f32 %v1353, %v1801
        %v2794 = vmax.f32 %v1358, %v1806
        %v2795 = vmax.f32 %v1361, %v1809
        %v2796 = vmax.f32 %v1366, %v1814
        %v2797 = vmax.f32 %v1369, %v1817
        %v2798 = vmax.f32 %v1374, %v1822
        %v2799 = vmax.f32 %v1377, %v1825
        %v2800 = vmax.f32 %v1382, %v1830
        %v2801 = vmax.f32 %v1385, %v1833
        %v2802 = vmax.f32 %v1390, %v1838
        %v2803 = vmax.f32 %v1393, %v1841
        %v2804 = vmax.f32 %v1398, %v1846
        %v2805 = vmax.f32 %v1401, %v1849
        %v2806 = vmax.f32 %v1406, %v1854
        %v2807 = vmax.f32 %v1409, %v1857
        %v2808 = vmax.f32 %v1414, %v1862
        %v2809 = vmax.f32 %v1417, %v1865
        %v2810 = vmax.f32 %v2134, %v2582
        %v2811 = vmax.f32 %v2137, %v2585
        %v2812 = vmax.f32 %v2142, %v2590
        %v2813 = vmax.f32 %v2145, %v2593
        %v2814 = vmax.f32 %v2150, %v2598
        %v2815 = vmax.f32 %v2153, %v2601
        %v2816 = vmax.f32 %v2158, %v2606
        %v2817 = vmax.f32 %v2161, %v2609
        %v2818 = vmax.f32 %v2166, %v2614
        %v2819 = vmax.f32 %v2169, %v2617
        %v2820 = vmax.f32 %v2174, %v2622
        %v2821 = vmax.f32 %v2177, %v2625
        %v2822 = vmax.f32 %v2182, %v2630
        %v2823 = vmax.f32 %v2185, %v2633
        %v2824 = vmax.f32 %v2190, %v2638
        %v2825 = vmax.f32 %v2193, %v2641
        %v2826 = vmax.f32 %v2198, %v2646
        %v2827 = vmax.f32 %v2201, %v2649
        %v2828 = vmax.f32 %v2206, %v2654
        %v2829 = vmax.f32 %v2209, %v2657
        %v2830 = vmax.f32 %v2214, %v2662
        %v2831 = vmax.f32 %v2217, %v2665
        %v2832 = vmax.f32 %v2222, %v2670
        %v2833 = vmax.f32 %v2225, %v2673
        %v2834 = vmax.f32 %v2230, %v2678
        %v2835 = vmax.f32 %v2233, %v2681
        %v2836 = vmax.f32 %v2238, %v2686
        %v2837 = vmax.f32 %v2241, %v2689
        %v2838 = vmax.f32 %v2246, %v2694
        %v2839 = vmax.f32 %v2249, %v2697
        %v2840 = vmax.f32 %v2254, %v2702
        %v2841 = vmax.f32 %v2257, %v2705
        %v2842 = vmax.f32 %v2262, %v2710
        %v2843 = vmax.f32 %v2265, %v2713
        %v2844 = vmax.f32 %v2270, %v2718
        %v2845 = vmax.f32 %v2273, %v2721
        %v2846 = vmax.f32 %v2278, %v2726
        %v2847 = vmax.f32 %v2281, %v2729
        %v2848 = vmax.f32 %v2286, %v2734
        %v2849 = vmax.f32 %v2289, %v2737
        %v2850 = vmax.f32 %v2294, %v2742
        %v2851 = vmax.f32 %v2297, %v2745
        %v2852 = vmax.f32 %v2302, %v2750
        %v2853 = vmax.f32 %v2305, %v2753
        %v2854 = vmax.f32 %v2310, %v2758
        %v2855 = vmax.f32 %v2313, %v2761
        %v2856 = vmax.f32 %v2764, %v2810
        %v2857 = vmax.f32 %v2765, %v2811
        %v2858 = vmax.f32 %v2766, %v2812
        %v2859 = vmax.f32 %v2767, %v2813
        %v2860 = vmax.f32 %v2768, %v2814
        %v2861 = vmax.f32 %v2769, %v2815
        %v2862 = vmax.f32 %v2770, %v2816
        %v2863 = vmax.f32 %v2771, %v2817
        %v2864 = vmax.f32 %v2772, %v2818
        %v2865 = vmax.f32 %v2773, %v2819
        %v2866 = vmax.f32 %v2774, %v2820
        %v2867 = vmax.f32 %v2775, %v2821
        %v2868 = vmax.f32 %v2776, %v2822
        %v2869 = vmax.f32 %v2777, %v2823
        %v2870 = vmax.f32 %v2778, %v2824
        %v2871 = vmax.f32 %v2779, %v2825
        %v2872 = vmax.f32 %v2780, %v2826
        %v2873 = vmax.f32 %v2781, %v2827
        %v2874 = vmax.f32 %v2782, %v2828
        %v2875 = vmax.f32 %v2783, %v2829
        %v2876 = vmax.f32 %v2784, %v2830
        %v2877 = vmax.f32 %v2785, %v2831
        %v2878 = vmax.f32 %v2786, %v2832
        %v2879 = vmax.f32 %v2787, %v2833
        %v2880 = vmax.f32 %v2788, %v2834
        %v2881 = vmax.f32 %v2789, %v2835
        %v2882 = vmax.f32 %v2790, %v2836
        %v2883 = vmax.f32 %v2791, %v2837
        %v2884 = vmax.f32 %v2792, %v2838
        %v2885 = vmax.f32 %v2793, %v2839
        %v2886 = vmax.f32 %v2794, %v2840
        %v2887 = vmax.f32 %v2795, %v2841
        %v2888 = vmax.f32 %v2796, %v2842
        %v2889 = vmax.f32 %v2797, %v2843
        %v2890 = vmax.f32 %v2798, %v2844
        %v2891 = vmax.f32 %v2799, %v2845
        %v2892 = vmax.f32 %v2800, %v2846
        %v2893 = vmax.f32 %v2801, %v2847
        %v2894 = vmax.f32 %v2802, %v2848
        %v2895 = vmax.f32 %v2803, %v2849
        %v2896 = vmax.f32 %v2804, %v2850
        %v2897 = vmax.f32 %v2805, %v2851
        %v2898 = vmax.f32 %v2806, %v2852
        %v2899 = vmax.f32 %v2807, %v2853
        %v2900 = vmax.f32 %v2808, %v2854
        %v2901 = vmax.f32 %v2809, %v2855
        %v2902 = vld [vmem:[%s2] sm:$0x1]
        %v2904 = vlaneseq
        %v2905 = vshrl.u32 %v2904, 7
        %v2906 = vsub.s32 0, %v2905
        %v2907 = vrot.slane %v2902, %v2906
        %v2909 = vadd.f32 %v2856, %v2907
        %v2910 = vadd.f32 %v2857, %v2907
        %v2911 = vadd.f32 %v2858, %v2907
        %v2912 = vadd.f32 %v2859, %v2907
        %v2913 = vadd.f32 %v2860, %v2907
        %v2914 = vadd.f32 %v2861, %v2907
        %v2915 = vadd.f32 %v2862, %v2907
        %v2916 = vadd.f32 %v2863, %v2907
        %v2917 = vadd.f32 %v2864, %v2907
        %v2918 = vadd.f32 %v2865, %v2907
        %v2919 = vadd.f32 %v2866, %v2907
        %v2920 = vadd.f32 %v2867, %v2907
        %v2921 = vadd.f32 %v2868, %v2907
        %v2922 = vadd.f32 %v2869, %v2907
        %v2923 = vadd.f32 %v2870, %v2907
        %v2924 = vadd.f32 %v2871, %v2907
        %v2925 = vadd.f32 %v2872, %v2907
        %v2926 = vadd.f32 %v2873, %v2907
        %v2927 = vadd.f32 %v2874, %v2907
        %v2928 = vadd.f32 %v2875, %v2907
        %v2929 = vadd.f32 %v2876, %v2907
        %v2930 = vadd.f32 %v2877, %v2907
        %v2931 = vadd.f32 %v2878, %v2907
        %v2932 = vadd.f32 %v2879, %v2907
        %v2933 = vadd.f32 %v2880, %v2907
        %v2934 = vadd.f32 %v2881, %v2907
        %v2935 = vadd.f32 %v2882, %v2907
        %v2936 = vadd.f32 %v2883, %v2907
        %v2937 = vadd.f32 %v2884, %v2907
        %v2938 = vadd.f32 %v2885, %v2907
        %v2939 = vadd.f32 %v2886, %v2907
        %v2940 = vadd.f32 %v2887, %v2907
        %v2941 = vadd.f32 %v2888, %v2907
        %v2942 = vadd.f32 %v2889, %v2907
        %v2943 = vadd.f32 %v2890, %v2907
        %v2944 = vadd.f32 %v2891, %v2907
        %v2945 = vadd.f32 %v2892, %v2907
        %v2946 = vadd.f32 %v2893, %v2907
        %v2947 = vadd.f32 %v2894, %v2907
        %v2948 = vadd.f32 %v2895, %v2907
        %v2949 = vadd.f32 %v2896, %v2907
        %v2950 = vadd.f32 %v2897, %v2907
        %v2951 = vadd.f32 %v2898, %v2907
        %v2952 = vadd.f32 %v2899, %v2907
        %v2953 = vadd.f32 %v2900, %v2907
        %v2954 = vadd.f32 %v2901, %v2907
        %v2955 = vmax.f32 %v2909, 0.0
        %v2956 = vmax.f32 %v2910, 0.0
        %v2957 = vmax.f32 %v2911, 0.0
        %v2958 = vmax.f32 %v2912, 0.0
        %v2959 = vmax.f32 %v2913, 0.0
        %v2960 = vmax.f32 %v2914, 0.0
        %v2961 = vmax.f32 %v2915, 0.0
        %v2962 = vmax.f32 %v2916, 0.0
        %v2963 = vmax.f32 %v2917, 0.0
        %v2964 = vmax.f32 %v2918, 0.0
        %v2965 = vmax.f32 %v2919, 0.0
        %v2966 = vmax.f32 %v2920, 0.0
        %v2967 = vmax.f32 %v2921, 0.0
        %v2968 = vmax.f32 %v2922, 0.0
        %v2969 = vmax.f32 %v2923, 0.0
        %v2970 = vmax.f32 %v2924, 0.0
        %v2971 = vmax.f32 %v2925, 0.0
        %v2972 = vmax.f32 %v2926, 0.0
        %v2973 = vmax.f32 %v2927, 0.0
        %v2974 = vmax.f32 %v2928, 0.0
        %v2975 = vmax.f32 %v2929, 0.0
        %v2976 = vmax.f32 %v2930, 0.0
        %v2977 = vmax.f32 %v2931, 0.0
        %v2978 = vmax.f32 %v2932, 0.0
        %v2979 = vmax.f32 %v2933, 0.0
        %v2980 = vmax.f32 %v2934, 0.0
        %v2981 = vmax.f32 %v2935, 0.0
        %v2982 = vmax.f32 %v2936, 0.0
        %v2983 = vmax.f32 %v2937, 0.0
        %v2984 = vmax.f32 %v2938, 0.0
        %v2985 = vmax.f32 %v2939, 0.0
        %v2986 = vmax.f32 %v2940, 0.0
        %v2987 = vmax.f32 %v2941, 0.0
        %v2988 = vmax.f32 %v2942, 0.0
        %v2989 = vmax.f32 %v2943, 0.0
        %v2990 = vmax.f32 %v2944, 0.0
        %v2991 = vmax.f32 %v2945, 0.0
        %v2992 = vmax.f32 %v2946, 0.0
        %v2993 = vmax.f32 %v2947, 0.0
        %v2994 = vmax.f32 %v2948, 0.0
        %v2995 = vmax.f32 %v2949, 0.0
        %v2996 = vmax.f32 %v2950, 0.0
        %v2997 = vmax.f32 %v2951, 0.0
        %v2998 = vmax.f32 %v2952, 0.0
        %v2999 = vmax.f32 %v2953, 0.0
        %v3000 = vmax.f32 %v2954, 0.0
        %v3001 = vpack.c.bf16 %v2956, %v2955
        %v3002 = vpack.c.bf16 %v2958, %v2957
        %v3003 = vpack.c.bf16 %v2960, %v2959
        %v3004 = vpack.c.bf16 %v2962, %v2961
        %v3005 = vpack.c.bf16 %v2964, %v2963
        %v3006 = vpack.c.bf16 %v2966, %v2965
        %v3007 = vpack.c.bf16 %v2968, %v2967
        %v3008 = vpack.c.bf16 %v2970, %v2969
        %v3009 = vpack.c.bf16 %v2972, %v2971
        %v3010 = vpack.c.bf16 %v2974, %v2973
        %v3011 = vpack.c.bf16 %v2976, %v2975
        %v3012 = vpack.c.bf16 %v2978, %v2977
        %v3013 = vpack.c.bf16 %v2980, %v2979
        %v3014 = vpack.c.bf16 %v2982, %v2981
        %v3015 = vpack.c.bf16 %v2984, %v2983
        %v3016 = vpack.c.bf16 %v2986, %v2985
        %v3017 = vpack.c.bf16 %v2988, %v2987
        %v3018 = vpack.c.bf16 %v2990, %v2989
        %v3019 = vpack.c.bf16 %v2992, %v2991
        %v3020 = vpack.c.bf16 %v2994, %v2993
        %v3021 = vpack.c.bf16 %v2996, %v2995
        %v3022 = vpack.c.bf16 %v2998, %v2997
        %v3023 = vpack.c.bf16 %v3000, %v2999
        %v3047 = vunpack.c.l.b16 %v3001
        %v3048 = vunpack.c.h.b16 %v3001
        %v3049 = vunpack.c.l.b16 %v3002
        %v3050 = vunpack.c.h.b16 %v3002
        %v3051 = vunpack.c.l.b16 %v3003
        %v3052 = vunpack.c.h.b16 %v3003
        %v3053 = vunpack.c.l.b16 %v3004
        %v3054 = vunpack.c.h.b16 %v3004
        %v3055 = vunpack.c.l.b16 %v3005
        %v3056 = vunpack.c.h.b16 %v3005
        %v3057 = vunpack.c.l.b16 %v3006
        %v3058 = vunpack.c.h.b16 %v3006
        %v3059 = vunpack.c.l.b16 %v3007
        %v3060 = vunpack.c.h.b16 %v3007
        %v3061 = vunpack.c.l.b16 %v3008
        %v3062 = vunpack.c.h.b16 %v3008
        %v3063 = vunpack.c.l.b16 %v3009
        %v3064 = vunpack.c.h.b16 %v3009
        %v3065 = vunpack.c.l.b16 %v3010
        %v3066 = vunpack.c.h.b16 %v3010
        %v3067 = vunpack.c.l.b16 %v3011
        %v3068 = vunpack.c.h.b16 %v3011
        %v3069 = vunpack.c.l.b16 %v3012
        %v3070 = vunpack.c.h.b16 %v3012
        %v3071 = vunpack.c.l.b16 %v3013
        %v3072 = vunpack.c.h.b16 %v3013
        %v3073 = vunpack.c.l.b16 %v3014
        %v3074 = vunpack.c.h.b16 %v3014
        %v3075 = vunpack.c.l.b16 %v3015
        %v3076 = vunpack.c.h.b16 %v3015
        %v3077 = vunpack.c.l.b16 %v3016
        %v3078 = vunpack.c.h.b16 %v3016
        %v3079 = vunpack.c.l.b16 %v3017
        %v3080 = vunpack.c.h.b16 %v3017
        %v3081 = vunpack.c.l.b16 %v3018
        %v3082 = vunpack.c.h.b16 %v3018
        %v3083 = vunpack.c.l.b16 %v3019
        %v3084 = vunpack.c.h.b16 %v3019
        %v3085 = vunpack.c.l.b16 %v3020
        %v3086 = vunpack.c.h.b16 %v3020
        %v3087 = vunpack.c.l.b16 %v3021
        %v3088 = vunpack.c.h.b16 %v3021
        %v3089 = vunpack.c.l.b16 %v3022
        %v3090 = vunpack.c.h.b16 %v3022
        %v3091 = vunpack.c.l.b16 %v3023
        %v3092 = vunpack.c.h.b16 %v3023
        %v3093 = vpack.c.b16 %v3047, %v3047
        %v3094 = vpack.c.b16 %v3048, %v3048
        %v3095 = vpack.c.b16 %v3049, %v3049
        %v3096 = vpack.c.b16 %v3050, %v3050
        %v3097 = vpack.c.b16 %v3051, %v3051
        %v3098 = vpack.c.b16 %v3052, %v3052
        %v3099 = vpack.c.b16 %v3053, %v3053
        %v3100 = vpack.c.b16 %v3054, %v3054
        %v3101 = vpack.c.b16 %v3055, %v3055
        %v3102 = vpack.c.b16 %v3056, %v3056
        %v3103 = vpack.c.b16 %v3057, %v3057
        %v3104 = vpack.c.b16 %v3058, %v3058
        %v3105 = vpack.c.b16 %v3059, %v3059
        %v3106 = vpack.c.b16 %v3060, %v3060
        %v3107 = vpack.c.b16 %v3061, %v3061
        %v3108 = vpack.c.b16 %v3062, %v3062
        %v3109 = vpack.c.b16 %v3063, %v3063
        %v3110 = vpack.c.b16 %v3064, %v3064
        %v3111 = vpack.c.b16 %v3065, %v3065
        %v3112 = vpack.c.b16 %v3066, %v3066
        %v3113 = vpack.c.b16 %v3067, %v3067
        %v3114 = vpack.c.b16 %v3068, %v3068
        %v3115 = vpack.c.b16 %v3069, %v3069
        %v3116 = vpack.c.b16 %v3070, %v3070
        %v3117 = vpack.c.b16 %v3071, %v3071
        %v3118 = vpack.c.b16 %v3072, %v3072
        %v3119 = vpack.c.b16 %v3073, %v3073
        %v3120 = vpack.c.b16 %v3074, %v3074
        %v3121 = vpack.c.b16 %v3075, %v3075
        %v3122 = vpack.c.b16 %v3076, %v3076
        %v3123 = vpack.c.b16 %v3077, %v3077
        %v3124 = vpack.c.b16 %v3078, %v3078
        %v3125 = vpack.c.b16 %v3079, %v3079
        %v3126 = vpack.c.b16 %v3080, %v3080
        %v3127 = vpack.c.b16 %v3081, %v3081
        %v3128 = vpack.c.b16 %v3082, %v3082
        %v3129 = vpack.c.b16 %v3083, %v3083
        %v3130 = vpack.c.b16 %v3084, %v3084
        %v3131 = vpack.c.b16 %v3085, %v3085
        %v3132 = vpack.c.b16 %v3086, %v3086
        %v3133 = vpack.c.b16 %v3087, %v3087
        %v3134 = vpack.c.b16 %v3088, %v3088
        %v3135 = vpack.c.b16 %v3089, %v3089
        %v3136 = vpack.c.b16 %v3090, %v3090
        %v3137 = vpack.c.b16 %v3091, %v3091
        %v3138 = vpack.c.b16 %v3092, %v3092
        %vm3185 = vcmask 257024
        %3186 = vst.msk [vmem:[%s947] sm:$0xf] %vm3185, %v3093
        %3187 = vst.msk [vmem:[%s947 + $0x4] sm:$0xf] %vm3185, %v3094
        %3188 = vst.msk [vmem:[%s947 + $0x8] sm:$0xf] %vm3185, %v3095
        %3189 = vst.msk [vmem:[%s947 + $0xc] sm:$0xf] %vm3185, %v3096
        %3190 = vst.msk [vmem:[%s947 + $0x10] sm:$0xf] %vm3185, %v3097
        %3191 = vst.msk [vmem:[%s947 + $0x14] sm:$0xf] %vm3185, %v3098
        %3192 = vst.msk [vmem:[%s947 + $0x18] sm:$0xf] %vm3185, %v3099
        %3193 = vst.msk [vmem:[%s947 + $0x1c] sm:$0xf] %vm3185, %v3100
        %3194 = vst.msk [vmem:[%s947 + $0x20] sm:$0xf] %vm3185, %v3101
        %3195 = vst.msk [vmem:[%s947 + $0x24] sm:$0xf] %vm3185, %v3102
        %3196 = vst.msk [vmem:[%s947 + $0x28] sm:$0xf] %vm3185, %v3103
        %3197 = vst.msk [vmem:[%s947 + $0x2c] sm:$0xf] %vm3185, %v3104
        %3198 = vst.msk [vmem:[%s947 + $0x30] sm:$0xf] %vm3185, %v3105
        %3199 = vst.msk [vmem:[%s947 + $0x34] sm:$0xf] %vm3185, %v3106
        %3200 = vst.msk [vmem:[%s947 + $0x38] sm:$0xf] %vm3185, %v3107
        %3201 = vst.msk [vmem:[%s947 + $0x3c] sm:$0xf] %vm3185, %v3108
        %3202 = vst.msk [vmem:[%s947 + $0x40] sm:$0xf] %vm3185, %v3109
        %3203 = vst.msk [vmem:[%s947 + $0x44] sm:$0xf] %vm3185, %v3110
        %3204 = vst.msk [vmem:[%s947 + $0x48] sm:$0xf] %vm3185, %v3111
        %3205 = vst.msk [vmem:[%s947 + $0x4c] sm:$0xf] %vm3185, %v3112
        %3206 = vst.msk [vmem:[%s947 + $0x50] sm:$0xf] %vm3185, %v3113
        %3207 = vst.msk [vmem:[%s947 + $0x54] sm:$0xf] %vm3185, %v3114
        %3208 = vst.msk [vmem:[%s947 + $0x58] sm:$0xf] %vm3185, %v3115
        %3209 = vst.msk [vmem:[%s947 + $0x5c] sm:$0xf] %vm3185, %v3116
        %3210 = vst.msk [vmem:[%s947 + $0x60] sm:$0xf] %vm3185, %v3117
        %3211 = vst.msk [vmem:[%s947 + $0x64] sm:$0xf] %vm3185, %v3118
        %3212 = vst.msk [vmem:[%s947 + $0x68] sm:$0xf] %vm3185, %v3119
        %3213 = vst.msk [vmem:[%s947 + $0x6c] sm:$0xf] %vm3185, %v3120
        %3214 = vst.msk [vmem:[%s947 + $0x70] sm:$0xf] %vm3185, %v3121
        %3215 = vst.msk [vmem:[%s947 + $0x74] sm:$0xf] %vm3185, %v3122
        %3216 = vst.msk [vmem:[%s947 + $0x78] sm:$0xf] %vm3185, %v3123
        %3217 = vst.msk [vmem:[%s947 + $0x7c] sm:$0xf] %vm3185, %v3124
        %3218 = vst.msk [vmem:[%s947 + $0x80] sm:$0xf] %vm3185, %v3125
        %3219 = vst.msk [vmem:[%s947 + $0x84] sm:$0xf] %vm3185, %v3126
        %3220 = vst.msk [vmem:[%s947 + $0x88] sm:$0xf] %vm3185, %v3127
        %3221 = vst.msk [vmem:[%s947 + $0x8c] sm:$0xf] %vm3185, %v3128
        %3222 = vst.msk [vmem:[%s947 + $0x90] sm:$0xf] %vm3185, %v3129
        %3223 = vst.msk [vmem:[%s947 + $0x94] sm:$0xf] %vm3185, %v3130
        %3224 = vst.msk [vmem:[%s947 + $0x98] sm:$0xf] %vm3185, %v3131
        %3225 = vst.msk [vmem:[%s947 + $0x9c] sm:$0xf] %vm3185, %v3132
        %3226 = vst.msk [vmem:[%s947 + $0xa0] sm:$0xf] %vm3185, %v3133
        %3227 = vst.msk [vmem:[%s947 + $0xa4] sm:$0xf] %vm3185, %v3134
        %3228 = vst.msk [vmem:[%s947 + $0xa8] sm:$0xf] %vm3185, %v3135
        %3229 = vst.msk [vmem:[%s947 + $0xac] sm:$0xf] %vm3185, %v3136
        %3230 = vst.msk [vmem:[%s947 + $0xb0] sm:$0xf] %vm3185, %v3137
        %3231 = vst.msk [vmem:[%s947 + $0xb4] sm:$0xf] %vm3185, %v3138
        %s3232 = smul.u32 46, %s14
        %p3233 = scmp.lt.s32.totalorder %s3232, 137
        %s3234 = scalar_select %p3233, %s3232, 137
        %s3235 = smul.addr %s3234, 4
        %s3236 = scalar_lea.vmem %s3, %s3235
        // Predicated region
        $region74: #{net_forward.4} parent=68 // pred_check
          %p3237 = pneg %p100
        $region75: #{net_forward.4} parent=68 // pred_check_branch
          %3239 = sbr.rel (%p3237) target = $region77
        $region76: #{net_forward.4} parent=68 // pred_region
          %s3240 = smul.u32 46, %s14
        $region77: #{net_forward.4} parent=68 // pred_fallthru
          _
      $region69: #{net_forward.4} parent=5 // pred_fallthru
        _
      %p3241 = scmp.le.s32.totalorder 2, %s9
      // Predicated region
      $region78: #{net_forward.4} parent=5 // pred_check
        %p3242 = pneg %p3241
      $region79: #{net_forward.4} parent=5 // pred_check_branch
        %3244 = sbr.rel (%p3242) target = $region81
      $region80: #{net_forward.4} parent=5 // pred_region
        %s3245 = ssub.s32 %s9, 2
        // Predicated region
        $region82: #{net_forward.4} parent=80 // pred_check
          %p3246 = pneg %p106
        $region83: #{net_forward.4} parent=80 // pred_check_branch
          %3248 = sbr.rel (%p3246) target = $region85
        $region84: #{net_forward.4} parent=80 // pred_region
          %s3249 = smul.u32 46, %s15
          %p3250 = scmp.lt.s32.totalorder %s3249, 137
          %s3251 = scalar_select %p3250, %s3249, 137
          %s3252 = smul.addr %s3251, 4
          %s3253 = scalar_lea.vmem %s3, %s3252
        $region85: #{net_forward.4} parent=80 // pred_fallthru
          _
      $region81: #{net_forward.4} parent=5 // pred_fallthru
        _
    $region6: #{net_forward.4} parent=1 // loop_footer
      %s13 = sadd.s32 1, %s9
    $region7: #{net_forward.4} parent=1 // loop_footer_branch
      %8 = sbr.rel target = $region3
    $region8: #{net_forward.4} parent=1 // loop_exit
      _

// kernel: net_forward.5
$region0: #{net_forward.5}
  #allocation0 [shape = 'u32[]', space=smem, size = 0x4, offset = 0x4, fixed_abs, tag = 'smem constant byte address 0x4 - core index']
  #allocation1 [shape = 'u32[144,128]{1,0:T(1,128)}', space=vmem, size = 0x12000, scoped, tag = 'internal scratch']
  %s0 = inlined_call_operand.vmem [shape: bf16[4,192,896], index: 0, kind: input, shape index: {}]
  %s1 = inlined_call_operand.vmem [shape: bf16[896,64], index: 1, kind: input, shape index: {}]
  %s2 = inlined_call_operand.vmem [shape: f32[1,64], index: 2, kind: input, shape index: {}]
  %s3 = inlined_call_operand.vmem [shape: bf16[192,64], index: 3, kind: output, shape index: {}]
  %s4 = sld [smem:[#allocation0]]
  $region71: #{net_forward.5} parent=0
    _
  %s6 = ssub.s32 1, %s4
  %s7 = scalar_select 0, %s6, %s4
  $region1: #{net_forward.5} parent=0
    #allocation2 [shape = 'u8[1376256]{0}', space=vmem, size = 0x150000, scoped, tag = 'input window, operand 0']
    loop: start=0, step=1, limit=4
    $region2: #{net_forward.5} parent=1 // loop_pre_header
      _
    $region3: #{net_forward.5} parent=1 // loop_header
      %s9 = sphi 0, %s13
      %p10 = scmp.ge.s32.totalorder %s9, 4
      %s19 = sphi 0, %s21
      %s22 = sphi 0, %s19
      %s23 = sphi 0, %s22
      %s39 = sphi 0, %s23
      %s43 = sphi 0, %s43
      %s45 = sphi 0, %s43
      %s46 = sphi 0, %s45
      %s60 = sphi 0, %s46
      %s64 = sphi 0, %s64
      %s66 = sphi 0, %s64
      %s67 = sphi 0, %s66
      %s81 = sphi 0, %s67
      %s87 = sphi 0, %s89
      %s90 = sphi 0, %s87
      %s91 = sphi 0, %s90
      %s107 = sphi 0, %s91
    $region4: #{net_forward.5} parent=1 // loop_header_branch
      %12 = sbr.rel (%p10) target = $region8
    $region5: #{net_forward.5} parent=1 // loop_body
      %s14 = ssub.s32 %s9, 1
      %s15 = ssub.s32 %s9, 2
      %s16 = sadd.s32 %s9, 1
      %s17 = ssub.s32 %s9, %s16
      %p18 = scmp.eq.s32.totalorder %s17, 0
      %s20 = sadd.s32 %s19, 1
      %s21 = scalar_select %p18, %s19, %s20
      %p24 = pneg %p18
      %p25 = scmp.eq.s32.totalorder %s9, 1
      %p26 = por %p24, %p25
      %p27 = scmp.ne.s32.totalorder %s19, %s22
      %p28 = scmp.eq.s32.totalorder %s9, 0
      %p29 = por %p27, %p28
      %p30 = scmp.ne.s32.totalorder %s19, %s22
      %p31 = scmp.eq.s32.totalorder %s14, 1
      %p32 = por %p30, %p31
      %p33 = scmp.ne.s32.totalorder %s22, %s23
      %p34 = scmp.eq.s32.totalorder %s14, 0
      %p35 = por %p33, %p34
      %p36 = scmp.ne.s32.totalorder %s22, %s23
      %p37 = scmp.eq.s32.totalorder %s15, 1
      %p38 = por %p36, %p37
      %p40 = scmp.ne.s32.totalorder %s23, %s39
      %p41 = scmp.eq.s32.totalorder %s15, 0
      %p42 = por %p40, %p41
      %s44 = sadd.s32 %s43, 1
      %p47 = scmp.eq.s32.totalorder %s9, 1
      %p48 = scmp.ne.s32.totalorder %s43, %s45
      %p49 = scmp.eq.s32.totalorder %s9, 0
      %p50 = por %p48, %p49
      %p51 = scmp.ne.s32.totalorder %s43, %s45
      %p52 = scmp.eq.s32.totalorder %s14, 1
      %p53 = por %p51, %p52
      %p54 = scmp.ne.s32.totalorder %s45, %s46
      %p55 = scmp.eq.s32.totalorder %s14, 0
      %p56 = por %p54, %p55
      %p57 = scmp.ne.s32.totalorder %s45, %s46
      %p58 = scmp.eq.s32.totalorder %s15, 1
      %p59 = por %p57, %p58
      %p61 = scmp.ne.s32.totalorder %s46, %s60
      %p62 = scmp.eq.s32.totalorder %s15, 0
      %p63 = por %p61, %p62
      %s65 = sadd.s32 %s64, 1
      %p68 = scmp.eq.s32.totalorder %s9, 1
      %p69 = scmp.ne.s32.totalorder %s64, %s66
      %p70 = scmp.eq.s32.totalorder %s9, 0
      %p71 = por %p69, %p70
      %p72 = scmp.ne.s32.totalorder %s64, %s66
      %p73 = scmp.eq.s32.totalorder %s14, 1
      %p74 = por %p72, %p73
      %p75 = scmp.ne.s32.totalorder %s66, %s67
      %p76 = scmp.eq.s32.totalorder %s14, 0
      %p77 = por %p75, %p76
      %p78 = scmp.ne.s32.totalorder %s66, %s67
      %p79 = scmp.eq.s32.totalorder %s15, 1
      %p80 = por %p78, %p79
      %p82 = scmp.ne.s32.totalorder %s67, %s81
      %p83 = scmp.eq.s32.totalorder %s15, 0
      %p84 = por %p82, %p83
      %s85 = ssub.s32 %s9, %s16
      %p86 = scmp.eq.s32.totalorder %s85, 0
      %s88 = sadd.s32 %s87, 1
      %s89 = scalar_select %p86, %s87, %s88
      %p92 = pneg %p86
      %p93 = scmp.eq.s32.totalorder %s9, 1
      %p94 = por %p92, %p93
      %p95 = scmp.ne.s32.totalorder %s87, %s90
      %p96 = scmp.eq.s32.totalorder %s9, 0
      %p97 = por %p95, %p96
      %p98 = scmp.ne.s32.totalorder %s87, %s90
      %p99 = scmp.eq.s32.totalorder %s14, 1
      %p100 = por %p98, %p99
      %p101 = scmp.ne.s32.totalorder %s90, %s91
      %p102 = scmp.eq.s32.totalorder %s14, 0
      %p103 = por %p101, %p102
      %p104 = scmp.ne.s32.totalorder %s90, %s91
      %p105 = scmp.eq.s32.totalorder %s15, 1
      %p106 = por %p104, %p105
      %p108 = scmp.ne.s32.totalorder %s91, %s107
      %p109 = scmp.eq.s32.totalorder %s15, 0
      %p110 = por %p108, %p109
      %p111 = scmp.le.s32.totalorder 1, %s9
      %p112 = scmp.lt.s32.totalorder %s9, 3
      %p113 = pnand %p111, %p112
      %p114 = pneg %p113
      // Predicated region
      $region9: #{net_forward.5} parent=5 // pred_check
        _
      $region10: #{net_forward.5} parent=5 // pred_check_branch
        %116 = sbr.rel (%p113) target = $region12
      $region11: #{net_forward.5} parent=5 // pred_region
        %s117 = ssub.s32 %s9, 1
        // Predicated region
        $region13: #{net_forward.5} parent=11 // pred_check
          %p118 = pneg %p56
        $region14: #{net_forward.5} parent=11 // pred_check_branch
          %120 = sbr.rel (%p118) target = $region16
        $region15: #{net_forward.5} parent=11 // pred_region
          _
        $region16: #{net_forward.5} parent=11 // pred_fallthru
          _
        // Predicated region
        $region17: #{net_forward.5} parent=11 // pred_check
          %p121 = pneg %p77
        $region18: #{net_forward.5} parent=11 // pred_check_branch
          %123 = sbr.rel (%p121) target = $region20
        $region19: #{net_forward.5} parent=11 // pred_region
          _
        $region20: #{net_forward.5} parent=11 // pred_fallthru
          _
      $region12: #{net_forward.5} parent=5 // pred_fallthru
        _
      %p124 = scmp.lt.s32.totalorder %s9, 2
      // Predicated region
      $region21: #{net_forward.5} parent=5 // pred_check
        %p125 = pneg %p124
      $region22: #{net_forward.5} parent=5 // pred_check_branch
        %127 = sbr.rel (%p125) target = $region24
      $region23: #{net_forward.5} parent=5 // pred_region
        // Predicated region
        $region25: #{net_forward.5} parent=23 // pred_check
          %p128 = pneg %p29
        $region26: #{net_forward.5} parent=23 // pred_check_branch
          %130 = sbr.rel (%p128) target = $region28
        $region27: #{net_forward.5} parent=23 // pred_region
          %s131 = sand.u32 %s19, 1
          %s132 = sand.u32 %s19, 1
          %s133 = smul.addr %s132, 1344
          %s134 = scalar_lea.vmem [#allocation2], %s133
          %s135 = smul.u32 12, %s9
          %s136 = smul.addr %s135, 7
          %s137 = smul.addr %s136, 4
          %s138 = scalar_lea.vmem %s0, %s137
          // Predicated region
          $region29: #{net_forward.5} parent=27 // pred_check
            _
          $region30: #{net_forward.5} parent=27 // pred_check_branch
            %140 = sbr.rel (0) target = $region32
          $region31: #{net_forward.5} parent=27 // pred_region
            // Predicated region
            $region33: #{net_forward.5} parent=31 // pred_check
              _
            $region34: #{net_forward.5} parent=31 // pred_check_branch
              %142 = sbr.rel (0) target = $region36
            $region35: #{net_forward.5} parent=31 // pred_region
              %s143 = scalar_lea.vmem %s138, 24
              %s144 = scalar_lea.vmem %s134, 24 [#allocation2]
              loop: start=0, step=1, limit=1
              $region37: #{net_forward.5} parent=35 // loop_pre_header
                _
              $region38: #{net_forward.5} parent=35 // loop_header
                %s146 = sphi 0, %s150
                %p147 = scmp.ge.s32.totalorder %s146, 1
                %s151 = sphi %s138, %s138
                %s152 = sphi %s134, %s134
              $region39: #{net_forward.5} parent=35 // loop_header_branch
                %149 = sbr.rel (%p147) target = $region43
              $region40: #{net_forward.5} parent=35 // loop_body
                %v153 = vld [vmem:[%s151] sm:$0xff]
                %154 = vst [vmem:[%s152] sm:$0xff] %v153
                %v155 = vld [vmem:[%s151 + $0x8] sm:$0xff]
                %156 = vst [vmem:[%s152 + $0x8] sm:$0xff] %v155
                %v157 = vld [vmem:[%s151 + $0x10] sm:$0xff]
                %158 = vst [vmem:[%s152 + $0x10] sm:$0xff] %v157
                %v159 = vld [vmem:[%s151 + $0x1c] sm:$0xff]
                %160 = vst [vmem:[%s152 + $0x1c] sm:$0xff] %v159
                %v161 = vld [vmem:[%s151 + $0x24] sm:$0xff]
                %162 = vst [vmem:[%s152 + $0x24] sm:$0xff] %v161
                %v163 = vld [vmem:[%s151 + $0x2c] sm:$0xff]
                %164 = vst [vmem:[%s152 + $0x2c] sm:$0xff] %v163
                %v165 = vld [vmem:[%s151 + $0x38] sm:$0xff]
                %166 = vst [vmem:[%s152 + $0x38] sm:$0xff] %v165
                %v167 = vld [vmem:[%s151 + $0x40] sm:$0xff]
                %168 = vst [vmem:[%s152 + $0x40] sm:$0xff] %v167
                %v169 = vld [vmem:[%s151 + $0x48] sm:$0xff]
                %170 = vst [vmem:[%s152 + $0x48] sm:$0xff] %v169
                %v171 = vld [vmem:[%s151 + $0x54] sm:$0xff]
                %172 = vst [vmem:[%s152 + $0x54] sm:$0xff] %v171
                %v173 = vld [vmem:[%s151 + $0x5c] sm:$0xff]
                %174 = vst [vmem:[%s152 + $0x5c] sm:$0xff] %v173
                %v175 = vld [vmem:[%s151 + $0x64] sm:$0xff]
                %176 = vst [vmem:[%s152 + $0x64] sm:$0xff] %v175
                %v177 = vld [vmem:[%s151 + $0x70] sm:$0xff]
                %178 = vst [vmem:[%s152 + $0x70] sm:$0xff] %v177
                %v179 = vld [vmem:[%s151 + $0x78] sm:$0xff]
                %180 = vst [vmem:[%s152 + $0x78] sm:$0xff] %v179
                %v181 = vld [vmem:[%s151 + $0x80] sm:$0xff]
                %182 = vst [vmem:[%s152 + $0x80] sm:$0xff] %v181
                %v183 = vld [vmem:[%s151 + $0x8c] sm:$0xff]
                %184 = vst [vmem:[%s152 + $0x8c] sm:$0xff] %v183
                %v185 = vld [vmem:[%s151 + $0x94] sm:$0xff]
                %186 = vst [vmem:[%s152 + $0x94] sm:$0xff] %v185
                %v187 = vld [vmem:[%s151 + $0x9c] sm:$0xff]
                %188 = vst [vmem:[%s152 + $0x9c] sm:$0xff] %v187
                %v189 = vld [vmem:[%s151 + $0xa8] sm:$0xff]
                %190 = vst [vmem:[%s152 + $0xa8] sm:$0xff] %v189
                %v191 = vld [vmem:[%s151 + $0xb0] sm:$0xff]
                %192 = vst [vmem:[%s152 + $0xb0] sm:$0xff] %v191
                %v193 = vld [vmem:[%s151 + $0xb8] sm:$0xff]
                %194 = vst [vmem:[%s152 + $0xb8] sm:$0xff] %v193
                %v195 = vld [vmem:[%s151 + $0xc4] sm:$0xff]
                %196 = vst [vmem:[%s152 + $0xc4] sm:$0xff] %v195
                %v197 = vld [vmem:[%s151 + $0xcc] sm:$0xff]
                %198 = vst [vmem:[%s152 + $0xcc] sm:$0xff] %v197
                %v199 = vld [vmem:[%s151 + $0xd4] sm:$0xff]
                %200 = vst [vmem:[%s152 + $0xd4] sm:$0xff] %v199
                %v201 = vld [vmem:[%s151 + $0xe0] sm:$0xff]
                %202 = vst [vmem:[%s152 + $0xe0] sm:$0xff] %v201
                %v203 = vld [vmem:[%s151 + $0xe8] sm:$0xff]
                %204 = vst [vmem:[%s152 + $0xe8] sm:$0xff] %v203
                %v205 = vld [vmem:[%s151 + $0xf0] sm:$0xff]
                %206 = vst [vmem:[%s152 + $0xf0] sm:$0xff] %v205
                %v207 = vld [vmem:[%s151 + $0xfc] sm:$0xff]
                %208 = vst [vmem:[%s152 + $0xfc] sm:$0xff] %v207
                %v209 = vld [vmem:[%s151 + $0x104] sm:$0xff]
                %210 = vst [vmem:[%s152 + $0x104] sm:$0xff] %v209
                %v211 = vld [vmem:[%s151 + $0x10c] sm:$0xff]
                %212 = vst [vmem:[%s152 + $0x10c] sm:$0xff] %v211
                %v213 = vld [vmem:[%s151 + $0x118] sm:$0xff]
                %214 = vst [vmem:[%s152 + $0x118] sm:$0xff] %v213
                %v215 = vld [vmem:[%s151 + $0x120] sm:$0xff]
                %216 = vst [vmem:[%s152 + $0x120] sm:$0xff] %v215
                %v217 = vld [vmem:[%s151 + $0x128] sm:$0xff]
                %218 = vst [vmem:[%s152 + $0x128] sm:$0xff] %v217
                %v219 = vld [vmem:[%s151 + $0x134] sm:$0xff]
                %220 = vst [vmem:[%s152 + $0x134] sm:$0xff] %v219
                %v221 = vld [vmem:[%s151 + $0x13c] sm:$0xff]
                %222 = vst [vmem:[%s152 + $0x13c] sm:$0xff] %v221
                %v223 = vld [vmem:[%s151 + $0x144] sm:$0xff]
                %224 = vst [vmem:[%s152 + $0x144] sm:$0xff] %v223
                %v225 = vld [vmem:[%s151 + $0x2a0] sm:$0xff]
                %226 = vst [vmem:[%s152 + $0x150] sm:$0xff] %v225
                %v227 = vld [vmem:[%s151 + $0x2a8] sm:$0xff]
                %228 = vst [vmem:[%s152 + $0x158] sm:$0xff] %v227
                %v229 = vld [vmem:[%s151 + $0x2b0] sm:$0xff]
                %230 = vst [vmem:[%s152 + $0x160] sm:$0xff] %v229
                %v231 = vld [vmem:[%s151 + $0x2bc] sm:$0xff]
                %232 = vst [vmem:[%s152 + $0x16c] sm:$0xff] %v231
                %v233 = vld [vmem:[%s151 + $0x2c4] sm:$0xff]
                %234 = vst [vmem:[%s152 + $0x174] sm:$0xff] %v233
                %v235 = vld [vmem:[%s151 + $0x2cc] sm:$0xff]
                %236 = vst [vmem:[%s152 + $0x17c] sm:$0xff] %v235
                %v237 = vld [vmem:[%s151 + $0x2d8] sm:$0xff]
                %238 = vst [vmem:[%s152 + $0x188] sm:$0xff] %v237
                %v239 = vld [vmem:[%s151 + $0x2e0] sm:$0xff]
                %240 = vst [vmem:[%s152 + $0x190] sm:$0xff] %v239
                %v241 = vld [vmem:[%s151 + $0x2e8] sm:$0xff]
                %242 = vst [vmem:[%s152 + $0x198] sm:$0xff] %v241
                %v243 = vld [vmem:[%s151 + $0x2f4] sm:$0xff]
                %244 = vst [vmem:[%s152 + $0x1a4] sm:$0xff] %v243
                %v245 = vld [vmem:[%s151 + $0x2fc] sm:$0xff]
                %246 = vst [vmem:[%s152 + $0x1ac] sm:$0xff] %v245
                %v247 = vld [vmem:[%s151 + $0x304] sm:$0xff]
                %248 = vst [vmem:[%s152 + $0x1b4] sm:$0xff] %v247
                %v249 = vld [vmem:[%s151 + $0x310] sm:$0xff]
                %250 = vst [vmem:[%s152 + $0x1c0] sm:$0xff] %v249
                %v251 = vld [vmem:[%s151 + $0x318] sm:$0xff]
                %252 = vst [vmem:[%s152 + $0x1c8] sm:$0xff] %v251
                %v253 = vld [vmem:[%s151 + $0x320] sm:$0xff]
                %254 = vst [vmem:[%s152 + $0x1d0] sm:$0xff] %v253
                %v255 = vld [vmem:[%s151 + $0x32c] sm:$0xff]
                %256 = vst [vmem:[%s152 + $0x1dc] sm:$0xff] %v255
                %v257 = vld [vmem:[%s151 + $0x334] sm:$0xff]
                %258 = vst [vmem:[%s152 + $0x1e4] sm:$0xff] %v257
                %v259 = vld [vmem:[%s151 + $0x33c] sm:$0xff]
                %260 = vst [vmem:[%s152 + $0x1ec] sm:$0xff] %v259
                %v261 = vld [vmem:[%s151 + $0x348] sm:$0xff]
                %262 = vst [vmem:[%s152 + $0x1f8] sm:$0xff] %v261
                %v263 = vld [vmem:[%s151 + $0x350] sm:$0xff]
                %264 = vst [vmem:[%s152 + $0x200] sm:$0xff] %v263
                %v265 = vld [vmem:[%s151 + $0x358] sm:$0xff]
                %266 = vst [vmem:[%s152 + $0x208] sm:$0xff] %v265
                %v267 = vld [vmem:[%s151 + $0x364] sm:$0xff]
                %268 = vst [vmem:[%s152 + $0x214] sm:$0xff] %v267
                %v269 = vld [vmem:[%s151 + $0x36c] sm:$0xff]
                %270 = vst [vmem:[%s152 + $0x21c] sm:$0xff] %v269
                %v271 = vld [vmem:[%s151 + $0x374] sm:$0xff]
                %272 = vst [vmem:[%s152 + $0x224] sm:$0xff] %v271
                %v273 = vld [vmem:[%s151 + $0x380] sm:$0xff]
                %274 = vst [vmem:[%s152 + $0x230] sm:$0xff] %v273
                %v275 = vld [vmem:[%s151 + $0x388] sm:$0xff]
                %276 = vst [vmem:[%s152 + $0x238] sm:$0xff] %v275
                %v277 = vld [vmem:[%s151 + $0x390] sm:$0xff]
                %278 = vst [vmem:[%s152 + $0x240] sm:$0xff] %v277
                %v279 = vld [vmem:[%s151 + $0x39c] sm:$0xff]
                %280 = vst [vmem:[%s152 + $0x24c] sm:$0xff] %v279
                %v281 = vld [vmem:[%s151 + $0x3a4] sm:$0xff]
                %282 = vst [vmem:[%s152 + $0x254] sm:$0xff] %v281
                %v283 = vld [vmem:[%s151 + $0x3ac] sm:$0xff]
                %284 = vst [vmem:[%s152 + $0x25c] sm:$0xff] %v283
                %v285 = vld [vmem:[%s151 + $0x3b8] sm:$0xff]
                %286 = vst [vmem:[%s152 + $0x268] sm:$0xff] %v285
                %v287 = vld [vmem:[%s151 + $0x3c0] sm:$0xff]
                %288 = vst [vmem:[%s152 + $0x270] sm:$0xff] %v287
                %v289 = vld [vmem:[%s151 + $0x3c8] sm:$0xff]
                %290 = vst [vmem:[%s152 + $0x278] sm:$0xff] %v289
                %v291 = vld [vmem:[%s151 + $0x3d4] sm:$0xff]
                %292 = vst [vmem:[%s152 + $0x284] sm:$0xff] %v291
                %v293 = vld [vmem:[%s151 + $0x3dc] sm:$0xff]
                %294 = vst [vmem:[%s152 + $0x28c] sm:$0xff] %v293
                %v295 = vld [vmem:[%s151 + $0x3e4] sm:$0xff]
                %296 = vst [vmem:[%s152 + $0x294] sm:$0xff] %v295
                %v297 = vld [vmem:[%s151 + $0x540] sm:$0xff]
                %298 = vst [vmem:[%s152 + $0x2a0] sm:$0xff] %v297
                %v299 = vld [vmem:[%s151 + $0x548] sm:$0xff]
                %300 = vst [vmem:[%s152 + $0x2a8] sm:$0xff] %v299
                %v301 = vld [vmem:[%s151 + $0x550] sm:$0xff]
                %302 = vst [vmem:[%s152 + $0x2b0] sm:$0xff] %v301
                %v303 = vld [vmem:[%s151 + $0x55c] sm:$0xff]
                %304 = vst [vmem:[%s152 + $0x2bc] sm:$0xff] %v303
                %v305 = vld [vmem:[%s151 + $0x564] sm:$0xff]
                %306 = vst [vmem:[%s152 + $0x2c4] sm:$0xff] %v305
                %v307 = vld [vmem:[%s151 + $0x56c] sm:$0xff]
                %308 = vst [vmem:[%s152 + $0x2cc] sm:$0xff] %v307
                %v309 = vld [vmem:[%s151 + $0x578] sm:$0xff]
                %310 = vst [vmem:[%s152 + $0x2d8] sm:$0xff] %v309
                %v311 = vld [vmem:[%s151 + $0x580] sm:$0xff]
                %312 = vst [vmem:[%s152 + $0x2e0] sm:$0xff] %v311
                %v313 = vld [vmem:[%s151 + $0x588] sm:$0xff]
                %314 = vst [vmem:[%s152 + $0x2e8] sm:$0xff] %v313
                %v315 = vld [vmem:[%s151 + $0x594] sm:$0xff]
                %316 = vst [vmem:[%s152 + $0x2f4] sm:$0xff] %v315
                %v317 = vld [vmem:[%s151 + $0x59c] sm:$0xff]
                %318 = vst [vmem:[%s152 + $0x2fc] sm:$0xff] %v317
                %v319 = vld [vmem:[%s151 + $0x5a4] sm:$0xff]
                %320 = vst [vmem:[%s152 + $0x304] sm:$0xff] %v319
                %v321 = vld [vmem:[%s151 + $0x5b0] sm:$0xff]
                %322 = vst [vmem:[%s152 + $0x310] sm:$0xff] %v321
                %v323 = vld [vmem:[%s151 + $0x5b8] sm:$0xff]
                %324 = vst [vmem:[%s152 + $0x318] sm:$0xff] %v323
                %v325 = vld [vmem:[%s151 + $0x5c0] sm:$0xff]
                %326 = vst [vmem:[%s152 + $0x320] sm:$0xff] %v325
                %v327 = vld [vmem:[%s151 + $0x5cc] sm:$0xff]
                %328 = vst [vmem:[%s152 + $0x32c] sm:$0xff] %v327
                %v329 = vld [vmem:[%s151 + $0x5d4] sm:$0xff]
                %330 = vst [vmem:[%s152 + $0x334] sm:$0xff] %v329
                %v331 = vld [vmem:[%s151 + $0x5dc] sm:$0xff]
                %332 = vst [vmem:[%s152 + $0x33c] sm:$0xff] %v331
                %v333 = vld [vmem:[%s151 + $0x5e8] sm:$0xff]
                %334 = vst [vmem:[%s152 + $0x348] sm:$0xff] %v333
                %v335 = vld [vmem:[%s151 + $0x5f0] sm:$0xff]
                %336 = vst [vmem:[%s152 + $0x350] sm:$0xff] %v335
                %v337 = vld [vmem:[%s151 + $0x5f8] sm:$0xff]
                %338 = vst [vmem:[%s152 + $0x358] sm:$0xff] %v337
                %v339 = vld [vmem:[%s151 + $0x604] sm:$0xff]
                %340 = vst [vmem:[%s152 + $0x364] sm:$0xff] %v339
                %v341 = vld [vmem:[%s151 + $0x60c] sm:$0xff]
                %342 = vst [vmem:[%s152 + $0x36c] sm:$0xff] %v341
                %v343 = vld [vmem:[%s151 + $0x614] sm:$0xff]
                %344 = vst [vmem:[%s152 + $0x374] sm:$0xff] %v343
                %v345 = vld [vmem:[%s151 + $0x620] sm:$0xff]
                %346 = vst [vmem:[%s152 + $0x380] sm:$0xff] %v345
                %v347 = vld [vmem:[%s151 + $0x628] sm:$0xff]
                %348 = vst [vmem:[%s152 + $0x388] sm:$0xff] %v347
                %v349 = vld [vmem:[%s151 + $0x630] sm:$0xff]
                %350 = vst [vmem:[%s152 + $0x390] sm:$0xff] %v349
                %v351 = vld [vmem:[%s151 + $0x63c] sm:$0xff]
                %352 = vst [vmem:[%s152 + $0x39c] sm:$0xff] %v351
                %v353 = vld [vmem:[%s151 + $0x644] sm:$0xff]
                %354 = vst [vmem:[%s152 + $0x3a4] sm:$0xff] %v353
                %v355 = vld [vmem:[%s151 + $0x64c] sm:$0xff]
                %356 = vst [vmem:[%s152 + $0x3ac] sm:$0xff] %v355
                %v357 = vld [vmem:[%s151 + $0x658] sm:$0xff]
                %358 = vst [vmem:[%s152 + $0x3b8] sm:$0xff] %v357
                %v359 = vld [vmem:[%s151 + $0x660] sm:$0xff]
                %360 = vst [vmem:[%s152 + $0x3c0] sm:$0xff] %v359
                %v361 = vld [vmem:[%s151 + $0x668] sm:$0xff]
                %362 = vst [vmem:[%s152 + $0x3c8] sm:$0xff] %v361
                %v363 = vld [vmem:[%s151 + $0x674] sm:$0xff]
                %364 = vst [vmem:[%s152 + $0x3d4] sm:$0xff] %v363
                %v365 = vld [vmem:[%s151 + $0x67c] sm:$0xff]
                %366 = vst [vmem:[%s152 + $0x3dc] sm:$0xff] %v365
                %v367 = vld [vmem:[%s151 + $0x684] sm:$0xff]
                %368 = vst [vmem:[%s152 + $0x3e4] sm:$0xff] %v367
                %v369 = vld [vmem:[%s151 + $0x7e0] sm:$0xff]
                %370 = vst [vmem:[%s152 + $0x3f0] sm:$0xff] %v369
                %v371 = vld [vmem:[%s151 + $0x7e8] sm:$0xff]
                %372 = vst [vmem:[%s152 + $0x3f8] sm:$0xff] %v371
                %v373 = vld [vmem:[%s151 + $0x7f0] sm:$0xff]
                %374 = vst [vmem:[%s152 + $0x400] sm:$0xff] %v373
                %v375 = vld [vmem:[%s151 + $0x7fc] sm:$0xff]
                %376 = vst [vmem:[%s152 + $0x40c] sm:$0xff] %v375
                %v377 = vld [vmem:[%s151 + $0x804] sm:$0xff]
                %378 = vst [vmem:[%s152 + $0x414] sm:$0xff] %v377
                %v379 = vld [vmem:[%s151 + $0x80c] sm:$0xff]
                %380 = vst [vmem:[%s152 + $0x41c] sm:$0xff] %v379
                %v381 = vld [vmem:[%s151 + $0x818] sm:$0xff]
                %382 = vst [vmem:[%s152 + $0x428] sm:$0xff] %v381
                %v383 = vld [vmem:[%s151 + $0x820] sm:$0xff]
                %384 = vst [vmem:[%s152 + $0x430] sm:$0xff] %v383
                %v385 = vld [vmem:[%s151 + $0x828] sm:$0xff]
                %386 = vst [vmem:[%s152 + $0x438] sm:$0xff] %v385
                %v387 = vld [vmem:[%s151 + $0x834] sm:$0xff]
                %388 = vst [vmem:[%s152 + $0x444] sm:$0xff] %v387
                %v389 = vld [vmem:[%s151 + $0x83c] sm:$0xff]
                %390 = vst [vmem:[%s152 + $0x44c] sm:$0xff] %v389
                %v391 = vld [vmem:[%s151 + $0x844] sm:$0xff]
                %392 = vst [vmem:[%s152 + $0x454] sm:$0xff] %v391
                %v393 = vld [vmem:[%s151 + $0x850] sm:$0xff]
                %394 = vst [vmem:[%s152 + $0x460] sm:$0xff] %v393
                %v395 = vld [vmem:[%s151 + $0x858] sm:$0xff]
                %396 = vst [vmem:[%s152 + $0x468] sm:$0xff] %v395
                %v397 = vld [vmem:[%s151 + $0x860] sm:$0xff]
                %398 = vst [vmem:[%s152 + $0x470] sm:$0xff] %v397
                %v399 = vld [vmem:[%s151 + $0x86c] sm:$0xff]
                %400 = vst [vmem:[%s152 + $0x47c] sm:$0xff] %v399
                %v401 = vld [vmem:[%s151 + $0x874] sm:$0xff]
                %402 = vst [vmem:[%s152 + $0x484] sm:$0xff] %v401
                %v403 = vld [vmem:[%s151 + $0x87c] sm:$0xff]
                %404 = vst [vmem:[%s152 + $0x48c] sm:$0xff] %v403
                %v405 = vld [vmem:[%s151 + $0x888] sm:$0xff]
                %406 = vst [vmem:[%s152 + $0x498] sm:$0xff] %v405
                %v407 = vld [vmem:[%s151 + $0x890] sm:$0xff]
                %408 = vst [vmem:[%s152 + $0x4a0] sm:$0xff] %v407
                %v409 = vld [vmem:[%s151 + $0x898] sm:$0xff]
                %410 = vst [vmem:[%s152 + $0x4a8] sm:$0xff] %v409
                %v411 = vld [vmem:[%s151 + $0x8a4] sm:$0xff]
                %412 = vst [vmem:[%s152 + $0x4b4] sm:$0xff] %v411
                %v413 = vld [vmem:[%s151 + $0x8ac] sm:$0xff]
                %414 = vst [vmem:[%s152 + $0x4bc] sm:$0xff] %v413
                %v415 = vld [vmem:[%s151 + $0x8b4] sm:$0xff]
                %416 = vst [vmem:[%s152 + $0x4c4] sm:$0xff] %v415
                %v417 = vld [vmem:[%s151 + $0x8c0] sm:$0xff]
                %418 = vst [vmem:[%s152 + $0x4d0] sm:$0xff] %v417
                %v419 = vld [vmem:[%s151 + $0x8c8] sm:$0xff]
                %420 = vst [vmem:[%s152 + $0x4d8] sm:$0xff] %v419
                %v421 = vld [vmem:[%s151 + $0x8d0] sm:$0xff]
                %422 = vst [vmem:[%s152 + $0x4e0] sm:$0xff] %v421
                %v423 = vld [vmem:[%s151 + $0x8dc] sm:$0xff]
                %424 = vst [vmem:[%s152 + $0x4ec] sm:$0xff] %v423
                %v425 = vld [vmem:[%s151 + $0x8e4] sm:$0xff]
                %426 = vst [vmem:[%s152 + $0x4f4] sm:$0xff] %v425
                %v427 = vld [vmem:[%s151 + $0x8ec] sm:$0xff]
                %428 = vst [vmem:[%s152 + $0x4fc] sm:$0xff] %v427
                %v429 = vld [vmem:[%s151 + $0x8f8] sm:$0xff]
                %430 = vst [vmem:[%s152 + $0x508] sm:$0xff] %v429
                %v431 = vld [vmem:[%s151 + $0x900] sm:$0xff]
                %432 = vst [vmem:[%s152 + $0x510] sm:$0xff] %v431
                %v433 = vld [vmem:[%s151 + $0x908] sm:$0xff]
                %434 = vst [vmem:[%s152 + $0x518] sm:$0xff] %v433
                %v435 = vld [vmem:[%s151 + $0x914] sm:$0xff]
                %436 = vst [vmem:[%s152 + $0x524] sm:$0xff] %v435
                %v437 = vld [vmem:[%s151 + $0x91c] sm:$0xff]
                %438 = vst [vmem:[%s152 + $0x52c] sm:$0xff] %v437
                %v439 = vld [vmem:[%s151 + $0x924] sm:$0xff]
                %440 = vst [vmem:[%s152 + $0x534] sm:$0xff] %v439
              $region41: #{net_forward.5} parent=35 // loop_footer
                %s150 = sadd.s32 1, %s146
              $region42: #{net_forward.5} parent=35 // loop_footer_branch
                %145 = sbr.rel target = $region38
              $region43: #{net_forward.5} parent=35 // loop_exit
                _
              %s442 = ssub.s32 16, 1
              loop: start=0, step=1, limit=1
              $region44: #{net_forward.5} parent=35 // loop_pre_header
                _
              $region45: #{net_forward.5} parent=35 // loop_header
                %s444 = sphi 0, %s448
                %p445 = scmp.ge.s32.totalorder %s444, 1
                %s449 = sphi %s143, %s143
                %s450 = sphi %s144, %s144
              $region46: #{net_forward.5} parent=35 // loop_header_branch
                %447 = sbr.rel (%p445) target = $region50
              $region47: #{net_forward.5} parent=35 // loop_body
                %v451 = vld [vmem:[%s449] sm:%s442]
                %452 = vst [vmem:[%s450] sm:%s442] %v451
                %v453 = vld [vmem:[%s449 + $0x1c] sm:%s442]
                %454 = vst [vmem:[%s450 + $0x1c] sm:%s442] %v453
                %v455 = vld [vmem:[%s449 + $0x38] sm:%s442]
                %456 = vst [vmem:[%s450 + $0x38] sm:%s442] %v455
                %v457 = vld [vmem:[%s449 + $0x54] sm:%s442]
                %458 = vst [vmem:[%s450 + $0x54] sm:%s442] %v457
                %v459 = vld [vmem:[%s449 + $0x70] sm:%s442]
                %460 = vst [vmem:[%s450 + $0x70] sm:%s442] %v459
                %v461 = vld [vmem:[%s449 + $0x8c] sm:%s442]
                %462 = vst [vmem:[%s450 + $0x8c] sm:%s442] %v461
                %v463 = vld [vmem:[%s449 + $0xa8] sm:%s442]
                %464 = vst [vmem:[%s450 + $0xa8] sm:%s442] %v463
                %v465 = vld [vmem:[%s449 + $0xc4] sm:%s442]
                %466 = vst [vmem:[%s450 + $0xc4] sm:%s442] %v465
                %v467 = vld [vmem:[%s449 + $0xe0] sm:%s442]
                %468 = vst [vmem:[%s450 + $0xe0] sm:%s442] %v467
                %v469 = vld [vmem:[%s449 + $0xfc] sm:%s442]
                %470 = vst [vmem:[%s450 + $0xfc] sm:%s442] %v469
                %v471 = vld [vmem:[%s449 + $0x118] sm:%s442]
                %472 = vst [vmem:[%s450 + $0x118] sm:%s442] %v471
                %v473 = vld [vmem:[%s449 + $0x134] sm:%s442]
                %474 = vst [vmem:[%s450 + $0x134] sm:%s442] %v473
                %v475 = vld [vmem:[%s449 + $0x2a0] sm:%s442]
                %476 = vst [vmem:[%s450 + $0x150] sm:%s442] %v475
                %v477 = vld [vmem:[%s449 + $0x2bc] sm:%s442]
                %478 = vst [vmem:[%s450 + $0x16c] sm:%s442] %v477
                %v479 = vld [vmem:[%s449 + $0x2d8] sm:%s442]
                %480 = vst [vmem:[%s450 + $0x188] sm:%s442] %v479
                %v481 = vld [vmem:[%s449 + $0x2f4] sm:%s442]
                %482 = vst [vmem:[%s450 + $0x1a4] sm:%s442] %v481
                %v483 = vld [vmem:[%s449 + $0x310] sm:%s442]
                %484 = vst [vmem:[%s450 + $0x1c0] sm:%s442] %v483
                %v485 = vld [vmem:[%s449 + $0x32c] sm:%s442]
                %486 = vst [vmem:[%s450 + $0x1dc] sm:%s442] %v485
                %v487 = vld [vmem:[%s449 + $0x348] sm:%s442]
                %488 = vst [vmem:[%s450 + $0x1f8] sm:%s442] %v487
                %v489 = vld [vmem:[%s449 + $0x364] sm:%s442]
                %490 = vst [vmem:[%s450 + $0x214] sm:%s442] %v489
                %v491 = vld [vmem:[%s449 + $0x380] sm:%s442]
                %492 = vst [vmem:[%s450 + $0x230] sm:%s442] %v491
                %v493 = vld [vmem:[%s449 + $0x39c] sm:%s442]
                %494 = vst [vmem:[%s450 + $0x24c] sm:%s442] %v493
                %v495 = vld [vmem:[%s449 + $0x3b8] sm:%s442]
                %496 = vst [vmem:[%s450 + $0x268] sm:%s442] %v495
                %v497 = vld [vmem:[%s449 + $0x3d4] sm:%s442]
                %498 = vst [vmem:[%s450 + $0x284] sm:%s442] %v497
                %v499 = vld [vmem:[%s449 + $0x540] sm:%s442]
                %500 = vst [vmem:[%s450 + $0x2a0] sm:%s442] %v499
                %v501 = vld [vmem:[%s449 + $0x55c] sm:%s442]
                %502 = vst [vmem:[%s450 + $0x2bc] sm:%s442] %v501
                %v503 = vld [vmem:[%s449 + $0x578] sm:%s442]
                %504 = vst [vmem:[%s450 + $0x2d8] sm:%s442] %v503
                %v505 = vld [vmem:[%s449 + $0x594] sm:%s442]
                %506 = vst [vmem:[%s450 + $0x2f4] sm:%s442] %v505
                %v507 = vld [vmem:[%s449 + $0x5b0] sm:%s442]
                %508 = vst [vmem:[%s450 + $0x310] sm:%s442] %v507
                %v509 = vld [vmem:[%s449 + $0x5cc] sm:%s442]
                %510 = vst [vmem:[%s450 + $0x32c] sm:%s442] %v509
                %v511 = vld [vmem:[%s449 + $0x5e8] sm:%s442]
                %512 = vst [vmem:[%s450 + $0x348] sm:%s442] %v511
                %v513 = vld [vmem:[%s449 + $0x604] sm:%s442]
                %514 = vst [vmem:[%s450 + $0x364] sm:%s442] %v513
                %v515 = vld [vmem:[%s449 + $0x620] sm:%s442]
                %516 = vst [vmem:[%s450 + $0x380] sm:%s442] %v515
                %v517 = vld [vmem:[%s449 + $0x63c] sm:%s442]
                %518 = vst [vmem:[%s450 + $0x39c] sm:%s442] %v517
                %v519 = vld [vmem:[%s449 + $0x658] sm:%s442]
                %520 = vst [vmem:[%s450 + $0x3b8] sm:%s442] %v519
                %v521 = vld [vmem:[%s449 + $0x674] sm:%s442]
                %522 = vst [vmem:[%s450 + $0x3d4] sm:%s442] %v521
                %v523 = vld [vmem:[%s449 + $0x7e0] sm:%s442]
                %524 = vst [vmem:[%s450 + $0x3f0] sm:%s442] %v523
                %v525 = vld [vmem:[%s449 + $0x7fc] sm:%s442]
                %526 = vst [vmem:[%s450 + $0x40c] sm:%s442] %v525
                %v527 = vld [vmem:[%s449 + $0x818] sm:%s442]
                %528 = vst [vmem:[%s450 + $0x428] sm:%s442] %v527
                %v529 = vld [vmem:[%s449 + $0x834] sm:%s442]
                %530 = vst [vmem:[%s450 + $0x444] sm:%s442] %v529
                %v531 = vld [vmem:[%s449 + $0x850] sm:%s442]
                %532 = vst [vmem:[%s450 + $0x460] sm:%s442] %v531
                %v533 = vld [vmem:[%s449 + $0x86c] sm:%s442]
                %534 = vst [vmem:[%s450 + $0x47c] sm:%s442] %v533
                %v535 = vld [vmem:[%s449 + $0x888] sm:%s442]
                %536 = vst [vmem:[%s450 + $0x498] sm:%s442] %v535
                %v537 = vld [vmem:[%s449 + $0x8a4] sm:%s442]
                %538 = vst [vmem:[%s450 + $0x4b4] sm:%s442] %v537
                %v539 = vld [vmem:[%s449 + $0x8c0] sm:%s442]
                %540 = vst [vmem:[%s450 + $0x4d0] sm:%s442] %v539
                %v541 = vld [vmem:[%s449 + $0x8dc] sm:%s442]
                %542 = vst [vmem:[%s450 + $0x4ec] sm:%s442] %v541
                %v543 = vld [vmem:[%s449 + $0x8f8] sm:%s442]
                %544 = vst [vmem:[%s450 + $0x508] sm:%s442] %v543
                %v545 = vld [vmem:[%s449 + $0x914] sm:%s442]
                %546 = vst [vmem:[%s450 + $0x524] sm:%s442] %v545
              $region48: #{net_forward.5} parent=35 // loop_footer
                %s448 = sadd.s32 1, %s444
              $region49: #{net_forward.5} parent=35 // loop_footer_branch
                %443 = sbr.rel target = $region45
              $region50: #{net_forward.5} parent=35 // loop_exit
                _
            $region36: #{net_forward.5} parent=31 // pred_fallthru
              _
          $region32: #{net_forward.5} parent=27 // pred_fallthru
            _
          %547 = vnop
        $region28: #{net_forward.5} parent=23 // pred_fallthru
          _
      $region24: #{net_forward.5} parent=5 // pred_fallthru
        _
      %p548 = scmp.le.s32.totalorder 1, %s9
      %p549 = scmp.lt.s32.totalorder %s9, 3
      %p550 = pnand %p548, %p549
      %p551 = pneg %p550
      // Predicated region
      $region51: #{net_forward.5} parent=5 // pred_check
        _
      $region52: #{net_forward.5} parent=5 // pred_check_branch
        %553 = sbr.rel (%p550) target = $region54
      $region53: #{net_forward.5} parent=5 // pred_region
        %s554 = ssub.s32 %s9, 1
        %s555 = sand.u32 %s22, 1
        %s556 = sand.u32 %s22, 1
        %s557 = smul.addr %s556, 1344
        %s558 = scalar_lea.vmem [#allocation2], %s557
        // Predicated region
        $region55: #{net_forward.5} parent=53 // pred_check
          %p559 = pneg %p35
        $region56: #{net_forward.5} parent=53 // pred_check_branch
          %561 = sbr.rel (%p559) target = $region58
        $region57: #{net_forward.5} parent=53 // pred_region
          _
        $region58: #{net_forward.5} parent=53 // pred_fallthru
          _
        %s562 = sand.u32 %s22, 1
        %s563 = sand.u32 %s22, 1
        %s564 = smul.addr %s563, 1344
        %s565 = scalar_lea.vmem [#allocation2], %s564
        %p566 = pneg %p35
        %p567 = pneg %p32
        %p568 = pneg %p56
        %p569 = pneg %p53
        %p570 = pneg %p77
        %p571 = pneg %p74
        %p572 = pneg %p103
        %p573 = pneg %p100
        %s574 = smul.u32 12, %s14
        %p575 = scmp.lt.s32.totalorder %s574, 23
        %s576 = scalar_select %p575, %s574, 23
        %s577 = smul.addr %s576, 4
        %s578 = scalar_lea.vmem %s3, %s577
        %s579 = smul.u32 12, %s14
        %s580 = smul.u32 12, %s14
        %p581 = scmp.lt.s32.totalorder %s580, 23
        %s582 = scalar_select %p581, %s580, 23
        %s583 = smul.addr %s582, 4
        %s584 = scalar_lea.vmem %s3, %s583
        %s585 = smul.u32 12, %s14
        %v587 = vld [vmem:[%s1] sm:$0xf]
        %v588 = vld [vmem:[%s1 + $0x4] sm:$0xf]
        %v589 = vld [vmem:[%s1 + $0x8] sm:$0xf]
        %v590 = vld [vmem:[%s1 + $0xc] sm:$0xf]
        %v591 = vld [vmem:[%s1 + $0x10] sm:$0xf]
        %v592 = vld [vmem:[%s1 + $0x14] sm:$0xf]
        %v593 = vld [vmem:[%s1 + $0x18] sm:$0xf]
        %v594 = vld [vmem:[%s1 + $0x1c] sm:$0xf]
        %v595 = vld [vmem:[%s1 + $0x20] sm:$0xf]
        %v596 = vld [vmem:[%s1 + $0x24] sm:$0xf]
        %v597 = vld [vmem:[%s1 + $0x28] sm:$0xf]
        %v598 = vld [vmem:[%s1 + $0x2c] sm:$0xf]
        %v599 = vld [vmem:[%s1 + $0x30] sm:$0xf]
        %v600 = vld [vmem:[%s1 + $0x34] sm:$0xf]
        %v601 = vld [vmem:[%s1 + $0x38] sm:$0xf]
        %v602 = vld [vmem:[%s1 + $0x3c] sm:$0xf]
        %v603 = vld [vmem:[%s1 + $0x40] sm:$0xf]
        %v604 = vld [vmem:[%s1 + $0x44] sm:$0xf]
        %v605 = vld [vmem:[%s1 + $0x48] sm:$0xf]
        %v606 = vld [vmem:[%s1 + $0x4c] sm:$0xf]
        %v607 = vld [vmem:[%s1 + $0x50] sm:$0xf]
        %v608 = vld [vmem:[%s1 + $0x54] sm:$0xf]
        %v609 = vld [vmem:[%s1 + $0x58] sm:$0xf]
        %v610 = vld [vmem:[%s1 + $0x5c] sm:$0xf]
        %v611 = vld [vmem:[%s1 + $0x60] sm:$0xf]
        %v612 = vld [vmem:[%s1 + $0x64] sm:$0xf]
        %v613 = vld [vmem:[%s1 + $0x68] sm:$0xf]
        %v614 = vld [vmem:[%s1 + $0x6c] sm:$0xf]
        %v615 = vld [vmem:[%s1 + $0x70] sm:$0xf]
        %v616 = vld [vmem:[%s1 + $0x74] sm:$0xf]
        %v617 = vld [vmem:[%s1 + $0x78] sm:$0xf]
        %v618 = vld [vmem:[%s1 + $0x7c] sm:$0xf]
        %v619 = vld [vmem:[%s1 + $0x80] sm:$0xf]
        %v620 = vld [vmem:[%s1 + $0x84] sm:$0xf]
        %v621 = vld [vmem:[%s1 + $0x88] sm:$0xf]
        %v622 = vld [vmem:[%s1 + $0x8c] sm:$0xf]
        %v623 = vld [vmem:[%s1 + $0x90] sm:$0xf]
        %v624 = vld [vmem:[%s1 + $0x94] sm:$0xf]
        %v625 = vld [vmem:[%s1 + $0x98] sm:$0xf]
        %v626 = vld [vmem:[%s1 + $0x9c] sm:$0xf]
        %v627 = vld [vmem:[%s1 + $0xa0] sm:$0xf]
        %v628 = vld [vmem:[%s1 + $0xa4] sm:$0xf]
        %v629 = vld [vmem:[%s1 + $0xa8] sm:$0xf]
        %v630 = vld [vmem:[%s1 + $0xac] sm:$0xf]
        %v631 = vld [vmem:[%s1 + $0xb0] sm:$0xf]
        %v632 = vld [vmem:[%s1 + $0xb4] sm:$0xf]
        %v633 = vld [vmem:[%s1 + $0xb8] sm:$0xf]
        %v634 = vld [vmem:[%s1 + $0xbc] sm:$0xf]
        %v635 = vld [vmem:[%s1 + $0xc0] sm:$0xf]
        %v636 = vld [vmem:[%s1 + $0xc4] sm:$0xf]
        %v637 = vld [vmem:[%s1 + $0xc8] sm:$0xf]
        %v638 = vld [vmem:[%s1 + $0xcc] sm:$0xf]
        %v639 = vld [vmem:[%s1 + $0xd0] sm:$0xf]
        %v640 = vld [vmem:[%s1 + $0xd4] sm:$0xf]
        %v641 = vld [vmem:[%s1 + $0xd8] sm:$0xf]
        %v642 = vld [vmem:[%s1 + $0xdc] sm:$0xf]
        %v643 = vld [vmem:[%s1 + $0xe0] sm:$0xf]
        %v644 = vld [vmem:[%s1 + $0xe4] sm:$0xf]
        %v645 = vld [vmem:[%s1 + $0xe8] sm:$0xf]
        %v646 = vld [vmem:[%s1 + $0xec] sm:$0xf]
        %v647 = vld [vmem:[%s1 + $0xf0] sm:$0xf]
        %v648 = vld [vmem:[%s1 + $0xf4] sm:$0xf]
        %v649 = vld [vmem:[%s1 + $0xf8] sm:$0xf]
        %v650 = vld [vmem:[%s1 + $0xfc] sm:$0xf]
        %v651 = vld [vmem:[%s1 + $0x100] sm:$0xf]
        %v652 = vld [vmem:[%s1 + $0x104] sm:$0xf]
        %v653 = vld [vmem:[%s1 + $0x108] sm:$0xf]
        %v654 = vld [vmem:[%s1 + $0x10c] sm:$0xf]
        %v655 = vld [vmem:[%s1 + $0x110] sm:$0xf]
        %v656 = vld [vmem:[%s1 + $0x114] sm:$0xf]
        %v657 = vld [vmem:[%s1 + $0x118] sm:$0xf]
        %v658 = vld [vmem:[%s1 + $0x11c] sm:$0xf]
        %v659 = vld [vmem:[%s1 + $0x120] sm:$0xf]
        %v660 = vld [vmem:[%s1 + $0x124] sm:$0xf]
        %v661 = vld [vmem:[%s1 + $0x128] sm:$0xf]
        %v662 = vld [vmem:[%s1 + $0x12c] sm:$0xf]
        %v663 = vld [vmem:[%s1 + $0x130] sm:$0xf]
        %v664 = vld [vmem:[%s1 + $0x134] sm:$0xf]
        %v665 = vld [vmem:[%s1 + $0x138] sm:$0xf]
        %v666 = vld [vmem:[%s1 + $0x13c] sm:$0xf]
        %v667 = vld [vmem:[%s1 + $0x140] sm:$0xf]
        %v668 = vld [vmem:[%s1 + $0x144] sm:$0xf]
        %v669 = vld [vmem:[%s1 + $0x148] sm:$0xf]
        %v670 = vld [vmem:[%s1 + $0x14c] sm:$0xf]
        %v671 = vld [vmem:[%s1 + $0x150] sm:$0xf]
        %v672 = vld [vmem:[%s1 + $0x154] sm:$0xf]
        %v673 = vld [vmem:[%s1 + $0x158] sm:$0xf]
        %v674 = vld [vmem:[%s1 + $0x15c] sm:$0xf]
        %v675 = vld [vmem:[%s1 + $0x160] sm:$0xf]
        %v676 = vld [vmem:[%s1 + $0x164] sm:$0xf]
        %v677 = vld [vmem:[%s1 + $0x168] sm:$0xf]
        %v678 = vld [vmem:[%s1 + $0x16c] sm:$0xf]
        %v679 = vld [vmem:[%s1 + $0x170] sm:$0xf]
        %v680 = vld [vmem:[%s1 + $0x174] sm:$0xf]
        %v681 = vld [vmem:[%s1 + $0x178] sm:$0xf]
        %v682 = vld [vmem:[%s1 + $0x17c] sm:$0xf]
        %v683 = vld [vmem:[%s1 + $0x180] sm:$0xf]
        %v684 = vld [vmem:[%s1 + $0x184] sm:$0xf]
        %v685 = vld [vmem:[%s1 + $0x188] sm:$0xf]
        %v686 = vld [vmem:[%s1 + $0x18c] sm:$0xf]
        %v687 = vld [vmem:[%s1 + $0x190] sm:$0xf]
        %v688 = vld [vmem:[%s1 + $0x194] sm:$0xf]
        %v689 = vld [vmem:[%s1 + $0x198] sm:$0xf]
        %v690 = vld [vmem:[%s1 + $0x19c] sm:$0xf]
        %v691 = vld [vmem:[%s1 + $0x1a0] sm:$0xf]
        %v692 = vld [vmem:[%s1 + $0x1a4] sm:$0xf]
        %v693 = vld [vmem:[%s1 + $0x1a8] sm:$0xf]
        %v694 = vld [vmem:[%s1 + $0x1ac] sm:$0xf]
        %v695 = vld [vmem:[%s1 + $0x1b0] sm:$0xf]
        %v696 = vld [vmem:[%s1 + $0x1b4] sm:$0xf]
        %v697 = vld [vmem:[%s1 + $0x1b8] sm:$0xf]
        %v698 = vld [vmem:[%s1 + $0x1bc] sm:$0xf]
        %v699 = vld [vmem:[%s558] sm:$0xff]
        %v700 = vld [vmem:[%s558 + $0x8] sm:$0xff]
        %v701 = vld [vmem:[%s558 + $0x10] sm:$0xff]
        %v702 = vld [vmem:[%s558 + $0x18] sm:$0xf]
        %v703 = vld [vmem:[%s558 + $0x1c] sm:$0xff]
        %v704 = vld [vmem:[%s558 + $0x24] sm:$0xff]
        %v705 = vld [vmem:[%s558 + $0x2c] sm:$0xff]
        %v706 = vld [vmem:[%s558 + $0x34] sm:$0xf]
        %v707 = vld [vmem:[%s558 + $0x38] sm:$0xff]
        %v708 = vld [vmem:[%s558 + $0x40] sm:$0xff]
        %v709 = vld [vmem:[%s558 + $0x48] sm:$0xff]
        %v710 = vld [vmem:[%s558 + $0x50] sm:$0xf]
        %v711 = vld [vmem:[%s558 + $0x54] sm:$0xff]
        %v712 = vld [vmem:[%s558 + $0x5c] sm:$0xff]
        %v713 = vld [vmem:[%s558 + $0x64] sm:$0xff]
        %v714 = vld [vmem:[%s558 + $0x6c] sm:$0xf]
        %v715 = vld [vmem:[%s558 + $0x70] sm:$0xff]
        %v716 = vld [vmem:[%s558 + $0x78] sm:$0xff]
        %v717 = vld [vmem:[%s558 + $0x80] sm:$0xff]
        %v718 = vld [vmem:[%s558 + $0x88] sm:$0xf]
        %v719 = vld [vmem:[%s558 + $0x8c] sm:$0xff]
        %v720 = vld [vmem:[%s558 + $0x94] sm:$0xff]
        %v721 = vld [vmem:[%s558 + $0x9c] sm:$0xff]
        %v722 = vld [vmem:[%s558 + $0xa4] sm:$0xf]
        %v723 = vld [vmem:[%s558 + $0xa8] sm:$0xff]
        %v724 = vld [vmem:[%s558 + $0xb0] sm:$0xff]
        %v725 = vld [vmem:[%s558 + $0xb8] sm:$0xff]
        %v726 = vld [vmem:[%s558 + $0xc0] sm:$0xf]
        %v727 = vld [vmem:[%s558 + $0xc4] sm:$0xff]
        %v728 = vld [vmem:[%s558 + $0xcc] sm:$0xff]
        %v729 = vld [vmem:[%s558 + $0xd4] sm:$0xff]
        %v730 = vld [vmem:[%s558 + $0xdc] sm:$0xf]
        %v731 = vld [vmem:[%s558 + $0xe0] sm:$0xff]
        %v732 = vld [vmem:[%s558 + $0xe8] sm:$0xff]
        %v733 = vld [vmem:[%s558 + $0xf0] sm:$0xff]
        %v734 = vld [vmem:[%s558 + $0xf8] sm:$0xf]
        %v735 = vld [vmem:[%s558 + $0xfc] sm:$0xff]
        %v736 = vld [vmem:[%s558 + $0x104] sm:$0xff]
        %v737 = vld [vmem:[%s558 + $0x10c] sm:$0xff]
        %v738 = vld [vmem:[%s558 + $0x114] sm:$0xf]
        %v739 = vld [vmem:[%s558 + $0x118] sm:$0xff]
        %v740 = vld [vmem:[%s558 + $0x120] sm:$0xff]
        %v741 = vld [vmem:[%s558 + $0x128] sm:$0xff]
        %v742 = vld [vmem:[%s558 + $0x130] sm:$0xf]
        %v743 = vld [vmem:[%s558 + $0x134] sm:$0xff]
        %v744 = vld [vmem:[%s558 + $0x13c] sm:$0xff]
        %v745 = vld [vmem:[%s558 + $0x144] sm:$0xff]
        %v746 = vld [vmem:[%s558 + $0x14c] sm:$0xf]
        %v795 = vunpack.c.l.b16 %v699
        %v796 = vunpack.c.h.b16 %v699
        %v797 = vunpack.c.l.b16 %v700
        %v798 = vunpack.c.h.b16 %v700
        %v799 = vunpack.c.l.b16 %v701
        %v800 = vunpack.c.h.b16 %v701
        %v801 = vunpack.c.l.b16 %v702
        %v802 = vunpack.c.l.b16 %v703
        %v803 = vunpack.c.h.b16 %v703
        %v804 = vunpack.c.l.b16 %v704
        %v805 = vunpack.c.h.b16 %v704
        %v806 = vunpack.c.l.b16 %v705
        %v807 = vunpack.c.h.b16 %v705
        %v808 = vunpack.c.l.b16 %v706
        %v809 = vunpack.c.l.b16 %v707
        %v810 = vunpack.c.h.b16 %v707
        %v811 = vunpack.c.l.b16 %v708
        %v812 = vunpack.c.h.b16 %v708
        %v813 = vunpack.c.l.b16 %v709
        %v814 = vunpack.c.h.b16 %v709
        %v815 = vunpack.c.l.b16 %v710
        %v816 = vunpack.c.l.b16 %v711
        %v817 = vunpack.c.h.b16 %v711
        %v818 = vunpack.c.l.b16 %v712
        %v819 = vunpack.c.h.b16 %v712
        %v820 = vunpack.c.l.b16 %v713
        %v821 = vunpack.c.h.b16 %v713
        %v822 = vunpack.c.l.b16 %v714
        %v823 = vunpack.c.l.b16 %v715
        %v824 = vunpack.c.h.b16 %v715
        %v825 = vunpack.c.l.b16 %v716
        %v826 = vunpack.c.h.b16 %v716
        %v827 = vunpack.c.l.b16 %v717
        %v828 = vunpack.c.h.b16 %v717
        %v829 = vunpack.c.l.b16 %v718
        %v830 = vunpack.c.l.b16 %v719
        %v831 = vunpack.c.h.b16 %v719
        %v832 = vunpack.c.l.b16 %v720
        %v833 = vunpack.c.h.b16 %v720
        %v834 = vunpack.c.l.b16 %v721
        %v835 = vunpack.c.h.b16 %v721
        %v836 = vunpack.c.l.b16 %v722
        %v837 = vunpack.c.l.b16 %v723
        %v838 = vunpack.c.h.b16 %v723
        %v839 = vunpack.c.l.b16 %v724
        %v840 = vunpack.c.h.b16 %v724
        %v841 = vunpack.c.l.b16 %v725
        %v842 = vunpack.c.h.b16 %v725
        %v843 = vunpack.c.l.b16 %v726
        %v844 = vunpack.c.l.b16 %v727
        %v845 = vunpack.c.h.b16 %v727
        %v846 = vunpack.c.l.b16 %v728
        %v847 = vunpack.c.h.b16 %v728
        %v848 = vunpack.c.l.b16 %v729
        %v849 = vunpack.c.h.b16 %v729
        %v850 = vunpack.c.l.b16 %v730
        %v851 = vunpack.c.l.b16 %v731
        %v852 = vunpack.c.h.b16 %v731
        %v853 = vunpack.c.l.b16 %v732
        %v854 = vunpack.c.h.b16 %v732
        %v855 = vunpack.c.l.b16 %v733
        %v856 = vunpack.c.h.b16 %v733
        %v857 = vunpack.c.l.b16 %v734
        %v858 = vunpack.c.l.b16 %v735
        %v859 = vunpack.c.h.b16 %v735
        %v860 = vunpack.c.l.b16 %v736
        %v861 = vunpack.c.h.b16 %v736
        %v862 = vunpack.c.l.b16 %v737
        %v863 = vunpack.c.h.b16 %v737
        %v864 = vunpack.c.l.b16 %v738
        %v865 = vunpack.c.l.b16 %v739
        %v866 = vunpack.c.h.b16 %v739
        %v867 = vunpack.c.l.b16 %v740
        %v868 = vunpack.c.h.b16 %v740
        %v869 = vunpack.c.l.b16 %v741
        %v870 = vunpack.c.h.b16 %v741
        %v871 = vunpack.c.l.b16 %v742
        %v872 = vunpack.c.l.b16 %v743
        %v873 = vunpack.c.h.b16 %v743
        %v874 = vunpack.c.l.b16 %v744
        %v875 = vunpack.c.h.b16 %v744
        %v876 = vunpack.c.l.b16 %v745
        %v877 = vunpack.c.h.b16 %v745
        %v878 = vunpack.c.l.b16 %v746
        %v879 = vpack.c.b16 %v802, %v795
        %v880 = vpack.c.b16 %v803, %v796
        %v881 = vpack.c.b16 %v804, %v797
        %v882 = vpack.c.b16 %v805, %v798
        %v883 = vpack.c.b16 %v806, %v799
        %v884 = vpack.c.b16 %v807, %v800
        %v885 = vpack.c.b16 %v808, %v801
        %v886 = vpack.c.b16 %v816, %v809
        %v887 = vpack.c.b16 %v817, %v810
        %v888 = vpack.c.b16 %v818, %v811
        %v889 = vpack.c.b16 %v819, %v812
        %v890 = vpack.c.b16 %v820, %v813
        %v891 = vpack.c.b16 %v821, %v814
        %v892 = vpack.c.b16 %v822, %v815
        %v893 = vpack.c.b16 %v830, %v823
        %v894 = vpack.c.b16 %v831, %v824
        %v895 = vpack.c.b16 %v832, %v825
        %v896 = vpack.c.b16 %v833, %v826
        %v897 = vpack.c.b16 %v834, %v827
        %v898 = vpack.c.b16 %v835, %v828
        %v899 = vpack.c.b16 %v836, %v829
        %v900 = vpack.c.b16 %v844, %v837
        %v901 = vpack.c.b16 %v845, %v838
        %v902 = vpack.c.b16 %v846, %v839
        %v903 = vpack.c.b16 %v847, %v840
        %v904 = vpack.c.b16 %v848, %v841
        %v905 = vpack.c.b16 %v849, %v842
        %v906 = vpack.c.b16 %v850, %v843
        %v907 = vpack.c.b16 %v858, %v851
        %v908 = vpack.c.b16 %v859, %v852
        %v909 = vpack.c.b16 %v860, %v853
        %v910 = vpack.c.b16 %v861, %v854
        %v911 = vpack.c.b16 %v862, %v855
        %v912 = vpack.c.b16 %v863, %v856
        %v913 = vpack.c.b16 %v864, %v857
        %v914 = vpack.c.b16 %v872, %v865
        %v915 = vpack.c.b16 %v873, %v866
        %v916 = vpack.c.b16 %v874, %v867
        %v917 = vpack.c.b16 %v875, %v868
        %v918 = vpack.c.b16 %v876, %v869
        %v919 = vpack.c.b16 %v877, %v870
        %v920 = vpack.c.b16 %v878, %v871
        %v1075 = vunpack.c.l.b16 %v587
        %v1076 = vunpack.c.l.b16 %v588
        %v1077 = vunpack.c.l.b16 %v589
        %v1078 = vunpack.c.l.b16 %v590
        %v1079 = vunpack.c.l.b16 %v591
        %v1080 = vunpack.c.l.b16 %v592
        %v1081 = vunpack.c.l.b16 %v593
        %v1082 = vunpack.c.l.b16 %v594
        %v1083 = vunpack.c.l.b16 %v595
        %v1084 = vunpack.c.l.b16 %v596
        %v1085 = vunpack.c.l.b16 %v597
        %v1086 = vunpack.c.l.b16 %v598
        %v1087 = vunpack.c.l.b16 %v599
        %v1088 = vunpack.c.l.b16 %v600
        %v1089 = vunpack.c.l.b16 %v601
        %v1090 = vunpack.c.l.b16 %v602
        %v1091 = vunpack.c.l.b16 %v603
        %v1092 = vunpack.c.l.b16 %v604
        %v1093 = vunpack.c.l.b16 %v605
        %v1094 = vunpack.c.l.b16 %v606
        %v1095 = vunpack.c.l.b16 %v607
        %v1096 = vunpack.c.l.b16 %v608
        %v1097 = vunpack.c.l.b16 %v609
        %v1098 = vunpack.c.l.b16 %v610
        %v1099 = vunpack.c.l.b16 %v611
        %v1100 = vunpack.c.l.b16 %v612
        %v1101 = vunpack.c.l.b16 %v613
        %v1102 = vunpack.c.l.b16 %v614
        %v1103 = vunpack.c.l.b16 %v615
        %v1104 = vunpack.c.l.b16 %v616
        %v1105 = vunpack.c.l.b16 %v617
        %v1106 = vunpack.c.l.b16 %v618
        %v1107 = vunpack.c.l.b16 %v619
        %v1108 = vunpack.c.l.b16 %v620
        %v1109 = vunpack.c.l.b16 %v621
        %v1110 = vunpack.c.l.b16 %v622
        %v1111 = vunpack.c.l.b16 %v623
        %v1112 = vunpack.c.l.b16 %v624
        %v1113 = vunpack.c.l.b16 %v625
        %v1114 = vunpack.c.l.b16 %v626
        %v1115 = vunpack.c.l.b16 %v627
        %v1116 = vunpack.c.l.b16 %v628
        %v1117 = vunpack.c.l.b16 %v629
        %v1118 = vunpack.c.l.b16 %v630
        %v1119 = vunpack.c.l.b16 %v631
        %v1120 = vunpack.c.l.b16 %v632
        %v1121 = vunpack.c.l.b16 %v633
        %v1122 = vunpack.c.l.b16 %v634
        %v1123 = vunpack.c.l.b16 %v635
        %v1124 = vunpack.c.l.b16 %v636
        %v1125 = vunpack.c.l.b16 %v637
        %v1126 = vunpack.c.l.b16 %v638
        %v1127 = vunpack.c.l.b16 %v639
        %v1128 = vunpack.c.l.b16 %v640
        %v1129 = vunpack.c.l.b16 %v641
        %v1130 = vunpack.c.l.b16 %v642
        %v1131 = vunpack.c.l.b16 %v643
        %v1132 = vunpack.c.l.b16 %v644
        %v1133 = vunpack.c.l.b16 %v645
        %v1134 = vunpack.c.l.b16 %v646
        %v1135 = vunpack.c.l.b16 %v647
        %v1136 = vunpack.c.l.b16 %v648
        %v1137 = vunpack.c.l.b16 %v649
        %v1138 = vunpack.c.l.b16 %v650
        %v1139 = vunpack.c.l.b16 %v651
        %v1140 = vunpack.c.l.b16 %v652
        %v1141 = vunpack.c.l.b16 %v653
        %v1142 = vunpack.c.l.b16 %v654
        %v1143 = vunpack.c.l.b16 %v655
        %v1144 = vunpack.c.l.b16 %v656
        %v1145 = vunpack.c.l.b16 %v657
        %v1146 = vunpack.c.l.b16 %v658
        %v1147 = vunpack.c.l.b16 %v659
        %v1148 = vunpack.c.l.b16 %v660
        %v1149 = vunpack.c.l.b16 %v661
        %v1150 = vunpack.c.l.b16 %v662
        %v1151 = vunpack.c.l.b16 %v663
        %v1152 = vunpack.c.l.b16 %v664
        %v1153 = vunpack.c.l.b16 %v665
        %v1154 = vunpack.c.l.b16 %v666
        %v1155 = vunpack.c.l.b16 %v667
        %v1156 = vunpack.c.l.b16 %v668
        %v1157 = vunpack.c.l.b16 %v669
        %v1158 = vunpack.c.l.b16 %v670
        %v1159 = vunpack.c.l.b16 %v671
        %v1160 = vunpack.c.l.b16 %v672
        %v1161 = vunpack.c.l.b16 %v673
        %v1162 = vunpack.c.l.b16 %v674
        %v1163 = vunpack.c.l.b16 %v675
        %v1164 = vunpack.c.l.b16 %v676
        %v1165 = vunpack.c.l.b16 %v677
        %v1166 = vunpack.c.l.b16 %v678
        %v1167 = vunpack.c.l.b16 %v679
        %v1168 = vunpack.c.l.b16 %v680
        %v1169 = vunpack.c.l.b16 %v681
        %v1170 = vunpack.c.l.b16 %v682
        %v1171 = vunpack.c.l.b16 %v683
        %v1172 = vunpack.c.l.b16 %v684
        %v1173 = vunpack.c.l.b16 %v685
        %v1174 = vunpack.c.l.b16 %v686
        %v1175 = vunpack.c.l.b16 %v687
        %v1176 = vunpack.c.l.b16 %v688
        %v1177 = vunpack.c.l.b16 %v689
        %v1178 = vunpack.c.l.b16 %v690
        %v1179 = vunpack.c.l.b16 %v691
        %v1180 = vunpack.c.l.b16 %v692
        %v1181 = vunpack.c.l.b16 %v693
        %v1182 = vunpack.c.l.b16 %v694
        %v1183 = vunpack.c.l.b16 %v695
        %v1184 = vunpack.c.l.b16 %v696
        %v1185 = vunpack.c.l.b16 %v697
        %v1186 = vunpack.c.l.b16 %v698
        %v1187 = vpack.c.b16 %v1076, %v1075
        %v1188 = vpack.c.b16 %v1078, %v1077
        %v1189 = vpack.c.b16 %v1080, %v1079
        %v1190 = vpack.c.b16 %v1082, %v1081
        %v1191 = vpack.c.b16 %v1084, %v1083
        %v1192 = vpack.c.b16 %v1086, %v1085
        %v1193 = vpack.c.b16 %v1088, %v1087
        %v1194 = vpack.c.b16 %v1090, %v1089
        %v1195 = vpack.c.b16 %v1092, %v1091
        %v1196 = vpack.c.b16 %v1094, %v1093
        %v1197 = vpack.c.b16 %v1096, %v1095
        %v1198 = vpack.c.b16 %v1098, %v1097
        %v1199 = vpack.c.b16 %v1100, %v1099
        %v1200 = vpack.c.b16 %v1102, %v1101
        %v1201 = vpack.c.b16 %v1104, %v1103
        %v1202 = vpack.c.b16 %v1106, %v1105
        %v1203 = vpack.c.b16 %v1108, %v1107
        %v1204 = vpack.c.b16 %v1110, %v1109
        %v1205 = vpack.c.b16 %v1112, %v1111
        %v1206 = vpack.c.b16 %v1114, %v1113
        %v1207 = vpack.c.b16 %v1116, %v1115
        %v1208 = vpack.c.b16 %v1118, %v1117
        %v1209 = vpack.c.b16 %v1120, %v1119
        %v1210 = vpack.c.b16 %v1122, %v1121
        %v1211 = vpack.c.b16 %v1124, %v1123
        %v1212 = vpack.c.b16 %v1126, %v1125
        %v1213 = vpack.c.b16 %v1128, %v1127
        %v1214 = vpack.c.b16 %v1130, %v1129
        %v1215 = vpack.c.b16 %v1132, %v1131
        %v1216 = vpack.c.b16 %v1134, %v1133
        %v1217 = vpack.c.b16 %v1136, %v1135
        %v1218 = vpack.c.b16 %v1138, %v1137
        %v1219 = vpack.c.b16 %v1140, %v1139
        %v1220 = vpack.c.b16 %v1142, %v1141
        %v1221 = vpack.c.b16 %v1144, %v1143
        %v1222 = vpack.c.b16 %v1146, %v1145
        %v1223 = vpack.c.b16 %v1148, %v1147
        %v1224 = vpack.c.b16 %v1150, %v1149
        %v1225 = vpack.c.b16 %v1152, %v1151
        %v1226 = vpack.c.b16 %v1154, %v1153
        %v1227 = vpack.c.b16 %v1156, %v1155
        %v1228 = vpack.c.b16 %v1158, %v1157
        %v1229 = vpack.c.b16 %v1160, %v1159
        %v1230 = vpack.c.b16 %v1162, %v1161
        %v1231 = vpack.c.b16 %v1164, %v1163
        %v1232 = vpack.c.b16 %v1166, %v1165
        %v1233 = vpack.c.b16 %v1168, %v1167
        %v1234 = vpack.c.b16 %v1170, %v1169
        %v1235 = vpack.c.b16 %v1172, %v1171
        %v1236 = vpack.c.b16 %v1174, %v1173
        %v1237 = vpack.c.b16 %v1176, %v1175
        %v1238 = vpack.c.b16 %v1178, %v1177
        %v1239 = vpack.c.b16 %v1180, %v1179
        %v1240 = vpack.c.b16 %v1182, %v1181
        %v1241 = vpack.c.b16 %v1184, %v1183
        %v1242 = vpack.c.b16 %v1186, %v1185
        %1299 = vmatprep.subr.bf16.mxu0 0
        %1300 = vmatpush1.bf16.msra.mxu0 %v1194
        %1301 = vmatprep.subr.bf16.mxu0 0
        %1302 = vmatpush1.bf16.msra.mxu0 %v1193
        %1303 = vmatprep.subr.bf16.mxu0 0
        %1304 = vmatpush1.bf16.msra.mxu0 %v1192
        %1305 = vmatprep.subr.bf16.mxu0 0
        %1306 = vmatpush1.bf16.msra.mxu0 %v1191
        %1307 = vmatprep.subr.bf16.mxu0 0
        %1308 = vmatpush1.bf16.msra.mxu0 %v1190
        %1309 = vmatprep.subr.bf16.mxu0 0
        %1310 = vmatpush1.bf16.msra.mxu0 %v1189
        %1311 = vmatprep.subr.bf16.mxu0 0
        %1312 = vmatpush1.bf16.msra.mxu0 %v1188
        %1313 = vmatprep.subr.bf16.mxu0 0
        %1314 = vmatpush1.bf16.msra.mxu0 %v1187
        %1315 = vmatprep.subr.bf16.mxu0 0
        %1316 = vmatpush2.bf16.msra.mxu0 %v1202
        %1317 = vmatprep.subr.bf16.mxu0 0
        %1318 = vmatpush2.bf16.msra.mxu0 %v1201
        %1319 = vmatprep.subr.bf16.mxu0 0
        %1320 = vmatpush2.bf16.msra.mxu0 %v1200
        %1321 = vmatprep.subr.bf16.mxu0 0
        %1322 = vmatpush2.bf16.msra.mxu0 %v1199
        %1323 = vmatprep.subr.bf16.mxu0 0
        %1324 = vmatpush2.bf16.msra.mxu0 %v1198
        %1325 = vmatprep.subr.bf16.mxu0 0
        %1326 = vmatpush2.bf16.msra.mxu0 %v1197
        %1327 = vmatprep.subr.bf16.mxu0 0
        %1328 = vmatpush2.bf16.msra.mxu0 %v1196
        %1329 = vmatprep.subr.bf16.mxu0 0
        %1330 = vmatpush2.bf16.msra.mxu0 %v1195
        %1331 = vmatprep.mubr.bf16.mxu0 %v880
        %1332 = vmatmul.mubr.bf16.gmra.mxu0 %v879
        %v1333 = vpop.f32.mrf.mxu0
        %v1334 = vadd.f32 0.0, %v1333
        %v1335 = vpop.f32.mrf.mxu0
        %v1336 = vpop.f32.mrf.mxu0
        %v1337 = vadd.f32 0.0, %v1336
        %v1338 = vpop.f32.mrf.mxu0
        %1339 = vmatprep.mubr.bf16.mxu0 %v887
        %1340 = vmatmul.mubr.bf16.gmra.mxu0 %v886
        %v1341 = vpop.f32.mrf.mxu0
        %v1342 = vadd.f32 0.0, %v1341
        %v1343 = vpop.f32.mrf.mxu0
        %v1344 = vpop.f32.mrf.mxu0
        %v1345 = vadd.f32 0.0, %v1344
        %v1346 = vpop.f32.mrf.mxu0
        %1347 = vmatprep.mubr.bf16.mxu0 %v894
        %1348 = vmatmul.mubr.bf16.gmra.mxu0 %v893
        %v1349 = vpop.f32.mrf.mxu0
        %v1350 = vadd.f32 0.0, %v1349
        %v1351 = vpop.f32.mrf.mxu0
        %v1352 = vpop.f32.mrf.mxu0
        %v1353 = vadd.f32 0.0, %v1352
        %v1354 = vpop.f32.mrf.mxu0
        %1355 = vmatprep.mubr.bf16.mxu0 %v901
        %1356 = vmatmul.mubr.bf16.gmra.mxu0 %v900
        %v1357 = vpop.f32.mrf.mxu0
        %v1358 = vadd.f32 0.0, %v1357
        %v1359 = vpop.f32.mrf.mxu0
        %v1360 = vpop.f32.mrf.mxu0
        %v1361 = vadd.f32 0.0, %v1360
        %v1362 = vpop.f32.mrf.mxu0
        %1363 = vmatprep.mubr.bf16.mxu0 %v908
        %1364 = vmatmul.mubr.bf16.gmra.mxu0 %v907
        %v1365 = vpop.f32.mrf.mxu0
        %v1366 = vadd.f32 0.0, %v1365
        %v1367 = vpop.f32.mrf.mxu0
        %v1368 = vpop.f32.mrf.mxu0
        %v1369 = vadd.f32 0.0, %v1368
        %v1370 = vpop.f32.mrf.mxu0
        %1371 = vmatprep.mubr.bf16.mxu0 %v915
        %1372 = vmatmul.mubr.bf16.gmra.mxu0 %v914
        %v1373 = vpop.f32.mrf.mxu0
        %v1374 = vadd.f32 0.0, %v1373
        %v1375 = vpop.f32.mrf.mxu0
        %v1376 = vpop.f32.mrf.mxu0
        %v1377 = vadd.f32 0.0, %v1376
        %v1378 = vpop.f32.mrf.mxu0
        %1379 = vdwg.mxu0
        %1380 = vmatprep.subr.bf16.mxu0 0
        %1381 = vmatpush1.bf16.msra.mxu0 %v1210
        %1382 = vmatprep.subr.bf16.mxu0 0
        %1383 = vmatpush1.bf16.msra.mxu0 %v1209
        %1384 = vmatprep.subr.bf16.mxu0 0
        %1385 = vmatpush1.bf16.msra.mxu0 %v1208
        %1386 = vmatprep.subr.bf16.mxu0 0
        %1387 = vmatpush1.bf16.msra.mxu0 %v1207
        %1388 = vmatprep.subr.bf16.mxu0 0
        %1389 = vmatpush1.bf16.msra.mxu0 %v1206
        %1390 = vmatprep.subr.bf16.mxu0 0
        %1391 = vmatpush1.bf16.msra.mxu0 %v1205
        %1392 = vmatprep.subr.bf16.mxu0 0
        %1393 = vmatpush1.bf16.msra.mxu0 %v1204
        %1394 = vmatprep.subr.bf16.mxu0 0
        %1395 = vmatpush1.bf16.msra.mxu0 %v1203
        %1396 = vmatprep.subr.bf16.mxu0 0
        %1397 = vmatpush2.bf16.msra.mxu0 %v1218
        %1398 = vmatprep.subr.bf16.mxu0 0
        %1399 = vmatpush2.bf16.msra.mxu0 %v1217
        %1400 = vmatprep.subr.bf16.mxu0 0
        %1401 = vmatpush2.bf16.msra.mxu0 %v1216
        %1402 = vmatprep.subr.bf16.mxu0 0
        %1403 = vmatpush2.bf16.msra.mxu0 %v1215
        %1404 = vmatprep.subr.bf16.mxu0 0
        %1405 = vmatpush2.bf16.msra.mxu0 %v1214
        %1406 = vmatprep.subr.bf16.mxu0 0
        %1407 = vmatpush2.bf16.msra.mxu0 %v1213
        %1408 = vmatprep.subr.bf16.mxu0 0
        %1409 = vmatpush2.bf16.msra.mxu0 %v1212
        %1410 = vmatprep.subr.bf16.mxu0 0
        %1411 = vmatpush2.bf16.msra.mxu0 %v1211
        %1412 = vmatprep.mubr.bf16.mxu0 %v882
        %1413 = vmatmul.mubr.bf16.gmra.mxu0 %v881
        %v1414 = vpop.f32.mrf.mxu0
        %v1415 = vadd.f32 %v1334, %v1414
        %v1416 = vpop.f32.mrf.mxu0
        %v1417 = vpop.f32.mrf.mxu0
        %v1418 = vadd.f32 %v1337, %v1417
        %v1419 = vpop.f32.mrf.mxu0
        %1420 = vmatprep.mubr.bf16.mxu0 %v889
        %1421 = vmatmul.mubr.bf16.gmra.mxu0 %v888
        %v1422 = vpop.f32.mrf.mxu0
        %v1423 = vadd.f32 %v1342, %v1422
        %v1424 = vpop.f32.mrf.mxu0
        %v1425 = vpop.f32.mrf.mxu0
        %v1426 = vadd.f32 %v1345, %v1425
        %v1427 = vpop.f32.mrf.mxu0
        %1428 = vmatprep.mubr.bf16.mxu0 %v896
        %1429 = vmatmul.mubr.bf16.gmra.mxu0 %v895
        %v1430 = vpop.f32.mrf.mxu0
        %v1431 = vadd.f32 %v1350, %v1430
        %v1432 = vpop.f32.mrf.mxu0
        %v1433 = vpop.f32.mrf.mxu0
        %v1434 = vadd.f32 %v1353, %v1433
        %v1435 = vpop.f32.mrf.mxu0
        %1436 = vmatprep.mubr.bf16.mxu0 %v903
        %1437 = vmatmul.mubr.bf16.gmra.mxu0 %v902
        %v1438 = vpop.f32.mrf.mxu0
        %v1439 = vadd.f32 %v1358, %v1438
        %v1440 = vpop.f32.mrf.mxu0
        %v1441 = vpop.f32.mrf.mxu0
        %v1442 = vadd.f32 %v1361, %v1441
        %v1443 = vpop.f32.mrf.mxu0
        %1444 = vmatprep.mubr.bf16.mxu0 %v910
        %1445 = vmatmul.mubr.bf16.gmra.mxu0 %v909
        %v1446 = vpop.f32.mrf.mxu0
        %v1447 = vadd.f32 %v1366, %v1446
        %v1448 = vpop.f32.mrf.mxu0
        %v1449 = vpop.f32.mrf.mxu0
        %v1450 = vadd.f32 %v1369, %v1449
        %v1451 = vpop.f32.mrf.mxu0
        %1452 = vmatprep.mubr.bf16.mxu0 %v917
        %1453 = vmatmul.mubr.bf16.gmra.mxu0 %v916
        %v1454 = vpop.f32.mrf.mxu0
        %v1455 = vadd.f32 %v1374, %v1454
        %v1456 = vpop.f32.mrf.mxu0
        %v1457 = vpop.f32.mrf.mxu0
        %v1458 = vadd.f32 %v1377, %v1457
        %v1459 = vpop.f32.mrf.mxu0
        %1460 = vdwg.mxu0
        %1461 = vmatprep.subr.bf16.mxu0 0
        %1462 = vmatpush1.bf16.msra.mxu0 %v1226
        %1463 = vmatprep.subr.bf16.mxu0 0
        %1464 = vmatpush1.bf16.msra.mxu0 %v1225
        %1465 = vmatprep.subr.bf16.mxu0 0
        %1466 = vmatpush1.bf16.msra.mxu0 %v1224
        %1467 = vmatprep.subr.bf16.mxu0 0
        %1468 = vmatpush1.bf16.msra.mxu0 %v1223
        %1469 = vmatprep.subr.bf16.mxu0 0
        %1470 = vmatpush1.bf16.msra.mxu0 %v1222
        %1471 = vmatprep.subr.bf16.mxu0 0
        %1472 = vmatpush1.bf16.msra.mxu0 %v1221
        %1473 = vmatprep.subr.bf16.mxu0 0
        %1474 = vmatpush1.bf16.msra.mxu0 %v1220
        %1475 = vmatprep.subr.bf16.mxu0 0
        %1476 = vmatpush1.bf16.msra.mxu0 %v1219
        %1477 = vmatprep.subr.bf16.mxu0 0
        %1478 = vmatpush2.bf16.msra.mxu0 %v1234
        %1479 = vmatprep.subr.bf16.mxu0 0
        %1480 = vmatpush2.bf16.msra.mxu0 %v1233
        %1481 = vmatprep.subr.bf16.mxu0 0
        %1482 = vmatpush2.bf16.msra.mxu0 %v1232
        %1483 = vmatprep.subr.bf16.mxu0 0
        %1484 = vmatpush2.bf16.msra.mxu0 %v1231
        %1485 = vmatprep.subr.bf16.mxu0 0
        %1486 = vmatpush2.bf16.msra.mxu0 %v1230
        %1487 = vmatprep.subr.bf16.mxu0 0
        %1488 = vmatpush2.bf16.msra.mxu0 %v1229
        %1489 = vmatprep.subr.bf16.mxu0 0
        %1490 = vmatpush2.bf16.msra.mxu0 %v1228
        %1491 = vmatprep.subr.bf16.mxu0 0
        %1492 = vmatpush2.bf16.msra.mxu0 %v1227
        %1493 = vmatprep.mubr.bf16.mxu0 %v884
        %1494 = vmatmul.mubr.bf16.gmra.mxu0 %v883
        %v1495 = vpop.f32.mrf.mxu0
        %v1496 = vadd.f32 %v1415, %v1495
        %v1497 = vpop.f32.mrf.mxu0
        %v1498 = vpop.f32.mrf.mxu0
        %v1499 = vadd.f32 %v1418, %v1498
        %v1500 = vpop.f32.mrf.mxu0
        %1501 = vmatprep.mubr.bf16.mxu0 %v891
        %1502 = vmatmul.mubr.bf16.gmra.mxu0 %v890
        %v1503 = vpop.f32.mrf.mxu0
        %v1504 = vadd.f32 %v1423, %v1503
        %v1505 = vpop.f32.mrf.mxu0
        %v1506 = vpop.f32.mrf.mxu0
        %v1507 = vadd.f32 %v1426, %v1506
        %v1508 = vpop.f32.mrf.mxu0
        %1509 = vmatprep.mubr.bf16.mxu0 %v898
        %1510 = vmatmul.mubr.bf16.gmra.mxu0 %v897
        %v1511 = vpop.f32.mrf.mxu0
        %v1512 = vadd.f32 %v1431, %v1511
        %v1513 = vpop.f32.mrf.mxu0
        %v1514 = vpop.f32.mrf.mxu0
        %v1515 = vadd.f32 %v1434, %v1514
        %v1516 = vpop.f32.mrf.mxu0
        %1517 = vmatprep.mubr.bf16.mxu0 %v905
        %1518 = vmatmul.mubr.bf16.gmra.mxu0 %v904
        %v1519 = vpop.f32.mrf.mxu0
        %v1520 = vadd.f32 %v1439, %v1519
        %v1521 = vpop.f32.mrf.mxu0
        %v1522 = vpop.f32.mrf.mxu0
        %v1523 = vadd.f32 %v1442, %v1522
        %v1524 = vpop.f32.mrf.mxu0
        %1525 = vmatprep.mubr.bf16.mxu0 %v912
        %1526 = vmatmul.mubr.bf16.gmra.mxu0 %v911
        %v1527 = vpop.f32.mrf.mxu0
        %v1528 = vadd.f32 %v1447, %v1527
        %v1529 = vpop.f32.mrf.mxu0
        %v1530 = vpop.f32.mrf.mxu0
        %v1531 = vadd.f32 %v1450, %v1530
        %v1532 = vpop.f32.mrf.mxu0
        %1533 = vmatprep.mubr.bf16.mxu0 %v919
        %1534 = vmatmul.mubr.bf16.gmra.mxu0 %v918
        %v1535 = vpop.f32.mrf.mxu0
        %v1536 = vadd.f32 %v1455, %v1535
        %v1537 = vpop.f32.mrf.mxu0
        %v1538 = vpop.f32.mrf.mxu0
        %v1539 = vadd.f32 %v1458, %v1538
        %v1540 = vpop.f32.mrf.mxu0
        %1541 = vdwg.mxu0
        %1542 = vmatprep.subr.bf16.mxu0 0
        %1543 = vmatpush1.bf16.msra.mxu0 %v1242
        %1544 = vmatprep.subr.bf16.mxu0 0
        %1545 = vmatpush1.bf16.msra.mxu0 %v1241
        %1546 = vmatprep.subr.bf16.mxu0 0
        %1547 = vmatpush1.bf16.msra.mxu0 %v1240
        %1548 = vmatprep.subr.bf16.mxu0 0
        %1549 = vmatpush1.bf16.msra.mxu0 %v1239
        %1550 = vmatprep.subr.bf16.mxu0 0
        %1551 = vmatpush1.bf16.msra.mxu0 %v1238
        %1552 = vmatprep.subr.bf16.mxu0 0
        %1553 = vmatpush1.bf16.msra.mxu0 %v1237
        %1554 = vmatprep.subr.bf16.mxu0 0
        %1555 = vmatpush1.bf16.msra.mxu0 %v1236
        %1556 = vmatprep.subr.bf16.mxu0 0
        %1557 = vmatpush1.bf16.msra.mxu0 %v1235
        %1558 = vmatprep.subr.bf16.mxu0 0
        %1559 = vmatpush2.bf16.msra.mxu0 0
        %1560 = vmatprep.subr.bf16.mxu0 0
        %1561 = vmatpush2.bf16.msra.mxu0 0
        %1562 = vmatprep.subr.bf16.mxu0 0
        %1563 = vmatpush2.bf16.msra.mxu0 0
        %1564 = vmatprep.subr.bf16.mxu0 0
        %1565 = vmatpush2.bf16.msra.mxu0 0
        %1566 = vmatprep.subr.bf16.mxu0 0
        %1567 = vmatpush2.bf16.msra.mxu0 0
        %1568 = vmatprep.subr.bf16.mxu0 0
        %1569 = vmatpush2.bf16.msra.mxu0 0
        %1570 = vmatprep.subr.bf16.mxu0 0
        %1571 = vmatpush2.bf16.msra.mxu0 0
        %1572 = vmatprep.subr.bf16.mxu0 0
        %1573 = vmatpush2.bf16.msra.mxu0 0
        %1574 = vmatprep.mubr.bf16.mxu0 0
        %1575 = vmatmul.mubr.bf16.gmra.mxu0 %v885
        %v1576 = vpop.f32.mrf.mxu0
        %v1577 = vadd.f32 %v1496, %v1576
        %v1578 = vpop.f32.mrf.mxu0
        %v1579 = vpop.f32.mrf.mxu0
        %v1580 = vadd.f32 %v1499, %v1579
        %v1581 = vpop.f32.mrf.mxu0
        %1582 = vmatprep.mubr.bf16.mxu0 0
        %1583 = vmatmul.mubr.bf16.gmra.mxu0 %v892
        %v1584 = vpop.f32.mrf.mxu0
        %v1585 = vadd.f32 %v1504, %v1584
        %v1586 = vpop.f32.mrf.mxu0
        %v1587 = vpop.f32.mrf.mxu0
        %v1588 = vadd.f32 %v1507, %v1587
        %v1589 = vpop.f32.mrf.mxu0
        %1590 = vmatprep.mubr.bf16.mxu0 0
        %1591 = vmatmul.mubr.bf16.gmra.mxu0 %v899
        %v1592 = vpop.f32.mrf.mxu0
        %v1593 = vadd.f32 %v1512, %v1592
        %v1594 = vpop.f32.mrf.mxu0
        %v1595 = vpop.f32.mrf.mxu0
        %v1596 = vadd.f32 %v1515, %v1595
        %v1597 = vpop.f32.mrf.mxu0
        %1598 = vmatprep.mubr.bf16.mxu0 0
        %1599 = vmatmul.mubr.bf16.gmra.mxu0 %v906
        %v1600 = vpop.f32.mrf.mxu0
        %v1601 = vadd.f32 %v1520, %v1600
        %v1602 = vpop.f32.mrf.mxu0
        %v1603 = vpop.f32.mrf.mxu0
        %v1604 = vadd.f32 %v1523, %v1603
        %v1605 = vpop.f32.mrf.mxu0
        %1606 = vmatprep.mubr.bf16.mxu0 0
        %1607 = vmatmul.mubr.bf16.gmra.mxu0 %v913
        %v1608 = vpop.f32.mrf.mxu0
        %v1609 = vadd.f32 %v1528, %v1608
        %v1610 = vpop.f32.mrf.mxu0
        %v1611 = vpop.f32.mrf.mxu0
        %v1612 = vadd.f32 %v1531, %v1611
        %v1613 = vpop.f32.mrf.mxu0
        %1614 = vmatprep.mubr.bf16.mxu0 0
        %1615 = vmatmul.mubr.bf16.gmra.mxu0 %v920
        %v1616 = vpop.f32.mrf.mxu0
        %v1617 = vadd.f32 %v1536, %v1616
        %v1618 = vpop.f32.mrf.mxu0
        %v1619 = vpop.f32.mrf.mxu0
        %v1620 = vadd.f32 %v1539, %v1619
        %v1621 = vpop.f32.mrf.mxu0
        %1622 = vdwg.mxu0
        %s1623 = scalar_lea.vmem %s558, 336 [#allocation2]
        %v1624 = vld [vmem:[%s1623] sm:$0xff]
        %v1625 = vld [vmem:[%s1623 + $0x8] sm:$0xff]
        %v1626 = vld [vmem:[%s1623 + $0x10] sm:$0xff]
        %v1627 = vld [vmem:[%s1623 + $0x18] sm:$0xf]
        %v1628 = vld [vmem:[%s1623 + $0x1c] sm:$0xff]
        %v1629 = vld [vmem:[%s1623 + $0x24] sm:$0xff]
        %v1630 = vld [vmem:[%s1623 + $0x2c] sm:$0xff]
        %v1631 = vld [vmem:[%s1623 + $0x34] sm:$0xf]
        %v1632 = vld [vmem:[%s1623 + $0x38] sm:$0xff]
        %v1633 = vld [vmem:[%s1623 + $0x40] sm:$0xff]
        %v1634 = vld [vmem:[%s1623 + $0x48] sm:$0xff]
        %v1635 = vld [vmem:[%s1623 + $0x50] sm:$0xf]
        %v1636 = vld [vmem:[%s1623 + $0x54] sm:$0xff]
        %v1637 = vld [vmem:[%s1623 + $0x5c] sm:$0xff]
        %v1638 = vld [vmem:[%s1623 + $0x64] sm:$0xff]
        %v1639 = vld [vmem:[%s1623 + $0x6c] sm:$0xf]
        %v1640 = vld [vmem:[%s1623 + $0x70] sm:$0xff]
        %v1641 = vld [vmem:[%s1623 + $0x78] sm:$0xff]
        %v1642 = vld [vmem:[%s1623 + $0x80] sm:$0xff]
        %v1643 = vld [vmem:[%s1623 + $0x88] sm:$0xf]
        %v1644 = vld [vmem:[%s1623 + $0x8c] sm:$0xff]
        %v1645 = vld [vmem:[%s1623 + $0x94] sm:$0xff]
        %v1646 = vld [vmem:[%s1623 + $0x9c] sm:$0xff]
        %v1647 = vld [vmem:[%s1623 + $0xa4] sm:$0xf]
        %v1648 = vld [vmem:[%s1623 + $0xa8] sm:$0xff]
        %v1649 = vld [vmem:[%s1623 + $0xb0] sm:$0xff]
        %v1650 = vld [vmem:[%s1623 + $0xb8] sm:$0xff]
        %v1651 = vld [vmem:[%s1623 + $0xc0] sm:$0xf]
        %v1652 = vld [vmem:[%s1623 + $0xc4] sm:$0xff]
        %v1653 = vld [vmem:[%s1623 + $0xcc] sm:$0xff]
        %v1654 = vld [vmem:[%s1623 + $0xd4] sm:$0xff]
        %v1655 = vld [vmem:[%s1623 + $0xdc] sm:$0xf]
        %v1656 = vld [vmem:[%s1623 + $0xe0] sm:$0xff]
        %v1657 = vld [vmem:[%s1623 + $0xe8] sm:$0xff]
        %v1658 = vld [vmem:[%s1623 + $0xf0] sm:$0xff]
        %v1659 = vld [vmem:[%s1623 + $0xf8] sm:$0xf]
        %v1660 = vld [vmem:[%s1623 + $0xfc] sm:$0xff]
        %v1661 = vld [vmem:[%s1623 + $0x104] sm:$0xff]
        %v1662 = vld [vmem:[%s1623 + $0x10c] sm:$0xff]
        %v1663 = vld [vmem:[%s1623 + $0x114] sm:$0xf]
        %v1664 = vld [vmem:[%s1623 + $0x118] sm:$0xff]
        %v1665 = vld [vmem:[%s1623 + $0x120] sm:$0xff]
        %v1666 = vld [vmem:[%s1623 + $0x128] sm:$0xff]
        %v1667 = vld [vmem:[%s1623 + $0x130] sm:$0xf]
        %v1668 = vld [vmem:[%s1623 + $0x134] sm:$0xff]
        %v1669 = vld [vmem:[%s1623 + $0x13c] sm:$0xff]
        %v1670 = vld [vmem:[%s1623 + $0x144] sm:$0xff]
        %v1671 = vld [vmem:[%s1623 + $0x14c] sm:$0xf]
        %v1720 = vunpack.c.l.b16 %v1624
        %v1721 = vunpack.c.h.b16 %v1624
        %v1722 = vunpack.c.l.b16 %v1625
        %v1723 = vunpack.c.h.b16 %v1625
        %v1724 = vunpack.c.l.b16 %v1626
        %v1725 = vunpack.c.h.b16 %v1626
        %v1726 = vunpack.c.l.b16 %v1627
        %v1727 = vunpack.c.l.b16 %v1628
        %v1728 = vunpack.c.h.b16 %v1628
        %v1729 = vunpack.c.l.b16 %v1629
        %v1730 = vunpack.c.h.b16 %v1629
        %v1731 = vunpack.c.l.b16 %v1630
        %v1732 = vunpack.c.h.b16 %v1630
        %v1733 = vunpack.c.l.b16 %v1631
        %v1734 = vunpack.c.l.b16 %v1632
        %v1735 = vunpack.c.h.b16 %v1632
        %v1736 = vunpack.c.l.b16 %v1633
        %v1737 = vunpack.c.h.b16 %v1633
        %v1738 = vunpack.c.l.b16 %v1634
        %v1739 = vunpack.c.h.b16 %v1634
        %v1740 = vunpack.c.l.b16 %v1635
        %v1741 = vunpack.c.l.b16 %v1636
        %v1742 = vunpack.c.h.b16 %v1636
        %v1743 = vunpack.c.l.b16 %v1637
        %v1744 = vunpack.c.h.b16 %v1637
        %v1745 = vunpack.c.l.b16 %v1638
        %v1746 = vunpack.c.h.b16 %v1638
        %v1747 = vunpack.c.l.b16 %v1639
        %v1748 = vunpack.c.l.b16 %v1640
        %v1749 = vunpack.c.h.b16 %v1640
        %v1750 = vunpack.c.l.b16 %v1641
        %v1751 = vunpack.c.h.b16 %v1641
        %v1752 = vunpack.c.l.b16 %v1642
        %v1753 = vunpack.c.h.b16 %v1642
        %v1754 = vunpack.c.l.b16 %v1643
        %v1755 = vunpack.c.l.b16 %v1644
        %v1756 = vunpack.c.h.b16 %v1644
        %v1757 = vunpack.c.l.b16 %v1645
        %v1758 = vunpack.c.h.b16 %v1645
        %v1759 = vunpack.c.l.b16 %v1646
        %v1760 = vunpack.c.h.b16 %v1646
        %v1761 = vunpack.c.l.b16 %v1647
        %v1762 = vunpack.c.l.b16 %v1648
        %v1763 = vunpack.c.h.b16 %v1648
        %v1764 = vunpack.c.l.b16 %v1649
        %v1765 = vunpack.c.h.b16 %v1649
        %v1766 = vunpack.c.l.b16 %v1650
        %v1767 = vunpack.c.h.b16 %v1650
        %v1768 = vunpack.c.l.b16 %v1651
        %v1769 = vunpack.c.l.b16 %v1652
        %v1770 = vunpack.c.h.b16 %v1652
        %v1771 = vunpack.c.l.b16 %v1653
        %v1772 = vunpack.c.h.b16 %v1653
        %v1773 = vunpack.c.l.b16 %v1654
        %v1774 = vunpack.c.h.b16 %v1654
        %v1775 = vunpack.c.l.b16 %v1655
        %v1776 = vunpack.c.l.b16 %v1656
        %v1777 = vunpack.c.h.b16 %v1656
        %v1778 = vunpack.c.l.b16 %v1657
        %v1779 = vunpack.c.h.b16 %v1657
        %v1780 = vunpack.c.l.b16 %v1658
        %v1781 = vunpack.c.h.b16 %v1658
        %v1782 = vunpack.c.l.b16 %v1659
        %v1783 = vunpack.c.l.b16 %v1660
        %v1784 = vunpack.c.h.b16 %v1660
        %v1785 = vunpack.c.l.b16 %v1661
        %v1786 = vunpack.c.h.b16 %v1661
        %v1787 = vunpack.c.l.b16 %v1662
        %v1788 = vunpack.c.h.b16 %v1662
        %v1789 = vunpack.c.l.b16 %v1663
        %v1790 = vunpack.c.l.b16 %v1664
        %v1791 = vunpack.c.h.b16 %v1664
        %v1792 = vunpack.c.l.b16 %v1665
        %v1793 = vunpack.c.h.b16 %v1665
        %v1794 = vunpack.c.l.b16 %v1666
        %v1795 = vunpack.c.h.b16 %v1666
        %v1796 = vunpack.c.l.b16 %v1667
        %v1797 = vunpack.c.l.b16 %v1668
        %v1798 = vunpack.c.h.b16 %v1668
        %v1799 = vunpack.c.l.b16 %v1669
        %v1800 = vunpack.c.h.b16 %v1669
        %v1801 = vunpack.c.l.b16 %v1670
        %v1802 = vunpack.c.h.b16 %v1670
        %v1803 = vunpack.c.l.b16 %v1671
        %v1804 = vpack.c.b16 %v1727, %v1720
        %v1805 = vpack.c.b16 %v1728, %v1721
        %v1806 = vpack.c.b16 %v1729, %v1722
        %v1807 = vpack.c.b16 %v1730, %v1723
        %v1808 = vpack.c.b16 %v1731, %v1724
        %v1809 = vpack.c.b16 %v1732, %v1725
        %v1810 = vpack.c.b16 %v1733, %v1726
        %v1811 = vpack.c.b16 %v1741, %v1734
        %v1812 = vpack.c.b16 %v1742, %v1735
        %v1813 = vpack.c.b16 %v1743, %v1736
        %v1814 = vpack.c.b16 %v1744, %v1737
        %v1815 = vpack.c.b16 %v1745, %v1738
        %v1816 = vpack.c.b16 %v1746, %v1739
        %v1817 = vpack.c.b16 %v1747, %v1740
        %v1818 = vpack.c.b16 %v1755, %v1748
        %v1819 = vpack.c.b16 %v1756, %v1749
        %v1820 = vpack.c.b16 %v1757, %v1750
        %v1821 = vpack.c.b16 %v1758, %v1751
        %v1822 = vpack.c.b16 %v1759, %v1752
        %v1823 = vpack.c.b16 %v1760, %v1753
        %v1824 = vpack.c.b16 %v1761, %v1754
        %v1825 = vpack.c.b16 %v1769, %v1762
        %v1826 = vpack.c.b16 %v1770, %v1763
        %v1827 = vpack.c.b16 %v1771, %v1764
        %v1828 = vpack.c.b16 %v1772, %v1765
        %v1829 = vpack.c.b16 %v1773, %v1766
        %v1830 = vpack.c.b16 %v1774, %v1767
        %v1831 = vpack.c.b16 %v1775, %v1768
        %v1832 = vpack.c.b16 %v1783, %v1776
        %v1833 = vpack.c.b16 %v1784, %v1777
        %v1834 = vpack.c.b16 %v1785, %v1778
        %v1835 = vpack.c.b16 %v1786, %v1779
        %v1836 = vpack.c.b16 %v1787, %v1780
        %v1837 = vpack.c.b16 %v1788, %v1781
        %v1838 = vpack.c.b16 %v1789, %v1782
        %v1839 = vpack.c.b16 %v1797, %v1790
        %v1840 = vpack.c.b16 %v1798, %v1791
        %v1841 = vpack.c.b16 %v1799, %v1792
        %v1842 = vpack.c.b16 %v1800, %v1793
        %v1843 = vpack.c.b16 %v1801, %v1794
        %v1844 = vpack.c.b16 %v1802, %v1795
        %v1845 = vpack.c.b16 %v1803, %v1796
        %1888 = vmatprep.subr.bf16.mxu0 0
        %1889 = vmatpush1.bf16.msra.mxu0 %v1194
        %1890 = vmatprep.subr.bf16.mxu0 0
        %1891 = vmatpush1.bf16.msra.mxu0 %v1193
        %1892 = vmatprep.subr.bf16.mxu0 0
        %1893 = vmatpush1.bf16.msra.mxu0 %v1192
        %1894 = vmatprep.subr.bf16.mxu0 0
        %1895 = vmatpush1.bf16.msra.mxu0 %v1191
        %1896 = vmatprep.subr.bf16.mxu0 0
        %1897 = vmatpush1.bf16.msra.mxu0 %v1190
        %1898 = vmatprep.subr.bf16.mxu0 0
        %1899 = vmatpush1.bf16.msra.mxu0 %v1189
        %1900 = vmatprep.subr.bf16.mxu0 0
        %1901 = vmatpush1.bf16.msra.mxu0 %v1188
        %1902 = vmatprep.subr.bf16.mxu0 0
        %1903 = vmatpush1.bf16.msra.mxu0 %v1187
        %1904 = vmatprep.subr.bf16.mxu0 0
        %1905 = vmatpush2.bf16.msra.mxu0 %v1202
        %1906 = vmatprep.subr.bf16.mxu0 0
        %1907 = vmatpush2.bf16.msra.mxu0 %v1201
        %1908 = vmatprep.subr.bf16.mxu0 0
        %1909 = vmatpush2.bf16.msra.mxu0 %v1200
        %1910 = vmatprep.subr.bf16.mxu0 0
        %1911 = vmatpush2.bf16.msra.mxu0 %v1199
        %1912 = vmatprep.subr.bf16.mxu0 0
        %1913 = vmatpush2.bf16.msra.mxu0 %v1198
        %1914 = vmatprep.subr.bf16.mxu0 0
        %1915 = vmatpush2.bf16.msra.mxu0 %v1197
        %1916 = vmatprep.subr.bf16.mxu0 0
        %1917 = vmatpush2.bf16.msra.mxu0 %v1196
        %1918 = vmatprep.subr.bf16.mxu0 0
        %1919 = vmatpush2.bf16.msra.mxu0 %v1195
        %1920 = vmatprep.mubr.bf16.mxu0 %v1805
        %1921 = vmatmul.mubr.bf16.gmra.mxu0 %v1804
        %v1922 = vpop.f32.mrf.mxu0
        %v1923 = vadd.f32 0.0, %v1922
        %v1924 = vpop.f32.mrf.mxu0
        %v1925 = vpop.f32.mrf.mxu0
        %v1926 = vadd.f32 0.0, %v1925
        %v1927 = vpop.f32.mrf.mxu0
        %1928 = vmatprep.mubr.bf16.mxu0 %v1812
        %1929 = vmatmul.mubr.bf16.gmra.mxu0 %v1811
        %v1930 = vpop.f32.mrf.mxu0
        %v1931 = vadd.f32 0.0, %v1930
        %v1932 = vpop.f32.mrf.mxu0
        %v1933 = vpop.f32.mrf.mxu0
        %v1934 = vadd.f32 0.0, %v1933
        %v1935 = vpop.f32.mrf.mxu0
        %1936 = vmatprep.mubr.bf16.mxu0 %v1819
        %1937 = vmatmul.mubr.bf16.gmra.mxu0 %v1818
        %v1938 = vpop.f32.mrf.mxu0
        %v1939 = vadd.f32 0.0, %v1938
        %v1940 = vpop.f32.mrf.mxu0
        %v1941 = vpop.f32.mrf.mxu0
        %v1942 = vadd.f32 0.0, %v1941
        %v1943 = vpop.f32.mrf.mxu0
        %1944 = vmatprep.mubr.bf16.mxu0 %v1826
        %1945 = vmatmul.mubr.bf16.gmra.mxu0 %v1825
        %v1946 = vpop.f32.mrf.mxu0
        %v1947 = vadd.f32 0.0, %v1946
        %v1948 = vpop.f32.mrf.mxu0
        %v1949 = vpop.f32.mrf.mxu0
        %v1950 = vadd.f32 0.0, %v1949
        %v1951 = vpop.f32.mrf.mxu0
        %1952 = vmatprep.mubr.bf16.mxu0 %v1833
        %1953 = vmatmul.mubr.bf16.gmra.mxu0 %v1832
        %v1954 = vpop.f32.mrf.mxu0
        %v1955 = vadd.f32 0.0, %v1954
        %v1956 = vpop.f32.mrf.mxu0
        %v1957 = vpop.f32.mrf.mxu0
        %v1958 = vadd.f32 0.0, %v1957
        %v1959 = vpop.f32.mrf.mxu0
        %1960 = vmatprep.mubr.bf16.mxu0 %v1840
        %1961 = vmatmul.mubr.bf16.gmra.mxu0 %v1839
        %v1962 = vpop.f32.mrf.mxu0
        %v1963 = vadd.f32 0.0, %v1962
        %v1964 = vpop.f32.mrf.mxu0
        %v1965 = vpop.f32.mrf.mxu0
        %v1966 = vadd.f32 0.0, %v1965
        %v1967 = vpop.f32.mrf.mxu0
        %1968 = vdwg.mxu0
        %1969 = vmatprep.subr.bf16.mxu0 0
        %1970 = vmatpush1.bf16.msra.mxu0 %v1210
        %1971 = vmatprep.subr.bf16.mxu0 0
        %1972 = vmatpush1.bf16.msra.mxu0 %v1209
        %1973 = vmatprep.subr.bf16.mxu0 0
        %1974 = vmatpush1.bf16.msra.mxu0 %v1208
        %1975 = vmatprep.subr.bf16.mxu0 0
        %1976 = vmatpush1.bf16.msra.mxu0 %v1207
        %1977 = vmatprep.subr.bf16.mxu0 0
        %1978 = vmatpush1.bf16.msra.mxu0 %v1206
        %1979 = vmatprep.subr.bf16.mxu0 0
        %1980 = vmatpush1.bf16.msra.mxu0 %v1205
        %1981 = vmatprep.subr.bf16.mxu0 0
        %1982 = vmatpush1.bf16.msra.mxu0 %v1204
        %1983 = vmatprep.subr.bf16.mxu0 0
        %1984 = vmatpush1.bf16.msra.mxu0 %v1203
        %1985 = vmatprep.subr.bf16.mxu0 0
        %1986 = vmatpush2.bf16.msra.mxu0 %v1218
        %1987 = vmatprep.subr.bf16.mxu0 0
        %1988 = vmatpush2.bf16.msra.mxu0 %v1217
        %1989 = vmatprep.subr.bf16.mxu0 0
        %1990 = vmatpush2.bf16.msra.mxu0 %v1216
        %1991 = vmatprep.subr.bf16.mxu0 0
        %1992 = vmatpush2.bf16.msra.mxu0 %v1215
        %1993 = vmatprep.subr.bf16.mxu0 0
        %1994 = vmatpush2.bf16.msra.mxu0 %v1214
        %1995 = vmatprep.subr.bf16.mxu0 0
        %1996 = vmatpush2.bf16.msra.mxu0 %v1213
        %1997 = vmatprep.subr.bf16.mxu0 0
        %1998 = vmatpush2.bf16.msra.mxu0 %v1212
        %1999 = vmatprep.subr.bf16.mxu0 0
        %2000 = vmatpush2.bf16.msra.mxu0 %v1211
        %2001 = vmatprep.mubr.bf16.mxu0 %v1807
        %2002 = vmatmul.mubr.bf16.gmra.mxu0 %v1806
        %v2003 = vpop.f32.mrf.mxu0
        %v2004 = vadd.f32 %v1923, %v2003
        %v2005 = vpop.f32.mrf.mxu0
        %v2006 = vpop.f32.mrf.mxu0
        %v2007 = vadd.f32 %v1926, %v2006
        %v2008 = vpop.f32.mrf.mxu0
        %2009 = vmatprep.mubr.bf16.mxu0 %v1814
        %2010 = vmatmul.mubr.bf16.gmra.mxu0 %v1813
        %v2011 = vpop.f32.mrf.mxu0
        %v2012 = vadd.f32 %v1931, %v2011
        %v2013 = vpop.f32.mrf.mxu0
        %v2014 = vpop.f32.mrf.mxu0
        %v2015 = vadd.f32 %v1934, %v2014
        %v2016 = vpop.f32.mrf.mxu0
        %2017 = vmatprep.mubr.bf16.mxu0 %v1821
        %2018 = vmatmul.mubr.bf16.gmra.mxu0 %v1820
        %v2019 = vpop.f32.mrf.mxu0
        %v2020 = vadd.f32 %v1939, %v2019
        %v2021 = vpop.f32.mrf.mxu0
        %v2022 = vpop.f32.mrf.mxu0
        %v2023 = vadd.f32 %v1942, %v2022
        %v2024 = vpop.f32.mrf.mxu0
        %2025 = vmatprep.mubr.bf16.mxu0 %v1828
        %2026 = vmatmul.mubr.bf16.gmra.mxu0 %v1827
        %v2027 = vpop.f32.mrf.mxu0
        %v2028 = vadd.f32 %v1947, %v2027
        %v2029 = vpop.f32.mrf.mxu0
        %v2030 = vpop.f32.mrf.mxu0
        %v2031 = vadd.f32 %v1950, %v2030
        %v2032 = vpop.f32.mrf.mxu0
        %2033 = vmatprep.mubr.bf16.mxu0 %v1835
        %2034 = vmatmul.mubr.bf16.gmra.mxu0 %v1834
        %v2035 = vpop.f32.mrf.mxu0
        %v2036 = vadd.f32 %v1955, %v2035
        %v2037 = vpop.f32.mrf.mxu0
        %v2038 = vpop.f32.mrf.mxu0
        %v2039 = vadd.f32 %v1958, %v2038
        %v2040 = vpop.f32.mrf.mxu0
        %2041 = vmatprep.mubr.bf16.mxu0 %v1842
        %2042 = vmatmul.mubr.bf16.gmra.mxu0 %v1841
        %v2043 = vpop.f32.mrf.mxu0
        %v2044 = vadd.f32 %v1963, %v2043
        %v2045 = vpop.f32.mrf.mxu0
        %v2046 = vpop.f32.mrf.mxu0
        %v2047 = vadd.f32 %v1966, %v2046
        %v2048 = vpop.f32.mrf.mxu0
        %2049 = vdwg.mxu0
        %2050 = vmatprep.subr.bf16.mxu0 0
        %2051 = vmatpush1.bf16.msra.mxu0 %v1226
        %2052 = vmatprep.subr.bf16.mxu0 0
        %2053 = vmatpush1.bf16.msra.mxu0 %v1225
        %2054 = vmatprep.subr.bf16.mxu0 0
        %2055 = vmatpush1.bf16.msra.mxu0 %v1224
        %2056 = vmatprep.subr.bf16.mxu0 0
        %2057 = vmatpush1.bf16.msra.mxu0 %v1223
        %2058 = vmatprep.subr.bf16.mxu0 0
        %2059 = vmatpush1.bf16.msra.mxu0 %v1222
        %2060 = vmatprep.subr.bf16.mxu0 0
        %2061 = vmatpush1.bf16.msra.mxu0 %v1221
        %2062 = vmatprep.subr.bf16.mxu0 0
        %2063 = vmatpush1.bf16.msra.mxu0 %v1220
        %2064 = vmatprep.subr.bf16.mxu0 0
        %2065 = vmatpush1.bf16.msra.mxu0 %v1219
        %2066 = vmatprep.subr.bf16.mxu0 0
        %2067 = vmatpush2.bf16.msra.mxu0 %v1234
        %2068 = vmatprep.subr.bf16.mxu0 0
        %2069 = vmatpush2.bf16.msra.mxu0 %v1233
        %2070 = vmatprep.subr.bf16.mxu0 0
        %2071 = vmatpush2.bf16.msra.mxu0 %v1232
        %2072 = vmatprep.subr.bf16.mxu0 0
        %2073 = vmatpush2.bf16.msra.mxu0 %v1231
        %2074 = vmatprep.subr.bf16.mxu0 0
        %2075 = vmatpush2.bf16.msra.mxu0 %v1230
        %2076 = vmatprep.subr.bf16.mxu0 0
        %2077 = vmatpush2.bf16.msra.mxu0 %v1229
        %2078 = vmatprep.subr.bf16.mxu0 0
        %2079 = vmatpush2.bf16.msra.mxu0 %v1228
        %2080 = vmatprep.subr.bf16.mxu0 0
        %2081 = vmatpush2.bf16.msra.mxu0 %v1227
        %2082 = vmatprep.mubr.bf16.mxu0 %v1809
        %2083 = vmatmul.mubr.bf16.gmra.mxu0 %v1808
        %v2084 = vpop.f32.mrf.mxu0
        %v2085 = vadd.f32 %v2004, %v2084
        %v2086 = vpop.f32.mrf.mxu0
        %v2087 = vpop.f32.mrf.mxu0
        %v2088 = vadd.f32 %v2007, %v2087
        %v2089 = vpop.f32.mrf.mxu0
        %2090 = vmatprep.mubr.bf16.mxu0 %v1816
        %2091 = vmatmul.mubr.bf16.gmra.mxu0 %v1815
        %v2092 = vpop.f32.mrf.mxu0
        %v2093 = vadd.f32 %v2012, %v2092
        %v2094 = vpop.f32.mrf.mxu0
        %v2095 = vpop.f32.mrf.mxu0
        %v2096 = vadd.f32 %v2015, %v2095
        %v2097 = vpop.f32.mrf.mxu0
        %2098 = vmatprep.mubr.bf16.mxu0 %v1823
        %2099 = vmatmul.mubr.bf16.gmra.mxu0 %v1822
        %v2100 = vpop.f32.mrf.mxu0
        %v2101 = vadd.f32 %v2020, %v2100
        %v2102 = vpop.f32.mrf.mxu0
        %v2103 = vpop.f32.mrf.mxu0
        %v2104 = vadd.f32 %v2023, %v2103
        %v2105 = vpop.f32.mrf.mxu0
        %2106 = vmatprep.mubr.bf16.mxu0 %v1830
        %2107 = vmatmul.mubr.bf16.gmra.mxu0 %v1829
        %v2108 = vpop.f32.mrf.mxu0
        %v2109 = vadd.f32 %v2028, %v2108
        %v2110 = vpop.f32.mrf.mxu0
        %v2111 = vpop.f32.mrf.mxu0
        %v2112 = vadd.f32 %v2031, %v2111
        %v2113 = vpop.f32.mrf.mxu0
        %2114 = vmatprep.mubr.bf16.mxu0 %v1837
        %2115 = vmatmul.mubr.bf16.gmra.mxu0 %v1836
        %v2116 = vpop.f32.mrf.mxu0
        %v2117 = vadd.f32 %v2036, %v2116
        %v2118 = vpop.f32.mrf.mxu0
        %v2119 = vpop.f32.mrf.mxu0
        %v2120 = vadd.f32 %v2039, %v2119
        %v2121 = vpop.f32.mrf.mxu0
        %2122 = vmatprep.mubr.bf16.mxu0 %v1844
        %2123 = vmatmul.mubr.bf16.gmra.mxu0 %v1843
        %v2124 = vpop.f32.mrf.mxu0
        %v2125 = vadd.f32 %v2044, %v2124
        %v2126 = vpop.f32.mrf.mxu0
        %v2127 = vpop.f32.mrf.mxu0
        %v2128 = vadd.f32 %v2047, %v2127
        %v2129 = vpop.f32.mrf.mxu0
        %2130 = vdwg.mxu0
        %2131 = vmatprep.subr.bf16.mxu0 0
        %2132 = vmatpush1.bf16.msra.mxu0 %v1242
        %2133 = vmatprep.subr.bf16.mxu0 0
        %2134 = vmatpush1.bf16.msra.mxu0 %v1241
        %2135 = vmatprep.subr.bf16.mxu0 0
        %2136 = vmatpush1.bf16.msra.mxu0 %v1240
        %2137 = vmatprep.subr.bf16.mxu0 0
        %2138 = vmatpush1.bf16.msra.mxu0 %v1239
        %2139 = vmatprep.subr.bf16.mxu0 0
        %2140 = vmatpush1.bf16.msra.mxu0 %v1238
        %2141 = vmatprep.subr.bf16.mxu0 0
        %2142 = vmatpush1.bf16.msra.mxu0 %v1237
        %2143 = vmatprep.subr.bf16.mxu0 0
        %2144 = vmatpush1.bf16.msra.mxu0 %v1236
        %2145 = vmatprep.subr.bf16.mxu0 0
        %2146 = vmatpush1.bf16.msra.mxu0 %v1235
        %2147 = vmatprep.subr.bf16.mxu0 0
        %2148 = vmatpush2.bf16.msra.mxu0 0
        %2149 = vmatprep.subr.bf16.mxu0 0
        %2150 = vmatpush2.bf16.msra.mxu0 0
        %2151 = vmatprep.subr.bf16.mxu0 0
        %2152 = vmatpush2.bf16.msra.mxu0 0
        %2153 = vmatprep.subr.bf16.mxu0 0
        %2154 = vmatpush2.bf16.msra.mxu0 0
        %2155 = vmatprep.subr.bf16.mxu0 0
        %2156 = vmatpush2.bf16.msra.mxu0 0
        %2157 = vmatprep.subr.bf16.mxu0 0
        %2158 = vmatpush2.bf16.msra.mxu0 0
        %2159 = vmatprep.subr.bf16.mxu0 0
        %2160 = vmatpush2.bf16.msra.mxu0 0
        %2161 = vmatprep.subr.bf16.mxu0 0
        %2162 = vmatpush2.bf16.msra.mxu0 0
        %2163 = vmatprep.mubr.bf16.mxu0 0
        %2164 = vmatmul.mubr.bf16.gmra.mxu0 %v1810
        %v2165 = vpop.f32.mrf.mxu0
        %v2166 = vadd.f32 %v2085, %v2165
        %v2167 = vpop.f32.mrf.mxu0
        %v2168 = vpop.f32.mrf.mxu0
        %v2169 = vadd.f32 %v2088, %v2168
        %v2170 = vpop.f32.mrf.mxu0
        %2171 = vmatprep.mubr.bf16.mxu0 0
        %2172 = vmatmul.mubr.bf16.gmra.mxu0 %v1817
        %v2173 = vpop.f32.mrf.mxu0
        %v2174 = vadd.f32 %v2093, %v2173
        %v2175 = vpop.f32.mrf.mxu0
        %v2176 = vpop.f32.mrf.mxu0
        %v2177 = vadd.f32 %v2096, %v2176
        %v2178 = vpop.f32.mrf.mxu0
        %2179 = vmatprep.mubr.bf16.mxu0 0
        %2180 = vmatmul.mubr.bf16.gmra.mxu0 %v1824
        %v2181 = vpop.f32.mrf.mxu0
        %v2182 = vadd.f32 %v2101, %v2181
        %v2183 = vpop.f32.mrf.mxu0
        %v2184 = vpop.f32.mrf.mxu0
        %v2185 = vadd.f32 %v2104, %v2184
        %v2186 = vpop.f32.mrf.mxu0
        %2187 = vmatprep.mubr.bf16.mxu0 0
        %2188 = vmatmul.mubr.bf16.gmra.mxu0 %v1831
        %v2189 = vpop.f32.mrf.mxu0
        %v2190 = vadd.f32 %v2109, %v2189
        %v2191 = vpop.f32.mrf.mxu0
        %v2192 = vpop.f32.mrf.mxu0
        %v2193 = vadd.f32 %v2112, %v2192
        %v2194 = vpop.f32.mrf.mxu0
        %2195 = vmatprep.mubr.bf16.mxu0 0
        %2196 = vmatmul.mubr.bf16.gmra.mxu0 %v1838
        %v2197 = vpop.f32.mrf.mxu0
        %v2198 = vadd.f32 %v2117, %v2197
        %v2199 = vpop.f32.mrf.mxu0
        %v2200 = vpop.f32.mrf.mxu0
        %v2201 = vadd.f32 %v2120, %v2200
        %v2202 = vpop.f32.mrf.mxu0
        %2203 = vmatprep.mubr.bf16.mxu0 0
        %2204 = vmatmul.mubr.bf16.gmra.mxu0 %v1845
        %v2205 = vpop.f32.mrf.mxu0
        %v2206 = vadd.f32 %v2125, %v2205
        %v2207 = vpop.f32.mrf.mxu0
        %v2208 = vpop.f32.mrf.mxu0
        %v2209 = vadd.f32 %v2128, %v2208
        %v2210 = vpop.f32.mrf.mxu0
        %2211 = vdwg.mxu0
        %s2212 = scalar_lea.vmem %s558, 672 [#allocation2]
        %v2213 = vld [vmem:[%s2212] sm:$0xff]
        %v2214 = vld [vmem:[%s2212 + $0x8] sm:$0xff]
        %v2215 = vld [vmem:[%s2212 + $0x10] sm:$0xff]
        %v2216 = vld [vmem:[%s2212 + $0x18] sm:$0xf]
        %v2217 = vld [vmem:[%s2212 + $0x1c] sm:$0xff]
        %v2218 = vld [vmem:[%s2212 + $0x24] sm:$0xff]
        %v2219 = vld [vmem:[%s2212 + $0x2c] sm:$0xff]
        %v2220 = vld [vmem:[%s2212 + $0x34] sm:$0xf]
        %v2221 = vld [vmem:[%s2212 + $0x38] sm:$0xff]
        %v2222 = vld [vmem:[%s2212 + $0x40] sm:$0xff]
        %v2223 = vld [vmem:[%s2212 + $0x48] sm:$0xff]
        %v2224 = vld [vmem:[%s2212 + $0x50] sm:$0xf]
        %v2225 = vld [vmem:[%s2212 + $0x54] sm:$0xff]
        %v2226 = vld [vmem:[%s2212 + $0x5c] sm:$0xff]
        %v2227 = vld [vmem:[%s2212 + $0x64] sm:$0xff]
        %v2228 = vld [vmem:[%s2212 + $0x6c] sm:$0xf]
        %v2229 = vld [vmem:[%s2212 + $0x70] sm:$0xff]
        %v2230 = vld [vmem:[%s2212 + $0x78] sm:$0xff]
        %v2231 = vld [vmem:[%s2212 + $0x80] sm:$0xff]
        %v2232 = vld [vmem:[%s2212 + $0x88] sm:$0xf]
        %v2233 = vld [vmem:[%s2212 + $0x8c] sm:$0xff]
        %v2234 = vld [vmem:[%s2212 + $0x94] sm:$0xff]
        %v2235 = vld [vmem:[%s2212 + $0x9c] sm:$0xff]
        %v2236 = vld [vmem:[%s2212 + $0xa4] sm:$0xf]
        %v2237 = vld [vmem:[%s2212 + $0xa8] sm:$0xff]
        %v2238 = vld [vmem:[%s2212 + $0xb0] sm:$0xff]
        %v2239 = vld [vmem:[%s2212 + $0xb8] sm:$0xff]
        %v2240 = vld [vmem:[%s2212 + $0xc0] sm:$0xf]
        %v2241 = vld [vmem:[%s2212 + $0xc4] sm:$0xff]
        %v2242 = vld [vmem:[%s2212 + $0xcc] sm:$0xff]
        %v2243 = vld [vmem:[%s2212 + $0xd4] sm:$0xff]
        %v2244 = vld [vmem:[%s2212 + $0xdc] sm:$0xf]
        %v2245 = vld [vmem:[%s2212 + $0xe0] sm:$0xff]
        %v2246 = vld [vmem:[%s2212 + $0xe8] sm:$0xff]
        %v2247 = vld [vmem:[%s2212 + $0xf0] sm:$0xff]
        %v2248 = vld [vmem:[%s2212 + $0xf8] sm:$0xf]
        %v2249 = vld [vmem:[%s2212 + $0xfc] sm:$0xff]
        %v2250 = vld [vmem:[%s2212 + $0x104] sm:$0xff]
        %v2251 = vld [vmem:[%s2212 + $0x10c] sm:$0xff]
        %v2252 = vld [vmem:[%s2212 + $0x114] sm:$0xf]
        %v2253 = vld [vmem:[%s2212 + $0x118] sm:$0xff]
        %v2254 = vld [vmem:[%s2212 + $0x120] sm:$0xff]
        %v2255 = vld [vmem:[%s2212 + $0x128] sm:$0xff]
        %v2256 = vld [vmem:[%s2212 + $0x130] sm:$0xf]
        %v2257 = vld [vmem:[%s2212 + $0x134] sm:$0xff]
        %v2258 = vld [vmem:[%s2212 + $0x13c] sm:$0xff]
        %v2259 = vld [vmem:[%s2212 + $0x144] sm:$0xff]
        %v2260 = vld [vmem:[%s2212 + $0x14c] sm:$0xf]
        %v2309 = vunpack.c.l.b16 %v2213
        %v2310 = vunpack.c.h.b16 %v2213
        %v2311 = vunpack.c.l.b16 %v2214
        %v2312 = vunpack.c.h.b16 %v2214
        %v2313 = vunpack.c.l.b16 %v2215
        %v2314 = vunpack.c.h.b16 %v2215
        %v2315 = vunpack.c.l.b16 %v2216
        %v2316 = vunpack.c.l.b16 %v2217
        %v2317 = vunpack.c.h.b16 %v2217
        %v2318 = vunpack.c.l.b16 %v2218
        %v2319 = vunpack.c.h.b16 %v2218
        %v2320 = vunpack.c.l.b16 %v2219
        %v2321 = vunpack.c.h.b16 %v2219
        %v2322 = vunpack.c.l.b16 %v2220
        %v2323 = vunpack.c.l.b16 %v2221
        %v2324 = vunpack.c.h.b16 %v2221
        %v2325 = vunpack.c.l.b16 %v2222
        %v2326 = vunpack.c.h.b16 %v2222
        %v2327 = vunpack.c.l.b16 %v2223
        %v2328 = vunpack.c.h.b16 %v2223
        %v2329 = vunpack.c.l.b16 %v2224
        %v2330 = vunpack.c.l.b16 %v2225
        %v2331 = vunpack.c.h.b16 %v2225
        %v2332 = vunpack.c.l.b16 %v2226
        %v2333 = vunpack.c.h.b16 %v2226
        %v2334 = vunpack.c.l.b16 %v2227
        %v2335 = vunpack.c.h.b16 %v2227
        %v2336 = vunpack.c.l.b16 %v2228
        %v2337 = vunpack.c.l.b16 %v2229
        %v2338 = vunpack.c.h.b16 %v2229
        %v2339 = vunpack.c.l.b16 %v2230
        %v2340 = vunpack.c.h.b16 %v2230
        %v2341 = vunpack.c.l.b16 %v2231
        %v2342 = vunpack.c.h.b16 %v2231
        %v2343 = vunpack.c.l.b16 %v2232
        %v2344 = vunpack.c.l.b16 %v2233
        %v2345 = vunpack.c.h.b16 %v2233
        %v2346 = vunpack.c.l.b16 %v2234
        %v2347 = vunpack.c.h.b16 %v2234
        %v2348 = vunpack.c.l.b16 %v2235
        %v2349 = vunpack.c.h.b16 %v2235
        %v2350 = vunpack.c.l.b16 %v2236
        %v2351 = vunpack.c.l.b16 %v2237
        %v2352 = vunpack.c.h.b16 %v2237
        %v2353 = vunpack.c.l.b16 %v2238
        %v2354 = vunpack.c.h.b16 %v2238
        %v2355 = vunpack.c.l.b16 %v2239
        %v2356 = vunpack.c.h.b16 %v2239
        %v2357 = vunpack.c.l.b16 %v2240
        %v2358 = vunpack.c.l.b16 %v2241
        %v2359 = vunpack.c.h.b16 %v2241
        %v2360 = vunpack.c.l.b16 %v2242
        %v2361 = vunpack.c.h.b16 %v2242
        %v2362 = vunpack.c.l.b16 %v2243
        %v2363 = vunpack.c.h.b16 %v2243
        %v2364 = vunpack.c.l.b16 %v2244
        %v2365 = vunpack.c.l.b16 %v2245
        %v2366 = vunpack.c.h.b16 %v2245
        %v2367 = vunpack.c.l.b16 %v2246
        %v2368 = vunpack.c.h.b16 %v2246
        %v2369 = vunpack.c.l.b16 %v2247
        %v2370 = vunpack.c.h.b16 %v2247
        %v2371 = vunpack.c.l.b16 %v2248
        %v2372 = vunpack.c.l.b16 %v2249
        %v2373 = vunpack.c.h.b16 %v2249
        %v2374 = vunpack.c.l.b16 %v2250
        %v2375 = vunpack.c.h.b16 %v2250
        %v2376 = vunpack.c.l.b16 %v2251
        %v2377 = vunpack.c.h.b16 %v2251
        %v2378 = vunpack.c.l.b16 %v2252
        %v2379 = vunpack.c.l.b16 %v2253
        %v2380 = vunpack.c.h.b16 %v2253
        %v2381 = vunpack.c.l.b16 %v2254
        %v2382 = vunpack.c.h.b16 %v2254
        %v2383 = vunpack.c.l.b16 %v2255
        %v2384 = vunpack.c.h.b16 %v2255
        %v2385 = vunpack.c.l.b16 %v2256
        %v2386 = vunpack.c.l.b16 %v2257
        %v2387 = vunpack.c.h.b16 %v2257
        %v2388 = vunpack.c.l.b16 %v2258
        %v2389 = vunpack.c.h.b16 %v2258
        %v2390 = vunpack.c.l.b16 %v2259
        %v2391 = vunpack.c.h.b16 %v2259
        %v2392 = vunpack.c.l.b16 %v2260
        %v2393 = vpack.c.b16 %v2316, %v2309
        %v2394 = vpack.c.b16 %v2317, %v2310
        %v2395 = vpack.c.b16 %v2318, %v2311
        %v2396 = vpack.c.b16 %v2319, %v2312
        %v2397 = vpack.c.b16 %v2320, %v2313
        %v2398 = vpack.c.b16 %v2321, %v2314
        %v2399 = vpack.c.b16 %v2322, %v2315
        %v2400 = vpack.c.b16 %v2330, %v2323
        %v2401 = vpack.c.b16 %v2331, %v2324
        %v2402 = vpack.c.b16 %v2332, %v2325
        %v2403 = vpack.c.b16 %v2333, %v2326
        %v2404 = vpack.c.b16 %v2334, %v2327
        %v2405 = vpack.c.b16 %v2335, %v2328
        %v2406 = vpack.c.b16 %v2336, %v2329
        %v2407 = vpack.c.b16 %v2344, %v2337
        %v2408 = vpack.c.b16 %v2345, %v2338
        %v2409 = vpack.c.b16 %v2346, %v2339
        %v2410 = vpack.c.b16 %v2347, %v2340
        %v2411 = vpack.c.b16 %v2348, %v2341
        %v2412 = vpack.c.b16 %v2349, %v2342
        %v2413 = vpack.c.b16 %v2350, %v2343
        %v2414 = vpack.c.b16 %v2358, %v2351
        %v2415 = vpack.c.b16 %v2359, %v2352
        %v2416 = vpack.c.b16 %v2360, %v2353
        %v2417 = vpack.c.b16 %v2361, %v2354
        %v2418 = vpack.c.b16 %v2362, %v2355
        %v2419 = vpack.c.b16 %v2363, %v2356
        %v2420 = vpack.c.b16 %v2364, %v2357
        %v2421 = vpack.c.b16 %v2372, %v2365
        %v2422 = vpack.c.b16 %v2373, %v2366
        %v2423 = vpack.c.b16 %v2374, %v2367
        %v2424 = vpack.c.b16 %v2375, %v2368
        %v2425 = vpack.c.b16 %v2376, %v2369
        %v2426 = vpack.c.b16 %v2377, %v2370
        %v2427 = vpack.c.b16 %v2378, %v2371
        %v2428 = vpack.c.b16 %v2386, %v2379
        %v2429 = vpack.c.b16 %v2387, %v2380
        %v2430 = vpack.c.b16 %v2388, %v2381
        %v2431 = vpack.c.b16 %v2389, %v2382
        %v2432 = vpack.c.b16 %v2390, %v2383
        %v2433 = vpack.c.b16 %v2391, %v2384
        %v2434 = vpack.c.b16 %v2392, %v2385
        %2477 = vmatprep.subr.bf16.mxu0 0
        %2478 = vmatpush1.bf16.msra.mxu0 %v1194
        %2479 = vmatprep.subr.bf16.mxu0 0
        %2480 = vmatpush1.bf16.msra.mxu0 %v1193
        %2481 = vmatprep.subr.bf16.mxu0 0
        %2482 = vmatpush1.bf16.msra.mxu0 %v1192
        %2483 = vmatprep.subr.bf16.mxu0 0
        %2484 = vmatpush1.bf16.msra.mxu0 %v1191
        %2485 = vmatprep.subr.bf16.mxu0 0
        %2486 = vmatpush1.bf16.msra.mxu0 %v1190
        %2487 = vmatprep.subr.bf16.mxu0 0
        %2488 = vmatpush1.bf16.msra.mxu0 %v1189
        %2489 = vmatprep.subr.bf16.mxu0 0
        %2490 = vmatpush1.bf16.msra.mxu0 %v1188
        %2491 = vmatprep.subr.bf16.mxu0 0
        %2492 = vmatpush1.bf16.msra.mxu0 %v1187
        %2493 = vmatprep.subr.bf16.mxu0 0
        %2494 = vmatpush2.bf16.msra.mxu0 %v1202
        %2495 = vmatprep.subr.bf16.mxu0 0
        %2496 = vmatpush2.bf16.msra.mxu0 %v1201
        %2497 = vmatprep.subr.bf16.mxu0 0
        %2498 = vmatpush2.bf16.msra.mxu0 %v1200
        %2499 = vmatprep.subr.bf16.mxu0 0
        %2500 = vmatpush2.bf16.msra.mxu0 %v1199
        %2501 = vmatprep.subr.bf16.mxu0 0
        %2502 = vmatpush2.bf16.msra.mxu0 %v1198
        %2503 = vmatprep.subr.bf16.mxu0 0
        %2504 = vmatpush2.bf16.msra.mxu0 %v1197
        %2505 = vmatprep.subr.bf16.mxu0 0
        %2506 = vmatpush2.bf16.msra.mxu0 %v1196
        %2507 = vmatprep.subr.bf16.mxu0 0
        %2508 = vmatpush2.bf16.msra.mxu0 %v1195
        %2509 = vmatprep.mubr.bf16.mxu0 %v2394
        %2510 = vmatmul.mubr.bf16.gmra.mxu0 %v2393
        %v2511 = vpop.f32.mrf.mxu0
        %v2512 = vadd.f32 0.0, %v2511
        %v2513 = vpop.f32.mrf.mxu0
        %v2514 = vpop.f32.mrf.mxu0
        %v2515 = vadd.f32 0.0, %v2514
        %v2516 = vpop.f32.mrf.mxu0
        %2517 = vmatprep.mubr.bf16.mxu0 %v2401
        %2518 = vmatmul.mubr.bf16.gmra.mxu0 %v2400
        %v2519 = vpop.f32.mrf.mxu0
        %v2520 = vadd.f32 0.0, %v2519
        %v2521 = vpop.f32.mrf.mxu0
        %v2522 = vpop.f32.mrf.mxu0
        %v2523 = vadd.f32 0.0, %v2522
        %v2524 = vpop.f32.mrf.mxu0
        %2525 = vmatprep.mubr.bf16.mxu0 %v2408
        %2526 = vmatmul.mubr.bf16.gmra.mxu0 %v2407
        %v2527 = vpop.f32.mrf.mxu0
        %v2528 = vadd.f32 0.0, %v2527
        %v2529 = vpop.f32.mrf.mxu0
        %v2530 = vpop.f32.mrf.mxu0
        %v2531 = vadd.f32 0.0, %v2530
        %v2532 = vpop.f32.mrf.mxu0
        %2533 = vmatprep.mubr.bf16.mxu0 %v2415
        %2534 = vmatmul.mubr.bf16.gmra.mxu0 %v2414
        %v2535 = vpop.f32.mrf.mxu0
        %v2536 = vadd.f32 0.0, %v2535
        %v2537 = vpop.f32.mrf.mxu0
        %v2538 = vpop.f32.mrf.mxu0
        %v2539 = vadd.f32 0.0, %v2538
        %v2540 = vpop.f32.mrf.mxu0
        %2541 = vmatprep.mubr.bf16.mxu0 %v2422
        %2542 = vmatmul.mubr.bf16.gmra.mxu0 %v2421
        %v2543 = vpop.f32.mrf.mxu0
        %v2544 = vadd.f32 0.0, %v2543
        %v2545 = vpop.f32.mrf.mxu0
        %v2546 = vpop.f32.mrf.mxu0
        %v2547 = vadd.f32 0.0, %v2546
        %v2548 = vpop.f32.mrf.mxu0
        %2549 = vmatprep.mubr.bf16.mxu0 %v2429
        %2550 = vmatmul.mubr.bf16.gmra.mxu0 %v2428
        %v2551 = vpop.f32.mrf.mxu0
        %v2552 = vadd.f32 0.0, %v2551
        %v2553 = vpop.f32.mrf.mxu0
        %v2554 = vpop.f32.mrf.mxu0
        %v2555 = vadd.f32 0.0, %v2554
        %v2556 = vpop.f32.mrf.mxu0
        %2557 = vdwg.mxu0
        %2558 = vmatprep.subr.bf16.mxu0 0
        %2559 = vmatpush1.bf16.msra.mxu0 %v1210
        %2560 = vmatprep.subr.bf16.mxu0 0
        %2561 = vmatpush1.bf16.msra.mxu0 %v1209
        %2562 = vmatprep.subr.bf16.mxu0 0
        %2563 = vmatpush1.bf16.msra.mxu0 %v1208
        %2564 = vmatprep.subr.bf16.mxu0 0
        %2565 = vmatpush1.bf16.msra.mxu0 %v1207
        %2566 = vmatprep.subr.bf16.mxu0 0
        %2567 = vmatpush1.bf16.msra.mxu0 %v1206
        %2568 = vmatprep.subr.bf16.mxu0 0
        %2569 = vmatpush1.bf16.msra.mxu0 %v1205
        %2570 = vmatprep.subr.bf16.mxu0 0
        %2571 = vmatpush1.bf16.msra.mxu0 %v1204
        %2572 = vmatprep.subr.bf16.mxu0 0
        %2573 = vmatpush1.bf16.msra.mxu0 %v1203
        %2574 = vmatprep.subr.bf16.mxu0 0
        %2575 = vmatpush2.bf16.msra.mxu0 %v1218
        %2576 = vmatprep.subr.bf16.mxu0 0
        %2577 = vmatpush2.bf16.msra.mxu0 %v1217
        %2578 = vmatprep.subr.bf16.mxu0 0
        %2579 = vmatpush2.bf16.msra.mxu0 %v1216
        %2580 = vmatprep.subr.bf16.mxu0 0
        %2581 = vmatpush2.bf16.msra.mxu0 %v1215
        %2582 = vmatprep.subr.bf16.mxu0 0
        %2583 = vmatpush2.bf16.msra.mxu0 %v1214
        %2584 = vmatprep.subr.bf16.mxu0 0
        %2585 = vmatpush2.bf16.msra.mxu0 %v1213
        %2586 = vmatprep.subr.bf16.mxu0 0
        %2587 = vmatpush2.bf16.msra.mxu0 %v1212
        %2588 = vmatprep.subr.bf16.mxu0 0
        %2589 = vmatpush2.bf16.msra.mxu0 %v1211
        %2590 = vmatprep.mubr.bf16.mxu0 %v2396
        %2591 = vmatmul.mubr.bf16.gmra.mxu0 %v2395
        %v2592 = vpop.f32.mrf.mxu0
        %v2593 = vadd.f32 %v2512, %v2592
        %v2594 = vpop.f32.mrf.mxu0
        %v2595 = vpop.f32.mrf.mxu0
        %v2596 = vadd.f32 %v2515, %v2595
        %v2597 = vpop.f32.mrf.mxu0
        %2598 = vmatprep.mubr.bf16.mxu0 %v2403
        %2599 = vmatmul.mubr.bf16.gmra.mxu0 %v2402
        %v2600 = vpop.f32.mrf.mxu0
        %v2601 = vadd.f32 %v2520, %v2600
        %v2602 = vpop.f32.mrf.mxu0
        %v2603 = vpop.f32.mrf.mxu0
        %v2604 = vadd.f32 %v2523, %v2603
        %v2605 = vpop.f32.mrf.mxu0
        %2606 = vmatprep.mubr.bf16.mxu0 %v2410
        %2607 = vmatmul.mubr.bf16.gmra.mxu0 %v2409
        %v2608 = vpop.f32.mrf.mxu0
        %v2609 = vadd.f32 %v2528, %v2608
        %v2610 = vpop.f32.mrf.mxu0
        %v2611 = vpop.f32.mrf.mxu0
        %v2612 = vadd.f32 %v2531, %v2611
        %v2613 = vpop.f32.mrf.mxu0
        %2614 = vmatprep.mubr.bf16.mxu0 %v2417
        %2615 = vmatmul.mubr.bf16.gmra.mxu0 %v2416
        %v2616 = vpop.f32.mrf.mxu0
        %v2617 = vadd.f32 %v2536, %v2616
        %v2618 = vpop.f32.mrf.mxu0
        %v2619 = vpop.f32.mrf.mxu0
        %v2620 = vadd.f32 %v2539, %v2619
        %v2621 = vpop.f32.mrf.mxu0
        %2622 = vmatprep.mubr.bf16.mxu0 %v2424
        %2623 = vmatmul.mubr.bf16.gmra.mxu0 %v2423
        %v2624 = vpop.f32.mrf.mxu0
        %v2625 = vadd.f32 %v2544, %v2624
        %v2626 = vpop.f32.mrf.mxu0
        %v2627 = vpop.f32.mrf.mxu0
        %v2628 = vadd.f32 %v2547, %v2627
        %v2629 = vpop.f32.mrf.mxu0
        %2630 = vmatprep.mubr.bf16.mxu0 %v2431
        %2631 = vmatmul.mubr.bf16.gmra.mxu0 %v2430
        %v2632 = vpop.f32.mrf.mxu0
        %v2633 = vadd.f32 %v2552, %v2632
        %v2634 = vpop.f32.mrf.mxu0
        %v2635 = vpop.f32.mrf.mxu0
        %v2636 = vadd.f32 %v2555, %v2635
        %v2637 = vpop.f32.mrf.mxu0
        %2638 = vdwg.mxu0
        %2639 = vmatprep.subr.bf16.mxu0 0
        %2640 = vmatpush1.bf16.msra.mxu0 %v1226
        %2641 = vmatprep.subr.bf16.mxu0 0
        %2642 = vmatpush1.bf16.msra.mxu0 %v1225
        %2643 = vmatprep.subr.bf16.mxu0 0
        %2644 = vmatpush1.bf16.msra.mxu0 %v1224
        %2645 = vmatprep.subr.bf16.mxu0 0
        %2646 = vmatpush1.bf16.msra.mxu0 %v1223
        %2647 = vmatprep.subr.bf16.mxu0 0
        %2648 = vmatpush1.bf16.msra.mxu0 %v1222
        %2649 = vmatprep.subr.bf16.mxu0 0
        %2650 = vmatpush1.bf16.msra.mxu0 %v1221
        %2651 = vmatprep.subr.bf16.mxu0 0
        %2652 = vmatpush1.bf16.msra.mxu0 %v1220
        %2653 = vmatprep.subr.bf16.mxu0 0
        %2654 = vmatpush1.bf16.msra.mxu0 %v1219
        %2655 = vmatprep.subr.bf16.mxu0 0
        %2656 = vmatpush2.bf16.msra.mxu0 %v1234
        %2657 = vmatprep.subr.bf16.mxu0 0
        %2658 = vmatpush2.bf16.msra.mxu0 %v1233
        %2659 = vmatprep.subr.bf16.mxu0 0
        %2660 = vmatpush2.bf16.msra.mxu0 %v1232
        %2661 = vmatprep.subr.bf16.mxu0 0
        %2662 = vmatpush2.bf16.msra.mxu0 %v1231
        %2663 = vmatprep.subr.bf16.mxu0 0
        %2664 = vmatpush2.bf16.msra.mxu0 %v1230
        %2665 = vmatprep.subr.bf16.mxu0 0
        %2666 = vmatpush2.bf16.msra.mxu0 %v1229
        %2667 = vmatprep.subr.bf16.mxu0 0
        %2668 = vmatpush2.bf16.msra.mxu0 %v1228
        %2669 = vmatprep.subr.bf16.mxu0 0
        %2670 = vmatpush2.bf16.msra.mxu0 %v1227
        %2671 = vmatprep.mubr.bf16.mxu0 %v2398
        %2672 = vmatmul.mubr.bf16.gmra.mxu0 %v2397
        %v2673 = vpop.f32.mrf.mxu0
        %v2674 = vadd.f32 %v2593, %v2673
        %v2675 = vpop.f32.mrf.mxu0
        %v2676 = vpop.f32.mrf.mxu0
        %v2677 = vadd.f32 %v2596, %v2676
        %v2678 = vpop.f32.mrf.mxu0
        %2679 = vmatprep.mubr.bf16.mxu0 %v2405
        %2680 = vmatmul.mubr.bf16.gmra.mxu0 %v2404
        %v2681 = vpop.f32.mrf.mxu0
        %v2682 = vadd.f32 %v2601, %v2681
        %v2683 = vpop.f32.mrf.mxu0
        %v2684 = vpop.f32.mrf.mxu0
        %v2685 = vadd.f32 %v2604, %v2684
        %v2686 = vpop.f32.mrf.mxu0
        %2687 = vmatprep.mubr.bf16.mxu0 %v2412
        %2688 = vmatmul.mubr.bf16.gmra.mxu0 %v2411
        %v2689 = vpop.f32.mrf.mxu0
        %v2690 = vadd.f32 %v2609, %v2689
        %v2691 = vpop.f32.mrf.mxu0
        %v2692 = vpop.f32.mrf.mxu0
        %v2693 = vadd.f32 %v2612, %v2692
        %v2694 = vpop.f32.mrf.mxu0
        %2695 = vmatprep.mubr.bf16.mxu0 %v2419
        %2696 = vmatmul.mubr.bf16.gmra.mxu0 %v2418
        %v2697 = vpop.f32.mrf.mxu0
        %v2698 = vadd.f32 %v2617, %v2697
        %v2699 = vpop.f32.mrf.mxu0
        %v2700 = vpop.f32.mrf.mxu0
        %v2701 = vadd.f32 %v2620, %v2700
        %v2702 = vpop.f32.mrf.mxu0
        %2703 = vmatprep.mubr.bf16.mxu0 %v2426
        %2704 = vmatmul.mubr.bf16.gmra.mxu0 %v2425
        %v2705 = vpop.f32.mrf.mxu0
        %v2706 = vadd.f32 %v2625, %v2705
        %v2707 = vpop.f32.mrf.mxu0
        %v2708 = vpop.f32.mrf.mxu0
        %v2709 = vadd.f32 %v2628, %v2708
        %v2710 = vpop.f32.mrf.mxu0
        %2711 = vmatprep.mubr.bf16.mxu0 %v2433
        %2712 = vmatmul.mubr.bf16.gmra.mxu0 %v2432
        %v2713 = vpop.f32.mrf.mxu0
        %v2714 = vadd.f32 %v2633, %v2713
        %v2715 = vpop.f32.mrf.mxu0
        %v2716 = vpop.f32.mrf.mxu0
        %v2717 = vadd.f32 %v2636, %v2716
        %v2718 = vpop.f32.mrf.mxu0
        %2719 = vdwg.mxu0
        %2720 = vmatprep.subr.bf16.mxu0 0
        %2721 = vmatpush1.bf16.msra.mxu0 %v1242
        %2722 = vmatprep.subr.bf16.mxu0 0
        %2723 = vmatpush1.bf16.msra.mxu0 %v1241
        %2724 = vmatprep.subr.bf16.mxu0 0
        %2725 = vmatpush1.bf16.msra.mxu0 %v1240
        %2726 = vmatprep.subr.bf16.mxu0 0
        %2727 = vmatpush1.bf16.msra.mxu0 %v1239
        %2728 = vmatprep.subr.bf16.mxu0 0
        %2729 = vmatpush1.bf16.msra.mxu0 %v1238
        %2730 = vmatprep.subr.bf16.mxu0 0
        %2731 = vmatpush1.bf16.msra.mxu0 %v1237
        %2732 = vmatprep.subr.bf16.mxu0 0
        %2733 = vmatpush1.bf16.msra.mxu0 %v1236
        %2734 = vmatprep.subr.bf16.mxu0 0
        %2735 = vmatpush1.bf16.msra.mxu0 %v1235
        %2736 = vmatprep.subr.bf16.mxu0 0
        %2737 = vmatpush2.bf16.msra.mxu0 0
        %2738 = vmatprep.subr.bf16.mxu0 0
        %2739 = vmatpush2.bf16.msra.mxu0 0
        %2740 = vmatprep.subr.bf16.mxu0 0
        %2741 = vmatpush2.bf16.msra.mxu0 0
        %2742 = vmatprep.subr.bf16.mxu0 0
        %2743 = vmatpush2.bf16.msra.mxu0 0
        %2744 = vmatprep.subr.bf16.mxu0 0
        %2745 = vmatpush2.bf16.msra.mxu0 0
        %2746 = vmatprep.subr.bf16.mxu0 0
        %2747 = vmatpush2.bf16.msra.mxu0 0
        %2748 = vmatprep.subr.bf16.mxu0 0
        %2749 = vmatpush2.bf16.msra.mxu0 0
        %2750 = vmatprep.subr.bf16.mxu0 0
        %2751 = vmatpush2.bf16.msra.mxu0 0
        %2752 = vmatprep.mubr.bf16.mxu0 0
        %2753 = vmatmul.mubr.bf16.gmra.mxu0 %v2399
        %v2754 = vpop.f32.mrf.mxu0
        %v2755 = vadd.f32 %v2674, %v2754
        %v2756 = vpop.f32.mrf.mxu0
        %v2757 = vpop.f32.mrf.mxu0
        %v2758 = vadd.f32 %v2677, %v2757
        %v2759 = vpop.f32.mrf.mxu0
        %2760 = vmatprep.mubr.bf16.mxu0 0
        %2761 = vmatmul.mubr.bf16.gmra.mxu0 %v2406
        %v2762 = vpop.f32.mrf.mxu0
        %v2763 = vadd.f32 %v2682, %v2762
        %v2764 = vpop.f32.mrf.mxu0
        %v2765 = vpop.f32.mrf.mxu0
        %v2766 = vadd.f32 %v2685, %v2765
        %v2767 = vpop.f32.mrf.mxu0
        %2768 = vmatprep.mubr.bf16.mxu0 0
        %2769 = vmatmul.mubr.bf16.gmra.mxu0 %v2413
        %v2770 = vpop.f32.mrf.mxu0
        %v2771 = vadd.f32 %v2690, %v2770
        %v2772 = vpop.f32.mrf.mxu0
        %v2773 = vpop.f32.mrf.mxu0
        %v2774 = vadd.f32 %v2693, %v2773
        %v2775 = vpop.f32.mrf.mxu0
        %2776 = vmatprep.mubr.bf16.mxu0 0
        %2777 = vmatmul.mubr.bf16.gmra.mxu0 %v2420
        %v2778 = vpop.f32.mrf.mxu0
        %v2779 = vadd.f32 %v2698, %v2778
        %v2780 = vpop.f32.mrf.mxu0
        %v2781 = vpop.f32.mrf.mxu0
        %v2782 = vadd.f32 %v2701, %v2781
        %v2783 = vpop.f32.mrf.mxu0
        %2784 = vmatprep.mubr.bf16.mxu0 0
        %2785 = vmatmul.mubr.bf16.gmra.mxu0 %v2427
        %v2786 = vpop.f32.mrf.mxu0
        %v2787 = vadd.f32 %v2706, %v2786
        %v2788 = vpop.f32.mrf.mxu0
        %v2789 = vpop.f32.mrf.mxu0
        %v2790 = vadd.f32 %v2709, %v2789
        %v2791 = vpop.f32.mrf.mxu0
        %2792 = vmatprep.mubr.bf16.mxu0 0
        %2793 = vmatmul.mubr.bf16.gmra.mxu0 %v2434
        %v2794 = vpop.f32.mrf.mxu0
        %v2795 = vadd.f32 %v2714, %v2794
        %v2796 = vpop.f32.mrf.mxu0
        %v2797 = vpop.f32.mrf.mxu0
        %v2798 = vadd.f32 %v2717, %v2797
        %v2799 = vpop.f32.mrf.mxu0
        %2800 = vdwg.mxu0
        %s2801 = scalar_lea.vmem %s558, 1008 [#allocation2]
        %v2802 = vld [vmem:[%s2801] sm:$0xff]
        %v2803 = vld [vmem:[%s2801 + $0x8] sm:$0xff]
        %v2804 = vld [vmem:[%s2801 + $0x10] sm:$0xff]
        %v2805 = vld [vmem:[%s2801 + $0x18] sm:$0xf]
        %v2806 = vld [vmem:[%s2801 + $0x1c] sm:$0xff]
        %v2807 = vld [vmem:[%s2801 + $0x24] sm:$0xff]
        %v2808 = vld [vmem:[%s2801 + $0x2c] sm:$0xff]
        %v2809 = vld [vmem:[%s2801 + $0x34] sm:$0xf]
        %v2810 = vld [vmem:[%s2801 + $0x38] sm:$0xff]
        %v2811 = vld [vmem:[%s2801 + $0x40] sm:$0xff]
        %v2812 = vld [vmem:[%s2801 + $0x48] sm:$0xff]
        %v2813 = vld [vmem:[%s2801 + $0x50] sm:$0xf]
        %v2814 = vld [vmem:[%s2801 + $0x54] sm:$0xff]
        %v2815 = vld [vmem:[%s2801 + $0x5c] sm:$0xff]
        %v2816 = vld [vmem:[%s2801 + $0x64] sm:$0xff]
        %v2817 = vld [vmem:[%s2801 + $0x6c] sm:$0xf]
        %v2818 = vld [vmem:[%s2801 + $0x70] sm:$0xff]
        %v2819 = vld [vmem:[%s2801 + $0x78] sm:$0xff]
        %v2820 = vld [vmem:[%s2801 + $0x80] sm:$0xff]
        %v2821 = vld [vmem:[%s2801 + $0x88] sm:$0xf]
        %v2822 = vld [vmem:[%s2801 + $0x8c] sm:$0xff]
        %v2823 = vld [vmem:[%s2801 + $0x94] sm:$0xff]
        %v2824 = vld [vmem:[%s2801 + $0x9c] sm:$0xff]
        %v2825 = vld [vmem:[%s2801 + $0xa4] sm:$0xf]
        %v2826 = vld [vmem:[%s2801 + $0xa8] sm:$0xff]
        %v2827 = vld [vmem:[%s2801 + $0xb0] sm:$0xff]
        %v2828 = vld [vmem:[%s2801 + $0xb8] sm:$0xff]
        %v2829 = vld [vmem:[%s2801 + $0xc0] sm:$0xf]
        %v2830 = vld [vmem:[%s2801 + $0xc4] sm:$0xff]
        %v2831 = vld [vmem:[%s2801 + $0xcc] sm:$0xff]
        %v2832 = vld [vmem:[%s2801 + $0xd4] sm:$0xff]
        %v2833 = vld [vmem:[%s2801 + $0xdc] sm:$0xf]
        %v2834 = vld [vmem:[%s2801 + $0xe0] sm:$0xff]
        %v2835 = vld [vmem:[%s2801 + $0xe8] sm:$0xff]
        %v2836 = vld [vmem:[%s2801 + $0xf0] sm:$0xff]
        %v2837 = vld [vmem:[%s2801 + $0xf8] sm:$0xf]
        %v2838 = vld [vmem:[%s2801 + $0xfc] sm:$0xff]
        %v2839 = vld [vmem:[%s2801 + $0x104] sm:$0xff]
        %v2840 = vld [vmem:[%s2801 + $0x10c] sm:$0xff]
        %v2841 = vld [vmem:[%s2801 + $0x114] sm:$0xf]
        %v2842 = vld [vmem:[%s2801 + $0x118] sm:$0xff]
        %v2843 = vld [vmem:[%s2801 + $0x120] sm:$0xff]
        %v2844 = vld [vmem:[%s2801 + $0x128] sm:$0xff]
        %v2845 = vld [vmem:[%s2801 + $0x130] sm:$0xf]
        %v2846 = vld [vmem:[%s2801 + $0x134] sm:$0xff]
        %v2847 = vld [vmem:[%s2801 + $0x13c] sm:$0xff]
        %v2848 = vld [vmem:[%s2801 + $0x144] sm:$0xff]
        %v2849 = vld [vmem:[%s2801 + $0x14c] sm:$0xf]
        %v2898 = vunpack.c.l.b16 %v2802
        %v2899 = vunpack.c.h.b16 %v2802
        %v2900 = vunpack.c.l.b16 %v2803
        %v2901 = vunpack.c.h.b16 %v2803
        %v2902 = vunpack.c.l.b16 %v2804
        %v2903 = vunpack.c.h.b16 %v2804
        %v2904 = vunpack.c.l.b16 %v2805
        %v2905 = vunpack.c.l.b16 %v2806
        %v2906 = vunpack.c.h.b16 %v2806
        %v2907 = vunpack.c.l.b16 %v2807
        %v2908 = vunpack.c.h.b16 %v2807
        %v2909 = vunpack.c.l.b16 %v2808
        %v2910 = vunpack.c.h.b16 %v2808
        %v2911 = vunpack.c.l.b16 %v2809
        %v2912 = vunpack.c.l.b16 %v2810
        %v2913 = vunpack.c.h.b16 %v2810
        %v2914 = vunpack.c.l.b16 %v2811
        %v2915 = vunpack.c.h.b16 %v2811
        %v2916 = vunpack.c.l.b16 %v2812
        %v2917 = vunpack.c.h.b16 %v2812
        %v2918 = vunpack.c.l.b16 %v2813
        %v2919 = vunpack.c.l.b16 %v2814
        %v2920 = vunpack.c.h.b16 %v2814
        %v2921 = vunpack.c.l.b16 %v2815
        %v2922 = vunpack.c.h.b16 %v2815
        %v2923 = vunpack.c.l.b16 %v2816
        %v2924 = vunpack.c.h.b16 %v2816
        %v2925 = vunpack.c.l.b16 %v2817
        %v2926 = vunpack.c.l.b16 %v2818
        %v2927 = vunpack.c.h.b16 %v2818
        %v2928 = vunpack.c.l.b16 %v2819
        %v2929 = vunpack.c.h.b16 %v2819
        %v2930 = vunpack.c.l.b16 %v2820
        %v2931 = vunpack.c.h.b16 %v2820
        %v2932 = vunpack.c.l.b16 %v2821
        %v2933 = vunpack.c.l.b16 %v2822
        %v2934 = vunpack.c.h.b16 %v2822
        %v2935 = vunpack.c.l.b16 %v2823
        %v2936 = vunpack.c.h.b16 %v2823
        %v2937 = vunpack.c.l.b16 %v2824
        %v2938 = vunpack.c.h.b16 %v2824
        %v2939 = vunpack.c.l.b16 %v2825
        %v2940 = vunpack.c.l.b16 %v2826
        %v2941 = vunpack.c.h.b16 %v2826
        %v2942 = vunpack.c.l.b16 %v2827
        %v2943 = vunpack.c.h.b16 %v2827
        %v2944 = vunpack.c.l.b16 %v2828
        %v2945 = vunpack.c.h.b16 %v2828
        %v2946 = vunpack.c.l.b16 %v2829
        %v2947 = vunpack.c.l.b16 %v2830
        %v2948 = vunpack.c.h.b16 %v2830
        %v2949 = vunpack.c.l.b16 %v2831
        %v2950 = vunpack.c.h.b16 %v2831
        %v2951 = vunpack.c.l.b16 %v2832
        %v2952 = vunpack.c.h.b16 %v2832
        %v2953 = vunpack.c.l.b16 %v2833
        %v2954 = vunpack.c.l.b16 %v2834
        %v2955 = vunpack.c.h.b16 %v2834
        %v2956 = vunpack.c.l.b16 %v2835
        %v2957 = vunpack.c.h.b16 %v2835
        %v2958 = vunpack.c.l.b16 %v2836
        %v2959 = vunpack.c.h.b16 %v2836
        %v2960 = vunpack.c.l.b16 %v2837
        %v2961 = vunpack.c.l.b16 %v2838
        %v2962 = vunpack.c.h.b16 %v2838
        %v2963 = vunpack.c.l.b16 %v2839
        %v2964 = vunpack.c.h.b16 %v2839
        %v2965 = vunpack.c.l.b16 %v2840
        %v2966 = vunpack.c.h.b16 %v2840
        %v2967 = vunpack.c.l.b16 %v2841
        %v2968 = vunpack.c.l.b16 %v2842
        %v2969 = vunpack.c.h.b16 %v2842
        %v2970 = vunpack.c.l.b16 %v2843
        %v2971 = vunpack.c.h.b16 %v2843
        %v2972 = vunpack.c.l.b16 %v2844
        %v2973 = vunpack.c.h.b16 %v2844
        %v2974 = vunpack.c.l.b16 %v2845
        %v2975 = vunpack.c.l.b16 %v2846
        %v2976 = vunpack.c.h.b16 %v2846
        %v2977 = vunpack.c.l.b16 %v2847
        %v2978 = vunpack.c.h.b16 %v2847
        %v2979 = vunpack.c.l.b16 %v2848
        %v2980 = vunpack.c.h.b16 %v2848
        %v2981 = vunpack.c.l.b16 %v2849
        %v2982 = vpack.c.b16 %v2905, %v2898
        %v2983 = vpack.c.b16 %v2906, %v2899
        %v2984 = vpack.c.b16 %v2907, %v2900
        %v2985 = vpack.c.b16 %v2908, %v2901
        %v2986 = vpack.c.b16 %v2909, %v2902
        %v2987 = vpack.c.b16 %v2910, %v2903
        %v2988 = vpack.c.b16 %v2911, %v2904
        %v2989 = vpack.c.b16 %v2919, %v2912
        %v2990 = vpack.c.b16 %v2920, %v2913
        %v2991 = vpack.c.b16 %v2921, %v2914
        %v2992 = vpack.c.b16 %v2922, %v2915
        %v2993 = vpack.c.b16 %v2923, %v2916
        %v2994 = vpack.c.b16 %v2924, %v2917
        %v2995 = vpack.c.b16 %v2925, %v2918
        %v2996 = vpack.c.b16 %v2933, %v2926
        %v2997 = vpack.c.b16 %v2934, %v2927
        %v2998 = vpack.c.b16 %v2935, %v2928
        %v2999 = vpack.c.b16 %v2936, %v2929
        %v3000 = vpack.c.b16 %v2937, %v2930
        %v3001 = vpack.c.b16 %v2938, %v2931
        %v3002 = vpack.c.b16 %v2939, %v2932
        %v3003 = vpack.c.b16 %v2947, %v2940
        %v3004 = vpack.c.b16 %v2948, %v2941
        %v3005 = vpack.c.b16 %v2949, %v2942
        %v3006 = vpack.c.b16 %v2950, %v2943
        %v3007 = vpack.c.b16 %v2951, %v2944
        %v3008 = vpack.c.b16 %v2952, %v2945
        %v3009 = vpack.c.b16 %v2953, %v2946
        %v3010 = vpack.c.b16 %v2961, %v2954
        %v3011 = vpack.c.b16 %v2962, %v2955
        %v3012 = vpack.c.b16 %v2963, %v2956
        %v3013 = vpack.c.b16 %v2964, %v2957
        %v3014 = vpack.c.b16 %v2965, %v2958
        %v3015 = vpack.c.b16 %v2966, %v2959
        %v3016 = vpack.c.b16 %v2967, %v2960
        %v3017 = vpack.c.b16 %v2975, %v2968
        %v3018 = vpack.c.b16 %v2976, %v2969
        %v3019 = vpack.c.b16 %v2977, %v2970
        %v3020 = vpack.c.b16 %v2978, %v2971
        %v3021 = vpack.c.b16 %v2979, %v2972
        %v3022 = vpack.c.b16 %v2980, %v2973
        %v3023 = vpack.c.b16 %v2981, %v2974
        %3066 = vmatprep.subr.bf16.mxu0 0
        %3067 = vmatpush1.bf16.msra.mxu0 %v1194
        %3068 = vmatprep.subr.bf16.mxu0 0
        %3069 = vmatpush1.bf16.msra.mxu0 %v1193
        %3070 = vmatprep.subr.bf16.mxu0 0
        %3071 = vmatpush1.bf16.msra.mxu0 %v1192
        %3072 = vmatprep.subr.bf16.mxu0 0
        %3073 = vmatpush1.bf16.msra.mxu0 %v1191
        %3074 = vmatprep.subr.bf16.mxu0 0
        %3075 = vmatpush1.bf16.msra.mxu0 %v1190
        %3076 = vmatprep.subr.bf16.mxu0 0
        %3077 = vmatpush1.bf16.msra.mxu0 %v1189
        %3078 = vmatprep.subr.bf16.mxu0 0
        %3079 = vmatpush1.bf16.msra.mxu0 %v1188
        %3080 = vmatprep.subr.bf16.mxu0 0
        %3081 = vmatpush1.bf16.msra.mxu0 %v1187
        %3082 = vmatprep.subr.bf16.mxu0 0
        %3083 = vmatpush2.bf16.msra.mxu0 %v1202
        %3084 = vmatprep.subr.bf16.mxu0 0
        %3085 = vmatpush2.bf16.msra.mxu0 %v1201
        %3086 = vmatprep.subr.bf16.mxu0 0
        %3087 = vmatpush2.bf16.msra.mxu0 %v1200
        %3088 = vmatprep.subr.bf16.mxu0 0
        %3089 = vmatpush2.bf16.msra.mxu0 %v1199
        %3090 = vmatprep.subr.bf16.mxu0 0
        %3091 = vmatpush2.bf16.msra.mxu0 %v1198
        %3092 = vmatprep.subr.bf16.mxu0 0
        %3093 = vmatpush2.bf16.msra.mxu0 %v1197
        %3094 = vmatprep.subr.bf16.mxu0 0
        %3095 = vmatpush2.bf16.msra.mxu0 %v1196
        %3096 = vmatprep.subr.bf16.mxu0 0
        %3097 = vmatpush2.bf16.msra.mxu0 %v1195
        %3098 = vmatprep.mubr.bf16.mxu0 %v2983
        %3099 = vmatmul.mubr.bf16.gmra.mxu0 %v2982
        %v3100 = vpop.f32.mrf.mxu0
        %v3101 = vadd.f32 0.0, %v3100
        %v3102 = vpop.f32.mrf.mxu0
        %v3103 = vpop.f32.mrf.mxu0
        %v3104 = vadd.f32 0.0, %v3103
        %v3105 = vpop.f32.mrf.mxu0
        %3106 = vmatprep.mubr.bf16.mxu0 %v2990
        %3107 = vmatmul.mubr.bf16.gmra.mxu0 %v2989
        %v3108 = vpop.f32.mrf.mxu0
        %v3109 = vadd.f32 0.0, %v3108
        %v3110 = vpop.f32.mrf.mxu0
        %v3111 = vpop.f32.mrf.mxu0
        %v3112 = vadd.f32 0.0, %v3111
        %v3113 = vpop.f32.mrf.mxu0
        %3114 = vmatprep.mubr.bf16.mxu0 %v2997
        %3115 = vmatmul.mubr.bf16.gmra.mxu0 %v2996
        %v3116 = vpop.f32.mrf.mxu0
        %v3117 = vadd.f32 0.0, %v3116
        %v3118 = vpop.f32.mrf.mxu0
        %v3119 = vpop.f32.mrf.mxu0
        %v3120 = vadd.f32 0.0, %v3119
        %v3121 = vpop.f32.mrf.mxu0
        %3122 = vmatprep.mubr.bf16.mxu0 %v3004
        %3123 = vmatmul.mubr.bf16.gmra.mxu0 %v3003
        %v3124 = vpop.f32.mrf.mxu0
        %v3125 = vadd.f32 0.0, %v3124
        %v3126 = vpop.f32.mrf.mxu0
        %v3127 = vpop.f32.mrf.mxu0
        %v3128 = vadd.f32 0.0, %v3127
        %v3129 = vpop.f32.mrf.mxu0
        %3130 = vmatprep.mubr.bf16.mxu0 %v3011
        %3131 = vmatmul.mubr.bf16.gmra.mxu0 %v3010
        %v3132 = vpop.f32.mrf.mxu0
        %v3133 = vadd.f32 0.0, %v3132
        %v3134 = vpop.f32.mrf.mxu0
        %v3135 = vpop.f32.mrf.mxu0
        %v3136 = vadd.f32 0.0, %v3135
        %v3137 = vpop.f32.mrf.mxu0
        %3138 = vmatprep.mubr.bf16.mxu0 %v3018
        %3139 = vmatmul.mubr.bf16.gmra.mxu0 %v3017
        %v3140 = vpop.f32.mrf.mxu0
        %v3141 = vadd.f32 0.0, %v3140
        %v3142 = vpop.f32.mrf.mxu0
        %v3143 = vpop.f32.mrf.mxu0
        %v3144 = vadd.f32 0.0, %v3143
        %v3145 = vpop.f32.mrf.mxu0
        %3146 = vdwg.mxu0
        %3147 = vmatprep.subr.bf16.mxu0 0
        %3148 = vmatpush1.bf16.msra.mxu0 %v1210
        %3149 = vmatprep.subr.bf16.mxu0 0
        %3150 = vmatpush1.bf16.msra.mxu0 %v1209
        %3151 = vmatprep.subr.bf16.mxu0 0
        %3152 = vmatpush1.bf16.msra.mxu0 %v1208
        %3153 = vmatprep.subr.bf16.mxu0 0
        %3154 = vmatpush1.bf16.msra.mxu0 %v1207
        %3155 = vmatprep.subr.bf16.mxu0 0
        %3156 = vmatpush1.bf16.msra.mxu0 %v1206
        %3157 = vmatprep.subr.bf16.mxu0 0
        %3158 = vmatpush1.bf16.msra.mxu0 %v1205
        %3159 = vmatprep.subr.bf16.mxu0 0
        %3160 = vmatpush1.bf16.msra.mxu0 %v1204
        %3161 = vmatprep.subr.bf16.mxu0 0
        %3162 = vmatpush1.bf16.msra.mxu0 %v1203
        %3163 = vmatprep.subr.bf16.mxu0 0
        %3164 = vmatpush2.bf16.msra.mxu0 %v1218
        %3165 = vmatprep.subr.bf16.mxu0 0
        %3166 = vmatpush2.bf16.msra.mxu0 %v1217
        %3167 = vmatprep.subr.bf16.mxu0 0
        %3168 = vmatpush2.bf16.msra.mxu0 %v1216
        %3169 = vmatprep.subr.bf16.mxu0 0
        %3170 = vmatpush2.bf16.msra.mxu0 %v1215
        %3171 = vmatprep.subr.bf16.mxu0 0
        %3172 = vmatpush2.bf16.msra.mxu0 %v1214
        %3173 = vmatprep.subr.bf16.mxu0 0
        %3174 = vmatpush2.bf16.msra.mxu0 %v1213
        %3175 = vmatprep.subr.bf16.mxu0 0
        %3176 = vmatpush2.bf16.msra.mxu0 %v1212
        %3177 = vmatprep.subr.bf16.mxu0 0
        %3178 = vmatpush2.bf16.msra.mxu0 %v1211
        %3179 = vmatprep.mubr.bf16.mxu0 %v2985
        %3180 = vmatmul.mubr.bf16.gmra.mxu0 %v2984
        %v3181 = vpop.f32.mrf.mxu0
        %v3182 = vadd.f32 %v3101, %v3181
        %v3183 = vpop.f32.mrf.mxu0
        %v3184 = vpop.f32.mrf.mxu0
        %v3185 = vadd.f32 %v3104, %v3184
        %v3186 = vpop.f32.mrf.mxu0
        %3187 = vmatprep.mubr.bf16.mxu0 %v2992
        %3188 = vmatmul.mubr.bf16.gmra.mxu0 %v2991
        %v3189 = vpop.f32.mrf.mxu0
        %v3190 = vadd.f32 %v3109, %v3189
        %v3191 = vpop.f32.mrf.mxu0
        %v3192 = vpop.f32.mrf.mxu0
        %v3193 = vadd.f32 %v3112, %v3192
        %v3194 = vpop.f32.mrf.mxu0
        %3195 = vmatprep.mubr.bf16.mxu0 %v2999
        %3196 = vmatmul.mubr.bf16.gmra.mxu0 %v2998
        %v3197 = vpop.f32.mrf.mxu0
        %v3198 = vadd.f32 %v3117, %v3197
        %v3199 = vpop.f32.mrf.mxu0
        %v3200 = vpop.f32.mrf.mxu0
        %v3201 = vadd.f32 %v3120, %v3200
        %v3202 = vpop.f32.mrf.mxu0
        %3203 = vmatprep.mubr.bf16.mxu0 %v3006
        %3204 = vmatmul.mubr.bf16.gmra.mxu0 %v3005
        %v3205 = vpop.f32.mrf.mxu0
        %v3206 = vadd.f32 %v3125, %v3205
        %v3207 = vpop.f32.mrf.mxu0
        %v3208 = vpop.f32.mrf.mxu0
        %v3209 = vadd.f32 %v3128, %v3208
        %v3210 = vpop.f32.mrf.mxu0
        %3211 = vmatprep.mubr.bf16.mxu0 %v3013
        %3212 = vmatmul.mubr.bf16.gmra.mxu0 %v3012
        %v3213 = vpop.f32.mrf.mxu0
        %v3214 = vadd.f32 %v3133, %v3213
        %v3215 = vpop.f32.mrf.mxu0
        %v3216 = vpop.f32.mrf.mxu0
        %v3217 = vadd.f32 %v3136, %v3216
        %v3218 = vpop.f32.mrf.mxu0
        %3219 = vmatprep.mubr.bf16.mxu0 %v3020
        %3220 = vmatmul.mubr.bf16.gmra.mxu0 %v3019
        %v3221 = vpop.f32.mrf.mxu0
        %v3222 = vadd.f32 %v3141, %v3221
        %v3223 = vpop.f32.mrf.mxu0
        %v3224 = vpop.f32.mrf.mxu0
        %v3225 = vadd.f32 %v3144, %v3224
        %v3226 = vpop.f32.mrf.mxu0
        %3227 = vdwg.mxu0
        %3228 = vmatprep.subr.bf16.mxu0 0
        %3229 = vmatpush1.bf16.msra.mxu0 %v1226
        %3230 = vmatprep.subr.bf16.mxu0 0
        %3231 = vmatpush1.bf16.msra.mxu0 %v1225
        %3232 = vmatprep.subr.bf16.mxu0 0
        %3233 = vmatpush1.bf16.msra.mxu0 %v1224
        %3234 = vmatprep.subr.bf16.mxu0 0
        %3235 = vmatpush1.bf16.msra.mxu0 %v1223
        %3236 = vmatprep.subr.bf16.mxu0 0
        %3237 = vmatpush1.bf16.msra.mxu0 %v1222
        %3238 = vmatprep.subr.bf16.mxu0 0
        %3239 = vmatpush1.bf16.msra.mxu0 %v1221
        %3240 = vmatprep.subr.bf16.mxu0 0
        %3241 = vmatpush1.bf16.msra.mxu0 %v1220
        %3242 = vmatprep.subr.bf16.mxu0 0
        %3243 = vmatpush1.bf16.msra.mxu0 %v1219
        %3244 = vmatprep.subr.bf16.mxu0 0
        %3245 = vmatpush2.bf16.msra.mxu0 %v1234
        %3246 = vmatprep.subr.bf16.mxu0 0
        %3247 = vmatpush2.bf16.msra.mxu0 %v1233
        %3248 = vmatprep.subr.bf16.mxu0 0
        %3249 = vmatpush2.bf16.msra.mxu0 %v1232
        %3250 = vmatprep.subr.bf16.mxu0 0
        %3251 = vmatpush2.bf16.msra.mxu0 %v1231
        %3252 = vmatprep.subr.bf16.mxu0 0
        %3253 = vmatpush2.bf16.msra.mxu0 %v1230
        %3254 = vmatprep.subr.bf16.mxu0 0
        %3255 = vmatpush2.bf16.msra.mxu0 %v1229
        %3256 = vmatprep.subr.bf16.mxu0 0
        %3257 = vmatpush2.bf16.msra.mxu0 %v1228
        %3258 = vmatprep.subr.bf16.mxu0 0
        %3259 = vmatpush2.bf16.msra.mxu0 %v1227
        %3260 = vmatprep.mubr.bf16.mxu0 %v2987
        %3261 = vmatmul.mubr.bf16.gmra.mxu0 %v2986
        %v3262 = vpop.f32.mrf.mxu0
        %v3263 = vadd.f32 %v3182, %v3262
        %v3264 = vpop.f32.mrf.mxu0
        %v3265 = vpop.f32.mrf.mxu0
        %v3266 = vadd.f32 %v3185, %v3265
        %v3267 = vpop.f32.mrf.mxu0
        %3268 = vmatprep.mubr.bf16.mxu0 %v2994
        %3269 = vmatmul.mubr.bf16.gmra.mxu0 %v2993
        %v3270 = vpop.f32.mrf.mxu0
        %v3271 = vadd.f32 %v3190, %v3270
        %v3272 = vpop.f32.mrf.mxu0
        %v3273 = vpop.f32.mrf.mxu0
        %v3274 = vadd.f32 %v3193, %v3273
        %v3275 = vpop.f32.mrf.mxu0
        %3276 = vmatprep.mubr.bf16.mxu0 %v3001
        %3277 = vmatmul.mubr.bf16.gmra.mxu0 %v3000
        %v3278 = vpop.f32.mrf.mxu0
        %v3279 = vadd.f32 %v3198, %v3278
        %v3280 = vpop.f32.mrf.mxu0
        %v3281 = vpop.f32.mrf.mxu0
        %v3282 = vadd.f32 %v3201, %v3281
        %v3283 = vpop.f32.mrf.mxu0
        %3284 = vmatprep.mubr.bf16.mxu0 %v3008
        %3285 = vmatmul.mubr.bf16.gmra.mxu0 %v3007
        %v3286 = vpop.f32.mrf.mxu0
        %v3287 = vadd.f32 %v3206, %v3286
        %v3288 = vpop.f32.mrf.mxu0
        %v3289 = vpop.f32.mrf.mxu0
        %v3290 = vadd.f32 %v3209, %v3289
        %v3291 = vpop.f32.mrf.mxu0
        %3292 = vmatprep.mubr.bf16.mxu0 %v3015
        %3293 = vmatmul.mubr.bf16.gmra.mxu0 %v3014
        %v3294 = vpop.f32.mrf.mxu0
        %v3295 = vadd.f32 %v3214, %v3294
        %v3296 = vpop.f32.mrf.mxu0
        %v3297 = vpop.f32.mrf.mxu0
        %v3298 = vadd.f32 %v3217, %v3297
        %v3299 = vpop.f32.mrf.mxu0
        %3300 = vmatprep.mubr.bf16.mxu0 %v3022
        %3301 = vmatmul.mubr.bf16.gmra.mxu0 %v3021
        %v3302 = vpop.f32.mrf.mxu0
        %v3303 = vadd.f32 %v3222, %v3302
        %v3304 = vpop.f32.mrf.mxu0
        %v3305 = vpop.f32.mrf.mxu0
        %v3306 = vadd.f32 %v3225, %v3305
        %v3307 = vpop.f32.mrf.mxu0
        %3308 = vdwg.mxu0
        %3309 = vmatprep.subr.bf16.mxu0 0
        %3310 = vmatpush1.bf16.msra.mxu0 %v1242
        %3311 = vmatprep.subr.bf16.mxu0 0
        %3312 = vmatpush1.bf16.msra.mxu0 %v1241
        %3313 = vmatprep.subr.bf16.mxu0 0
        %3314 = vmatpush1.bf16.msra.mxu0 %v1240
        %3315 = vmatprep.subr.bf16.mxu0 0
        %3316 = vmatpush1.bf16.msra.mxu0 %v1239
        %3317 = vmatprep.subr.bf16.mxu0 0
        %3318 = vmatpush1.bf16.msra.mxu0 %v1238
        %3319 = vmatprep.subr.bf16.mxu0 0
        %3320 = vmatpush1.bf16.msra.mxu0 %v1237
        %3321 = vmatprep.subr.bf16.mxu0 0
        %3322 = vmatpush1.bf16.msra.mxu0 %v1236
        %3323 = vmatprep.subr.bf16.mxu0 0
        %3324 = vmatpush1.bf16.msra.mxu0 %v1235
        %3325 = vmatprep.subr.bf16.mxu0 0
        %3326 = vmatpush2.bf16.msra.mxu0 0
        %3327 = vmatprep.subr.bf16.mxu0 0
        %3328 = vmatpush2.bf16.msra.mxu0 0
        %3329 = vmatprep.subr.bf16.mxu0 0
        %3330 = vmatpush2.bf16.msra.mxu0 0
        %3331 = vmatprep.subr.bf16.mxu0 0
        %3332 = vmatpush2.bf16.msra.mxu0 0
        %3333 = vmatprep.subr.bf16.mxu0 0
        %3334 = vmatpush2.bf16.msra.mxu0 0
        %3335 = vmatprep.subr.bf16.mxu0 0
        %3336 = vmatpush2.bf16.msra.mxu0 0
        %3337 = vmatprep.subr.bf16.mxu0 0
        %3338 = vmatpush2.bf16.msra.mxu0 0
        %3339 = vmatprep.subr.bf16.mxu0 0
        %3340 = vmatpush2.bf16.msra.mxu0 0
        %3341 = vmatprep.mubr.bf16.mxu0 0
        %3342 = vmatmul.mubr.bf16.gmra.mxu0 %v2988
        %v3343 = vpop.f32.mrf.mxu0
        %v3344 = vadd.f32 %v3263, %v3343
        %v3345 = vpop.f32.mrf.mxu0
        %v3346 = vpop.f32.mrf.mxu0
        %v3347 = vadd.f32 %v3266, %v3346
        %v3348 = vpop.f32.mrf.mxu0
        %3349 = vmatprep.mubr.bf16.mxu0 0
        %3350 = vmatmul.mubr.bf16.gmra.mxu0 %v2995
        %v3351 = vpop.f32.mrf.mxu0
        %v3352 = vadd.f32 %v3271, %v3351
        %v3353 = vpop.f32.mrf.mxu0
        %v3354 = vpop.f32.mrf.mxu0
        %v3355 = vadd.f32 %v3274, %v3354
        %v3356 = vpop.f32.mrf.mxu0
        %3357 = vmatprep.mubr.bf16.mxu0 0
        %3358 = vmatmul.mubr.bf16.gmra.mxu0 %v3002
        %v3359 = vpop.f32.mrf.mxu0
        %v3360 = vadd.f32 %v3279, %v3359
        %v3361 = vpop.f32.mrf.mxu0
        %v3362 = vpop.f32.mrf.mxu0
        %v3363 = vadd.f32 %v3282, %v3362
        %v3364 = vpop.f32.mrf.mxu0
        %3365 = vmatprep.mubr.bf16.mxu0 0
        %3366 = vmatmul.mubr.bf16.gmra.mxu0 %v3009
        %v3367 = vpop.f32.mrf.mxu0
        %v3368 = vadd.f32 %v3287, %v3367
        %v3369 = vpop.f32.mrf.mxu0
        %v3370 = vpop.f32.mrf.mxu0
        %v3371 = vadd.f32 %v3290, %v3370
        %v3372 = vpop.f32.mrf.mxu0
        %3373 = vmatprep.mubr.bf16.mxu0 0
        %3374 = vmatmul.mubr.bf16.gmra.mxu0 %v3016
        %v3375 = vpop.f32.mrf.mxu0
        %v3376 = vadd.f32 %v3295, %v3375
        %v3377 = vpop.f32.mrf.mxu0
        %v3378 = vpop.f32.mrf.mxu0
        %v3379 = vadd.f32 %v3298, %v3378
        %v3380 = vpop.f32.mrf.mxu0
        %3381 = vmatprep.mubr.bf16.mxu0 0
        %3382 = vmatmul.mubr.bf16.gmra.mxu0 %v3023
        %v3383 = vpop.f32.mrf.mxu0
        %v3384 = vadd.f32 %v3303, %v3383
        %v3385 = vpop.f32.mrf.mxu0
        %v3386 = vpop.f32.mrf.mxu0
        %v3387 = vadd.f32 %v3306, %v3386
        %v3388 = vpop.f32.mrf.mxu0
        %3389 = vdwg.mxu0
        %v3390 = vmax.f32 %v1577, %v2166
        %v3391 = vmax.f32 %v1580, %v2169
        %v3392 = vmax.f32 %v1585, %v2174
        %v3393 = vmax.f32 %v1588, %v2177
        %v3394 = vmax.f32 %v1593, %v2182
        %v3395 = vmax.f32 %v1596, %v2185
        %v3396 = vmax.f32 %v1601, %v2190
        %v3397 = vmax.f32 %v1604, %v2193
        %v3398 = vmax.f32 %v1609, %v2198
        %v3399 = vmax.f32 %v1612, %v2201
        %v3400 = vmax.f32 %v1617, %v2206
        %v3401 = vmax.f32 %v1620, %v2209
        %v3402 = vmax.f32 %v2755, %v3344
        %v3403 = vmax.f32 %v2758, %v3347
        %v3404 = vmax.f32 %v2763, %v3352
        %v3405 = vmax.f32 %v2766, %v3355
        %v3406 = vmax.f32 %v2771, %v3360
        %v3407 = vmax.f32 %v2774, %v3363
        %v3408 = vmax.f32 %v2779, %v3368
        %v3409 = vmax.f32 %v2782, %v3371
        %v3410 = vmax.f32 %v2787, %v3376
        %v3411 = vmax.f32 %v2790, %v3379
        %v3412 = vmax.f32 %v2795, %v3384
        %v3413 = vmax.f32 %v2798, %v3387
        %v3414 = vmax.f32 %v3390, %v3402
        %v3415 = vmax.f32 %v3391, %v3403
        %v3416 = vmax.f32 %v3392, %v3404
        %v3417 = vmax.f32 %v3393, %v3405
        %v3418 = vmax.f32 %v3394, %v3406
        %v3419 = vmax.f32 %v3395, %v3407
        %v3420 = vmax.f32 %v3396, %v3408
        %v3421 = vmax.f32 %v3397, %v3409
        %v3422 = vmax.f32 %v3398, %v3410
        %v3423 = vmax.f32 %v3399, %v3411
        %v3424 = vmax.f32 %v3400, %v3412
        %v3425 = vmax.f32 %v3401, %v3413
        %v3426 = vld [vmem:[%s2] sm:$0x1]
        %v3428 = vlaneseq
        %v3429 = vshrl.u32 %v3428, 7
        %v3430 = vsub.s32 0, %v3429
        %v3431 = vrot.slane %v3426, %v3430
        %v3433 = vadd.f32 %v3414, %v3431
        %v3434 = vadd.f32 %v3415, %v3431
        %v3435 = vadd.f32 %v3416, %v3431
        %v3436 = vadd.f32 %v3417, %v3431
        %v3437 = vadd.f32 %v3418, %v3431
        %v3438 = vadd.f32 %v3419, %v3431
        %v3439 = vadd.f32 %v3420, %v3431
        %v3440 = vadd.f32 %v3421, %v3431
        %v3441 = vadd.f32 %v3422, %v3431
        %v3442 = vadd.f32 %v3423, %v3431
        %v3443 = vadd.f32 %v3424, %v3431
        %v3444 = vadd.f32 %v3425, %v3431
        %v3445 = vmax.f32 %v3433, 0.0
        %v3446 = vmax.f32 %v3434, 0.0
        %v3447 = vmax.f32 %v3435, 0.0
        %v3448 = vmax.f32 %v3436, 0.0
        %v3449 = vmax.f32 %v3437, 0.0
        %v3450 = vmax.f32 %v3438, 0.0
        %v3451 = vmax.f32 %v3439, 0.0
        %v3452 = vmax.f32 %v3440, 0.0
        %v3453 = vmax.f32 %v3441, 0.0
        %v3454 = vmax.f32 %v3442, 0.0
        %v3455 = vmax.f32 %v3443, 0.0
        %v3456 = vmax.f32 %v3444, 0.0
        %v3457 = vpack.c.bf16 %v3446, %v3445
        %v3458 = vpack.c.bf16 %v3448, %v3447
        %v3459 = vpack.c.bf16 %v3450, %v3449
        %v3460 = vpack.c.bf16 %v3452, %v3451
        %v3461 = vpack.c.bf16 %v3454, %v3453
        %v3462 = vpack.c.bf16 %v3456, %v3455
        %v3469 = vunpack.c.l.b16 %v3457
        %v3470 = vunpack.c.h.b16 %v3457
        %v3471 = vunpack.c.l.b16 %v3458
        %v3472 = vunpack.c.h.b16 %v3458
        %v3473 = vunpack.c.l.b16 %v3459
        %v3474 = vunpack.c.h.b16 %v3459
        %v3475 = vunpack.c.l.b16 %v3460
        %v3476 = vunpack.c.h.b16 %v3460
        %v3477 = vunpack.c.l.b16 %v3461
        %v3478 = vunpack.c.h.b16 %v3461
        %v3479 = vunpack.c.l.b16 %v3462
        %v3480 = vunpack.c.h.b16 %v3462
        %v3481 = vpack.c.b16 %v3469, %v3469
        %v3482 = vpack.c.b16 %v3470, %v3470
        %v3483 = vpack.c.b16 %v3471, %v3471
        %v3484 = vpack.c.b16 %v3472, %v3472
        %v3485 = vpack.c.b16 %v3473, %v3473
        %v3486 = vpack.c.b16 %v3474, %v3474
        %v3487 = vpack.c.b16 %v3475, %v3475
        %v3488 = vpack.c.b16 %v3476, %v3476
        %v3489 = vpack.c.b16 %v3477, %v3477
        %v3490 = vpack.c.b16 %v3478, %v3478
        %v3491 = vpack.c.b16 %v3479, %v3479
        %v3492 = vpack.c.b16 %v3480, %v3480
        %vm3505 = vcmask 519168
        %3506 = vst.msk [vmem:[%s584] sm:$0xf] %vm3505, %v3481
        %3507 = vst.msk [vmem:[%s584 + $0x4] sm:$0xf] %vm3505, %v3482
        %3508 = vst.msk [vmem:[%s584 + $0x8] sm:$0xf] %vm3505, %v3483
        %3509 = vst.msk [vmem:[%s584 + $0xc] sm:$0xf] %vm3505, %v3484
        %3510 = vst.msk [vmem:[%s584 + $0x10] sm:$0xf] %vm3505, %v3485
        %3511 = vst.msk [vmem:[%s584 + $0x14] sm:$0xf] %vm3505, %v3486
        %3512 = vst.msk [vmem:[%s584 + $0x18] sm:$0xf] %vm3505, %v3487
        %3513 = vst.msk [vmem:[%s584 + $0x1c] sm:$0xf] %vm3505, %v3488
        %3514 = vst.msk [vmem:[%s584 + $0x20] sm:$0xf] %vm3505, %v3489
        %3515 = vst.msk [vmem:[%s584 + $0x24] sm:$0xf] %vm3505, %v3490
        %3516 = vst.msk [vmem:[%s584 + $0x28] sm:$0xf] %vm3505, %v3491
        %3517 = vst.msk [vmem:[%s584 + $0x2c] sm:$0xf] %vm3505, %v3492
        %s3518 = smul.u32 12, %s14
        %p3519 = scmp.lt.s32.totalorder %s3518, 23
        %s3520 = scalar_select %p3519, %s3518, 23
        %s3521 = smul.addr %s3520, 4
        %s3522 = scalar_lea.vmem %s3, %s3521
        // Predicated region
        $region59: #{net_forward.5} parent=53 // pred_check
          %p3523 = pneg %p100
        $region60: #{net_forward.5} parent=53 // pred_check_branch
          %3525 = sbr.rel (%p3523) target = $region62
        $region61: #{net_forward.5} parent=53 // pred_region
          %s3526 = smul.u32 12, %s14
        $region62: #{net_forward.5} parent=53 // pred_fallthru
          _
      $region54: #{net_forward.5} parent=5 // pred_fallthru
        _
      %p3527 = scmp.le.s32.totalorder 2, %s9
      // Predicated region
      $region63: #{net_forward.5} parent=5 // pred_check
        %p3528 = pneg %p3527
      $region64: #{net_forward.5} parent=5 // pred_check_branch
        %3530 = sbr.rel (%p3528) target = $region66
      $region65: #{net_forward.5} parent=5 // pred_region
        %s3531 = ssub.s32 %s9, 2
        // Predicated region
        $region67: #{net_forward.5} parent=65 // pred_check
          %p3532 = pneg %p106
        $region68: #{net_forward.5} parent=65 // pred_check_branch
          %3534 = sbr.rel (%p3532) target = $region70
        $region69: #{net_forward.5} parent=65 // pred_region
          %s3535 = smul.u32 12, %s15
          %p3536 = scmp.lt.s32.totalorder %s3535, 23
          %s3537 = scalar_select %p3536, %s3535, 23
          %s3538 = smul.addr %s3537, 4
          %s3539 = scalar_lea.vmem %s3, %s3538
        $region70: #{net_forward.5} parent=65 // pred_fallthru
          _
      $region66: #{net_forward.5} parent=5 // pred_fallthru
        _
    $region6: #{net_forward.5} parent=1 // loop_footer
      %s13 = sadd.s32 1, %s9
    $region7: #{net_forward.5} parent=1 // loop_footer_branch
      %8 = sbr.rel target = $region3
    $region8: #{net_forward.5} parent=1 // loop_exit
      _

// kernel: net_forward.6
$region0: #{net_forward.6}
  #allocation0 [shape = 'u32[]', space=smem, size = 0x4, offset = 0x4, fixed_abs, tag = 'smem constant byte address 0x4 - core index']
  #allocation1 [shape = 'u32[144,128]{1,0:T(1,128)}', space=vmem, size = 0x12000, scoped, tag = 'internal scratch']
  %s0 = inlined_call_operand.vmem [shape: bf16[4,16,1664], index: 0, kind: input, shape index: {}]
  %s1 = inlined_call_operand.vmem [shape: bf16[1664,128], index: 1, kind: input, shape index: {}]
  %s2 = inlined_call_operand.vmem [shape: f32[1,128], index: 2, kind: input, shape index: {}]
  %s3 = inlined_call_operand.vmem [shape: bf16[16,128], index: 3, kind: output, shape index: {}]
  %s4 = sld [smem:[#allocation0]]
  $region22: #{net_forward.6} parent=0
    _
  %s6 = ssub.s32 1, %s4
  %s7 = scalar_select 0, %s6, %s4
  // Predicated region
  $region2: #{net_forward.6} parent=0 // pred_check
    _
  $region3: #{net_forward.6} parent=0 // pred_check_branch
    %9 = sbr.rel (0) target = $region5
  $region4: #{net_forward.6} parent=0 // pred_region
    _
  $region5: #{net_forward.6} parent=0 // pred_fallthru
    _
  // Predicated region
  $region6: #{net_forward.6} parent=0 // pred_check
    _
  $region7: #{net_forward.6} parent=0 // pred_check_branch
    %11 = sbr.rel (0) target = $region9
  $region8: #{net_forward.6} parent=0 // pred_region
    _
  $region9: #{net_forward.6} parent=0 // pred_fallthru
    _
  // Predicated region
  $region10: #{net_forward.6} parent=0 // pred_check
    _
  $region11: #{net_forward.6} parent=0 // pred_check_branch
    %13 = sbr.rel (0) target = $region13
  $region12: #{net_forward.6} parent=0 // pred_region
    _
  $region13: #{net_forward.6} parent=0 // pred_fallthru
    _
  %v15 = vld [vmem:[%s1] sm:$0xf]
  %v16 = vld [vmem:[%s1 + $0x4] sm:$0xf]
  %v17 = vld [vmem:[%s1 + $0x8] sm:$0xf]
  %v18 = vld [vmem:[%s1 + $0xc] sm:$0xf]
  %v19 = vld [vmem:[%s1 + $0x10] sm:$0xf]
  %v20 = vld [vmem:[%s1 + $0x14] sm:$0xf]
  %v21 = vld [vmem:[%s1 + $0x18] sm:$0xf]
  %v22 = vld [vmem:[%s1 + $0x1c] sm:$0xf]
  %v23 = vld [vmem:[%s1 + $0x20] sm:$0xf]
  %v24 = vld [vmem:[%s1 + $0x24] sm:$0xf]
  %v25 = vld [vmem:[%s1 + $0x28] sm:$0xf]
  %v26 = vld [vmem:[%s1 + $0x2c] sm:$0xf]
  %v27 = vld [vmem:[%s1 + $0x30] sm:$0xf]
  %v28 = vld [vmem:[%s1 + $0x34] sm:$0xf]
  %v29 = vld [vmem:[%s1 + $0x38] sm:$0xf]
  %v30 = vld [vmem:[%s1 + $0x3c] sm:$0xf]
  %v31 = vld [vmem:[%s1 + $0x40] sm:$0xf]
  %v32 = vld [vmem:[%s1 + $0x44] sm:$0xf]
  %v33 = vld [vmem:[%s1 + $0x48] sm:$0xf]
  %v34 = vld [vmem:[%s1 + $0x4c] sm:$0xf]
  %v35 = vld [vmem:[%s1 + $0x50] sm:$0xf]
  %v36 = vld [vmem:[%s1 + $0x54] sm:$0xf]
  %v37 = vld [vmem:[%s1 + $0x58] sm:$0xf]
  %v38 = vld [vmem:[%s1 + $0x5c] sm:$0xf]
  %v39 = vld [vmem:[%s1 + $0x60] sm:$0xf]
  %v40 = vld [vmem:[%s1 + $0x64] sm:$0xf]
  %v41 = vld [vmem:[%s1 + $0x68] sm:$0xf]
  %v42 = vld [vmem:[%s1 + $0x6c] sm:$0xf]
  %v43 = vld [vmem:[%s1 + $0x70] sm:$0xf]
  %v44 = vld [vmem:[%s1 + $0x74] sm:$0xf]
  %v45 = vld [vmem:[%s1 + $0x78] sm:$0xf]
  %v46 = vld [vmem:[%s1 + $0x7c] sm:$0xf]
  %v47 = vld [vmem:[%s1 + $0x80] sm:$0xf]
  %v48 = vld [vmem:[%s1 + $0x84] sm:$0xf]
  %v49 = vld [vmem:[%s1 + $0x88] sm:$0xf]
  %v50 = vld [vmem:[%s1 + $0x8c] sm:$0xf]
  %v51 = vld [vmem:[%s1 + $0x90] sm:$0xf]
  %v52 = vld [vmem:[%s1 + $0x94] sm:$0xf]
  %v53 = vld [vmem:[%s1 + $0x98] sm:$0xf]
  %v54 = vld [vmem:[%s1 + $0x9c] sm:$0xf]
  %v55 = vld [vmem:[%s1 + $0xa0] sm:$0xf]
  %v56 = vld [vmem:[%s1 + $0xa4] sm:$0xf]
  %v57 = vld [vmem:[%s1 + $0xa8] sm:$0xf]
  %v58 = vld [vmem:[%s1 + $0xac] sm:$0xf]
  %v59 = vld [vmem:[%s1 + $0xb0] sm:$0xf]
  %v60 = vld [vmem:[%s1 + $0xb4] sm:$0xf]
  %v61 = vld [vmem:[%s1 + $0xb8] sm:$0xf]
  %v62 = vld [vmem:[%s1 + $0xbc] sm:$0xf]
  %v63 = vld [vmem:[%s1 + $0xc0] sm:$0xf]
  %v64 = vld [vmem:[%s1 + $0xc4] sm:$0xf]
  %v65 = vld [vmem:[%s1 + $0xc8] sm:$0xf]
  %v66 = vld [vmem:[%s1 + $0xcc] sm:$0xf]
  %v67 = vld [vmem:[%s1 + $0xd0] sm:$0xf]
  %v68 = vld [vmem:[%s1 + $0xd4] sm:$0xf]
  %v69 = vld [vmem:[%s1 + $0xd8] sm:$0xf]
  %v70 = vld [vmem:[%s1 + $0xdc] sm:$0xf]
  %v71 = vld [vmem:[%s1 + $0xe0] sm:$0xf]
  %v72 = vld [vmem:[%s1 + $0xe4] sm:$0xf]
  %v73 = vld [vmem:[%s1 + $0xe8] sm:$0xf]
  %v74 = vld [vmem:[%s1 + $0xec] sm:$0xf]
  %v75 = vld [vmem:[%s1 + $0xf0] sm:$0xf]
  %v76 = vld [vmem:[%s1 + $0xf4] sm:$0xf]
  %v77 = vld [vmem:[%s1 + $0xf8] sm:$0xf]
  %v78 = vld [vmem:[%s1 + $0xfc] sm:$0xf]
  %v79 = vld [vmem:[%s1 + $0x100] sm:$0xf]
  %v80 = vld [vmem:[%s1 + $0x104] sm:$0xf]
  %v81 = vld [vmem:[%s1 + $0x108] sm:$0xf]
  %v82 = vld [vmem:[%s1 + $0x10c] sm:$0xf]
  %v83 = vld [vmem:[%s1 + $0x110] sm:$0xf]
  %v84 = vld [vmem:[%s1 + $0x114] sm:$0xf]
  %v85 = vld [vmem:[%s1 + $0x118] sm:$0xf]
  %v86 = vld [vmem:[%s1 + $0x11c] sm:$0xf]
  %v87 = vld [vmem:[%s1 + $0x120] sm:$0xf]
  %v88 = vld [vmem:[%s1 + $0x124] sm:$0xf]
  %v89 = vld [vmem:[%s1 + $0x128] sm:$0xf]
  %v90 = vld [vmem:[%s1 + $0x12c] sm:$0xf]
  %v91 = vld [vmem:[%s1 + $0x130] sm:$0xf]
  %v92 = vld [vmem:[%s1 + $0x134] sm:$0xf]
  %v93 = vld [vmem:[%s1 + $0x138] sm:$0xf]
  %v94 = vld [vmem:[%s1 + $0x13c] sm:$0xf]
  %v95 = vld [vmem:[%s1 + $0x140] sm:$0xf]
  %v96 = vld [vmem:[%s1 + $0x144] sm:$0xf]
  %v97 = vld [vmem:[%s1 + $0x148] sm:$0xf]
  %v98 = vld [vmem:[%s1 + $0x14c] sm:$0xf]
  %v99 = vld [vmem:[%s1 + $0x150] sm:$0xf]
  %v100 = vld [vmem:[%s1 + $0x154] sm:$0xf]
  %v101 = vld [vmem:[%s1 + $0x158] sm:$0xf]
  %v102 = vld [vmem:[%s1 + $0x15c] sm:$0xf]
  %v103 = vld [vmem:[%s1 + $0x160] sm:$0xf]
  %v104 = vld [vmem:[%s1 + $0x164] sm:$0xf]
  %v105 = vld [vmem:[%s1 + $0x168] sm:$0xf]
  %v106 = vld [vmem:[%s1 + $0x16c] sm:$0xf]
  %v107 = vld [vmem:[%s1 + $0x170] sm:$0xf]
  %v108 = vld [vmem:[%s1 + $0x174] sm:$0xf]
  %v109 = vld [vmem:[%s1 + $0x178] sm:$0xf]
  %v110 = vld [vmem:[%s1 + $0x17c] sm:$0xf]
  %v111 = vld [vmem:[%s1 + $0x180] sm:$0xf]
  %v112 = vld [vmem:[%s1 + $0x184] sm:$0xf]
  %v113 = vld [vmem:[%s1 + $0x188] sm:$0xf]
  %v114 = vld [vmem:[%s1 + $0x18c] sm:$0xf]
  %v115 = vld [vmem:[%s1 + $0x190] sm:$0xf]
  %v116 = vld [vmem:[%s1 + $0x194] sm:$0xf]
  %v117 = vld [vmem:[%s1 + $0x198] sm:$0xf]
  %v118 = vld [vmem:[%s1 + $0x19c] sm:$0xf]
  %v119 = vld [vmem:[%s1 + $0x1a0] sm:$0xf]
  %v120 = vld [vmem:[%s1 + $0x1a4] sm:$0xf]
  %v121 = vld [vmem:[%s1 + $0x1a8] sm:$0xf]
  %v122 = vld [vmem:[%s1 + $0x1ac] sm:$0xf]
  %v123 = vld [vmem:[%s1 + $0x1b0] sm:$0xf]
  %v124 = vld [vmem:[%s1 + $0x1b4] sm:$0xf]
  %v125 = vld [vmem:[%s1 + $0x1b8] sm:$0xf]
  %v126 = vld [vmem:[%s1 + $0x1bc] sm:$0xf]
  %v127 = vld [vmem:[%s1 + $0x1c0] sm:$0xf]
  %v128 = vld [vmem:[%s1 + $0x1c4] sm:$0xf]
  %v129 = vld [vmem:[%s1 + $0x1c8] sm:$0xf]
  %v130 = vld [vmem:[%s1 + $0x1cc] sm:$0xf]
  %v131 = vld [vmem:[%s1 + $0x1d0] sm:$0xf]
  %v132 = vld [vmem:[%s1 + $0x1d4] sm:$0xf]
  %v133 = vld [vmem:[%s1 + $0x1d8] sm:$0xf]
  %v134 = vld [vmem:[%s1 + $0x1dc] sm:$0xf]
  %v135 = vld [vmem:[%s1 + $0x1e0] sm:$0xf]
  %v136 = vld [vmem:[%s1 + $0x1e4] sm:$0xf]
  %v137 = vld [vmem:[%s1 + $0x1e8] sm:$0xf]
  %v138 = vld [vmem:[%s1 + $0x1ec] sm:$0xf]
  %v139 = vld [vmem:[%s1 + $0x1f0] sm:$0xf]
  %v140 = vld [vmem:[%s1 + $0x1f4] sm:$0xf]
  %v141 = vld [vmem:[%s1 + $0x1f8] sm:$0xf]
  %v142 = vld [vmem:[%s1 + $0x1fc] sm:$0xf]
  %v143 = vld [vmem:[%s1 + $0x200] sm:$0xf]
  %v144 = vld [vmem:[%s1 + $0x204] sm:$0xf]
  %v145 = vld [vmem:[%s1 + $0x208] sm:$0xf]
  %v146 = vld [vmem:[%s1 + $0x20c] sm:$0xf]
  %v147 = vld [vmem:[%s1 + $0x210] sm:$0xf]
  %v148 = vld [vmem:[%s1 + $0x214] sm:$0xf]
  %v149 = vld [vmem:[%s1 + $0x218] sm:$0xf]
  %v150 = vld [vmem:[%s1 + $0x21c] sm:$0xf]
  %v151 = vld [vmem:[%s1 + $0x220] sm:$0xf]
  %v152 = vld [vmem:[%s1 + $0x224] sm:$0xf]
  %v153 = vld [vmem:[%s1 + $0x228] sm:$0xf]
  %v154 = vld [vmem:[%s1 + $0x22c] sm:$0xf]
  %v155 = vld [vmem:[%s1 + $0x230] sm:$0xf]
  %v156 = vld [vmem:[%s1 + $0x234] sm:$0xf]
  %v157 = vld [vmem:[%s1 + $0x238] sm:$0xf]
  %v158 = vld [vmem:[%s1 + $0x23c] sm:$0xf]
  %v159 = vld [vmem:[%s1 + $0x240] sm:$0xf]
  %v160 = vld [vmem:[%s1 + $0x244] sm:$0xf]
  %v161 = vld [vmem:[%s1 + $0x248] sm:$0xf]
  %v162 = vld [vmem:[%s1 + $0x24c] sm:$0xf]
  %v163 = vld [vmem:[%s1 + $0x250] sm:$0xf]
  %v164 = vld [vmem:[%s1 + $0x254] sm:$0xf]
  %v165 = vld [vmem:[%s1 + $0x258] sm:$0xf]
  %v166 = vld [vmem:[%s1 + $0x25c] sm:$0xf]
  %v167 = vld [vmem:[%s1 + $0x260] sm:$0xf]
  %v168 = vld [vmem:[%s1 + $0x264] sm:$0xf]
  %v169 = vld [vmem:[%s1 + $0x268] sm:$0xf]
  %v170 = vld [vmem:[%s1 + $0x26c] sm:$0xf]
  %v171 = vld [vmem:[%s1 + $0x270] sm:$0xf]
  %v172 = vld [vmem:[%s1 + $0x274] sm:$0xf]
  %v173 = vld [vmem:[%s1 + $0x278] sm:$0xf]
  %v174 = vld [vmem:[%s1 + $0x27c] sm:$0xf]
  %v175 = vld [vmem:[%s1 + $0x280] sm:$0xf]
  %v176 = vld [vmem:[%s1 + $0x284] sm:$0xf]
  %v177 = vld [vmem:[%s1 + $0x288] sm:$0xf]
  %v178 = vld [vmem:[%s1 + $0x28c] sm:$0xf]
  %v179 = vld [vmem:[%s1 + $0x290] sm:$0xf]
  %v180 = vld [vmem:[%s1 + $0x294] sm:$0xf]
  %v181 = vld [vmem:[%s1 + $0x298] sm:$0xf]
  %v182 = vld [vmem:[%s1 + $0x29c] sm:$0xf]
  %v183 = vld [vmem:[%s1 + $0x2a0] sm:$0xf]
  %v184 = vld [vmem:[%s1 + $0x2a4] sm:$0xf]
  %v185 = vld [vmem:[%s1 + $0x2a8] sm:$0xf]
  %v186 = vld [vmem:[%s1 + $0x2ac] sm:$0xf]
  %v187 = vld [vmem:[%s1 + $0x2b0] sm:$0xf]
  %v188 = vld [vmem:[%s1 + $0x2b4] sm:$0xf]
  %v189 = vld [vmem:[%s1 + $0x2b8] sm:$0xf]
  %v190 = vld [vmem:[%s1 + $0x2bc] sm:$0xf]
  %v191 = vld [vmem:[%s1 + $0x2c0] sm:$0xf]
  %v192 = vld [vmem:[%s1 + $0x2c4] sm:$0xf]
  %v193 = vld [vmem:[%s1 + $0x2c8] sm:$0xf]
  %v194 = vld [vmem:[%s1 + $0x2cc] sm:$0xf]
  %v195 = vld [vmem:[%s1 + $0x2d0] sm:$0xf]
  %v196 = vld [vmem:[%s1 + $0x2d4] sm:$0xf]
  %v197 = vld [vmem:[%s1 + $0x2d8] sm:$0xf]
  %v198 = vld [vmem:[%s1 + $0x2dc] sm:$0xf]
  %v199 = vld [vmem:[%s1 + $0x2e0] sm:$0xf]
  %v200 = vld [vmem:[%s1 + $0x2e4] sm:$0xf]
  %v201 = vld [vmem:[%s1 + $0x2e8] sm:$0xf]
  %v202 = vld [vmem:[%s1 + $0x2ec] sm:$0xf]
  %v203 = vld [vmem:[%s1 + $0x2f0] sm:$0xf]
  %v204 = vld [vmem:[%s1 + $0x2f4] sm:$0xf]
  %v205 = vld [vmem:[%s1 + $0x2f8] sm:$0xf]
  %v206 = vld [vmem:[%s1 + $0x2fc] sm:$0xf]
  %v207 = vld [vmem:[%s1 + $0x300] sm:$0xf]
  %v208 = vld [vmem:[%s1 + $0x304] sm:$0xf]
  %v209 = vld [vmem:[%s1 + $0x308] sm:$0xf]
  %v210 = vld [vmem:[%s1 + $0x30c] sm:$0xf]
  %v211 = vld [vmem:[%s1 + $0x310] sm:$0xf]
  %v212 = vld [vmem:[%s1 + $0x314] sm:$0xf]
  %v213 = vld [vmem:[%s1 + $0x318] sm:$0xf]
  %v214 = vld [vmem:[%s1 + $0x31c] sm:$0xf]
  %v215 = vld [vmem:[%s1 + $0x320] sm:$0xf]
  %v216 = vld [vmem:[%s1 + $0x324] sm:$0xf]
  %v217 = vld [vmem:[%s1 + $0x328] sm:$0xf]
  %v218 = vld [vmem:[%s1 + $0x32c] sm:$0xf]
  %v219 = vld [vmem:[%s1 + $0x330] sm:$0xf]
  %v220 = vld [vmem:[%s1 + $0x334] sm:$0xf]
  %v221 = vld [vmem:[%s1 + $0x338] sm:$0xf]
  %v222 = vld [vmem:[%s1 + $0x33c] sm:$0xf]
  %v223 = vld [vmem:[%s0] sm:$0xff]
  %v224 = vld [vmem:[%s0 + $0x8] sm:$0xff]
  %v225 = vld [vmem:[%s0 + $0x10] sm:$0xff]
  %v226 = vld [vmem:[%s0 + $0x18] sm:$0xff]
  %v227 = vld [vmem:[%s0 + $0x20] sm:$0xff]
  %v228 = vld [vmem:[%s0 + $0x28] sm:$0xff]
  %v229 = vld [vmem:[%s0 + $0x30] sm:$0xf]
  %v230 = vld [vmem:[%s0 + $0x34] sm:$0xff]
  %v231 = vld [vmem:[%s0 + $0x3c] sm:$0xff]
  %v232 = vld [vmem:[%s0 + $0x44] sm:$0xff]
  %v233 = vld [vmem:[%s0 + $0x4c] sm:$0xff]
  %v234 = vld [vmem:[%s0 + $0x54] sm:$0xff]
  %v235 = vld [vmem:[%s0 + $0x5c] sm:$0xff]
  %v236 = vld [vmem:[%s0 + $0x64] sm:$0xf]
  %v251 = vunpack.c.l.b16 %v223
  %v252 = vunpack.c.h.b16 %v223
  %v253 = vunpack.c.l.b16 %v224
  %v254 = vunpack.c.h.b16 %v224
  %v255 = vunpack.c.l.b16 %v225
  %v256 = vunpack.c.h.b16 %v225
  %v257 = vunpack.c.l.b16 %v226
  %v258 = vunpack.c.h.b16 %v226
  %v259 = vunpack.c.l.b16 %v227
  %v260 = vunpack.c.h.b16 %v227
  %v261 = vunpack.c.l.b16 %v228
  %v262 = vunpack.c.h.b16 %v228
  %v263 = vunpack.c.l.b16 %v229
  %v264 = vunpack.c.l.b16 %v230
  %v265 = vunpack.c.h.b16 %v230
  %v266 = vunpack.c.l.b16 %v231
  %v267 = vunpack.c.h.b16 %v231
  %v268 = vunpack.c.l.b16 %v232
  %v269 = vunpack.c.h.b16 %v232
  %v270 = vunpack.c.l.b16 %v233
  %v271 = vunpack.c.h.b16 %v233
  %v272 = vunpack.c.l.b16 %v234
  %v273 = vunpack.c.h.b16 %v234
  %v274 = vunpack.c.l.b16 %v235
  %v275 = vunpack.c.h.b16 %v235
  %v276 = vunpack.c.l.b16 %v236
  %v277 = vpack.c.b16 %v264, %v251
  %v278 = vpack.c.b16 %v265, %v252
  %v279 = vpack.c.b16 %v266, %v253
  %v280 = vpack.c.b16 %v267, %v254
  %v281 = vpack.c.b16 %v268, %v255
  %v282 = vpack.c.b16 %v269, %v256
  %v283 = vpack.c.b16 %v270, %v257
  %v284 = vpack.c.b16 %v271, %v258
  %v285 = vpack.c.b16 %v272, %v259
  %v286 = vpack.c.b16 %v273, %v260
  %v287 = vpack.c.b16 %v274, %v261
  %v288 = vpack.c.b16 %v275, %v262
  %v289 = vpack.c.b16 %v276, %v263
  %v511 = vunpack.c.l.b16 %v15
  %v512 = vunpack.c.l.b16 %v16
  %v513 = vunpack.c.l.b16 %v17
  %v514 = vunpack.c.l.b16 %v18
  %v515 = vunpack.c.l.b16 %v19
  %v516 = vunpack.c.l.b16 %v20
  %v517 = vunpack.c.l.b16 %v21
  %v518 = vunpack.c.l.b16 %v22
  %v519 = vunpack.c.l.b16 %v23
  %v520 = vunpack.c.l.b16 %v24
  %v521 = vunpack.c.l.b16 %v25
  %v522 = vunpack.c.l.b16 %v26
  %v523 = vunpack.c.l.b16 %v27
  %v524 = vunpack.c.l.b16 %v28
  %v525 = vunpack.c.l.b16 %v29
  %v526 = vunpack.c.l.b16 %v30
  %v527 = vunpack.c.l.b16 %v31
  %v528 = vunpack.c.l.b16 %v32
  %v529 = vunpack.c.l.b16 %v33
  %v530 = vunpack.c.l.b16 %v34
  %v531 = vunpack.c.l.b16 %v35
  %v532 = vunpack.c.l.b16 %v36
  %v533 = vunpack.c.l.b16 %v37
  %v534 = vunpack.c.l.b16 %v38
  %v535 = vunpack.c.l.b16 %v39
  %v536 = vunpack.c.l.b16 %v40
  %v537 = vunpack.c.l.b16 %v41
  %v538 = vunpack.c.l.b16 %v42
  %v539 = vunpack.c.l.b16 %v43
  %v540 = vunpack.c.l.b16 %v44
  %v541 = vunpack.c.l.b16 %v45
  %v542 = vunpack.c.l.b16 %v46
  %v543 = vunpack.c.l.b16 %v47
  %v544 = vunpack.c.l.b16 %v48
  %v545 = vunpack.c.l.b16 %v49
  %v546 = vunpack.c.l.b16 %v50
  %v547 = vunpack.c.l.b16 %v51
  %v548 = vunpack.c.l.b16 %v52
  %v549 = vunpack.c.l.b16 %v53
  %v550 = vunpack.c.l.b16 %v54
  %v551 = vunpack.c.l.b16 %v55
  %v552 = vunpack.c.l.b16 %v56
  %v553 = vunpack.c.l.b16 %v57
  %v554 = vunpack.c.l.b16 %v58
  %v555 = vunpack.c.l.b16 %v59
  %v556 = vunpack.c.l.b16 %v60
  %v557 = vunpack.c.l.b16 %v61
  %v558 = vunpack.c.l.b16 %v62
  %v559 = vunpack.c.l.b16 %v63
  %v560 = vunpack.c.l.b16 %v64
  %v561 = vunpack.c.l.b16 %v65
  %v562 = vunpack.c.l.b16 %v66
  %v563 = vunpack.c.l.b16 %v67
  %v564 = vunpack.c.l.b16 %v68
  %v565 = vunpack.c.l.b16 %v69
  %v566 = vunpack.c.l.b16 %v70
  %v567 = vunpack.c.l.b16 %v71
  %v568 = vunpack.c.l.b16 %v72
  %v569 = vunpack.c.l.b16 %v73
  %v570 = vunpack.c.l.b16 %v74
  %v571 = vunpack.c.l.b16 %v75
  %v572 = vunpack.c.l.b16 %v76
  %v573 = vunpack.c.l.b16 %v77
  %v574 = vunpack.c.l.b16 %v78
  %v575 = vunpack.c.l.b16 %v79
  %v576 = vunpack.c.l.b16 %v80
  %v577 = vunpack.c.l.b16 %v81
  %v578 = vunpack.c.l.b16 %v82
  %v579 = vunpack.c.l.b16 %v83
  %v580 = vunpack.c.l.b16 %v84
  %v581 = vunpack.c.l.b16 %v85
  %v582 = vunpack.c.l.b16 %v86
  %v583 = vunpack.c.l.b16 %v87
  %v584 = vunpack.c.l.b16 %v88
  %v585 = vunpack.c.l.b16 %v89
  %v586 = vunpack.c.l.b16 %v90
  %v587 = vunpack.c.l.b16 %v91
  %v588 = vunpack.c.l.b16 %v92
  %v589 = vunpack.c.l.b16 %v93
  %v590 = vunpack.c.l.b16 %v94
  %v591 = vunpack.c.l.b16 %v95
  %v592 = vunpack.c.l.b16 %v96
  %v593 = vunpack.c.l.b16 %v97
  %v594 = vunpack.c.l.b16 %v98
  %v595 = vunpack.c.l.b16 %v99
  %v596 = vunpack.c.l.b16 %v100
  %v597 = vunpack.c.l.b16 %v101
  %v598 = vunpack.c.l.b16 %v102
  %v599 = vunpack.c.l.b16 %v103
  %v600 = vunpack.c.l.b16 %v104
  %v601 = vunpack.c.l.b16 %v105
  %v602 = vunpack.c.l.b16 %v106
  %v603 = vunpack.c.l.b16 %v107
  %v604 = vunpack.c.l.b16 %v108
  %v605 = vunpack.c.l.b16 %v109
  %v606 = vunpack.c.l.b16 %v110
  %v607 = vunpack.c.l.b16 %v111
  %v608 = vunpack.c.l.b16 %v112
  %v609 = vunpack.c.l.b16 %v113
  %v610 = vunpack.c.l.b16 %v114
  %v611 = vunpack.c.l.b16 %v115
  %v612 = vunpack.c.l.b16 %v116
  %v613 = vunpack.c.l.b16 %v117
  %v614 = vunpack.c.l.b16 %v118
  %v615 = vunpack.c.l.b16 %v119
  %v616 = vunpack.c.l.b16 %v120
  %v617 = vunpack.c.l.b16 %v121
  %v618 = vunpack.c.l.b16 %v122
  %v619 = vunpack.c.l.b16 %v123
  %v620 = vunpack.c.l.b16 %v124
  %v621 = vunpack.c.l.b16 %v125
  %v622 = vunpack.c.l.b16 %v126
  %v623 = vunpack.c.l.b16 %v127
  %v624 = vunpack.c.l.b16 %v128
  %v625 = vunpack.c.l.b16 %v129
  %v626 = vunpack.c.l.b16 %v130
  %v627 = vunpack.c.l.b16 %v131
  %v628 = vunpack.c.l.b16 %v132
  %v629 = vunpack.c.l.b16 %v133
  %v630 = vunpack.c.l.b16 %v134
  %v631 = vunpack.c.l.b16 %v135
  %v632 = vunpack.c.l.b16 %v136
  %v633 = vunpack.c.l.b16 %v137
  %v634 = vunpack.c.l.b16 %v138
  %v635 = vunpack.c.l.b16 %v139
  %v636 = vunpack.c.l.b16 %v140
  %v637 = vunpack.c.l.b16 %v141
  %v638 = vunpack.c.l.b16 %v142
  %v639 = vunpack.c.l.b16 %v143
  %v640 = vunpack.c.l.b16 %v144
  %v641 = vunpack.c.l.b16 %v145
  %v642 = vunpack.c.l.b16 %v146
  %v643 = vunpack.c.l.b16 %v147
  %v644 = vunpack.c.l.b16 %v148
  %v645 = vunpack.c.l.b16 %v149
  %v646 = vunpack.c.l.b16 %v150
  %v647 = vunpack.c.l.b16 %v151
  %v648 = vunpack.c.l.b16 %v152
  %v649 = vunpack.c.l.b16 %v153
  %v650 = vunpack.c.l.b16 %v154
  %v651 = vunpack.c.l.b16 %v155
  %v652 = vunpack.c.l.b16 %v156
  %v653 = vunpack.c.l.b16 %v157
  %v654 = vunpack.c.l.b16 %v158
  %v655 = vunpack.c.l.b16 %v159
  %v656 = vunpack.c.l.b16 %v160
  %v657 = vunpack.c.l.b16 %v161
  %v658 = vunpack.c.l.b16 %v162
  %v659 = vunpack.c.l.b16 %v163
  %v660 = vunpack.c.l.b16 %v164
  %v661 = vunpack.c.l.b16 %v165
  %v662 = vunpack.c.l.b16 %v166
  %v663 = vunpack.c.l.b16 %v167
  %v664 = vunpack.c.l.b16 %v168
  %v665 = vunpack.c.l.b16 %v169
  %v666 = vunpack.c.l.b16 %v170
  %v667 = vunpack.c.l.b16 %v171
  %v668 = vunpack.c.l.b16 %v172
  %v669 = vunpack.c.l.b16 %v173
  %v670 = vunpack.c.l.b16 %v174
  %v671 = vunpack.c.l.b16 %v175
  %v672 = vunpack.c.l.b16 %v176
  %v673 = vunpack.c.l.b16 %v177
  %v674 = vunpack.c.l.b16 %v178
  %v675 = vunpack.c.l.b16 %v179
  %v676 = vunpack.c.l.b16 %v180
  %v677 = vunpack.c.l.b16 %v181
  %v678 = vunpack.c.l.b16 %v182
  %v679 = vunpack.c.l.b16 %v183
  %v680 = vunpack.c.l.b16 %v184
  %v681 = vunpack.c.l.b16 %v185
  %v682 = vunpack.c.l.b16 %v186
  %v683 = vunpack.c.l.b16 %v187
  %v684 = vunpack.c.l.b16 %v188
  %v685 = vunpack.c.l.b16 %v189
  %v686 = vunpack.c.l.b16 %v190
  %v687 = vunpack.c.l.b16 %v191
  %v688 = vunpack.c.l.b16 %v192
  %v689 = vunpack.c.l.b16 %v193
  %v690 = vunpack.c.l.b16 %v194
  %v691 = vunpack.c.l.b16 %v195
  %v692 = vunpack.c.l.b16 %v196
  %v693 = vunpack.c.l.b16 %v197
  %v694 = vunpack.c.l.b16 %v198
  %v695 = vunpack.c.l.b16 %v199
  %v696 = vunpack.c.l.b16 %v200
  %v697 = vunpack.c.l.b16 %v201
  %v698 = vunpack.c.l.b16 %v202
  %v699 = vunpack.c.l.b16 %v203
  %v700 = vunpack.c.l.b16 %v204
  %v701 = vunpack.c.l.b16 %v205
  %v702 = vunpack.c.l.b16 %v206
  %v703 = vunpack.c.l.b16 %v207
  %v704 = vunpack.c.l.b16 %v208
  %v705 = vunpack.c.l.b16 %v209
  %v706 = vunpack.c.l.b16 %v210
  %v707 = vunpack.c.l.b16 %v211
  %v708 = vunpack.c.l.b16 %v212
  %v709 = vunpack.c.l.b16 %v213
  %v710 = vunpack.c.l.b16 %v214
  %v711 = vunpack.c.l.b16 %v215
  %v712 = vunpack.c.l.b16 %v216
  %v713 = vunpack.c.l.b16 %v217
  %v714 = vunpack.c.l.b16 %v218
  %v715 = vunpack.c.l.b16 %v219
  %v716 = vunpack.c.l.b16 %v220
  %v717 = vunpack.c.l.b16 %v221
  %v718 = vunpack.c.l.b16 %v222
  %v719 = vpack.c.b16 %v512, %v511
  %v720 = vpack.c.b16 %v514, %v513
  %v721 = vpack.c.b16 %v516, %v515
  %v722 = vpack.c.b16 %v518, %v517
  %v723 = vpack.c.b16 %v520, %v519
  %v724 = vpack.c.b16 %v522, %v521
  %v725 = vpack.c.b16 %v524, %v523
  %v726 = vpack.c.b16 %v526, %v525
  %v727 = vpack.c.b16 %v528, %v527
  %v728 = vpack.c.b16 %v530, %v529
  %v729 = vpack.c.b16 %v532, %v531
  %v730 = vpack.c.b16 %v534, %v533
  %v731 = vpack.c.b16 %v536, %v535
  %v732 = vpack.c.b16 %v538, %v537
  %v733 = vpack.c.b16 %v540, %v539
  %v734 = vpack.c.b16 %v542, %v541
  %v735 = vpack.c.b16 %v544, %v543
  %v736 = vpack.c.b16 %v546, %v545
  %v737 = vpack.c.b16 %v548, %v547
  %v738 = vpack.c.b16 %v550, %v549
  %v739 = vpack.c.b16 %v552, %v551
  %v740 = vpack.c.b16 %v554, %v553
  %v741 = vpack.c.b16 %v556, %v555
  %v742 = vpack.c.b16 %v558, %v557
  %v743 = vpack.c.b16 %v560, %v559
  %v744 = vpack.c.b16 %v562, %v561
  %v745 = vpack.c.b16 %v564, %v563
  %v746 = vpack.c.b16 %v566, %v565
  %v747 = vpack.c.b16 %v568, %v567
  %v748 = vpack.c.b16 %v570, %v569
  %v749 = vpack.c.b16 %v572, %v571
  %v750 = vpack.c.b16 %v574, %v573
  %v751 = vpack.c.b16 %v576, %v575
  %v752 = vpack.c.b16 %v578, %v577
  %v753 = vpack.c.b16 %v580, %v579
  %v754 = vpack.c.b16 %v582, %v581
  %v755 = vpack.c.b16 %v584, %v583
  %v756 = vpack.c.b16 %v586, %v585
  %v757 = vpack.c.b16 %v588, %v587
  %v758 = vpack.c.b16 %v590, %v589
  %v759 = vpack.c.b16 %v592, %v591
  %v760 = vpack.c.b16 %v594, %v593
  %v761 = vpack.c.b16 %v596, %v595
  %v762 = vpack.c.b16 %v598, %v597
  %v763 = vpack.c.b16 %v600, %v599
  %v764 = vpack.c.b16 %v602, %v601
  %v765 = vpack.c.b16 %v604, %v603
  %v766 = vpack.c.b16 %v606, %v605
  %v767 = vpack.c.b16 %v608, %v607
  %v768 = vpack.c.b16 %v610, %v609
  %v769 = vpack.c.b16 %v612, %v611
  %v770 = vpack.c.b16 %v614, %v613
  %v771 = vpack.c.b16 %v616, %v615
  %v772 = vpack.c.b16 %v618, %v617
  %v773 = vpack.c.b16 %v620, %v619
  %v774 = vpack.c.b16 %v622, %v621
  %v775 = vpack.c.b16 %v624, %v623
  %v776 = vpack.c.b16 %v626, %v625
  %v777 = vpack.c.b16 %v628, %v627
  %v778 = vpack.c.b16 %v630, %v629
  %v779 = vpack.c.b16 %v632, %v631
  %v780 = vpack.c.b16 %v634, %v633
  %v781 = vpack.c.b16 %v636, %v635
  %v782 = vpack.c.b16 %v638, %v637
  %v783 = vpack.c.b16 %v640, %v639
  %v784 = vpack.c.b16 %v642, %v641
  %v785 = vpack.c.b16 %v644, %v643
  %v786 = vpack.c.b16 %v646, %v645
  %v787 = vpack.c.b16 %v648, %v647
  %v788 = vpack.c.b16 %v650, %v649
  %v789 = vpack.c.b16 %v652, %v651
  %v790 = vpack.c.b16 %v654, %v653
  %v791 = vpack.c.b16 %v656, %v655
  %v792 = vpack.c.b16 %v658, %v657
  %v793 = vpack.c.b16 %v660, %v659
  %v794 = vpack.c.b16 %v662, %v661
  %v795 = vpack.c.b16 %v664, %v663
  %v796 = vpack.c.b16 %v666, %v665
  %v797 = vpack.c.b16 %v668, %v667
  %v798 = vpack.c.b16 %v670, %v669
  %v799 = vpack.c.b16 %v672, %v671
  %v800 = vpack.c.b16 %v674, %v673
  %v801 = vpack.c.b16 %v676, %v675
  %v802 = vpack.c.b16 %v678, %v677
  %v803 = vpack.c.b16 %v680, %v679
  %v804 = vpack.c.b16 %v682, %v681
  %v805 = vpack.c.b16 %v684, %v683
  %v806 = vpack.c.b16 %v686, %v685
  %v807 = vpack.c.b16 %v688, %v687
  %v808 = vpack.c.b16 %v690, %v689
  %v809 = vpack.c.b16 %v692, %v691
  %v810 = vpack.c.b16 %v694, %v693
  %v811 = vpack.c.b16 %v696, %v695
  %v812 = vpack.c.b16 %v698, %v697
  %v813 = vpack.c.b16 %v700, %v699
  %v814 = vpack.c.b16 %v702, %v701
  %v815 = vpack.c.b16 %v704, %v703
  %v816 = vpack.c.b16 %v706, %v705
  %v817 = vpack.c.b16 %v708, %v707
  %v818 = vpack.c.b16 %v710, %v709
  %v819 = vpack.c.b16 %v712, %v711
  %v820 = vpack.c.b16 %v714, %v713
  %v821 = vpack.c.b16 %v716, %v715
  %v822 = vpack.c.b16 %v718, %v717
  %927 = vmatprep.subr.bf16.mxu0 0
  %928 = vmatpush1.bf16.msra.mxu0 %v726
  %929 = vmatprep.subr.bf16.mxu0 0
  %930 = vmatpush1.bf16.msra.mxu0 %v725
  %931 = vmatprep.subr.bf16.mxu0 0
  %932 = vmatpush1.bf16.msra.mxu0 %v724
  %933 = vmatprep.subr.bf16.mxu0 0
  %934 = vmatpush1.bf16.msra.mxu0 %v723
  %935 = vmatprep.subr.bf16.mxu0 0
  %936 = vmatpush1.bf16.msra.mxu0 %v722
  %937 = vmatprep.subr.bf16.mxu0 0
  %938 = vmatpush1.bf16.msra.mxu0 %v721
  %939 = vmatprep.subr.bf16.mxu0 0
  %940 = vmatpush1.bf16.msra.mxu0 %v720
  %941 = vmatprep.subr.bf16.mxu0 0
  %942 = vmatpush1.bf16.msra.mxu0 %v719
  %943 = vmatprep.subr.bf16.mxu0 0
  %944 = vmatpush2.bf16.msra.mxu0 %v734
  %945 = vmatprep.subr.bf16.mxu0 0
  %946 = vmatpush2.bf16.msra.mxu0 %v733
  %947 = vmatprep.subr.bf16.mxu0 0
  %948 = vmatpush2.bf16.msra.mxu0 %v732
  %949 = vmatprep.subr.bf16.mxu0 0
  %950 = vmatpush2.bf16.msra.mxu0 %v731
  %951 = vmatprep.subr.bf16.mxu0 0
  %952 = vmatpush2.bf16.msra.mxu0 %v730
  %953 = vmatprep.subr.bf16.mxu0 0
  %954 = vmatpush2.bf16.msra.mxu0 %v729
  %955 = vmatprep.subr.bf16.mxu0 0
  %956 = vmatpush2.bf16.msra.mxu0 %v728
  %957 = vmatprep.subr.bf16.mxu0 0
  %958 = vmatpush2.bf16.msra.mxu0 %v727
  %959 = vmatprep.mubr.bf16.mxu0 %v278
  %960 = vmatmul.mubr.bf16.gmra.mxu0 %v277
  %v961 = vpop.f32.mrf.mxu0
  %v962 = vadd.f32 0.0, %v961
  %v963 = vpop.f32.mrf.mxu0
  %v964 = vpop.f32.mrf.mxu0
  %v965 = vadd.f32 0.0, %v964
  %v966 = vpop.f32.mrf.mxu0
  %967 = vdwg.mxu0
  %968 = vmatprep.subr.bf16.mxu0 0
  %969 = vmatpush1.bf16.msra.mxu0 %v742
  %970 = vmatprep.subr.bf16.mxu0 0
  %971 = vmatpush1.bf16.msra.mxu0 %v741
  %972 = vmatprep.subr.bf16.mxu0 0
  %973 = vmatpush1.bf16.msra.mxu0 %v740
  %974 = vmatprep.subr.bf16.mxu0 0
  %975 = vmatpush1.bf16.msra.mxu0 %v739
  %976 = vmatprep.subr.bf16.mxu0 0
  %977 = vmatpush1.bf16.msra.mxu0 %v738
  %978 = vmatprep.subr.bf16.mxu0 0
  %979 = vmatpush1.bf16.msra.mxu0 %v737
  %980 = vmatprep.subr.bf16.mxu0 0
  %981 = vmatpush1.bf16.msra.mxu0 %v736
  %982 = vmatprep.subr.bf16.mxu0 0
  %983 = vmatpush1.bf16.msra.mxu0 %v735
  %984 = vmatprep.subr.bf16.mxu0 0
  %985 = vmatpush2.bf16.msra.mxu0 %v750
  %986 = vmatprep.subr.bf16.mxu0 0
  %987 = vmatpush2.bf16.msra.mxu0 %v749
  %988 = vmatprep.subr.bf16.mxu0 0
  %989 = vmatpush2.bf16.msra.mxu0 %v748
  %990 = vmatprep.subr.bf16.mxu0 0
  %991 = vmatpush2.bf16.msra.mxu0 %v747
  %992 = vmatprep.subr.bf16.mxu0 0
  %993 = vmatpush2.bf16.msra.mxu0 %v746
  %994 = vmatprep.subr.bf16.mxu0 0
  %995 = vmatpush2.bf16.msra.mxu0 %v745
  %996 = vmatprep.subr.bf16.mxu0 0
  %997 = vmatpush2.bf16.msra.mxu0 %v744
  %998 = vmatprep.subr.bf16.mxu0 0
  %999 = vmatpush2.bf16.msra.mxu0 %v743
  %1000 = vmatprep.mubr.bf16.mxu0 %v280
  %1001 = vmatmul.mubr.bf16.gmra.mxu0 %v279
  %v1002 = vpop.f32.mrf.mxu0
  %v1003 = vadd.f32 %v962, %v1002
  %v1004 = vpop.f32.mrf.mxu0
  %v1005 = vpop.f32.mrf.mxu0
  %v1006 = vadd.f32 %v965, %v1005
  %v1007 = vpop.f32.mrf.mxu0
  %1008 = vdwg.mxu0
  %1009 = vmatprep.subr.bf16.mxu0 0
  %1010 = vmatpush1.bf16.msra.mxu0 %v758
  %1011 = vmatprep.subr.bf16.mxu0 0
  %1012 = vmatpush1.bf16.msra.mxu0 %v757
  %1013 = vmatprep.subr.bf16.mxu0 0
  %1014 = vmatpush1.bf16.msra.mxu0 %v756
  %1015 = vmatprep.subr.bf16.mxu0 0
  %1016 = vmatpush1.bf16.msra.mxu0 %v755
  %1017 = vmatprep.subr.bf16.mxu0 0
  %1018 = vmatpush1.bf16.msra.mxu0 %v754
  %1019 = vmatprep.subr.bf16.mxu0 0
  %1020 = vmatpush1.bf16.msra.mxu0 %v753
  %1021 = vmatprep.subr.bf16.mxu0 0
  %1022 = vmatpush1.bf16.msra.mxu0 %v752
  %1023 = vmatprep.subr.bf16.mxu0 0
  %1024 = vmatpush1.bf16.msra.mxu0 %v751
  %1025 = vmatprep.subr.bf16.mxu0 0
  %1026 = vmatpush2.bf16.msra.mxu0 %v766
  %1027 = vmatprep.subr.bf16.mxu0 0
  %1028 = vmatpush2.bf16.msra.mxu0 %v765
  %1029 = vmatprep.subr.bf16.mxu0 0
  %1030 = vmatpush2.bf16.msra.mxu0 %v764
  %1031 = vmatprep.subr.bf16.mxu0 0
  %1032 = vmatpush2.bf16.msra.mxu0 %v763
  %1033 = vmatprep.subr.bf16.mxu0 0
  %1034 = vmatpush2.bf16.msra.mxu0 %v762
  %1035 = vmatprep.subr.bf16.mxu0 0
  %1036 = vmatpush2.bf16.msra.mxu0 %v761
  %1037 = vmatprep.subr.bf16.mxu0 0
  %1038 = vmatpush2.bf16.msra.mxu0 %v760
  %1039 = vmatprep.subr.bf16.mxu0 0
  %1040 = vmatpush2.bf16.msra.mxu0 %v759
  %1041 = vmatprep.mubr.bf16.mxu0 %v282
  %1042 = vmatmul.mubr.bf16.gmra.mxu0 %v281
  %v1043 = vpop.f32.mrf.mxu0
  %v1044 = vadd.f32 %v1003, %v1043
  %v1045 = vpop.f32.mrf.mxu0
  %v1046 = vpop.f32.mrf.mxu0
  %v1047 = vadd.f32 %v1006, %v1046
  %v1048 = vpop.f32.mrf.mxu0
  %1049 = vdwg.mxu0
  %1050 = vmatprep.subr.bf16.mxu0 0
  %1051 = vmatpush1.bf16.msra.mxu0 %v774
  %1052 = vmatprep.subr.bf16.mxu0 0
  %1053 = vmatpush1.bf16.msra.mxu0 %v773
  %1054 = vmatprep.subr.bf16.mxu0 0
  %1055 = vmatpush1.bf16.msra.mxu0 %v772
  %1056 = vmatprep.subr.bf16.mxu0 0
  %1057 = vmatpush1.bf16.msra.mxu0 %v771
  %1058 = vmatprep.subr.bf16.mxu0 0
  %1059 = vmatpush1.bf16.msra.mxu0 %v770
  %1060 = vmatprep.subr.bf16.mxu0 0
  %1061 = vmatpush1.bf16.msra.mxu0 %v769
  %1062 = vmatprep.subr.bf16.mxu0 0
  %1063 = vmatpush1.bf16.msra.mxu0 %v768
  %1064 = vmatprep.subr.bf16.mxu0 0
  %1065 = vmatpush1.bf16.msra.mxu0 %v767
  %1066 = vmatprep.subr.bf16.mxu0 0
  %1067 = vmatpush2.bf16.msra.mxu0 %v782
  %1068 = vmatprep.subr.bf16.mxu0 0
  %1069 = vmatpush2.bf16.msra.mxu0 %v781
  %1070 = vmatprep.subr.bf16.mxu0 0
  %1071 = vmatpush2.bf16.msra.mxu0 %v780
  %1072 = vmatprep.subr.bf16.mxu0 0
  %1073 = vmatpush2.bf16.msra.mxu0 %v779
  %1074 = vmatprep.subr.bf16.mxu0 0
  %1075 = vmatpush2.bf16.msra.mxu0 %v778
  %1076 = vmatprep.subr.bf16.mxu0 0
  %1077 = vmatpush2.bf16.msra.mxu0 %v777
  %1078 = vmatprep.subr.bf16.mxu0 0
  %1079 = vmatpush2.bf16.msra.mxu0 %v776
  %1080 = vmatprep.subr.bf16.mxu0 0
  %1081 = vmatpush2.bf16.msra.mxu0 %v775
  %1082 = vmatprep.mubr.bf16.mxu0 %v284
  %1083 = vmatmul.mubr.bf16.gmra.mxu0 %v283
  %v1084 = vpop.f32.mrf.mxu0
  %v1085 = vadd.f32 %v1044, %v1084
  %v1086 = vpop.f32.mrf.mxu0
  %v1087 = vpop.f32.mrf.mxu0
  %v1088 = vadd.f32 %v1047, %v1087
  %v1089 = vpop.f32.mrf.mxu0
  %1090 = vdwg.mxu0
  %1091 = vmatprep.subr.bf16.mxu0 0
  %1092 = vmatpush1.bf16.msra.mxu0 %v790
  %1093 = vmatprep.subr.bf16.mxu0 0
  %1094 = vmatpush1.bf16.msra.mxu0 %v789
  %1095 = vmatprep.subr.bf16.mxu0 0
  %1096 = vmatpush1.bf16.msra.mxu0 %v788
  %1097 = vmatprep.subr.bf16.mxu0 0
  %1098 = vmatpush1.bf16.msra.mxu0 %v787
  %1099 = vmatprep.subr.bf16.mxu0 0
  %1100 = vmatpush1.bf16.msra.mxu0 %v786
  %1101 = vmatprep.subr.bf16.mxu0 0
  %1102 = vmatpush1.bf16.msra.mxu0 %v785
  %1103 = vmatprep.subr.bf16.mxu0 0
  %1104 = vmatpush1.bf16.msra.mxu0 %v784
  %1105 = vmatprep.subr.bf16.mxu0 0
  %1106 = vmatpush1.bf16.msra.mxu0 %v783
  %1107 = vmatprep.subr.bf16.mxu0 0
  %1108 = vmatpush2.bf16.msra.mxu0 %v798
  %1109 = vmatprep.subr.bf16.mxu0 0
  %1110 = vmatpush2.bf16.msra.mxu0 %v797
  %1111 = vmatprep.subr.bf16.mxu0 0
  %1112 = vmatpush2.bf16.msra.mxu0 %v796
  %1113 = vmatprep.subr.bf16.mxu0 0
  %1114 = vmatpush2.bf16.msra.mxu0 %v795
  %1115 = vmatprep.subr.bf16.mxu0 0
  %1116 = vmatpush2.bf16.msra.mxu0 %v794
  %1117 = vmatprep.subr.bf16.mxu0 0
  %1118 = vmatpush2.bf16.msra.mxu0 %v793
  %1119 = vmatprep.subr.bf16.mxu0 0
  %1120 = vmatpush2.bf16.msra.mxu0 %v792
  %1121 = vmatprep.subr.bf16.mxu0 0
  %1122 = vmatpush2.bf16.msra.mxu0 %v791
  %1123 = vmatprep.mubr.bf16.mxu0 %v286
  %1124 = vmatmul.mubr.bf16.gmra.mxu0 %v285
  %v1125 = vpop.f32.mrf.mxu0
  %v1126 = vadd.f32 %v1085, %v1125
  %v1127 = vpop.f32.mrf.mxu0
  %v1128 = vpop.f32.mrf.mxu0
  %v1129 = vadd.f32 %v1088, %v1128
  %v1130 = vpop.f32.mrf.mxu0
  %1131 = vdwg.mxu0
  %1132 = vmatprep.subr.bf16.mxu0 0
  %1133 = vmatpush1.bf16.msra.mxu0 %v806
  %1134 = vmatprep.subr.bf16.mxu0 0
  %1135 = vmatpush1.bf16.msra.mxu0 %v805
  %1136 = vmatprep.subr.bf16.mxu0 0
  %1137 = vmatpush1.bf16.msra.mxu0 %v804
  %1138 = vmatprep.subr.bf16.mxu0 0
  %1139 = vmatpush1.bf16.msra.mxu0 %v803
  %1140 = vmatprep.subr.bf16.mxu0 0
  %1141 = vmatpush1.bf16.msra.mxu0 %v802
  %1142 = vmatprep.subr.bf16.mxu0 0
  %1143 = vmatpush1.bf16.msra.mxu0 %v801
  %1144 = vmatprep.subr.bf16.mxu0 0
  %1145 = vmatpush1.bf16.msra.mxu0 %v800
  %1146 = vmatprep.subr.bf16.mxu0 0
  %1147 = vmatpush1.bf16.msra.mxu0 %v799
  %1148 = vmatprep.subr.bf16.mxu0 0
  %1149 = vmatpush2.bf16.msra.mxu0 %v814
  %1150 = vmatprep.subr.bf16.mxu0 0
  %1151 = vmatpush2.bf16.msra.mxu0 %v813
  %1152 = vmatprep.subr.bf16.mxu0 0
  %1153 = vmatpush2.bf16.msra.mxu0 %v812
  %1154 = vmatprep.subr.bf16.mxu0 0
  %1155 = vmatpush2.bf16.msra.mxu0 %v811
  %1156 = vmatprep.subr.bf16.mxu0 0
  %1157 = vmatpush2.bf16.msra.mxu0 %v810
  %1158 = vmatprep.subr.bf16.mxu0 0
  %1159 = vmatpush2.bf16.msra.mxu0 %v809
  %1160 = vmatprep.subr.bf16.mxu0 0
  %1161 = vmatpush2.bf16.msra.mxu0 %v808
  %1162 = vmatprep.subr.bf16.mxu0 0
  %1163 = vmatpush2.bf16.msra.mxu0 %v807
  %1164 = vmatprep.mubr.bf16.mxu0 %v288
  %1165 = vmatmul.mubr.bf16.gmra.mxu0 %v287
  %v1166 = vpop.f32.mrf.mxu0
  %v1167 = vadd.f32 %v1126, %v1166
  %v1168 = vpop.f32.mrf.mxu0
  %v1169 = vpop.f32.mrf.mxu0
  %v1170 = vadd.f32 %v1129, %v1169
  %v1171 = vpop.f32.mrf.mxu0
  %1172 = vdwg.mxu0
  %1173 = vmatprep.subr.bf16.mxu0 0
  %1174 = vmatpush1.bf16.msra.mxu0 %v822
  %1175 = vmatprep.subr.bf16.mxu0 0
  %1176 = vmatpush1.bf16.msra.mxu0 %v821
  %1177 = vmatprep.subr.bf16.mxu0 0
  %1178 = vmatpush1.bf16.msra.mxu0 %v820
  %1179 = vmatprep.subr.bf16.mxu0 0
  %1180 = vmatpush1.bf16.msra.mxu0 %v819
  %1181 = vmatprep.subr.bf16.mxu0 0
  %1182 = vmatpush1.bf16.msra.mxu0 %v818
  %1183 = vmatprep.subr.bf16.mxu0 0
  %1184 = vmatpush1.bf16.msra.mxu0 %v817
  %1185 = vmatprep.subr.bf16.mxu0 0
  %1186 = vmatpush1.bf16.msra.mxu0 %v816
  %1187 = vmatprep.subr.bf16.mxu0 0
  %1188 = vmatpush1.bf16.msra.mxu0 %v815
  %1189 = vmatprep.subr.bf16.mxu0 0
  %1190 = vmatpush2.bf16.msra.mxu0 0
  %1191 = vmatprep.subr.bf16.mxu0 0
  %1192 = vmatpush2.bf16.msra.mxu0 0
  %1193 = vmatprep.subr.bf16.mxu0 0
  %1194 = vmatpush2.bf16.msra.mxu0 0
  %1195 = vmatprep.subr.bf16.mxu0 0
  %1196 = vmatpush2.bf16.msra.mxu0 0
  %1197 = vmatprep.subr.bf16.mxu0 0
  %1198 = vmatpush2.bf16.msra.mxu0 0
  %1199 = vmatprep.subr.bf16.mxu0 0
  %1200 = vmatpush2.bf16.msra.mxu0 0
  %1201 = vmatprep.subr.bf16.mxu0 0
  %1202 = vmatpush2.bf16.msra.mxu0 0
  %1203 = vmatprep.subr.bf16.mxu0 0
  %1204 = vmatpush2.bf16.msra.mxu0 0
  %1205 = vmatprep.mubr.bf16.mxu0 0
  %1206 = vmatmul.mubr.bf16.gmra.mxu0 %v289
  %v1207 = vpop.f32.mrf.mxu0
  %v1208 = vadd.f32 %v1167, %v1207
  %v1209 = vpop.f32.mrf.mxu0
  %v1210 = vpop.f32.mrf.mxu0
  %v1211 = vadd.f32 %v1170, %v1210
  %v1212 = vpop.f32.mrf.mxu0
  %1213 = vdwg.mxu0
  %s1214 = scalar_lea.vmem %s0, 104
  %v1215 = vld [vmem:[%s1214] sm:$0xff]
  %v1216 = vld [vmem:[%s1214 + $0x8] sm:$0xff]
  %v1217 = vld [vmem:[%s1214 + $0x10] sm:$0xff]
  %v1218 = vld [vmem:[%s1214 + $0x18] sm:$0xff]
  %v1219 = vld [vmem:[%s1214 + $0x20] sm:$0xff]
  %v1220 = vld [vmem:[%s1214 + $0x28] sm:$0xff]
  %v1221 = vld [vmem:[%s1214 + $0x30] sm:$0xf]
  %v1222 = vld [vmem:[%s1214 + $0x34] sm:$0xff]
  %v1223 = vld [vmem:[%s1214 + $0x3c] sm:$0xff]
  %v1224 = vld [vmem:[%s1214 + $0x44] sm:$0xff]
  %v1225 = vld [vmem:[%s1214 + $0x4c] sm:$0xff]
  %v1226 = vld [vmem:[%s1214 + $0x54] sm:$0xff]
  %v1227 = vld [vmem:[%s1214 + $0x5c] sm:$0xff]
  %v1228 = vld [vmem:[%s1214 + $0x64] sm:$0xf]
  %v1243 = vunpack.c.l.b16 %v1215
  %v1244 = vunpack.c.h.b16 %v1215
  %v1245 = vunpack.c.l.b16 %v1216
  %v1246 = vunpack.c.h.b16 %v1216
  %v1247 = vunpack.c.l.b16 %v1217
  %v1248 = vunpack.c.h.b16 %v1217
  %v1249 = vunpack.c.l.b16 %v1218
  %v1250 = vunpack.c.h.b16 %v1218
  %v1251 = vunpack.c.l.b16 %v1219
  %v1252 = vunpack.c.h.b16 %v1219
  %v1253 = vunpack.c.l.b16 %v1220
  %v1254 = vunpack.c.h.b16 %v1220
  %v1255 = vunpack.c.l.b16 %v1221
  %v1256 = vunpack.c.l.b16 %v1222
  %v1257 = vunpack.c.h.b16 %v1222
  %v1258 = vunpack.c.l.b16 %v1223
  %v1259 = vunpack.c.h.b16 %v1223
  %v1260 = vunpack.c.l.b16 %v1224
  %v1261 = vunpack.c.h.b16 %v1224
  %v1262 = vunpack.c.l.b16 %v1225
  %v1263 = vunpack.c.h.b16 %v1225
  %v1264 = vunpack.c.l.b16 %v1226
  %v1265 = vunpack.c.h.b16 %v1226
  %v1266 = vunpack.c.l.b16 %v1227
  %v1267 = vunpack.c.h.b16 %v1227
  %v1268 = vunpack.c.l.b16 %v1228
  %v1269 = vpack.c.b16 %v1256, %v1243
  %v1270 = vpack.c.b16 %v1257, %v1244
  %v1271 = vpack.c.b16 %v1258, %v1245
  %v1272 = vpack.c.b16 %v1259, %v1246
  %v1273 = vpack.c.b16 %v1260, %v1247
  %v1274 = vpack.c.b16 %v1261, %v1248
  %v1275 = vpack.c.b16 %v1262, %v1249
  %v1276 = vpack.c.b16 %v1263, %v1250
  %v1277 = vpack.c.b16 %v1264, %v1251
  %v1278 = vpack.c.b16 %v1265, %v1252
  %v1279 = vpack.c.b16 %v1266, %v1253
  %v1280 = vpack.c.b16 %v1267, %v1254
  %v1281 = vpack.c.b16 %v1268, %v1255
  %1295 = vmatprep.subr.bf16.mxu0 0
  %1296 = vmatpush1.bf16.msra.mxu0 %v726
  %1297 = vmatprep.subr.bf16.mxu0 0
  %1298 = vmatpush1.bf16.msra.mxu0 %v725
  %1299 = vmatprep.subr.bf16.mxu0 0
  %1300 = vmatpush1.bf16.msra.mxu0 %v724
  %1301 = vmatprep.subr.bf16.mxu0 0
  %1302 = vmatpush1.bf16.msra.mxu0 %v723
  %1303 = vmatprep.subr.bf16.mxu0 0
  %1304 = vmatpush1.bf16.msra.mxu0 %v722
  %1305 = vmatprep.subr.bf16.mxu0 0
  %1306 = vmatpush1.bf16.msra.mxu0 %v721
  %1307 = vmatprep.subr.bf16.mxu0 0
  %1308 = vmatpush1.bf16.msra.mxu0 %v720
  %1309 = vmatprep.subr.bf16.mxu0 0
  %1310 = vmatpush1.bf16.msra.mxu0 %v719
  %1311 = vmatprep.subr.bf16.mxu0 0
  %1312 = vmatpush2.bf16.msra.mxu0 %v734
  %1313 = vmatprep.subr.bf16.mxu0 0
  %1314 = vmatpush2.bf16.msra.mxu0 %v733
  %1315 = vmatprep.subr.bf16.mxu0 0
  %1316 = vmatpush2.bf16.msra.mxu0 %v732
  %1317 = vmatprep.subr.bf16.mxu0 0
  %1318 = vmatpush2.bf16.msra.mxu0 %v731
  %1319 = vmatprep.subr.bf16.mxu0 0
  %1320 = vmatpush2.bf16.msra.mxu0 %v730
  %1321 = vmatprep.subr.bf16.mxu0 0
  %1322 = vmatpush2.bf16.msra.mxu0 %v729
  %1323 = vmatprep.subr.bf16.mxu0 0
  %1324 = vmatpush2.bf16.msra.mxu0 %v728
  %1325 = vmatprep.subr.bf16.mxu0 0
  %1326 = vmatpush2.bf16.msra.mxu0 %v727
  %1327 = vmatprep.mubr.bf16.mxu0 %v1270
  %1328 = vmatmul.mubr.bf16.gmra.mxu0 %v1269
  %v1329 = vpop.f32.mrf.mxu0
  %v1330 = vadd.f32 0.0, %v1329
  %v1331 = vpop.f32.mrf.mxu0
  %v1332 = vpop.f32.mrf.mxu0
  %v1333 = vadd.f32 0.0, %v1332
  %v1334 = vpop.f32.mrf.mxu0
  %1335 = vdwg.mxu0
  %1336 = vmatprep.subr.bf16.mxu0 0
  %1337 = vmatpush1.bf16.msra.mxu0 %v742
  %1338 = vmatprep.subr.bf16.mxu0 0
  %1339 = vmatpush1.bf16.msra.mxu0 %v741
  %1340 = vmatprep.subr.bf16.mxu0 0
  %1341 = vmatpush1.bf16.msra.mxu0 %v740
  %1342 = vmatprep.subr.bf16.mxu0 0
  %1343 = vmatpush1.bf16.msra.mxu0 %v739
  %1344 = vmatprep.subr.bf16.mxu0 0
  %1345 = vmatpush1.bf16.msra.mxu0 %v738
  %1346 = vmatprep.subr.bf16.mxu0 0
  %1347 = vmatpush1.bf16.msra.mxu0 %v737
  %1348 = vmatprep.subr.bf16.mxu0 0
  %1349 = vmatpush1.bf16.msra.mxu0 %v736
  %1350 = vmatprep.subr.bf16.mxu0 0
  %1351 = vmatpush1.bf16.msra.mxu0 %v735
  %1352 = vmatprep.subr.bf16.mxu0 0
  %1353 = vmatpush2.bf16.msra.mxu0 %v750
  %1354 = vmatprep.subr.bf16.mxu0 0
  %1355 = vmatpush2.bf16.msra.mxu0 %v749
  %1356 = vmatprep.subr.bf16.mxu0 0
  %1357 = vmatpush2.bf16.msra.mxu0 %v748
  %1358 = vmatprep.subr.bf16.mxu0 0
  %1359 = vmatpush2.bf16.msra.mxu0 %v747
  %1360 = vmatprep.subr.bf16.mxu0 0
  %1361 = vmatpush2.bf16.msra.mxu0 %v746
  %1362 = vmatprep.subr.bf16.mxu0 0
  %1363 = vmatpush2.bf16.msra.mxu0 %v745
  %1364 = vmatprep.subr.bf16.mxu0 0
  %1365 = vmatpush2.bf16.msra.mxu0 %v744
  %1366 = vmatprep.subr.bf16.mxu0 0
  %1367 = vmatpush2.bf16.msra.mxu0 %v743
  %1368 = vmatprep.mubr.bf16.mxu0 %v1272
  %1369 = vmatmul.mubr.bf16.gmra.mxu0 %v1271
  %v1370 = vpop.f32.mrf.mxu0
  %v1371 = vadd.f32 %v1330, %v1370
  %v1372 = vpop.f32.mrf.mxu0
  %v1373 = vpop.f32.mrf.mxu0
  %v1374 = vadd.f32 %v1333, %v1373
  %v1375 = vpop.f32.mrf.mxu0
  %1376 = vdwg.mxu0
  %1377 = vmatprep.subr.bf16.mxu0 0
  %1378 = vmatpush1.bf16.msra.mxu0 %v758
  %1379 = vmatprep.subr.bf16.mxu0 0
  %1380 = vmatpush1.bf16.msra.mxu0 %v757
  %1381 = vmatprep.subr.bf16.mxu0 0
  %1382 = vmatpush1.bf16.msra.mxu0 %v756
  %1383 = vmatprep.subr.bf16.mxu0 0
  %1384 = vmatpush1.bf16.msra.mxu0 %v755
  %1385 = vmatprep.subr.bf16.mxu0 0
  %1386 = vmatpush1.bf16.msra.mxu0 %v754
  %1387 = vmatprep.subr.bf16.mxu0 0
  %1388 = vmatpush1.bf16.msra.mxu0 %v753
  %1389 = vmatprep.subr.bf16.mxu0 0
  %1390 = vmatpush1.bf16.msra.mxu0 %v752
  %1391 = vmatprep.subr.bf16.mxu0 0
  %1392 = vmatpush1.bf16.msra.mxu0 %v751
  %1393 = vmatprep.subr.bf16.mxu0 0
  %1394 = vmatpush2.bf16.msra.mxu0 %v766
  %1395 = vmatprep.subr.bf16.mxu0 0
  %1396 = vmatpush2.bf16.msra.mxu0 %v765
  %1397 = vmatprep.subr.bf16.mxu0 0
  %1398 = vmatpush2.bf16.msra.mxu0 %v764
  %1399 = vmatprep.subr.bf16.mxu0 0
  %1400 = vmatpush2.bf16.msra.mxu0 %v763
  %1401 = vmatprep.subr.bf16.mxu0 0
  %1402 = vmatpush2.bf16.msra.mxu0 %v762
  %1403 = vmatprep.subr.bf16.mxu0 0
  %1404 = vmatpush2.bf16.msra.mxu0 %v761
  %1405 = vmatprep.subr.bf16.mxu0 0
  %1406 = vmatpush2.bf16.msra.mxu0 %v760
  %1407 = vmatprep.subr.bf16.mxu0 0
  %1408 = vmatpush2.bf16.msra.mxu0 %v759
  %1409 = vmatprep.mubr.bf16.mxu0 %v1274
  %1410 = vmatmul.mubr.bf16.gmra.mxu0 %v1273
  %v1411 = vpop.f32.mrf.mxu0
  %v1412 = vadd.f32 %v1371, %v1411
  %v1413 = vpop.f32.mrf.mxu0
  %v1414 = vpop.f32.mrf.mxu0
  %v1415 = vadd.f32 %v1374, %v1414
  %v1416 = vpop.f32.mrf.mxu0
  %1417 = vdwg.mxu0
  %1418 = vmatprep.subr.bf16.mxu0 0
  %1419 = vmatpush1.bf16.msra.mxu0 %v774
  %1420 = vmatprep.subr.bf16.mxu0 0
  %1421 = vmatpush1.bf16.msra.mxu0 %v773
  %1422 = vmatprep.subr.bf16.mxu0 0
  %1423 = vmatpush1.bf16.msra.mxu0 %v772
  %1424 = vmatprep.subr.bf16.mxu0 0
  %1425 = vmatpush1.bf16.msra.mxu0 %v771
  %1426 = vmatprep.subr.bf16.mxu0 0
  %1427 = vmatpush1.bf16.msra.mxu0 %v770
  %1428 = vmatprep.subr.bf16.mxu0 0
  %1429 = vmatpush1.bf16.msra.mxu0 %v769
  %1430 = vmatprep.subr.bf16.mxu0 0
  %1431 = vmatpush1.bf16.msra.mxu0 %v768
  %1432 = vmatprep.subr.bf16.mxu0 0
  %1433 = vmatpush1.bf16.msra.mxu0 %v767
  %1434 = vmatprep.subr.bf16.mxu0 0
  %1435 = vmatpush2.bf16.msra.mxu0 %v782
  %1436 = vmatprep.subr.bf16.mxu0 0
  %1437 = vmatpush2.bf16.msra.mxu0 %v781
  %1438 = vmatprep.subr.bf16.mxu0 0
  %1439 = vmatpush2.bf16.msra.mxu0 %v780
  %1440 = vmatprep.subr.bf16.mxu0 0
  %1441 = vmatpush2.bf16.msra.mxu0 %v779
  %1442 = vmatprep.subr.bf16.mxu0 0
  %1443 = vmatpush2.bf16.msra.mxu0 %v778
  %1444 = vmatprep.subr.bf16.mxu0 0
  %1445 = vmatpush2.bf16.msra.mxu0 %v777
  %1446 = vmatprep.subr.bf16.mxu0 0
  %1447 = vmatpush2.bf16.msra.mxu0 %v776
  %1448 = vmatprep.subr.bf16.mxu0 0
  %1449 = vmatpush2.bf16.msra.mxu0 %v775
  %1450 = vmatprep.mubr.bf16.mxu0 %v1276
  %1451 = vmatmul.mubr.bf16.gmra.mxu0 %v1275
  %v1452 = vpop.f32.mrf.mxu0
  %v1453 = vadd.f32 %v1412, %v1452
  %v1454 = vpop.f32.mrf.mxu0
  %v1455 = vpop.f32.mrf.mxu0
  %v1456 = vadd.f32 %v1415, %v1455
  %v1457 = vpop.f32.mrf.mxu0
  %1458 = vdwg.mxu0
  %1459 = vmatprep.subr.bf16.mxu0 0
  %1460 = vmatpush1.bf16.msra.mxu0 %v790
  %1461 = vmatprep.subr.bf16.mxu0 0
  %1462 = vmatpush1.bf16.msra.mxu0 %v789
  %1463 = vmatprep.subr.bf16.mxu0 0
  %1464 = vmatpush1.bf16.msra.mxu0 %v788
  %1465 = vmatprep.subr.bf16.mxu0 0
  %1466 = vmatpush1.bf16.msra.mxu0 %v787
  %1467 = vmatprep.subr.bf16.mxu0 0
  %1468 = vmatpush1.bf16.msra.mxu0 %v786
  %1469 = vmatprep.subr.bf16.mxu0 0
  %1470 = vmatpush1.bf16.msra.mxu0 %v785
  %1471 = vmatprep.subr.bf16.mxu0 0
  %1472 = vmatpush1.bf16.msra.mxu0 %v784
  %1473 = vmatprep.subr.bf16.mxu0 0
  %1474 = vmatpush1.bf16.msra.mxu0 %v783
  %1475 = vmatprep.subr.bf16.mxu0 0
  %1476 = vmatpush2.bf16.msra.mxu0 %v798
  %1477 = vmatprep.subr.bf16.mxu0 0
  %1478 = vmatpush2.bf16.msra.mxu0 %v797
  %1479 = vmatprep.subr.bf16.mxu0 0
  %1480 = vmatpush2.bf16.msra.mxu0 %v796
  %1481 = vmatprep.subr.bf16.mxu0 0
  %1482 = vmatpush2.bf16.msra.mxu0 %v795
  %1483 = vmatprep.subr.bf16.mxu0 0
  %1484 = vmatpush2.bf16.msra.mxu0 %v794
  %1485 = vmatprep.subr.bf16.mxu0 0
  %1486 = vmatpush2.bf16.msra.mxu0 %v793
  %1487 = vmatprep.subr.bf16.mxu0 0
  %1488 = vmatpush2.bf16.msra.mxu0 %v792
  %1489 = vmatprep.subr.bf16.mxu0 0
  %1490 = vmatpush2.bf16.msra.mxu0 %v791
  %1491 = vmatprep.mubr.bf16.mxu0 %v1278
  %1492 = vmatmul.mubr.bf16.gmra.mxu0 %v1277
  %v1493 = vpop.f32.mrf.mxu0
  %v1494 = vadd.f32 %v1453, %v1493
  %v1495 = vpop.f32.mrf.mxu0
  %v1496 = vpop.f32.mrf.mxu0
  %v1497 = vadd.f32 %v1456, %v1496
  %v1498 = vpop.f32.mrf.mxu0
  %1499 = vdwg.mxu0
  %1500 = vmatprep.subr.bf16.mxu0 0
  %1501 = vmatpush1.bf16.msra.mxu0 %v806
  %1502 = vmatprep.subr.bf16.mxu0 0
  %1503 = vmatpush1.bf16.msra.mxu0 %v805
  %1504 = vmatprep.subr.bf16.mxu0 0
  %1505 = vmatpush1.bf16.msra.mxu0 %v804
  %1506 = vmatprep.subr.bf16.mxu0 0
  %1507 = vmatpush1.bf16.msra.mxu0 %v803
  %1508 = vmatprep.subr.bf16.mxu0 0
  %1509 = vmatpush1.bf16.msra.mxu0 %v802
  %1510 = vmatprep.subr.bf16.mxu0 0
  %1511 = vmatpush1.bf16.msra.mxu0 %v801
  %1512 = vmatprep.subr.bf16.mxu0 0
  %1513 = vmatpush1.bf16.msra.mxu0 %v800
  %1514 = vmatprep.subr.bf16.mxu0 0
  %1515 = vmatpush1.bf16.msra.mxu0 %v799
  %1516 = vmatprep.subr.bf16.mxu0 0
  %1517 = vmatpush2.bf16.msra.mxu0 %v814
  %1518 = vmatprep.subr.bf16.mxu0 0
  %1519 = vmatpush2.bf16.msra.mxu0 %v813
  %1520 = vmatprep.subr.bf16.mxu0 0
  %1521 = vmatpush2.bf16.msra.mxu0 %v812
  %1522 = vmatprep.subr.bf16.mxu0 0
  %1523 = vmatpush2.bf16.msra.mxu0 %v811
  %1524 = vmatprep.subr.bf16.mxu0 0
  %1525 = vmatpush2.bf16.msra.mxu0 %v810
  %1526 = vmatprep.subr.bf16.mxu0 0
  %1527 = vmatpush2.bf16.msra.mxu0 %v809
  %1528 = vmatprep.subr.bf16.mxu0 0
  %1529 = vmatpush2.bf16.msra.mxu0 %v808
  %1530 = vmatprep.subr.bf16.mxu0 0
  %1531 = vmatpush2.bf16.msra.mxu0 %v807
  %1532 = vmatprep.mubr.bf16.mxu0 %v1280
  %1533 = vmatmul.mubr.bf16.gmra.mxu0 %v1279
  %v1534 = vpop.f32.mrf.mxu0
  %v1535 = vadd.f32 %v1494, %v1534
  %v1536 = vpop.f32.mrf.mxu0
  %v1537 = vpop.f32.mrf.mxu0
  %v1538 = vadd.f32 %v1497, %v1537
  %v1539 = vpop.f32.mrf.mxu0
  %1540 = vdwg.mxu0
  %1541 = vmatprep.subr.bf16.mxu0 0
  %1542 = vmatpush1.bf16.msra.mxu0 %v822
  %1543 = vmatprep.subr.bf16.mxu0 0
  %1544 = vmatpush1.bf16.msra.mxu0 %v821
  %1545 = vmatprep.subr.bf16.mxu0 0
  %1546 = vmatpush1.bf16.msra.mxu0 %v820
  %1547 = vmatprep.subr.bf16.mxu0 0
  %1548 = vmatpush1.bf16.msra.mxu0 %v819
  %1549 = vmatprep.subr.bf16.mxu0 0
  %1550 = vmatpush1.bf16.msra.mxu0 %v818
  %1551 = vmatprep.subr.bf16.mxu0 0
  %1552 = vmatpush1.bf16.msra.mxu0 %v817
  %1553 = vmatprep.subr.bf16.mxu0 0
  %1554 = vmatpush1.bf16.msra.mxu0 %v816
  %1555 = vmatprep.subr.bf16.mxu0 0
  %1556 = vmatpush1.bf16.msra.mxu0 %v815
  %1557 = vmatprep.subr.bf16.mxu0 0
  %1558 = vmatpush2.bf16.msra.mxu0 0
  %1559 = vmatprep.subr.bf16.mxu0 0
  %1560 = vmatpush2.bf16.msra.mxu0 0
  %1561 = vmatprep.subr.bf16.mxu0 0
  %1562 = vmatpush2.bf16.msra.mxu0 0
  %1563 = vmatprep.subr.bf16.mxu0 0
  %1564 = vmatpush2.bf16.msra.mxu0 0
  %1565 = vmatprep.subr.bf16.mxu0 0
  %1566 = vmatpush2.bf16.msra.mxu0 0
  %1567 = vmatprep.subr.bf16.mxu0 0
  %1568 = vmatpush2.bf16.msra.mxu0 0
  %1569 = vmatprep.subr.bf16.mxu0 0
  %1570 = vmatpush2.bf16.msra.mxu0 0
  %1571 = vmatprep.subr.bf16.mxu0 0
  %1572 = vmatpush2.bf16.msra.mxu0 0
  %1573 = vmatprep.mubr.bf16.mxu0 0
  %1574 = vmatmul.mubr.bf16.gmra.mxu0 %v1281
  %v1575 = vpop.f32.mrf.mxu0
  %v1576 = vadd.f32 %v1535, %v1575
  %v1577 = vpop.f32.mrf.mxu0
  %v1578 = vpop.f32.mrf.mxu0
  %v1579 = vadd.f32 %v1538, %v1578
  %v1580 = vpop.f32.mrf.mxu0
  %1581 = vdwg.mxu0
  %s1582 = scalar_lea.vmem %s0, 208
  %v1583 = vld [vmem:[%s1582] sm:$0xff]
  %v1584 = vld [vmem:[%s1582 + $0x8] sm:$0xff]
  %v1585 = vld [vmem:[%s1582 + $0x10] sm:$0xff]
  %v1586 = vld [vmem:[%s1582 + $0x18] sm:$0xff]
  %v1587 = vld [vmem:[%s1582 + $0x20] sm:$0xff]
  %v1588 = vld [vmem:[%s1582 + $0x28] sm:$0xff]
  %v1589 = vld [vmem:[%s1582 + $0x30] sm:$0xf]
  %v1590 = vld [vmem:[%s1582 + $0x34] sm:$0xff]
  %v1591 = vld [vmem:[%s1582 + $0x3c] sm:$0xff]
  %v1592 = vld [vmem:[%s1582 + $0x44] sm:$0xff]
  %v1593 = vld [vmem:[%s1582 + $0x4c] sm:$0xff]
  %v1594 = vld [vmem:[%s1582 + $0x54] sm:$0xff]
  %v1595 = vld [vmem:[%s1582 + $0x5c] sm:$0xff]
  %v1596 = vld [vmem:[%s1582 + $0x64] sm:$0xf]
  %v1611 = vunpack.c.l.b16 %v1583
  %v1612 = vunpack.c.h.b16 %v1583
  %v1613 = vunpack.c.l.b16 %v1584
  %v1614 = vunpack.c.h.b16 %v1584
  %v1615 = vunpack.c.l.b16 %v1585
  %v1616 = vunpack.c.h.b16 %v1585
  %v1617 = vunpack.c.l.b16 %v1586
  %v1618 = vunpack.c.h.b16 %v1586
  %v1619 = vunpack.c.l.b16 %v1587
  %v1620 = vunpack.c.h.b16 %v1587
  %v1621 = vunpack.c.l.b16 %v1588
  %v1622 = vunpack.c.h.b16 %v1588
  %v1623 = vunpack.c.l.b16 %v1589
  %v1624 = vunpack.c.l.b16 %v1590
  %v1625 = vunpack.c.h.b16 %v1590
  %v1626 = vunpack.c.l.b16 %v1591
  %v1627 = vunpack.c.h.b16 %v1591
  %v1628 = vunpack.c.l.b16 %v1592
  %v1629 = vunpack.c.h.b16 %v1592
  %v1630 = vunpack.c.l.b16 %v1593
  %v1631 = vunpack.c.h.b16 %v1593
  %v1632 = vunpack.c.l.b16 %v1594
  %v1633 = vunpack.c.h.b16 %v1594
  %v1634 = vunpack.c.l.b16 %v1595
  %v1635 = vunpack.c.h.b16 %v1595
  %v1636 = vunpack.c.l.b16 %v1596
  %v1637 = vpack.c.b16 %v1624, %v1611
  %v1638 = vpack.c.b16 %v1625, %v1612
  %v1639 = vpack.c.b16 %v1626, %v1613
  %v1640 = vpack.c.b16 %v1627, %v1614
  %v1641 = vpack.c.b16 %v1628, %v1615
  %v1642 = vpack.c.b16 %v1629, %v1616
  %v1643 = vpack.c.b16 %v1630, %v1617
  %v1644 = vpack.c.b16 %v1631, %v1618
  %v1645 = vpack.c.b16 %v1632, %v1619
  %v1646 = vpack.c.b16 %v1633, %v1620
  %v1647 = vpack.c.b16 %v1634, %v1621
  %v1648 = vpack.c.b16 %v1635, %v1622
  %v1649 = vpack.c.b16 %v1636, %v1623
  %1663 = vmatprep.subr.bf16.mxu0 0
  %1664 = vmatpush1.bf16.msra.mxu0 %v726
  %1665 = vmatprep.subr.bf16.mxu0 0
  %1666 = vmatpush1.bf16.msra.mxu0 %v725
  %1667 = vmatprep.subr.bf16.mxu0 0
  %1668 = vmatpush1.bf16.msra.mxu0 %v724
  %1669 = vmatprep.subr.bf16.mxu0 0
  %1670 = vmatpush1.bf16.msra.mxu0 %v723
  %1671 = vmatprep.subr.bf16.mxu0 0
  %1672 = vmatpush1.bf16.msra.mxu0 %v722
  %1673 = vmatprep.subr.bf16.mxu0 0
  %1674 = vmatpush1.bf16.msra.mxu0 %v721
  %1675 = vmatprep.subr.bf16.mxu0 0
  %1676 = vmatpush1.bf16.msra.mxu0 %v720
  %1677 = vmatprep.subr.bf16.mxu0 0
  %1678 = vmatpush1.bf16.msra.mxu0 %v719
  %1679 = vmatprep.subr.bf16.mxu0 0
  %1680 = vmatpush2.bf16.msra.mxu0 %v734
  %1681 = vmatprep.subr.bf16.mxu0 0
  %1682 = vmatpush2.bf16.msra.mxu0 %v733
  %1683 = vmatprep.subr.bf16.mxu0 0
  %1684 = vmatpush2.bf16.msra.mxu0 %v732
  %1685 = vmatprep.subr.bf16.mxu0 0
  %1686 = vmatpush2.bf16.msra.mxu0 %v731
  %1687 = vmatprep.subr.bf16.mxu0 0
  %1688 = vmatpush2.bf16.msra.mxu0 %v730
  %1689 = vmatprep.subr.bf16.mxu0 0
  %1690 = vmatpush2.bf16.msra.mxu0 %v729
  %1691 = vmatprep.subr.bf16.mxu0 0
  %1692 = vmatpush2.bf16.msra.mxu0 %v728
  %1693 = vmatprep.subr.bf16.mxu0 0
  %1694 = vmatpush2.bf16.msra.mxu0 %v727
  %1695 = vmatprep.mubr.bf16.mxu0 %v1638
  %1696 = vmatmul.mubr.bf16.gmra.mxu0 %v1637
  %v1697 = vpop.f32.mrf.mxu0
  %v1698 = vadd.f32 0.0, %v1697
  %v1699 = vpop.f32.mrf.mxu0
  %v1700 = vpop.f32.mrf.mxu0
  %v1701 = vadd.f32 0.0, %v1700
  %v1702 = vpop.f32.mrf.mxu0
  %1703 = vdwg.mxu0
  %1704 = vmatprep.subr.bf16.mxu0 0
  %1705 = vmatpush1.bf16.msra.mxu0 %v742
  %1706 = vmatprep.subr.bf16.mxu0 0
  %1707 = vmatpush1.bf16.msra.mxu0 %v741
  %1708 = vmatprep.subr.bf16.mxu0 0
  %1709 = vmatpush1.bf16.msra.mxu0 %v740
  %1710 = vmatprep.subr.bf16.mxu0 0
  %1711 = vmatpush1.bf16.msra.mxu0 %v739
  %1712 = vmatprep.subr.bf16.mxu0 0
  %1713 = vmatpush1.bf16.msra.mxu0 %v738
  %1714 = vmatprep.subr.bf16.mxu0 0
  %1715 = vmatpush1.bf16.msra.mxu0 %v737
  %1716 = vmatprep.subr.bf16.mxu0 0
  %1717 = vmatpush1.bf16.msra.mxu0 %v736
  %1718 = vmatprep.subr.bf16.mxu0 0
  %1719 = vmatpush1.bf16.msra.mxu0 %v735
  %1720 = vmatprep.subr.bf16.mxu0 0
  %1721 = vmatpush2.bf16.msra.mxu0 %v750
  %1722 = vmatprep.subr.bf16.mxu0 0
  %1723 = vmatpush2.bf16.msra.mxu0 %v749
  %1724 = vmatprep.subr.bf16.mxu0 0
  %1725 = vmatpush2.bf16.msra.mxu0 %v748
  %1726 = vmatprep.subr.bf16.mxu0 0
  %1727 = vmatpush2.bf16.msra.mxu0 %v747
  %1728 = vmatprep.subr.bf16.mxu0 0
  %1729 = vmatpush2.bf16.msra.mxu0 %v746
  %1730 = vmatprep.subr.bf16.mxu0 0
  %1731 = vmatpush2.bf16.msra.mxu0 %v745
  %1732 = vmatprep.subr.bf16.mxu0 0
  %1733 = vmatpush2.bf16.msra.mxu0 %v744
  %1734 = vmatprep.subr.bf16.mxu0 0
  %1735 = vmatpush2.bf16.msra.mxu0 %v743
  %1736 = vmatprep.mubr.bf16.mxu0 %v1640
  %1737 = vmatmul.mubr.bf16.gmra.mxu0 %v1639
  %v1738 = vpop.f32.mrf.mxu0
  %v1739 = vadd.f32 %v1698, %v1738
  %v1740 = vpop.f32.mrf.mxu0
  %v1741 = vpop.f32.mrf.mxu0
  %v1742 = vadd.f32 %v1701, %v1741
  %v1743 = vpop.f32.mrf.mxu0
  %1744 = vdwg.mxu0
  %1745 = vmatprep.subr.bf16.mxu0 0
  %1746 = vmatpush1.bf16.msra.mxu0 %v758
  %1747 = vmatprep.subr.bf16.mxu0 0
  %1748 = vmatpush1.bf16.msra.mxu0 %v757
  %1749 = vmatprep.subr.bf16.mxu0 0
  %1750 = vmatpush1.bf16.msra.mxu0 %v756
  %1751 = vmatprep.subr.bf16.mxu0 0
  %1752 = vmatpush1.bf16.msra.mxu0 %v755
  %1753 = vmatprep.subr.bf16.mxu0 0
  %1754 = vmatpush1.bf16.msra.mxu0 %v754
  %1755 = vmatprep.subr.bf16.mxu0 0
  %1756 = vmatpush1.bf16.msra.mxu0 %v753
  %1757 = vmatprep.subr.bf16.mxu0 0
  %1758 = vmatpush1.bf16.msra.mxu0 %v752
  %1759 = vmatprep.subr.bf16.mxu0 0
  %1760 = vmatpush1.bf16.msra.mxu0 %v751
  %1761 = vmatprep.subr.bf16.mxu0 0
  %1762 = vmatpush2.bf16.msra.mxu0 %v766
  %1763 = vmatprep.subr.bf16.mxu0 0
  %1764 = vmatpush2.bf16.msra.mxu0 %v765
  %1765 = vmatprep.subr.bf16.mxu0 0
  %1766 = vmatpush2.bf16.msra.mxu0 %v764
  %1767 = vmatprep.subr.bf16.mxu0 0
  %1768 = vmatpush2.bf16.msra.mxu0 %v763
  %1769 = vmatprep.subr.bf16.mxu0 0
  %1770 = vmatpush2.bf16.msra.mxu0 %v762
  %1771 = vmatprep.subr.bf16.mxu0 0
  %1772 = vmatpush2.bf16.msra.mxu0 %v761
  %1773 = vmatprep.subr.bf16.mxu0 0
  %1774 = vmatpush2.bf16.msra.mxu0 %v760
  %1775 = vmatprep.subr.bf16.mxu0 0
  %1776 = vmatpush2.bf16.msra.mxu0 %v759
  %1777 = vmatprep.mubr.bf16.mxu0 %v1642
  %1778 = vmatmul.mubr.bf16.gmra.mxu0 %v1641
  %v1779 = vpop.f32.mrf.mxu0
  %v1780 = vadd.f32 %v1739, %v1779
  %v1781 = vpop.f32.mrf.mxu0
  %v1782 = vpop.f32.mrf.mxu0
  %v1783 = vadd.f32 %v1742, %v1782
  %v1784 = vpop.f32.mrf.mxu0
  %1785 = vdwg.mxu0
  %1786 = vmatprep.subr.bf16.mxu0 0
  %1787 = vmatpush1.bf16.msra.mxu0 %v774
  %1788 = vmatprep.subr.bf16.mxu0 0
  %1789 = vmatpush1.bf16.msra.mxu0 %v773
  %1790 = vmatprep.subr.bf16.mxu0 0
  %1791 = vmatpush1.bf16.msra.mxu0 %v772
  %1792 = vmatprep.subr.bf16.mxu0 0
  %1793 = vmatpush1.bf16.msra.mxu0 %v771
  %1794 = vmatprep.subr.bf16.mxu0 0
  %1795 = vmatpush1.bf16.msra.mxu0 %v770
  %1796 = vmatprep.subr.bf16.mxu0 0
  %1797 = vmatpush1.bf16.msra.mxu0 %v769
  %1798 = vmatprep.subr.bf16.mxu0 0
  %1799 = vmatpush1.bf16.msra.mxu0 %v768
  %1800 = vmatprep.subr.bf16.mxu0 0
  %1801 = vmatpush1.bf16.msra.mxu0 %v767
  %1802 = vmatprep.subr.bf16.mxu0 0
  %1803 = vmatpush2.bf16.msra.mxu0 %v782
  %1804 = vmatprep.subr.bf16.mxu0 0
  %1805 = vmatpush2.bf16.msra.mxu0 %v781
  %1806 = vmatprep.subr.bf16.mxu0 0
  %1807 = vmatpush2.bf16.msra.mxu0 %v780
  %1808 = vmatprep.subr.bf16.mxu0 0
  %1809 = vmatpush2.bf16.msra.mxu0 %v779
  %1810 = vmatprep.subr.bf16.mxu0 0
  %1811 = vmatpush2.bf16.msra.mxu0 %v778
  %1812 = vmatprep.subr.bf16.mxu0 0
  %1813 = vmatpush2.bf16.msra.mxu0 %v777
  %1814 = vmatprep.subr.bf16.mxu0 0
  %1815 = vmatpush2.bf16.msra.mxu0 %v776
  %1816 = vmatprep.subr.bf16.mxu0 0
  %1817 = vmatpush2.bf16.msra.mxu0 %v775
  %1818 = vmatprep.mubr.bf16.mxu0 %v1644
  %1819 = vmatmul.mubr.bf16.gmra.mxu0 %v1643
  %v1820 = vpop.f32.mrf.mxu0
  %v1821 = vadd.f32 %v1780, %v1820
  %v1822 = vpop.f32.mrf.mxu0
  %v1823 = vpop.f32.mrf.mxu0
  %v1824 = vadd.f32 %v1783, %v1823
  %v1825 = vpop.f32.mrf.mxu0
  %1826 = vdwg.mxu0
  %1827 = vmatprep.subr.bf16.mxu0 0
  %1828 = vmatpush1.bf16.msra.mxu0 %v790
  %1829 = vmatprep.subr.bf16.mxu0 0
  %1830 = vmatpush1.bf16.msra.mxu0 %v789
  %1831 = vmatprep.subr.bf16.mxu0 0
  %1832 = vmatpush1.bf16.msra.mxu0 %v788
  %1833 = vmatprep.subr.bf16.mxu0 0
  %1834 = vmatpush1.bf16.msra.mxu0 %v787
  %1835 = vmatprep.subr.bf16.mxu0 0
  %1836 = vmatpush1.bf16.msra.mxu0 %v786
  %1837 = vmatprep.subr.bf16.mxu0 0
  %1838 = vmatpush1.bf16.msra.mxu0 %v785
  %1839 = vmatprep.subr.bf16.mxu0 0
  %1840 = vmatpush1.bf16.msra.mxu0 %v784
  %1841 = vmatprep.subr.bf16.mxu0 0
  %1842 = vmatpush1.bf16.msra.mxu0 %v783
  %1843 = vmatprep.subr.bf16.mxu0 0
  %1844 = vmatpush2.bf16.msra.mxu0 %v798
  %1845 = vmatprep.subr.bf16.mxu0 0
  %1846 = vmatpush2.bf16.msra.mxu0 %v797
  %1847 = vmatprep.subr.bf16.mxu0 0
  %1848 = vmatpush2.bf16.msra.mxu0 %v796
  %1849 = vmatprep.subr.bf16.mxu0 0
  %1850 = vmatpush2.bf16.msra.mxu0 %v795
  %1851 = vmatprep.subr.bf16.mxu0 0
  %1852 = vmatpush2.bf16.msra.mxu0 %v794
  %1853 = vmatprep.subr.bf16.mxu0 0
  %1854 = vmatpush2.bf16.msra.mxu0 %v793
  %1855 = vmatprep.subr.bf16.mxu0 0
  %1856 = vmatpush2.bf16.msra.mxu0 %v792
  %1857 = vmatprep.subr.bf16.mxu0 0
  %1858 = vmatpush2.bf16.msra.mxu0 %v791
  %1859 = vmatprep.mubr.bf16.mxu0 %v1646
  %1860 = vmatmul.mubr.bf16.gmra.mxu0 %v1645
  %v1861 = vpop.f32.mrf.mxu0
  %v1862 = vadd.f32 %v1821, %v1861
  %v1863 = vpop.f32.mrf.mxu0
  %v1864 = vpop.f32.mrf.mxu0
  %v1865 = vadd.f32 %v1824, %v1864
  %v1866 = vpop.f32.mrf.mxu0
  %1867 = vdwg.mxu0
  %1868 = vmatprep.subr.bf16.mxu0 0
  %1869 = vmatpush1.bf16.msra.mxu0 %v806
  %1870 = vmatprep.subr.bf16.mxu0 0
  %1871 = vmatpush1.bf16.msra.mxu0 %v805
  %1872 = vmatprep.subr.bf16.mxu0 0
  %1873 = vmatpush1.bf16.msra.mxu0 %v804
  %1874 = vmatprep.subr.bf16.mxu0 0
  %1875 = vmatpush1.bf16.msra.mxu0 %v803
  %1876 = vmatprep.subr.bf16.mxu0 0
  %1877 = vmatpush1.bf16.msra.mxu0 %v802
  %1878 = vmatprep.subr.bf16.mxu0 0
  %1879 = vmatpush1.bf16.msra.mxu0 %v801
  %1880 = vmatprep.subr.bf16.mxu0 0
  %1881 = vmatpush1.bf16.msra.mxu0 %v800
  %1882 = vmatprep.subr.bf16.mxu0 0
  %1883 = vmatpush1.bf16.msra.mxu0 %v799
  %1884 = vmatprep.subr.bf16.mxu0 0
  %1885 = vmatpush2.bf16.msra.mxu0 %v814
  %1886 = vmatprep.subr.bf16.mxu0 0
  %1887 = vmatpush2.bf16.msra.mxu0 %v813
  %1888 = vmatprep.subr.bf16.mxu0 0
  %1889 = vmatpush2.bf16.msra.mxu0 %v812
  %1890 = vmatprep.subr.bf16.mxu0 0
  %1891 = vmatpush2.bf16.msra.mxu0 %v811
  %1892 = vmatprep.subr.bf16.mxu0 0
  %1893 = vmatpush2.bf16.msra.mxu0 %v810
  %1894 = vmatprep.subr.bf16.mxu0 0
  %1895 = vmatpush2.bf16.msra.mxu0 %v809
  %1896 = vmatprep.subr.bf16.mxu0 0
  %1897 = vmatpush2.bf16.msra.mxu0 %v808
  %1898 = vmatprep.subr.bf16.mxu0 0
  %1899 = vmatpush2.bf16.msra.mxu0 %v807
  %1900 = vmatprep.mubr.bf16.mxu0 %v1648
  %1901 = vmatmul.mubr.bf16.gmra.mxu0 %v1647
  %v1902 = vpop.f32.mrf.mxu0
  %v1903 = vadd.f32 %v1862, %v1902
  %v1904 = vpop.f32.mrf.mxu0
  %v1905 = vpop.f32.mrf.mxu0
  %v1906 = vadd.f32 %v1865, %v1905
  %v1907 = vpop.f32.mrf.mxu0
  %1908 = vdwg.mxu0
  %1909 = vmatprep.subr.bf16.mxu0 0
  %1910 = vmatpush1.bf16.msra.mxu0 %v822
  %1911 = vmatprep.subr.bf16.mxu0 0
  %1912 = vmatpush1.bf16.msra.mxu0 %v821
  %1913 = vmatprep.subr.bf16.mxu0 0
  %1914 = vmatpush1.bf16.msra.mxu0 %v820
  %1915 = vmatprep.subr.bf16.mxu0 0
  %1916 = vmatpush1.bf16.msra.mxu0 %v819
  %1917 = vmatprep.subr.bf16.mxu0 0
  %1918 = vmatpush1.bf16.msra.mxu0 %v818
  %1919 = vmatprep.subr.bf16.mxu0 0
  %1920 = vmatpush1.bf16.msra.mxu0 %v817
  %1921 = vmatprep.subr.bf16.mxu0 0
  %1922 = vmatpush1.bf16.msra.mxu0 %v816
  %1923 = vmatprep.subr.bf16.mxu0 0
  %1924 = vmatpush1.bf16.msra.mxu0 %v815
  %1925 = vmatprep.subr.bf16.mxu0 0
  %1926 = vmatpush2.bf16.msra.mxu0 0
  %1927 = vmatprep.subr.bf16.mxu0 0
  %1928 = vmatpush2.bf16.msra.mxu0 0
  %1929 = vmatprep.subr.bf16.mxu0 0
  %1930 = vmatpush2.bf16.msra.mxu0 0
  %1931 = vmatprep.subr.bf16.mxu0 0
  %1932 = vmatpush2.bf16.msra.mxu0 0
  %1933 = vmatprep.subr.bf16.mxu0 0
  %1934 = vmatpush2.bf16.msra.mxu0 0
  %1935 = vmatprep.subr.bf16.mxu0 0
  %1936 = vmatpush2.bf16.msra.mxu0 0
  %1937 = vmatprep.subr.bf16.mxu0 0
  %1938 = vmatpush2.bf16.msra.mxu0 0
  %1939 = vmatprep.subr.bf16.mxu0 0
  %1940 = vmatpush2.bf16.msra.mxu0 0
  %1941 = vmatprep.mubr.bf16.mxu0 0
  %1942 = vmatmul.mubr.bf16.gmra.mxu0 %v1649
  %v1943 = vpop.f32.mrf.mxu0
  %v1944 = vadd.f32 %v1903, %v1943
  %v1945 = vpop.f32.mrf.mxu0
  %v1946 = vpop.f32.mrf.mxu0
  %v1947 = vadd.f32 %v1906, %v1946
  %v1948 = vpop.f32.mrf.mxu0
  %1949 = vdwg.mxu0
  %s1950 = scalar_lea.vmem %s0, 312
  %v1951 = vld [vmem:[%s1950] sm:$0xff]
  %v1952 = vld [vmem:[%s1950 + $0x8] sm:$0xff]
  %v1953 = vld [vmem:[%s1950 + $0x10] sm:$0xff]
  %v1954 = vld [vmem:[%s1950 + $0x18] sm:$0xff]
  %v1955 = vld [vmem:[%s1950 + $0x20] sm:$0xff]
  %v1956 = vld [vmem:[%s1950 + $0x28] sm:$0xff]
  %v1957 = vld [vmem:[%s1950 + $0x30] sm:$0xf]
  %v1958 = vld [vmem:[%s1950 + $0x34] sm:$0xff]
  %v1959 = vld [vmem:[%s1950 + $0x3c] sm:$0xff]
  %v1960 = vld [vmem:[%s1950 + $0x44] sm:$0xff]
  %v1961 = vld [vmem:[%s1950 + $0x4c] sm:$0xff]
  %v1962 = vld [vmem:[%s1950 + $0x54] sm:$0xff]
  %v1963 = vld [vmem:[%s1950 + $0x5c] sm:$0xff]
  %v1964 = vld [vmem:[%s1950 + $0x64] sm:$0xf]
  %v1979 = vunpack.c.l.b16 %v1951
  %v1980 = vunpack.c.h.b16 %v1951
  %v1981 = vunpack.c.l.b16 %v1952
  %v1982 = vunpack.c.h.b16 %v1952
  %v1983 = vunpack.c.l.b16 %v1953
  %v1984 = vunpack.c.h.b16 %v1953
  %v1985 = vunpack.c.l.b16 %v1954
  %v1986 = vunpack.c.h.b16 %v1954
  %v1987 = vunpack.c.l.b16 %v1955
  %v1988 = vunpack.c.h.b16 %v1955
  %v1989 = vunpack.c.l.b16 %v1956
  %v1990 = vunpack.c.h.b16 %v1956
  %v1991 = vunpack.c.l.b16 %v1957
  %v1992 = vunpack.c.l.b16 %v1958
  %v1993 = vunpack.c.h.b16 %v1958
  %v1994 = vunpack.c.l.b16 %v1959
  %v1995 = vunpack.c.h.b16 %v1959
  %v1996 = vunpack.c.l.b16 %v1960
  %v1997 = vunpack.c.h.b16 %v1960
  %v1998 = vunpack.c.l.b16 %v1961
  %v1999 = vunpack.c.h.b16 %v1961
  %v2000 = vunpack.c.l.b16 %v1962
  %v2001 = vunpack.c.h.b16 %v1962
  %v2002 = vunpack.c.l.b16 %v1963
  %v2003 = vunpack.c.h.b16 %v1963
  %v2004 = vunpack.c.l.b16 %v1964
  %v2005 = vpack.c.b16 %v1992, %v1979
  %v2006 = vpack.c.b16 %v1993, %v1980
  %v2007 = vpack.c.b16 %v1994, %v1981
  %v2008 = vpack.c.b16 %v1995, %v1982
  %v2009 = vpack.c.b16 %v1996, %v1983
  %v2010 = vpack.c.b16 %v1997, %v1984
  %v2011 = vpack.c.b16 %v1998, %v1985
  %v2012 = vpack.c.b16 %v1999, %v1986
  %v2013 = vpack.c.b16 %v2000, %v1987
  %v2014 = vpack.c.b16 %v2001, %v1988
  %v2015 = vpack.c.b16 %v2002, %v1989
  %v2016 = vpack.c.b16 %v2003, %v1990
  %v2017 = vpack.c.b16 %v2004, %v1991
  %2031 = vmatprep.subr.bf16.mxu0 0
  %2032 = vmatpush1.bf16.msra.mxu0 %v726
  %2033 = vmatprep.subr.bf16.mxu0 0
  %2034 = vmatpush1.bf16.msra.mxu0 %v725
  %2035 = vmatprep.subr.bf16.mxu0 0
  %2036 = vmatpush1.bf16.msra.mxu0 %v724
  %2037 = vmatprep.subr.bf16.mxu0 0
  %2038 = vmatpush1.bf16.msra.mxu0 %v723
  %2039 = vmatprep.subr.bf16.mxu0 0
  %2040 = vmatpush1.bf16.msra.mxu0 %v722
  %2041 = vmatprep.subr.bf16.mxu0 0
  %2042 = vmatpush1.bf16.msra.mxu0 %v721
  %2043 = vmatprep.subr.bf16.mxu0 0
  %2044 = vmatpush1.bf16.msra.mxu0 %v720
  %2045 = vmatprep.subr.bf16.mxu0 0
  %2046 = vmatpush1.bf16.msra.mxu0 %v719
  %2047 = vmatprep.subr.bf16.mxu0 0
  %2048 = vmatpush2.bf16.msra.mxu0 %v734
  %2049 = vmatprep.subr.bf16.mxu0 0
  %2050 = vmatpush2.bf16.msra.mxu0 %v733
  %2051 = vmatprep.subr.bf16.mxu0 0
  %2052 = vmatpush2.bf16.msra.mxu0 %v732
  %2053 = vmatprep.subr.bf16.mxu0 0
  %2054 = vmatpush2.bf16.msra.mxu0 %v731
  %2055 = vmatprep.subr.bf16.mxu0 0
  %2056 = vmatpush2.bf16.msra.mxu0 %v730
  %2057 = vmatprep.subr.bf16.mxu0 0
  %2058 = vmatpush2.bf16.msra.mxu0 %v729
  %2059 = vmatprep.subr.bf16.mxu0 0
  %2060 = vmatpush2.bf16.msra.mxu0 %v728
  %2061 = vmatprep.subr.bf16.mxu0 0
  %2062 = vmatpush2.bf16.msra.mxu0 %v727
  %2063 = vmatprep.mubr.bf16.mxu0 %v2006
  %2064 = vmatmul.mubr.bf16.gmra.mxu0 %v2005
  %v2065 = vpop.f32.mrf.mxu0
  %v2066 = vadd.f32 0.0, %v2065
  %v2067 = vpop.f32.mrf.mxu0
  %v2068 = vpop.f32.mrf.mxu0
  %v2069 = vadd.f32 0.0, %v2068
  %v2070 = vpop.f32.mrf.mxu0
  %2071 = vdwg.mxu0
  %2072 = vmatprep.subr.bf16.mxu0 0
  %2073 = vmatpush1.bf16.msra.mxu0 %v742
  %2074 = vmatprep.subr.bf16.mxu0 0
  %2075 = vmatpush1.bf16.msra.mxu0 %v741
  %2076 = vmatprep.subr.bf16.mxu0 0
  %2077 = vmatpush1.bf16.msra.mxu0 %v740
  %2078 = vmatprep.subr.bf16.mxu0 0
  %2079 = vmatpush1.bf16.msra.mxu0 %v739
  %2080 = vmatprep.subr.bf16.mxu0 0
  %2081 = vmatpush1.bf16.msra.mxu0 %v738
  %2082 = vmatprep.subr.bf16.mxu0 0
  %2083 = vmatpush1.bf16.msra.mxu0 %v737
  %2084 = vmatprep.subr.bf16.mxu0 0
  %2085 = vmatpush1.bf16.msra.mxu0 %v736
  %2086 = vmatprep.subr.bf16.mxu0 0
  %2087 = vmatpush1.bf16.msra.mxu0 %v735
  %2088 = vmatprep.subr.bf16.mxu0 0
  %2089 = vmatpush2.bf16.msra.mxu0 %v750
  %2090 = vmatprep.subr.bf16.mxu0 0
  %2091 = vmatpush2.bf16.msra.mxu0 %v749
  %2092 = vmatprep.subr.bf16.mxu0 0
  %2093 = vmatpush2.bf16.msra.mxu0 %v748
  %2094 = vmatprep.subr.bf16.mxu0 0
  %2095 = vmatpush2.bf16.msra.mxu0 %v747
  %2096 = vmatprep.subr.bf16.mxu0 0
  %2097 = vmatpush2.bf16.msra.mxu0 %v746
  %2098 = vmatprep.subr.bf16.mxu0 0
  %2099 = vmatpush2.bf16.msra.mxu0 %v745
  %2100 = vmatprep.subr.bf16.mxu0 0
  %2101 = vmatpush2.bf16.msra.mxu0 %v744
  %2102 = vmatprep.subr.bf16.mxu0 0
  %2103 = vmatpush2.bf16.msra.mxu0 %v743
  %2104 = vmatprep.mubr.bf16.mxu0 %v2008
  %2105 = vmatmul.mubr.bf16.gmra.mxu0 %v2007
  %v2106 = vpop.f32.mrf.mxu0
  %v2107 = vadd.f32 %v2066, %v2106
  %v2108 = vpop.f32.mrf.mxu0
  %v2109 = vpop.f32.mrf.mxu0
  %v2110 = vadd.f32 %v2069, %v2109
  %v2111 = vpop.f32.mrf.mxu0
  %2112 = vdwg.mxu0
  %2113 = vmatprep.subr.bf16.mxu0 0
  %2114 = vmatpush1.bf16.msra.mxu0 %v758
  %2115 = vmatprep.subr.bf16.mxu0 0
  %2116 = vmatpush1.bf16.msra.mxu0 %v757
  %2117 = vmatprep.subr.bf16.mxu0 0
  %2118 = vmatpush1.bf16.msra.mxu0 %v756
  %2119 = vmatprep.subr.bf16.mxu0 0
  %2120 = vmatpush1.bf16.msra.mxu0 %v755
  %2121 = vmatprep.subr.bf16.mxu0 0
  %2122 = vmatpush1.bf16.msra.mxu0 %v754
  %2123 = vmatprep.subr.bf16.mxu0 0
  %2124 = vmatpush1.bf16.msra.mxu0 %v753
  %2125 = vmatprep.subr.bf16.mxu0 0
  %2126 = vmatpush1.bf16.msra.mxu0 %v752
  %2127 = vmatprep.subr.bf16.mxu0 0
  %2128 = vmatpush1.bf16.msra.mxu0 %v751
  %2129 = vmatprep.subr.bf16.mxu0 0
  %2130 = vmatpush2.bf16.msra.mxu0 %v766
  %2131 = vmatprep.subr.bf16.mxu0 0
  %2132 = vmatpush2.bf16.msra.mxu0 %v765
  %2133 = vmatprep.subr.bf16.mxu0 0
  %2134 = vmatpush2.bf16.msra.mxu0 %v764
  %2135 = vmatprep.subr.bf16.mxu0 0
  %2136 = vmatpush2.bf16.msra.mxu0 %v763
  %2137 = vmatprep.subr.bf16.mxu0 0
  %2138 = vmatpush2.bf16.msra.mxu0 %v762
  %2139 = vmatprep.subr.bf16.mxu0 0
  %2140 = vmatpush2.bf16.msra.mxu0 %v761
  %2141 = vmatprep.subr.bf16.mxu0 0
  %2142 = vmatpush2.bf16.msra.mxu0 %v760
  %2143 = vmatprep.subr.bf16.mxu0 0
  %2144 = vmatpush2.bf16.msra.mxu0 %v759
  %2145 = vmatprep.mubr.bf16.mxu0 %v2010
  %2146 = vmatmul.mubr.bf16.gmra.mxu0 %v2009
  %v2147 = vpop.f32.mrf.mxu0
  %v2148 = vadd.f32 %v2107, %v2147
  %v2149 = vpop.f32.mrf.mxu0
  %v2150 = vpop.f32.mrf.mxu0
  %v2151 = vadd.f32 %v2110, %v2150
  %v2152 = vpop.f32.mrf.mxu0
  %2153 = vdwg.mxu0
  %2154 = vmatprep.subr.bf16.mxu0 0
  %2155 = vmatpush1.bf16.msra.mxu0 %v774
  %2156 = vmatprep.subr.bf16.mxu0 0
  %2157 = vmatpush1.bf16.msra.mxu0 %v773
  %2158 = vmatprep.subr.bf16.mxu0 0
  %2159 = vmatpush1.bf16.msra.mxu0 %v772
  %2160 = vmatprep.subr.bf16.mxu0 0
  %2161 = vmatpush1.bf16.msra.mxu0 %v771
  %2162 = vmatprep.subr.bf16.mxu0 0
  %2163 = vmatpush1.bf16.msra.mxu0 %v770
  %2164 = vmatprep.subr.bf16.mxu0 0
  %2165 = vmatpush1.bf16.msra.mxu0 %v769
  %2166 = vmatprep.subr.bf16.mxu0 0
  %2167 = vmatpush1.bf16.msra.mxu0 %v768
  %2168 = vmatprep.subr.bf16.mxu0 0
  %2169 = vmatpush1.bf16.msra.mxu0 %v767
  %2170 = vmatprep.subr.bf16.mxu0 0
  %2171 = vmatpush2.bf16.msra.mxu0 %v782
  %2172 = vmatprep.subr.bf16.mxu0 0
  %2173 = vmatpush2.bf16.msra.mxu0 %v781
  %2174 = vmatprep.subr.bf16.mxu0 0
  %2175 = vmatpush2.bf16.msra.mxu0 %v780
  %2176 = vmatprep.subr.bf16.mxu0 0
  %2177 = vmatpush2.bf16.msra.mxu0 %v779
  %2178 = vmatprep.subr.bf16.mxu0 0
  %2179 = vmatpush2.bf16.msra.mxu0 %v778
  %2180 = vmatprep.subr.bf16.mxu0 0
  %2181 = vmatpush2.bf16.msra.mxu0 %v777
  %2182 = vmatprep.subr.bf16.mxu0 0
  %2183 = vmatpush2.bf16.msra.mxu0 %v776
  %2184 = vmatprep.subr.bf16.mxu0 0
  %2185 = vmatpush2.bf16.msra.mxu0 %v775
  %2186 = vmatprep.mubr.bf16.mxu0 %v2012
  %2187 = vmatmul.mubr.bf16.gmra.mxu0 %v2011
  %v2188 = vpop.f32.mrf.mxu0
  %v2189 = vadd.f32 %v2148, %v2188
  %v2190 = vpop.f32.mrf.mxu0
  %v2191 = vpop.f32.mrf.mxu0
  %v2192 = vadd.f32 %v2151, %v2191
  %v2193 = vpop.f32.mrf.mxu0
  %2194 = vdwg.mxu0
  %2195 = vmatprep.subr.bf16.mxu0 0
  %2196 = vmatpush1.bf16.msra.mxu0 %v790
  %2197 = vmatprep.subr.bf16.mxu0 0
  %2198 = vmatpush1.bf16.msra.mxu0 %v789
  %2199 = vmatprep.subr.bf16.mxu0 0
  %2200 = vmatpush1.bf16.msra.mxu0 %v788
  %2201 = vmatprep.subr.bf16.mxu0 0
  %2202 = vmatpush1.bf16.msra.mxu0 %v787
  %2203 = vmatprep.subr.bf16.mxu0 0
  %2204 = vmatpush1.bf16.msra.mxu0 %v786
  %2205 = vmatprep.subr.bf16.mxu0 0
  %2206 = vmatpush1.bf16.msra.mxu0 %v785
  %2207 = vmatprep.subr.bf16.mxu0 0
  %2208 = vmatpush1.bf16.msra.mxu0 %v784
  %2209 = vmatprep.subr.bf16.mxu0 0
  %2210 = vmatpush1.bf16.msra.mxu0 %v783
  %2211 = vmatprep.subr.bf16.mxu0 0
  %2212 = vmatpush2.bf16.msra.mxu0 %v798
  %2213 = vmatprep.subr.bf16.mxu0 0
  %2214 = vmatpush2.bf16.msra.mxu0 %v797
  %2215 = vmatprep.subr.bf16.mxu0 0
  %2216 = vmatpush2.bf16.msra.mxu0 %v796
  %2217 = vmatprep.subr.bf16.mxu0 0
  %2218 = vmatpush2.bf16.msra.mxu0 %v795
  %2219 = vmatprep.subr.bf16.mxu0 0
  %2220 = vmatpush2.bf16.msra.mxu0 %v794
  %2221 = vmatprep.subr.bf16.mxu0 0
  %2222 = vmatpush2.bf16.msra.mxu0 %v793
  %2223 = vmatprep.subr.bf16.mxu0 0
  %2224 = vmatpush2.bf16.msra.mxu0 %v792
  %2225 = vmatprep.subr.bf16.mxu0 0
  %2226 = vmatpush2.bf16.msra.mxu0 %v791
  %2227 = vmatprep.mubr.bf16.mxu0 %v2014
  %2228 = vmatmul.mubr.bf16.gmra.mxu0 %v2013
  %v2229 = vpop.f32.mrf.mxu0
  %v2230 = vadd.f32 %v2189, %v2229
  %v2231 = vpop.f32.mrf.mxu0
  %v2232 = vpop.f32.mrf.mxu0
  %v2233 = vadd.f32 %v2192, %v2232
  %v2234 = vpop.f32.mrf.mxu0
  %2235 = vdwg.mxu0
  %2236 = vmatprep.subr.bf16.mxu0 0
  %2237 = vmatpush1.bf16.msra.mxu0 %v806
  %2238 = vmatprep.subr.bf16.mxu0 0
  %2239 = vmatpush1.bf16.msra.mxu0 %v805
  %2240 = vmatprep.subr.bf16.mxu0 0
  %2241 = vmatpush1.bf16.msra.mxu0 %v804
  %2242 = vmatprep.subr.bf16.mxu0 0
  %2243 = vmatpush1.bf16.msra.mxu0 %v803
  %2244 = vmatprep.subr.bf16.mxu0 0
  %2245 = vmatpush1.bf16.msra.mxu0 %v802
  %2246 = vmatprep.subr.bf16.mxu0 0
  %2247 = vmatpush1.bf16.msra.mxu0 %v801
  %2248 = vmatprep.subr.bf16.mxu0 0
  %2249 = vmatpush1.bf16.msra.mxu0 %v800
  %2250 = vmatprep.subr.bf16.mxu0 0
  %2251 = vmatpush1.bf16.msra.mxu0 %v799
  %2252 = vmatprep.subr.bf16.mxu0 0
  %2253 = vmatpush2.bf16.msra.mxu0 %v814
  %2254 = vmatprep.subr.bf16.mxu0 0
  %2255 = vmatpush2.bf16.msra.mxu0 %v813
  %2256 = vmatprep.subr.bf16.mxu0 0
  %2257 = vmatpush2.bf16.msra.mxu0 %v812
  %2258 = vmatprep.subr.bf16.mxu0 0
  %2259 = vmatpush2.bf16.msra.mxu0 %v811
  %2260 = vmatprep.subr.bf16.mxu0 0
  %2261 = vmatpush2.bf16.msra.mxu0 %v810
  %2262 = vmatprep.subr.bf16.mxu0 0
  %2263 = vmatpush2.bf16.msra.mxu0 %v809
  %2264 = vmatprep.subr.bf16.mxu0 0
  %2265 = vmatpush2.bf16.msra.mxu0 %v808
  %2266 = vmatprep.subr.bf16.mxu0 0
  %2267 = vmatpush2.bf16.msra.mxu0 %v807
  %2268 = vmatprep.mubr.bf16.mxu0 %v2016
  %2269 = vmatmul.mubr.bf16.gmra.mxu0 %v2015
  %v2270 = vpop.f32.mrf.mxu0
  %v2271 = vadd.f32 %v2230, %v2270
  %v2272 = vpop.f32.mrf.mxu0
  %v2273 = vpop.f32.mrf.mxu0
  %v2274 = vadd.f32 %v2233, %v2273
  %v2275 = vpop.f32.mrf.mxu0
  %2276 = vdwg.mxu0
  %2277 = vmatprep.subr.bf16.mxu0 0
  %2278 = vmatpush1.bf16.msra.mxu0 %v822
  %2279 = vmatprep.subr.bf16.mxu0 0
  %2280 = vmatpush1.bf16.msra.mxu0 %v821
  %2281 = vmatprep.subr.bf16.mxu0 0
  %2282 = vmatpush1.bf16.msra.mxu0 %v820
  %2283 = vmatprep.subr.bf16.mxu0 0
  %2284 = vmatpush1.bf16.msra.mxu0 %v819
  %2285 = vmatprep.subr.bf16.mxu0 0
  %2286 = vmatpush1.bf16.msra.mxu0 %v818
  %2287 = vmatprep.subr.bf16.mxu0 0
  %2288 = vmatpush1.bf16.msra.mxu0 %v817
  %2289 = vmatprep.subr.bf16.mxu0 0
  %2290 = vmatpush1.bf16.msra.mxu0 %v816
  %2291 = vmatprep.subr.bf16.mxu0 0
  %2292 = vmatpush1.bf16.msra.mxu0 %v815
  %2293 = vmatprep.subr.bf16.mxu0 0
  %2294 = vmatpush2.bf16.msra.mxu0 0
  %2295 = vmatprep.subr.bf16.mxu0 0
  %2296 = vmatpush2.bf16.msra.mxu0 0
  %2297 = vmatprep.subr.bf16.mxu0 0
  %2298 = vmatpush2.bf16.msra.mxu0 0
  %2299 = vmatprep.subr.bf16.mxu0 0
  %2300 = vmatpush2.bf16.msra.mxu0 0
  %2301 = vmatprep.subr.bf16.mxu0 0
  %2302 = vmatpush2.bf16.msra.mxu0 0
  %2303 = vmatprep.subr.bf16.mxu0 0
  %2304 = vmatpush2.bf16.msra.mxu0 0
  %2305 = vmatprep.subr.bf16.mxu0 0
  %2306 = vmatpush2.bf16.msra.mxu0 0
  %2307 = vmatprep.subr.bf16.mxu0 0
  %2308 = vmatpush2.bf16.msra.mxu0 0
  %2309 = vmatprep.mubr.bf16.mxu0 0
  %2310 = vmatmul.mubr.bf16.gmra.mxu0 %v2017
  %v2311 = vpop.f32.mrf.mxu0
  %v2312 = vadd.f32 %v2271, %v2311
  %v2313 = vpop.f32.mrf.mxu0
  %v2314 = vpop.f32.mrf.mxu0
  %v2315 = vadd.f32 %v2274, %v2314
  %v2316 = vpop.f32.mrf.mxu0
  %2317 = vdwg.mxu0
  %v2318 = vmax.f32 %v1208, %v1576
  %v2319 = vmax.f32 %v1211, %v1579
  %v2320 = vmax.f32 %v1944, %v2312
  %v2321 = vmax.f32 %v1947, %v2315
  %v2322 = vmax.f32 %v2318, %v2320
  %v2323 = vmax.f32 %v2319, %v2321
  %v2324 = vld [vmem:[%s2] sm:$0x1]
  %v2326 = vlaneseq
  %v2327 = vshrl.u32 %v2326, 7
  %v2328 = vsub.s32 0, %v2327
  %v2329 = vrot.slane %v2324, %v2328
  %v2331 = vadd.f32 %v2322, %v2329
  %v2332 = vadd.f32 %v2323, %v2329
  %v2333 = vmax.f32 %v2331, 0.0
  %v2334 = vmax.f32 %v2332, 0.0
  %v2335 = vpack.c.bf16 %v2334, %v2333
  %v2337 = vunpack.c.l.b16 %v2335
  %v2338 = vunpack.c.h.b16 %v2335
  %v2339 = vpack.c.b16 %v2337, %v2337
  %v2340 = vpack.c.b16 %v2338, %v2338
  %2343 = vst [vmem:[%s3] sm:$0xf] %v2339
  %2344 = vst [vmem:[%s3 + $0x4] sm:$0xf] %v2340
  // Predicated region
  $region14: #{net_forward.6} parent=0 // pred_check
    _
  $region15: #{net_forward.6} parent=0 // pred_check_branch
    %2346 = sbr.rel (0) target = $region17
  $region16: #{net_forward.6} parent=0 // pred_region
    _
  $region17: #{net_forward.6} parent=0 // pred_fallthru
    _
  // Predicated region
  $region18: #{net_forward.6} parent=0 // pred_check
    _
  $region19: #{net_forward.6} parent=0 // pred_check_branch
    %2348 = sbr.rel (0) target = $region21
  $region20: #{net_forward.6} parent=0 // pred_region
    _
  $region21: #{net_forward.6} parent=0 // pred_fallthru
    _

// kernel: net_forward.7
$region0: #{net_forward.7}
  #allocation0 [shape = 'u32[]', space=smem, size = 0x4, offset = 0x4, fixed_abs, tag = 'smem constant byte address 0x4 - core index']
  #allocation1 [shape = 'u32[144,128]{1,0:T(1,128)}', space=vmem, size = 0x12000, scoped, tag = 'internal scratch']
  %s0 = inlined_call_operand.vmem [shape: bf16[16,512], index: 0, kind: input, shape index: {}]
  %s1 = inlined_call_operand.vmem [shape: bf16[512,512], index: 1, kind: input, shape index: {}]
  %s2 = inlined_call_operand.vmem [shape: f32[1,512], index: 2, kind: input, shape index: {}]
  %s3 = inlined_call_operand.vmem [shape: bf16[512,2], index: 3, kind: input, shape index: {}]
  %s4 = inlined_call_operand.vmem [shape: f32[1,2], index: 4, kind: input, shape index: {}]
  %s5 = inlined_call_operand.vmem [shape: f32[16,2], index: 5, kind: output, shape index: {}]
  %s6 = sld [smem:[#allocation0]]
  $region30: #{net_forward.7} parent=0
    _
  %s8 = ssub.s32 1, %s6
  %s9 = scalar_select 0, %s8, %s6
  // Predicated region
  $region2: #{net_forward.7} parent=0 // pred_check
    _
  $region3: #{net_forward.7} parent=0 // pred_check_branch
    %11 = sbr.rel (0) target = $region5
  $region4: #{net_forward.7} parent=0 // pred_region
    _
  $region5: #{net_forward.7} parent=0 // pred_fallthru
    _
  // Predicated region
  $region6: #{net_forward.7} parent=0 // pred_check
    _
  $region7: #{net_forward.7} parent=0 // pred_check_branch
    %13 = sbr.rel (0) target = $region9
  $region8: #{net_forward.7} parent=0 // pred_region
    _
  $region9: #{net_forward.7} parent=0 // pred_fallthru
    _
  // Predicated region
  $region10: #{net_forward.7} parent=0 // pred_check
    _
  $region11: #{net_forward.7} parent=0 // pred_check_branch
    %15 = sbr.rel (0) target = $region13
  $region12: #{net_forward.7} parent=0 // pred_region
    _
  $region13: #{net_forward.7} parent=0 // pred_fallthru
    _
  // Predicated region
  $region14: #{net_forward.7} parent=0 // pred_check
    _
  $region15: #{net_forward.7} parent=0 // pred_check_branch
    %17 = sbr.rel (0) target = $region17
  $region16: #{net_forward.7} parent=0 // pred_region
    _
  $region17: #{net_forward.7} parent=0 // pred_fallthru
    _
  // Predicated region
  $region18: #{net_forward.7} parent=0 // pred_check
    _
  $region19: #{net_forward.7} parent=0 // pred_check_branch
    %19 = sbr.rel (0) target = $region21
  $region20: #{net_forward.7} parent=0 // pred_region
    _
  $region21: #{net_forward.7} parent=0 // pred_fallthru
    _
  %v21 = vld [vmem:[%s0] sm:$0xff]
  %v22 = vld [vmem:[%s0 + $0x8] sm:$0xff]
  %v23 = vld [vmem:[%s0 + $0x10] sm:$0xff]
  %v24 = vld [vmem:[%s0 + $0x18] sm:$0xff]
  %v25 = vld [vmem:[%s1] sm:$0xff]
  %v26 = vld [vmem:[%s1 + $0x8] sm:$0xff]
  %v27 = vld [vmem:[%s1 + $0x10] sm:$0xff]
  %v28 = vld [vmem:[%s1 + $0x18] sm:$0xff]
  %v29 = vld [vmem:[%s1 + $0x20] sm:$0xff]
  %v30 = vld [vmem:[%s1 + $0x28] sm:$0xff]
  %v31 = vld [vmem:[%s1 + $0x30] sm:$0xff]
  %v32 = vld [vmem:[%s1 + $0x38] sm:$0xff]
  %v33 = vld [vmem:[%s1 + $0x40] sm:$0xff]
  %v34 = vld [vmem:[%s1 + $0x48] sm:$0xff]
  %v35 = vld [vmem:[%s1 + $0x50] sm:$0xff]
  %v36 = vld [vmem:[%s1 + $0x58] sm:$0xff]
  %v37 = vld [vmem:[%s1 + $0x60] sm:$0xff]
  %v38 = vld [vmem:[%s1 + $0x68] sm:$0xff]
  %v39 = vld [vmem:[%s1 + $0x70] sm:$0xff]
  %v40 = vld [vmem:[%s1 + $0x78] sm:$0xff]
  %v41 = vld [vmem:[%s1 + $0x80] sm:$0xff]
  %v42 = vld [vmem:[%s1 + $0x88] sm:$0xff]
  %v43 = vld [vmem:[%s1 + $0x90] sm:$0xff]
  %v44 = vld [vmem:[%s1 + $0x98] sm:$0xff]
  %v45 = vld [vmem:[%s1 + $0xa0] sm:$0xff]
  %v46 = vld [vmem:[%s1 + $0xa8] sm:$0xff]
  %v47 = vld [vmem:[%s1 + $0xb0] sm:$0xff]
  %v48 = vld [vmem:[%s1 + $0xb8] sm:$0xff]
  %v49 = vld [vmem:[%s1 + $0xc0] sm:$0xff]
  %v50 = vld [vmem:[%s1 + $0xc8] sm:$0xff]
  %v51 = vld [vmem:[%s1 + $0xd0] sm:$0xff]
  %v52 = vld [vmem:[%s1 + $0xd8] sm:$0xff]
  %v53 = vld [vmem:[%s1 + $0xe0] sm:$0xff]
  %v54 = vld [vmem:[%s1 + $0xe8] sm:$0xff]
  %v55 = vld [vmem:[%s1 + $0xf0] sm:$0xff]
  %v56 = vld [vmem:[%s1 + $0xf8] sm:$0xff]
  %v57 = vld [vmem:[%s1 + $0x100] sm:$0xff]
  %v58 = vld [vmem:[%s1 + $0x108] sm:$0xff]
  %v59 = vld [vmem:[%s1 + $0x110] sm:$0xff]
  %v60 = vld [vmem:[%s1 + $0x118] sm:$0xff]
  %v61 = vld [vmem:[%s1 + $0x120] sm:$0xff]
  %v62 = vld [vmem:[%s1 + $0x128] sm:$0xff]
  %v63 = vld [vmem:[%s1 + $0x130] sm:$0xff]
  %v64 = vld [vmem:[%s1 + $0x138] sm:$0xff]
  %v65 = vld [vmem:[%s1 + $0x140] sm:$0xff]
  %v66 = vld [vmem:[%s1 + $0x148] sm:$0xff]
  %v67 = vld [vmem:[%s1 + $0x150] sm:$0xff]
  %v68 = vld [vmem:[%s1 + $0x158] sm:$0xff]
  %v69 = vld [vmem:[%s1 + $0x160] sm:$0xff]
  %v70 = vld [vmem:[%s1 + $0x168] sm:$0xff]
  %v71 = vld [vmem:[%s1 + $0x170] sm:$0xff]
  %v72 = vld [vmem:[%s1 + $0x178] sm:$0xff]
  %v73 = vld [vmem:[%s1 + $0x180] sm:$0xff]
  %v74 = vld [vmem:[%s1 + $0x188] sm:$0xff]
  %v75 = vld [vmem:[%s1 + $0x190] sm:$0xff]
  %v76 = vld [vmem:[%s1 + $0x198] sm:$0xff]
  %v77 = vld [vmem:[%s1 + $0x1a0] sm:$0xff]
  %v78 = vld [vmem:[%s1 + $0x1a8] sm:$0xff]
  %v79 = vld [vmem:[%s1 + $0x1b0] sm:$0xff]
  %v80 = vld [vmem:[%s1 + $0x1b8] sm:$0xff]
  %v81 = vld [vmem:[%s1 + $0x1c0] sm:$0xff]
  %v82 = vld [vmem:[%s1 + $0x1c8] sm:$0xff]
  %v83 = vld [vmem:[%s1 + $0x1d0] sm:$0xff]
  %v84 = vld [vmem:[%s1 + $0x1d8] sm:$0xff]
  %v85 = vld [vmem:[%s1 + $0x1e0] sm:$0xff]
  %v86 = vld [vmem:[%s1 + $0x1e8] sm:$0xff]
  %v87 = vld [vmem:[%s1 + $0x1f0] sm:$0xff]
  %v88 = vld [vmem:[%s1 + $0x1f8] sm:$0xff]
  %v89 = vld [vmem:[%s1 + $0x200] sm:$0xff]
  %v90 = vld [vmem:[%s1 + $0x208] sm:$0xff]
  %v91 = vld [vmem:[%s1 + $0x210] sm:$0xff]
  %v92 = vld [vmem:[%s1 + $0x218] sm:$0xff]
  %v93 = vld [vmem:[%s1 + $0x220] sm:$0xff]
  %v94 = vld [vmem:[%s1 + $0x228] sm:$0xff]
  %v95 = vld [vmem:[%s1 + $0x230] sm:$0xff]
  %v96 = vld [vmem:[%s1 + $0x238] sm:$0xff]
  %v97 = vld [vmem:[%s1 + $0x240] sm:$0xff]
  %v98 = vld [vmem:[%s1 + $0x248] sm:$0xff]
  %v99 = vld [vmem:[%s1 + $0x250] sm:$0xff]
  %v100 = vld [vmem:[%s1 + $0x258] sm:$0xff]
  %v101 = vld [vmem:[%s1 + $0x260] sm:$0xff]
  %v102 = vld [vmem:[%s1 + $0x268] sm:$0xff]
  %v103 = vld [vmem:[%s1 + $0x270] sm:$0xff]
  %v104 = vld [vmem:[%s1 + $0x278] sm:$0xff]
  %v105 = vld [vmem:[%s1 + $0x280] sm:$0xff]
  %v106 = vld [vmem:[%s1 + $0x288] sm:$0xff]
  %v107 = vld [vmem:[%s1 + $0x290] sm:$0xff]
  %v108 = vld [vmem:[%s1 + $0x298] sm:$0xff]
  %v109 = vld [vmem:[%s1 + $0x2a0] sm:$0xff]
  %v110 = vld [vmem:[%s1 + $0x2a8] sm:$0xff]
  %v111 = vld [vmem:[%s1 + $0x2b0] sm:$0xff]
  %v112 = vld [vmem:[%s1 + $0x2b8] sm:$0xff]
  %v113 = vld [vmem:[%s1 + $0x2c0] sm:$0xff]
  %v114 = vld [vmem:[%s1 + $0x2c8] sm:$0xff]
  %v115 = vld [vmem:[%s1 + $0x2d0] sm:$0xff]
  %v116 = vld [vmem:[%s1 + $0x2d8] sm:$0xff]
  %v117 = vld [vmem:[%s1 + $0x2e0] sm:$0xff]
  %v118 = vld [vmem:[%s1 + $0x2e8] sm:$0xff]
  %v119 = vld [vmem:[%s1 + $0x2f0] sm:$0xff]
  %v120 = vld [vmem:[%s1 + $0x2f8] sm:$0xff]
  %v121 = vld [vmem:[%s1 + $0x300] sm:$0xff]
  %v122 = vld [vmem:[%s1 + $0x308] sm:$0xff]
  %v123 = vld [vmem:[%s1 + $0x310] sm:$0xff]
  %v124 = vld [vmem:[%s1 + $0x318] sm:$0xff]
  %v125 = vld [vmem:[%s1 + $0x320] sm:$0xff]
  %v126 = vld [vmem:[%s1 + $0x328] sm:$0xff]
  %v127 = vld [vmem:[%s1 + $0x330] sm:$0xff]
  %v128 = vld [vmem:[%s1 + $0x338] sm:$0xff]
  %v129 = vld [vmem:[%s1 + $0x340] sm:$0xff]
  %v130 = vld [vmem:[%s1 + $0x348] sm:$0xff]
  %v131 = vld [vmem:[%s1 + $0x350] sm:$0xff]
  %v132 = vld [vmem:[%s1 + $0x358] sm:$0xff]
  %v133 = vld [vmem:[%s1 + $0x360] sm:$0xff]
  %v134 = vld [vmem:[%s1 + $0x368] sm:$0xff]
  %v135 = vld [vmem:[%s1 + $0x370] sm:$0xff]
  %v136 = vld [vmem:[%s1 + $0x378] sm:$0xff]
  %v137 = vld [vmem:[%s1 + $0x380] sm:$0xff]
  %v138 = vld [vmem:[%s1 + $0x388] sm:$0xff]
  %v139 = vld [vmem:[%s1 + $0x390] sm:$0xff]
  %v140 = vld [vmem:[%s1 + $0x398] sm:$0xff]
  %v141 = vld [vmem:[%s1 + $0x3a0] sm:$0xff]
  %v142 = vld [vmem:[%s1 + $0x3a8] sm:$0xff]
  %v143 = vld [vmem:[%s1 + $0x3b0] sm:$0xff]
  %v144 = vld [vmem:[%s1 + $0x3b8] sm:$0xff]
  %v145 = vld [vmem:[%s1 + $0x3c0] sm:$0xff]
  %v146 = vld [vmem:[%s1 + $0x3c8] sm:$0xff]
  %v147 = vld [vmem:[%s1 + $0x3d0] sm:$0xff]
  %v148 = vld [vmem:[%s1 + $0x3d8] sm:$0xff]
  %v149 = vld [vmem:[%s1 + $0x3e0] sm:$0xff]
  %v150 = vld [vmem:[%s1 + $0x3e8] sm:$0xff]
  %v151 = vld [vmem:[%s1 + $0x3f0] sm:$0xff]
  %v152 = vld [vmem:[%s1 + $0x3f8] sm:$0xff]
  %v153 = vld [vmem:[%s2] sm:$0xf]
  %v155 = vlaneseq
  %v156 = vshrl.u32 %v155, 7
  %v157 = vsub.s32 0, %v156
  %v158 = vrot.slane %v153, %v157
  %v159 = vlaneseq
  %v160 = vshrl.u32 %v159, 7
  %v161 = vsub.s32 1, %v160
  %v162 = vrot.slane %v153, %v161
  %v163 = vlaneseq
  %v164 = vshrl.u32 %v163, 7
  %v165 = vsub.s32 2, %v164
  %v166 = vrot.slane %v153, %v165
  %v167 = vlaneseq
  %v168 = vshrl.u32 %v167, 7
  %v169 = vsub.s32 3, %v168
  %v170 = vrot.slane %v153, %v169
  %v179 = vunpack.c.l.b16 %v21
  %v180 = vunpack.c.h.b16 %v21
  %v181 = vunpack.c.l.b16 %v22
  %v182 = vunpack.c.h.b16 %v22
  %v183 = vunpack.c.l.b16 %v23
  %v184 = vunpack.c.h.b16 %v23
  %v185 = vunpack.c.l.b16 %v24
  %v186 = vunpack.c.h.b16 %v24
  %v187 = vpack.c.b16 %v183, %v179
  %v188 = vpack.c.b16 %v184, %v180
  %v189 = vpack.c.b16 %v185, %v181
  %v190 = vpack.c.b16 %v186, %v182
  %v323 = vunpack.c.l.b16 %v25
  %v324 = vunpack.c.h.b16 %v25
  %v325 = vunpack.c.l.b16 %v26
  %v326 = vunpack.c.h.b16 %v26
  %v327 = vunpack.c.l.b16 %v27
  %v328 = vunpack.c.h.b16 %v27
  %v329 = vunpack.c.l.b16 %v28
  %v330 = vunpack.c.h.b16 %v28
  %v331 = vunpack.c.l.b16 %v29
  %v332 = vunpack.c.h.b16 %v29
  %v333 = vunpack.c.l.b16 %v30
  %v334 = vunpack.c.h.b16 %v30
  %v335 = vunpack.c.l.b16 %v31
  %v336 = vunpack.c.h.b16 %v31
  %v337 = vunpack.c.l.b16 %v32
  %v338 = vunpack.c.h.b16 %v32
  %v339 = vunpack.c.l.b16 %v33
  %v340 = vunpack.c.h.b16 %v33
  %v341 = vunpack.c.l.b16 %v34
  %v342 = vunpack.c.h.b16 %v34
  %v343 = vunpack.c.l.b16 %v35
  %v344 = vunpack.c.h.b16 %v35
  %v345 = vunpack.c.l.b16 %v36
  %v346 = vunpack.c.h.b16 %v36
  %v347 = vunpack.c.l.b16 %v37
  %v348 = vunpack.c.h.b16 %v37
  %v349 = vunpack.c.l.b16 %v38
  %v350 = vunpack.c.h.b16 %v38
  %v351 = vunpack.c.l.b16 %v39
  %v352 = vunpack.c.h.b16 %v39
  %v353 = vunpack.c.l.b16 %v40
  %v354 = vunpack.c.h.b16 %v40
  %v355 = vunpack.c.l.b16 %v41
  %v356 = vunpack.c.h.b16 %v41
  %v357 = vunpack.c.l.b16 %v42
  %v358 = vunpack.c.h.b16 %v42
  %v359 = vunpack.c.l.b16 %v43
  %v360 = vunpack.c.h.b16 %v43
  %v361 = vunpack.c.l.b16 %v44
  %v362 = vunpack.c.h.b16 %v44
  %v363 = vunpack.c.l.b16 %v45
  %v364 = vunpack.c.h.b16 %v45
  %v365 = vunpack.c.l.b16 %v46
  %v366 = vunpack.c.h.b16 %v46
  %v367 = vunpack.c.l.b16 %v47
  %v368 = vunpack.c.h.b16 %v47
  %v369 = vunpack.c.l.b16 %v48
  %v370 = vunpack.c.h.b16 %v48
  %v371 = vunpack.c.l.b16 %v49
  %v372 = vunpack.c.h.b16 %v49
  %v373 = vunpack.c.l.b16 %v50
  %v374 = vunpack.c.h.b16 %v50
  %v375 = vunpack.c.l.b16 %v51
  %v376 = vunpack.c.h.b16 %v51
  %v377 = vunpack.c.l.b16 %v52
  %v378 = vunpack.c.h.b16 %v52
  %v379 = vunpack.c.l.b16 %v53
  %v380 = vunpack.c.h.b16 %v53
  %v381 = vunpack.c.l.b16 %v54
  %v382 = vunpack.c.h.b16 %v54
  %v383 = vunpack.c.l.b16 %v55
  %v384 = vunpack.c.h.b16 %v55
  %v385 = vunpack.c.l.b16 %v56
  %v386 = vunpack.c.h.b16 %v56
  %v387 = vunpack.c.l.b16 %v57
  %v388 = vunpack.c.h.b16 %v57
  %v389 = vunpack.c.l.b16 %v58
  %v390 = vunpack.c.h.b16 %v58
  %v391 = vunpack.c.l.b16 %v59
  %v392 = vunpack.c.h.b16 %v59
  %v393 = vunpack.c.l.b16 %v60
  %v394 = vunpack.c.h.b16 %v60
  %v395 = vunpack.c.l.b16 %v61
  %v396 = vunpack.c.h.b16 %v61
  %v397 = vunpack.c.l.b16 %v62
  %v398 = vunpack.c.h.b16 %v62
  %v399 = vunpack.c.l.b16 %v63
  %v400 = vunpack.c.h.b16 %v63
  %v401 = vunpack.c.l.b16 %v64
  %v402 = vunpack.c.h.b16 %v64
  %v403 = vunpack.c.l.b16 %v65
  %v404 = vunpack.c.h.b16 %v65
  %v405 = vunpack.c.l.b16 %v66
  %v406 = vunpack.c.h.b16 %v66
  %v407 = vunpack.c.l.b16 %v67
  %v408 = vunpack.c.h.b16 %v67
  %v409 = vunpack.c.l.b16 %v68
  %v410 = vunpack.c.h.b16 %v68
  %v411 = vunpack.c.l.b16 %v69
  %v412 = vunpack.c.h.b16 %v69
  %v413 = vunpack.c.l.b16 %v70
  %v414 = vunpack.c.h.b16 %v70
  %v415 = vunpack.c.l.b16 %v71
  %v416 = vunpack.c.h.b16 %v71
  %v417 = vunpack.c.l.b16 %v72
  %v418 = vunpack.c.h.b16 %v72
  %v419 = vunpack.c.l.b16 %v73
  %v420 = vunpack.c.h.b16 %v73
  %v421 = vunpack.c.l.b16 %v74
  %v422 = vunpack.c.h.b16 %v74
  %v423 = vunpack.c.l.b16 %v75
  %v424 = vunpack.c.h.b16 %v75
  %v425 = vunpack.c.l.b16 %v76
  %v426 = vunpack.c.h.b16 %v76
  %v427 = vunpack.c.l.b16 %v77
  %v428 = vunpack.c.h.b16 %v77
  %v429 = vunpack.c.l.b16 %v78
  %v430 = vunpack.c.h.b16 %v78
  %v431 = vunpack.c.l.b16 %v79
  %v432 = vunpack.c.h.b16 %v79
  %v433 = vunpack.c.l.b16 %v80
  %v434 = vunpack.c.h.b16 %v80
  %v435 = vunpack.c.l.b16 %v81
  %v436 = vunpack.c.h.b16 %v81
  %v437 = vunpack.c.l.b16 %v82
  %v438 = vunpack.c.h.b16 %v82
  %v439 = vunpack.c.l.b16 %v83
  %v440 = vunpack.c.h.b16 %v83
  %v441 = vunpack.c.l.b16 %v84
  %v442 = vunpack.c.h.b16 %v84
  %v443 = vunpack.c.l.b16 %v85
  %v444 = vunpack.c.h.b16 %v85
  %v445 = vunpack.c.l.b16 %v86
  %v446 = vunpack.c.h.b16 %v86
  %v447 = vunpack.c.l.b16 %v87
  %v448 = vunpack.c.h.b16 %v87
  %v449 = vunpack.c.l.b16 %v88
  %v450 = vunpack.c.h.b16 %v88
  %v451 = vunpack.c.l.b16 %v89
  %v452 = vunpack.c.h.b16 %v89
  %v453 = vunpack.c.l.b16 %v90
  %v454 = vunpack.c.h.b16 %v90
  %v455 = vunpack.c.l.b16 %v91
  %v456 = vunpack.c.h.b16 %v91
  %v457 = vunpack.c.l.b16 %v92
  %v458 = vunpack.c.h.b16 %v92
  %v459 = vunpack.c.l.b16 %v93
  %v460 = vunpack.c.h.b16 %v93
  %v461 = vunpack.c.l.b16 %v94
  %v462 = vunpack.c.h.b16 %v94
  %v463 = vunpack.c.l.b16 %v95
  %v464 = vunpack.c.h.b16 %v95
  %v465 = vunpack.c.l.b16 %v96
  %v466 = vunpack.c.h.b16 %v96
  %v467 = vunpack.c.l.b16 %v97
  %v468 = vunpack.c.h.b16 %v97
  %v469 = vunpack.c.l.b16 %v98
  %v470 = vunpack.c.h.b16 %v98
  %v471 = vunpack.c.l.b16 %v99
  %v472 = vunpack.c.h.b16 %v99
  %v473 = vunpack.c.l.b16 %v100
  %v474 = vunpack.c.h.b16 %v100
  %v475 = vunpack.c.l.b16 %v101
  %v476 = vunpack.c.h.b16 %v101
  %v477 = vunpack.c.l.b16 %v102
  %v478 = vunpack.c.h.b16 %v102
  %v479 = vunpack.c.l.b16 %v103
  %v480 = vunpack.c.h.b16 %v103
  %v481 = vunpack.c.l.b16 %v104
  %v482 = vunpack.c.h.b16 %v104
  %v483 = vunpack.c.l.b16 %v105
  %v484 = vunpack.c.h.b16 %v105
  %v485 = vunpack.c.l.b16 %v106
  %v486 = vunpack.c.h.b16 %v106
  %v487 = vunpack.c.l.b16 %v107
  %v488 = vunpack.c.h.b16 %v107
  %v489 = vunpack.c.l.b16 %v108
  %v490 = vunpack.c.h.b16 %v108
  %v491 = vunpack.c.l.b16 %v109
  %v492 = vunpack.c.h.b16 %v109
  %v493 = vunpack.c.l.b16 %v110
  %v494 = vunpack.c.h.b16 %v110
  %v495 = vunpack.c.l.b16 %v111
  %v496 = vunpack.c.h.b16 %v111
  %v497 = vunpack.c.l.b16 %v112
  %v498 = vunpack.c.h.b16 %v112
  %v499 = vunpack.c.l.b16 %v113
  %v500 = vunpack.c.h.b16 %v113
  %v501 = vunpack.c.l.b16 %v114
  %v502 = vunpack.c.h.b16 %v114
  %v503 = vunpack.c.l.b16 %v115
  %v504 = vunpack.c.h.b16 %v115
  %v505 = vunpack.c.l.b16 %v116
  %v506 = vunpack.c.h.b16 %v116
  %v507 = vunpack.c.l.b16 %v117
  %v508 = vunpack.c.h.b16 %v117
  %v509 = vunpack.c.l.b16 %v118
  %v510 = vunpack.c.h.b16 %v118
  %v511 = vunpack.c.l.b16 %v119
  %v512 = vunpack.c.h.b16 %v119
  %v513 = vunpack.c.l.b16 %v120
  %v514 = vunpack.c.h.b16 %v120
  %v515 = vunpack.c.l.b16 %v121
  %v516 = vunpack.c.h.b16 %v121
  %v517 = vunpack.c.l.b16 %v122
  %v518 = vunpack.c.h.b16 %v122
  %v519 = vunpack.c.l.b16 %v123
  %v520 = vunpack.c.h.b16 %v123
  %v521 = vunpack.c.l.b16 %v124
  %v522 = vunpack.c.h.b16 %v124
  %v523 = vunpack.c.l.b16 %v125
  %v524 = vunpack.c.h.b16 %v125
  %v525 = vunpack.c.l.b16 %v126
  %v526 = vunpack.c.h.b16 %v126
  %v527 = vunpack.c.l.b16 %v127
  %v528 = vunpack.c.h.b16 %v127
  %v529 = vunpack.c.l.b16 %v128
  %v530 = vunpack.c.h.b16 %v128
  %v531 = vunpack.c.l.b16 %v129
  %v532 = vunpack.c.h.b16 %v129
  %v533 = vunpack.c.l.b16 %v130
  %v534 = vunpack.c.h.b16 %v130
  %v535 = vunpack.c.l.b16 %v131
  %v536 = vunpack.c.h.b16 %v131
  %v537 = vunpack.c.l.b16 %v132
  %v538 = vunpack.c.h.b16 %v132
  %v539 = vunpack.c.l.b16 %v133
  %v540 = vunpack.c.h.b16 %v133
  %v541 = vunpack.c.l.b16 %v134
  %v542 = vunpack.c.h.b16 %v134
  %v543 = vunpack.c.l.b16 %v135
  %v544 = vunpack.c.h.b16 %v135
  %v545 = vunpack.c.l.b16 %v136
  %v546 = vunpack.c.h.b16 %v136
  %v547 = vunpack.c.l.b16 %v137
  %v548 = vunpack.c.h.b16 %v137
  %v549 = vunpack.c.l.b16 %v138
  %v550 = vunpack.c.h.b16 %v138
  %v551 = vunpack.c.l.b16 %v139
  %v552 = vunpack.c.h.b16 %v139
  %v553 = vunpack.c.l.b16 %v140
  %v554 = vunpack.c.h.b16 %v140
  %v555 = vunpack.c.l.b16 %v141
  %v556 = vunpack.c.h.b16 %v141
  %v557 = vunpack.c.l.b16 %v142
  %v558 = vunpack.c.h.b16 %v142
  %v559 = vunpack.c.l.b16 %v143
  %v560 = vunpack.c.h.b16 %v143
  %v561 = vunpack.c.l.b16 %v144
  %v562 = vunpack.c.h.b16 %v144
  %v563 = vunpack.c.l.b16 %v145
  %v564 = vunpack.c.h.b16 %v145
  %v565 = vunpack.c.l.b16 %v146
  %v566 = vunpack.c.h.b16 %v146
  %v567 = vunpack.c.l.b16 %v147
  %v568 = vunpack.c.h.b16 %v147
  %v569 = vunpack.c.l.b16 %v148
  %v570 = vunpack.c.h.b16 %v148
  %v571 = vunpack.c.l.b16 %v149
  %v572 = vunpack.c.h.b16 %v149
  %v573 = vunpack.c.l.b16 %v150
  %v574 = vunpack.c.h.b16 %v150
  %v575 = vunpack.c.l.b16 %v151
  %v576 = vunpack.c.h.b16 %v151
  %v577 = vunpack.c.l.b16 %v152
  %v578 = vunpack.c.h.b16 %v152
  %v579 = vpack.c.b16 %v327, %v323
  %v580 = vpack.c.b16 %v328, %v324
  %v581 = vpack.c.b16 %v329, %v325
  %v582 = vpack.c.b16 %v330, %v326
  %v583 = vpack.c.b16 %v335, %v331
  %v584 = vpack.c.b16 %v336, %v332
  %v585 = vpack.c.b16 %v337, %v333
  %v586 = vpack.c.b16 %v338, %v334
  %v587 = vpack.c.b16 %v343, %v339
  %v588 = vpack.c.b16 %v344, %v340
  %v589 = vpack.c.b16 %v345, %v341
  %v590 = vpack.c.b16 %v346, %v342
  %v591 = vpack.c.b16 %v351, %v347
  %v592 = vpack.c.b16 %v352, %v348
  %v593 = vpack.c.b16 %v353, %v349
  %v594 = vpack.c.b16 %v354, %v350
  %v595 = vpack.c.b16 %v359, %v355
  %v596 = vpack.c.b16 %v360, %v356
  %v597 = vpack.c.b16 %v361, %v357
  %v598 = vpack.c.b16 %v362, %v358
  %v599 = vpack.c.b16 %v367, %v363
  %v600 = vpack.c.b16 %v368, %v364
  %v601 = vpack.c.b16 %v369, %v365
  %v602 = vpack.c.b16 %v370, %v366
  %v603 = vpack.c.b16 %v375, %v371
  %v604 = vpack.c.b16 %v376, %v372
  %v605 = vpack.c.b16 %v377, %v373
  %v606 = vpack.c.b16 %v378, %v374
  %v607 = vpack.c.b16 %v383, %v379
  %v608 = vpack.c.b16 %v384, %v380
  %v609 = vpack.c.b16 %v385, %v381
  %v610 = vpack.c.b16 %v386, %v382
  %v611 = vpack.c.b16 %v391, %v387
  %v612 = vpack.c.b16 %v392, %v388
  %v613 = vpack.c.b16 %v393, %v389
  %v614 = vpack.c.b16 %v394, %v390
  %v615 = vpack.c.b16 %v399, %v395
  %v616 = vpack.c.b16 %v400, %v396
  %v617 = vpack.c.b16 %v401, %v397
  %v618 = vpack.c.b16 %v402, %v398
  %v619 = vpack.c.b16 %v407, %v403
  %v620 = vpack.c.b16 %v408, %v404
  %v621 = vpack.c.b16 %v409, %v405
  %v622 = vpack.c.b16 %v410, %v406
  %v623 = vpack.c.b16 %v415, %v411
  %v624 = vpack.c.b16 %v416, %v412
  %v625 = vpack.c.b16 %v417, %v413
  %v626 = vpack.c.b16 %v418, %v414
  %v627 = vpack.c.b16 %v423, %v419
  %v628 = vpack.c.b16 %v424, %v420
  %v629 = vpack.c.b16 %v425, %v421
  %v630 = vpack.c.b16 %v426, %v422
  %v631 = vpack.c.b16 %v431, %v427
  %v632 = vpack.c.b16 %v432, %v428
  %v633 = vpack.c.b16 %v433, %v429
  %v634 = vpack.c.b16 %v434, %v430
  %v635 = vpack.c.b16 %v439, %v435
  %v636 = vpack.c.b16 %v440, %v436
  %v637 = vpack.c.b16 %v441, %v437
  %v638 = vpack.c.b16 %v442, %v438
  %v639 = vpack.c.b16 %v447, %v443
  %v640 = vpack.c.b16 %v448, %v444
  %v641 = vpack.c.b16 %v449, %v445
  %v642 = vpack.c.b16 %v450, %v446
  %v643 = vpack.c.b16 %v455, %v451
  %v644 = vpack.c.b16 %v456, %v452
  %v645 = vpack.c.b16 %v457, %v453
  %v646 = vpack.c.b16 %v458, %v454
  %v647 = vpack.c.b16 %v463, %v459
  %v648 = vpack.c.b16 %v464, %v460
  %v649 = vpack.c.b16 %v465, %v461
  %v650 = vpack.c.b16 %v466, %v462
  %v651 = vpack.c.b16 %v471, %v467
  %v652 = vpack.c.b16 %v472, %v468
  %v653 = vpack.c.b16 %v473, %v469
  %v654 = vpack.c.b16 %v474, %v470
  %v655 = vpack.c.b16 %v479, %v475
  %v656 = vpack.c.b16 %v480, %v476
  %v657 = vpack.c.b16 %v481, %v477
  %v658 = vpack.c.b16 %v482, %v478
  %v659 = vpack.c.b16 %v487, %v483
  %v660 = vpack.c.b16 %v488, %v484
  %v661 = vpack.c.b16 %v489, %v485
  %v662 = vpack.c.b16 %v490, %v486
  %v663 = vpack.c.b16 %v495, %v491
  %v664 = vpack.c.b16 %v496, %v492
  %v665 = vpack.c.b16 %v497, %v493
  %v666 = vpack.c.b16 %v498, %v494
  %v667 = vpack.c.b16 %v503, %v499
  %v668 = vpack.c.b16 %v504, %v500
  %v669 = vpack.c.b16 %v505, %v501
  %v670 = vpack.c.b16 %v506, %v502
  %v671 = vpack.c.b16 %v511, %v507
  %v672 = vpack.c.b16 %v512, %v508
  %v673 = vpack.c.b16 %v513, %v509
  %v674 = vpack.c.b16 %v514, %v510
  %v675 = vpack.c.b16 %v519, %v515
  %v676 = vpack.c.b16 %v520, %v516
  %v677 = vpack.c.b16 %v521, %v517
  %v678 = vpack.c.b16 %v522, %v518
  %v679 = vpack.c.b16 %v527, %v523
  %v680 = vpack.c.b16 %v528, %v524
  %v681 = vpack.c.b16 %v529, %v525
  %v682 = vpack.c.b16 %v530, %v526
  %v683 = vpack.c.b16 %v535, %v531
  %v684 = vpack.c.b16 %v536, %v532
  %v685 = vpack.c.b16 %v537, %v533
  %v686 = vpack.c.b16 %v538, %v534
  %v687 = vpack.c.b16 %v543, %v539
  %v688 = vpack.c.b16 %v544, %v540
  %v689 = vpack.c.b16 %v545, %v541
  %v690 = vpack.c.b16 %v546, %v542
  %v691 = vpack.c.b16 %v551, %v547
  %v692 = vpack.c.b16 %v552, %v548
  %v693 = vpack.c.b16 %v553, %v549
  %v694 = vpack.c.b16 %v554, %v550
  %v695 = vpack.c.b16 %v559, %v555
  %v696 = vpack.c.b16 %v560, %v556
  %v697 = vpack.c.b16 %v561, %v557
  %v698 = vpack.c.b16 %v562, %v558
  %v699 = vpack.c.b16 %v567, %v563
  %v700 = vpack.c.b16 %v568, %v564
  %v701 = vpack.c.b16 %v569, %v565
  %v702 = vpack.c.b16 %v570, %v566
  %v703 = vpack.c.b16 %v575, %v571
  %v704 = vpack.c.b16 %v576, %v572
  %v705 = vpack.c.b16 %v577, %v573
  %v706 = vpack.c.b16 %v578, %v574
  %835 = vmatprep.subr.bf16.mxu0 %v608
  %836 = vmatpush1.bf16.msra.mxu0 %v607
  %837 = vmatprep.subr.bf16.mxu0 %v604
  %838 = vmatpush1.bf16.msra.mxu0 %v603
  %839 = vmatprep.subr.bf16.mxu0 %v600
  %840 = vmatpush1.bf16.msra.mxu0 %v599
  %841 = vmatprep.subr.bf16.mxu0 %v596
  %842 = vmatpush1.bf16.msra.mxu0 %v595
  %843 = vmatprep.subr.bf16.mxu0 %v592
  %844 = vmatpush1.bf16.msra.mxu0 %v591
  %845 = vmatprep.subr.bf16.mxu0 %v588
  %846 = vmatpush1.bf16.msra.mxu0 %v587
  %847 = vmatprep.subr.bf16.mxu0 %v584
  %848 = vmatpush1.bf16.msra.mxu0 %v583
  %849 = vmatprep.subr.bf16.mxu0 %v580
  %850 = vmatpush1.bf16.msra.mxu0 %v579
  %851 = vmatprep.subr.bf16.mxu0 %v640
  %852 = vmatpush2.bf16.msra.mxu0 %v639
  %853 = vmatprep.subr.bf16.mxu0 %v636
  %854 = vmatpush2.bf16.msra.mxu0 %v635
  %855 = vmatprep.subr.bf16.mxu0 %v632
  %856 = vmatpush2.bf16.msra.mxu0 %v631
  %857 = vmatprep.subr.bf16.mxu0 %v628
  %858 = vmatpush2.bf16.msra.mxu0 %v627
  %859 = vmatprep.subr.bf16.mxu0 %v624
  %860 = vmatpush2.bf16.msra.mxu0 %v623
  %861 = vmatprep.subr.bf16.mxu0 %v620
  %862 = vmatpush2.bf16.msra.mxu0 %v619
  %863 = vmatprep.subr.bf16.mxu0 %v616
  %864 = vmatpush2.bf16.msra.mxu0 %v615
  %865 = vmatprep.subr.bf16.mxu0 %v612
  %866 = vmatpush2.bf16.msra.mxu0 %v611
  %867 = vmatprep.mubr.bf16.mxu0 %v188
  %868 = vmatmul.mubr.bf16.gmra.mxu0 %v187
  %v869 = vpop.f32.mrf.mxu0
  %v870 = vadd.f32 %v158, %v869
  %v871 = vpop.f32.mrf.mxu0
  %v872 = vadd.f32 %v162, %v871
  %v873 = vpop.f32.mrf.mxu0
  %v874 = vadd.f32 %v158, %v873
  %v875 = vpop.f32.mrf.mxu0
  %v876 = vadd.f32 %v162, %v875
  %877 = vdwg.mxu0
  %878 = vmatprep.subr.bf16.mxu0 %v672
  %879 = vmatpush1.bf16.msra.mxu0 %v671
  %880 = vmatprep.subr.bf16.mxu0 %v668
  %881 = vmatpush1.bf16.msra.mxu0 %v667
  %882 = vmatprep.subr.bf16.mxu0 %v664
  %883 = vmatpush1.bf16.msra.mxu0 %v663
  %884 = vmatprep.subr.bf16.mxu0 %v660
  %885 = vmatpush1.bf16.msra.mxu0 %v659
  %886 = vmatprep.subr.bf16.mxu0 %v656
  %887 = vmatpush1.bf16.msra.mxu0 %v655
  %888 = vmatprep.subr.bf16.mxu0 %v652
  %889 = vmatpush1.bf16.msra.mxu0 %v651
  %890 = vmatprep.subr.bf16.mxu0 %v648
  %891 = vmatpush1.bf16.msra.mxu0 %v647
  %892 = vmatprep.subr.bf16.mxu0 %v644
  %893 = vmatpush1.bf16.msra.mxu0 %v643
  %894 = vmatprep.subr.bf16.mxu0 %v704
  %895 = vmatpush2.bf16.msra.mxu0 %v703
  %896 = vmatprep.subr.bf16.mxu0 %v700
  %897 = vmatpush2.bf16.msra.mxu0 %v699
  %898 = vmatprep.subr.bf16.mxu0 %v696
  %899 = vmatpush2.bf16.msra.mxu0 %v695
  %900 = vmatprep.subr.bf16.mxu0 %v692
  %901 = vmatpush2.bf16.msra.mxu0 %v691
  %902 = vmatprep.subr.bf16.mxu0 %v688
  %903 = vmatpush2.bf16.msra.mxu0 %v687
  %904 = vmatprep.subr.bf16.mxu0 %v684
  %905 = vmatpush2.bf16.msra.mxu0 %v683
  %906 = vmatprep.subr.bf16.mxu0 %v680
  %907 = vmatpush2.bf16.msra.mxu0 %v679
  %908 = vmatprep.subr.bf16.mxu0 %v676
  %909 = vmatpush2.bf16.msra.mxu0 %v675
  %910 = vmatprep.mubr.bf16.mxu0 %v190
  %911 = vmatmul.mubr.bf16.gmra.mxu0 %v189
  %v912 = vpop.f32.mrf.mxu0
  %v913 = vadd.f32 %v870, %v912
  %v914 = vpop.f32.mrf.mxu0
  %v915 = vadd.f32 %v872, %v914
  %v916 = vpop.f32.mrf.mxu0
  %v917 = vadd.f32 %v874, %v916
  %v918 = vpop.f32.mrf.mxu0
  %v919 = vadd.f32 %v876, %v918
  %920 = vdwg.mxu0
  %921 = vmatprep.subr.bf16.mxu0 %v610
  %922 = vmatpush1.bf16.msra.mxu0 %v609
  %923 = vmatprep.subr.bf16.mxu0 %v606
  %924 = vmatpush1.bf16.msra.mxu0 %v605
  %925 = vmatprep.subr.bf16.mxu0 %v602
  %926 = vmatpush1.bf16.msra.mxu0 %v601
  %927 = vmatprep.subr.bf16.mxu0 %v598
  %928 = vmatpush1.bf16.msra.mxu0 %v597
  %929 = vmatprep.subr.bf16.mxu0 %v594
  %930 = vmatpush1.bf16.msra.mxu0 %v593
  %931 = vmatprep.subr.bf16.mxu0 %v590
  %932 = vmatpush1.bf16.msra.mxu0 %v589
  %933 = vmatprep.subr.bf16.mxu0 %v586
  %934 = vmatpush1.bf16.msra.mxu0 %v585
  %935 = vmatprep.subr.bf16.mxu0 %v582
  %936 = vmatpush1.bf16.msra.mxu0 %v581
  %937 = vmatprep.subr.bf16.mxu0 %v642
  %938 = vmatpush2.bf16.msra.mxu0 %v641
  %939 = vmatprep.subr.bf16.mxu0 %v638
  %940 = vmatpush2.bf16.msra.mxu0 %v637
  %941 = vmatprep.subr.bf16.mxu0 %v634
  %942 = vmatpush2.bf16.msra.mxu0 %v633
  %943 = vmatprep.subr.bf16.mxu0 %v630
  %944 = vmatpush2.bf16.msra.mxu0 %v629
  %945 = vmatprep.subr.bf16.mxu0 %v626
  %946 = vmatpush2.bf16.msra.mxu0 %v625
  %947 = vmatprep.subr.bf16.mxu0 %v622
  %948 = vmatpush2.bf16.msra.mxu0 %v621
  %949 = vmatprep.subr.bf16.mxu0 %v618
  %950 = vmatpush2.bf16.msra.mxu0 %v617
  %951 = vmatprep.subr.bf16.mxu0 %v614
  %952 = vmatpush2.bf16.msra.mxu0 %v613
  %953 = vmatprep.mubr.bf16.mxu0 %v188
  %954 = vmatmul.mubr.bf16.gmra.mxu0 %v187
  %v955 = vpop.f32.mrf.mxu0
  %v956 = vadd.f32 %v166, %v955
  %v957 = vpop.f32.mrf.mxu0
  %v958 = vadd.f32 %v170, %v957
  %v959 = vpop.f32.mrf.mxu0
  %v960 = vadd.f32 %v166, %v959
  %v961 = vpop.f32.mrf.mxu0
  %v962 = vadd.f32 %v170, %v961
  %963 = vdwg.mxu0
  %964 = vmatprep.subr.bf16.mxu0 %v674
  %965 = vmatpush1.bf16.msra.mxu0 %v673
  %966 = vmatprep.subr.bf16.mxu0 %v670
  %967 = vmatpush1.bf16.msra.mxu0 %v669
  %968 = vmatprep.subr.bf16.mxu0 %v666
  %969 = vmatpush1.bf16.msra.mxu0 %v665
  %970 = vmatprep.subr.bf16.mxu0 %v662
  %971 = vmatpush1.bf16.msra.mxu0 %v661
  %972 = vmatprep.subr.bf16.mxu0 %v658
  %973 = vmatpush1.bf16.msra.mxu0 %v657
  %974 = vmatprep.subr.bf16.mxu0 %v654
  %975 = vmatpush1.bf16.msra.mxu0 %v653
  %976 = vmatprep.subr.bf16.mxu0 %v650
  %977 = vmatpush1.bf16.msra.mxu0 %v649
  %978 = vmatprep.subr.bf16.mxu0 %v646
  %979 = vmatpush1.bf16.msra.mxu0 %v645
  %980 = vmatprep.subr.bf16.mxu0 %v706
  %981 = vmatpush2.bf16.msra.mxu0 %v705
  %982 = vmatprep.subr.bf16.mxu0 %v702
  %983 = vmatpush2.bf16.msra.mxu0 %v701
  %984 = vmatprep.subr.bf16.mxu0 %v698
  %985 = vmatpush2.bf16.msra.mxu0 %v697
  %986 = vmatprep.subr.bf16.mxu0 %v694
  %987 = vmatpush2.bf16.msra.mxu0 %v693
  %988 = vmatprep.subr.bf16.mxu0 %v690
  %989 = vmatpush2.bf16.msra.mxu0 %v689
  %990 = vmatprep.subr.bf16.mxu0 %v686
  %991 = vmatpush2.bf16.msra.mxu0 %v685
  %992 = vmatprep.subr.bf16.mxu0 %v682
  %993 = vmatpush2.bf16.msra.mxu0 %v681
  %994 = vmatprep.subr.bf16.mxu0 %v678
  %995 = vmatpush2.bf16.msra.mxu0 %v677
  %996 = vmatprep.mubr.bf16.mxu0 %v190
  %997 = vmatmul.mubr.bf16.gmra.mxu0 %v189
  %v998 = vpop.f32.mrf.mxu0
  %v999 = vadd.f32 %v956, %v998
  %v1000 = vpop.f32.mrf.mxu0
  %v1001 = vadd.f32 %v958, %v1000
  %v1002 = vpop.f32.mrf.mxu0
  %v1003 = vadd.f32 %v960, %v1002
  %v1004 = vpop.f32.mrf.mxu0
  %v1005 = vadd.f32 %v962, %v1004
  %1006 = vdwg.mxu0
  %v1007 = vmax.f32 %v913, 0.0
  %v1008 = vmax.f32 %v915, 0.0
  %v1009 = vmax.f32 %v999, 0.0
  %v1010 = vmax.f32 %v1001, 0.0
  %v1011 = vmax.f32 %v917, 0.0
  %v1012 = vmax.f32 %v919, 0.0
  %v1013 = vmax.f32 %v1003, 0.0
  %v1014 = vmax.f32 %v1005, 0.0
  %v1015 = vpack.c.bf16 %v1011, %v1007
  %v1016 = vpack.c.bf16 %v1012, %v1008
  %v1017 = vpack.c.bf16 %v1013, %v1009
  %v1018 = vpack.c.bf16 %v1014, %v1010
  %v1019 = vld [vmem:[%s3] sm:$0xf]
  %v1020 = vld [vmem:[%s3 + $0x4] sm:$0xf]
  %v1021 = vld [vmem:[%s3 + $0x8] sm:$0xf]
  %v1022 = vld [vmem:[%s3 + $0xc] sm:$0xf]
  %v1023 = vld [vmem:[%s3 + $0x10] sm:$0xf]
  %v1024 = vld [vmem:[%s3 + $0x14] sm:$0xf]
  %v1025 = vld [vmem:[%s3 + $0x18] sm:$0xf]
  %v1026 = vld [vmem:[%s3 + $0x1c] sm:$0xf]
  %v1027 = vld [vmem:[%s3 + $0x20] sm:$0xf]
  %v1028 = vld [vmem:[%s3 + $0x24] sm:$0xf]
  %v1029 = vld [vmem:[%s3 + $0x28] sm:$0xf]
  %v1030 = vld [vmem:[%s3 + $0x2c] sm:$0xf]
  %v1031 = vld [vmem:[%s3 + $0x30] sm:$0xf]
  %v1032 = vld [vmem:[%s3 + $0x34] sm:$0xf]
  %v1033 = vld [vmem:[%s3 + $0x38] sm:$0xf]
  %v1034 = vld [vmem:[%s3 + $0x3c] sm:$0xf]
  %v1035 = vld [vmem:[%s3 + $0x40] sm:$0xf]
  %v1036 = vld [vmem:[%s3 + $0x44] sm:$0xf]
  %v1037 = vld [vmem:[%s3 + $0x48] sm:$0xf]
  %v1038 = vld [vmem:[%s3 + $0x4c] sm:$0xf]
  %v1039 = vld [vmem:[%s3 + $0x50] sm:$0xf]
  %v1040 = vld [vmem:[%s3 + $0x54] sm:$0xf]
  %v1041 = vld [vmem:[%s3 + $0x58] sm:$0xf]
  %v1042 = vld [vmem:[%s3 + $0x5c] sm:$0xf]
  %v1043 = vld [vmem:[%s3 + $0x60] sm:$0xf]
  %v1044 = vld [vmem:[%s3 + $0x64] sm:$0xf]
  %v1045 = vld [vmem:[%s3 + $0x68] sm:$0xf]
  %v1046 = vld [vmem:[%s3 + $0x6c] sm:$0xf]
  %v1047 = vld [vmem:[%s3 + $0x70] sm:$0xf]
  %v1048 = vld [vmem:[%s3 + $0x74] sm:$0xf]
  %v1049 = vld [vmem:[%s3 + $0x78] sm:$0xf]
  %v1050 = vld [vmem:[%s3 + $0x7c] sm:$0xf]
  %v1051 = vld [vmem:[%s3 + $0x80] sm:$0xf]
  %v1052 = vld [vmem:[%s3 + $0x84] sm:$0xf]
  %v1053 = vld [vmem:[%s3 + $0x88] sm:$0xf]
  %v1054 = vld [vmem:[%s3 + $0x8c] sm:$0xf]
  %v1055 = vld [vmem:[%s3 + $0x90] sm:$0xf]
  %v1056 = vld [vmem:[%s3 + $0x94] sm:$0xf]
  %v1057 = vld [vmem:[%s3 + $0x98] sm:$0xf]
  %v1058 = vld [vmem:[%s3 + $0x9c] sm:$0xf]
  %v1059 = vld [vmem:[%s3 + $0xa0] sm:$0xf]
  %v1060 = vld [vmem:[%s3 + $0xa4] sm:$0xf]
  %v1061 = vld [vmem:[%s3 + $0xa8] sm:$0xf]
  %v1062 = vld [vmem:[%s3 + $0xac] sm:$0xf]
  %v1063 = vld [vmem:[%s3 + $0xb0] sm:$0xf]
  %v1064 = vld [vmem:[%s3 + $0xb4] sm:$0xf]
  %v1065 = vld [vmem:[%s3 + $0xb8] sm:$0xf]
  %v1066 = vld [vmem:[%s3 + $0xbc] sm:$0xf]
  %v1067 = vld [vmem:[%s3 + $0xc0] sm:$0xf]
  %v1068 = vld [vmem:[%s3 + $0xc4] sm:$0xf]
  %v1069 = vld [vmem:[%s3 + $0xc8] sm:$0xf]
  %v1070 = vld [vmem:[%s3 + $0xcc] sm:$0xf]
  %v1071 = vld [vmem:[%s3 + $0xd0] sm:$0xf]
  %v1072 = vld [vmem:[%s3 + $0xd4] sm:$0xf]
  %v1073 = vld [vmem:[%s3 + $0xd8] sm:$0xf]
  %v1074 = vld [vmem:[%s3 + $0xdc] sm:$0xf]
  %v1075 = vld [vmem:[%s3 + $0xe0] sm:$0xf]
  %v1076 = vld [vmem:[%s3 + $0xe4] sm:$0xf]
  %v1077 = vld [vmem:[%s3 + $0xe8] sm:$0xf]
  %v1078 = vld [vmem:[%s3 + $0xec] sm:$0xf]
  %v1079 = vld [vmem:[%s3 + $0xf0] sm:$0xf]
  %v1080 = vld [vmem:[%s3 + $0xf4] sm:$0xf]
  %v1081 = vld [vmem:[%s3 + $0xf8] sm:$0xf]
  %v1082 = vld [vmem:[%s3 + $0xfc] sm:$0xf]
  %v1083 = vld [vmem:[%s4] sm:$0x1]
  %v1085 = vlaneseq
  %v1086 = vshrl.u32 %v1085, 7
  %v1087 = vsub.s32 0, %v1086
  %v1088 = vrot.slane %v1083, %v1087
  %v1154 = vunpack.c.l.b16 %v1019
  %v1155 = vunpack.c.l.b16 %v1020
  %v1156 = vunpack.c.l.b16 %v1021
  %v1157 = vunpack.c.l.b16 %v1022
  %v1158 = vunpack.c.l.b16 %v1023
  %v1159 = vunpack.c.l.b16 %v1024
  %v1160 = vunpack.c.l.b16 %v1025
  %v1161 = vunpack.c.l.b16 %v1026
  %v1162 = vunpack.c.l.b16 %v1027
  %v1163 = vunpack.c.l.b16 %v1028
  %v1164 = vunpack.c.l.b16 %v1029
  %v1165 = vunpack.c.l.b16 %v1030
  %v1166 = vunpack.c.l.b16 %v1031
  %v1167 = vunpack.c.l.b16 %v1032
  %v1168 = vunpack.c.l.b16 %v1033
  %v1169 = vunpack.c.l.b16 %v1034
  %v1170 = vunpack.c.l.b16 %v1035
  %v1171 = vunpack.c.l.b16 %v1036
  %v1172 = vunpack.c.l.b16 %v1037
  %v1173 = vunpack.c.l.b16 %v1038
  %v1174 = vunpack.c.l.b16 %v1039
  %v1175 = vunpack.c.l.b16 %v1040
  %v1176 = vunpack.c.l.b16 %v1041
  %v1177 = vunpack.c.l.b16 %v1042
  %v1178 = vunpack.c.l.b16 %v1043
  %v1179 = vunpack.c.l.b16 %v1044
  %v1180 = vunpack.c.l.b16 %v1045
  %v1181 = vunpack.c.l.b16 %v1046
  %v1182 = vunpack.c.l.b16 %v1047
  %v1183 = vunpack.c.l.b16 %v1048
  %v1184 = vunpack.c.l.b16 %v1049
  %v1185 = vunpack.c.l.b16 %v1050
  %v1186 = vunpack.c.l.b16 %v1051
  %v1187 = vunpack.c.l.b16 %v1052
  %v1188 = vunpack.c.l.b16 %v1053
  %v1189 = vunpack.c.l.b16 %v1054
  %v1190 = vunpack.c.l.b16 %v1055
  %v1191 = vunpack.c.l.b16 %v1056
  %v1192 = vunpack.c.l.b16 %v1057
  %v1193 = vunpack.c.l.b16 %v1058
  %v1194 = vunpack.c.l.b16 %v1059
  %v1195 = vunpack.c.l.b16 %v1060
  %v1196 = vunpack.c.l.b16 %v1061
  %v1197 = vunpack.c.l.b16 %v1062
  %v1198 = vunpack.c.l.b16 %v1063
  %v1199 = vunpack.c.l.b16 %v1064
  %v1200 = vunpack.c.l.b16 %v1065
  %v1201 = vunpack.c.l.b16 %v1066
  %v1202 = vunpack.c.l.b16 %v1067
  %v1203 = vunpack.c.l.b16 %v1068
  %v1204 = vunpack.c.l.b16 %v1069
  %v1205 = vunpack.c.l.b16 %v1070
  %v1206 = vunpack.c.l.b16 %v1071
  %v1207 = vunpack.c.l.b16 %v1072
  %v1208 = vunpack.c.l.b16 %v1073
  %v1209 = vunpack.c.l.b16 %v1074
  %v1210 = vunpack.c.l.b16 %v1075
  %v1211 = vunpack.c.l.b16 %v1076
  %v1212 = vunpack.c.l.b16 %v1077
  %v1213 = vunpack.c.l.b16 %v1078
  %v1214 = vunpack.c.l.b16 %v1079
  %v1215 = vunpack.c.l.b16 %v1080
  %v1216 = vunpack.c.l.b16 %v1081
  %v1217 = vunpack.c.l.b16 %v1082
  %v1218 = vpack.c.b16 %v1155, %v1154
  %v1219 = vpack.c.b16 %v1157, %v1156
  %v1220 = vpack.c.b16 %v1159, %v1158
  %v1221 = vpack.c.b16 %v1161, %v1160
  %v1222 = vpack.c.b16 %v1163, %v1162
  %v1223 = vpack.c.b16 %v1165, %v1164
  %v1224 = vpack.c.b16 %v1167, %v1166
  %v1225 = vpack.c.b16 %v1169, %v1168
  %v1226 = vpack.c.b16 %v1171, %v1170
  %v1227 = vpack.c.b16 %v1173, %v1172
  %v1228 = vpack.c.b16 %v1175, %v1174
  %v1229 = vpack.c.b16 %v1177, %v1176
  %v1230 = vpack.c.b16 %v1179, %v1178
  %v1231 = vpack.c.b16 %v1181, %v1180
  %v1232 = vpack.c.b16 %v1183, %v1182
  %v1233 = vpack.c.b16 %v1185, %v1184
  %v1234 = vpack.c.b16 %v1187, %v1186
  %v1235 = vpack.c.b16 %v1189, %v1188
  %v1236 = vpack.c.b16 %v1191, %v1190
  %v1237 = vpack.c.b16 %v1193, %v1192
  %v1238 = vpack.c.b16 %v1195, %v1194
  %v1239 = vpack.c.b16 %v1197, %v1196
  %v1240 = vpack.c.b16 %v1199, %v1198
  %v1241 = vpack.c.b16 %v1201, %v1200
  %v1242 = vpack.c.b16 %v1203, %v1202
  %v1243 = vpack.c.b16 %v1205, %v1204
  %v1244 = vpack.c.b16 %v1207, %v1206
  %v1245 = vpack.c.b16 %v1209, %v1208
  %v1246 = vpack.c.b16 %v1211, %v1210
  %v1247 = vpack.c.b16 %v1213, %v1212
  %v1248 = vpack.c.b16 %v1215, %v1214
  %v1249 = vpack.c.b16 %v1217, %v1216
  %1282 = vmatprep.subr.bf16.mxu0 0
  %1283 = vmatpush1.bf16.msra.mxu0 %v1225
  %1284 = vmatprep.subr.bf16.mxu0 0
  %1285 = vmatpush1.bf16.msra.mxu0 %v1224
  %1286 = vmatprep.subr.bf16.mxu0 0
  %1287 = vmatpush1.bf16.msra.mxu0 %v1223
  %1288 = vmatprep.subr.bf16.mxu0 0
  %1289 = vmatpush1.bf16.msra.mxu0 %v1222
  %1290 = vmatprep.subr.bf16.mxu0 0
  %1291 = vmatpush1.bf16.msra.mxu0 %v1221
  %1292 = vmatprep.subr.bf16.mxu0 0
  %1293 = vmatpush1.bf16.msra.mxu0 %v1220
  %1294 = vmatprep.subr.bf16.mxu0 0
  %1295 = vmatpush1.bf16.msra.mxu0 %v1219
  %1296 = vmatprep.subr.bf16.mxu0 0
  %1297 = vmatpush1.bf16.msra.mxu0 %v1218
  %1298 = vmatprep.subr.bf16.mxu0 0
  %1299 = vmatpush2.bf16.msra.mxu0 %v1233
  %1300 = vmatprep.subr.bf16.mxu0 0
  %1301 = vmatpush2.bf16.msra.mxu0 %v1232
  %1302 = vmatprep.subr.bf16.mxu0 0
  %1303 = vmatpush2.bf16.msra.mxu0 %v1231
  %1304 = vmatprep.subr.bf16.mxu0 0
  %1305 = vmatpush2.bf16.msra.mxu0 %v1230
  %1306 = vmatprep.subr.bf16.mxu0 0
  %1307 = vmatpush2.bf16.msra.mxu0 %v1229
  %1308 = vmatprep.subr.bf16.mxu0 0
  %1309 = vmatpush2.bf16.msra.mxu0 %v1228
  %1310 = vmatprep.subr.bf16.mxu0 0
  %1311 = vmatpush2.bf16.msra.mxu0 %v1227
  %1312 = vmatprep.subr.bf16.mxu0 0
  %1313 = vmatpush2.bf16.msra.mxu0 %v1226
  %1314 = vmatprep.mubr.bf16.mxu0 %v1016
  %1315 = vmatmul.mubr.bf16.gmra.mxu0 %v1015
  %v1316 = vpop.f32.mrf.mxu0
  %v1317 = vadd.f32 %v1088, %v1316
  %v1318 = vpop.f32.mrf.mxu0
  %v1319 = vpop.f32.mrf.mxu0
  %v1320 = vadd.f32 %v1088, %v1319
  %v1321 = vpop.f32.mrf.mxu0
  %1322 = vdwg.mxu0
  %1323 = vmatprep.subr.bf16.mxu0 0
  %1324 = vmatpush1.bf16.msra.mxu0 %v1241
  %1325 = vmatprep.subr.bf16.mxu0 0
  %1326 = vmatpush1.bf16.msra.mxu0 %v1240
  %1327 = vmatprep.subr.bf16.mxu0 0
  %1328 = vmatpush1.bf16.msra.mxu0 %v1239
  %1329 = vmatprep.subr.bf16.mxu0 0
  %1330 = vmatpush1.bf16.msra.mxu0 %v1238
  %1331 = vmatprep.subr.bf16.mxu0 0
  %1332 = vmatpush1.bf16.msra.mxu0 %v1237
  %1333 = vmatprep.subr.bf16.mxu0 0
  %1334 = vmatpush1.bf16.msra.mxu0 %v1236
  %1335 = vmatprep.subr.bf16.mxu0 0
  %1336 = vmatpush1.bf16.msra.mxu0 %v1235
  %1337 = vmatprep.subr.bf16.mxu0 0
  %1338 = vmatpush1.bf16.msra.mxu0 %v1234
  %1339 = vmatprep.subr.bf16.mxu0 0
  %1340 = vmatpush2.bf16.msra.mxu0 %v1249
  %1341 = vmatprep.subr.bf16.mxu0 0
  %1342 = vmatpush2.bf16.msra.mxu0 %v1248
  %1343 = vmatprep.subr.bf16.mxu0 0
  %1344 = vmatpush2.bf16.msra.mxu0 %v1247
  %1345 = vmatprep.subr.bf16.mxu0 0
  %1346 = vmatpush2.bf16.msra.mxu0 %v1246
  %1347 = vmatprep.subr.bf16.mxu0 0
  %1348 = vmatpush2.bf16.msra.mxu0 %v1245
  %1349 = vmatprep.subr.bf16.mxu0 0
  %1350 = vmatpush2.bf16.msra.mxu0 %v1244
  %1351 = vmatprep.subr.bf16.mxu0 0
  %1352 = vmatpush2.bf16.msra.mxu0 %v1243
  %1353 = vmatprep.subr.bf16.mxu0 0
  %1354 = vmatpush2.bf16.msra.mxu0 %v1242
  %1355 = vmatprep.mubr.bf16.mxu0 %v1018
  %1356 = vmatmul.mubr.bf16.gmra.mxu0 %v1017
  %v1357 = vpop.f32.mrf.mxu0
  %v1358 = vadd.f32 %v1317, %v1357
  %v1359 = vpop.f32.mrf.mxu0
  %v1360 = vpop.f32.mrf.mxu0
  %v1361 = vadd.f32 %v1320, %v1360
  %v1362 = vpop.f32.mrf.mxu0
  %1363 = vdwg.mxu0
  %vm1364 = vcmask 15360
  %v1365 = vsel %vm1364, %v1358, -inf
  %1366 = vmax.xlane.f32.xlu0 %v1365
  %v1367 = vpop.xlane.xlu0 %1366
  %v1368 = vsel %vm1364, %v1361, -inf
  %1369 = vmax.xlane.f32.xlu0 %v1368
  %v1370 = vpop.xlane.xlu0 %1369
  %v1371 = vsub.f32 %v1358, %v1367
  %v1372 = vsub.f32 %v1361, %v1370
  %v1373 = vmul.f32 %v1371, 1.442695
  %v1374 = vpow.pop %v1373
  %v1375 = vmul.f32 %v1372, 1.442695
  %v1376 = vpow.pop %v1375
  %v1377 = vsel %vm1364, %v1374, 0.0
  %1378 = vadd.xlane.f32.xlu0 %v1377
  %v1379 = vpop.xlane.xlu0 %1378
  %v1380 = vsel %vm1364, %v1376, 0.0
  %1381 = vadd.xlane.f32.xlu0 %v1380
  %v1382 = vpop.xlane.xlu0 %1381
  %v1383 = vrcp.pop %v1379
  %v1384 = vmul.f32 %v1374, %v1383
  %v1385 = vrcp.pop %v1382
  %v1386 = vmul.f32 %v1376, %v1385
  %1387 = vst.msk [vmem:[%s5] sm:$0xff] %vm1364, %v1384
  %1388 = vst.msk [vmem:[%s5 + $0x8] sm:$0xff] %vm1364, %v1386
  // Predicated region
  $region22: #{net_forward.7} parent=0 // pred_check
    _
  $region23: #{net_forward.7} parent=0 // pred_check_branch
    %1390 = sbr.rel (0) target = $region25
  $region24: #{net_forward.7} parent=0 // pred_region
    _
  $region25: #{net_forward.7} parent=0 // pred_fallthru
    _
  // Predicated region
  $region26: #{net_forward.7} parent=0 // pred_check
    _
  $region27: #{net_forward.7} parent=0 // pred_check_branch
    %1392 = sbr.rel (0) target = $region29
  $region28: #{net_forward.7} parent=0 // pred_region
    _
  $region29: #{net_forward.7} parent=0 // pred_fallthru
    _

</llo_original>
